<compile_context>
chip_gen: v6e
topology: v6e:2x2x1
jax: 0.10.0
libtpu: 0.0.40
codegen_flags: <defaults>
</compile_context>

<pallas_src>
import functools

import jax
import jax.numpy as jnp
from jax import lax
from jax.experimental import pallas as pl
from jax.experimental.pallas import tpu as pltpu


def _mixed_op_kernel(Wp, xf_ref, w_ref, s_ref, o_ref):
    """One grid step = one zero-padded, spatially-flattened image.

    xf_ref : (Hp*Wp + 4, Cin)   bf16  flattened padded image (+4 tail rows)
    w_ref  : (25, Cin, 3*Cout)  bf16  [w1 | w3 | w5] embedded on the 5x5 taps
    s_ref  : (1, 3*Cout)        f32   per-column scale = alphas_normal[i]*mask
    o_ref  : (H*Wp, Cout)       f32   (columns w >= W are junk, sliced off by caller)
    """
    L, C = o_ref.shape
    n_taps = w_ref.shape[0]                      # 25

    acc = None
    for tap in range(n_taps):
        dy, dx = divmod(tap, 5)
        off = dy * Wp + dx                       # static shift of the flattened image
        contrib = jnp.dot(xf_ref[off:off + L, :], w_ref[tap],
                          preferred_element_type=jnp.float32)
        acc = contrib if acc is None else acc + contrib   # init from first term

    # ReLU, then (alphas_normal[i] * channel-mask) per column — exact module order.
    act = jnp.maximum(acc, 0.0) * s_ref[...]               # (L, 3*Cout)
    o_ref[...] = act[:, :C] + act[:, C:2 * C] + act[:, 2 * C:]


def make_channel_masks(out_channels, channel_scale_factor):
    """Row i: first channel_scale_factor*(i+1) channels are 1, rest 0."""
    n_masks = out_channels // channel_scale_factor
    idx = jnp.arange(out_channels)[None, :]
    thresh = (channel_scale_factor * (jnp.arange(n_masks) + 1))[:, None]
    return (idx < thresh).astype(jnp.float32)               # (n_masks, out_channels)


def _combined_weight(weights, Cin, Cout):
    """Zero-embed the 1x1/3x3 kernels on the 5x5 tap grid, concat over Cout."""
    wc = jnp.zeros((5, 5, Cin, 3 * Cout), jnp.float32)
    wc = wc.at[2:3, 2:3, :, 0:Cout].set(weights[1])          # 1x1 at the center tap
    wc = wc.at[1:4, 1:4, :, Cout:2 * Cout].set(weights[3])   # 3x3 on the inner taps
    wc = wc.at[:, :, :, 2 * Cout:].set(weights[5])           # 5x5 everywhere
    return wc.reshape(25, Cin, 3 * Cout)


def mixed_op_forward(x, weights, alphas_normal, alphas_channels, channel_masks):
    """x: (N, H, W, Cin) NHWC.  weights: {k: (k, k, Cin, Cout) HWIO for k in 1,3,5}."""
    N, H, W, Cin = x.shape
    Cout = weights[1].shape[-1]
    Hp, Wp = H + 4, W + 4            # 'same' padding of the 5x5 support
    L = H * Wp                       # rows computed per image (incl. Wp-W junk cols)
    Lp = Hp * Wp + 4                 # flattened input rows (+4 so every tap slice fits)

    # --- layout-only glue in plain JAX (no patch duplication) ---
    xp = jnp.pad(x, ((0, 0), (2, 2), (2, 2), (0, 0)))
    xf = jnp.pad(xp.reshape(N, Hp * Wp, Cin), ((0, 0), (0, 4), (0, 0)))
    xf = xf.astype(jnp.bfloat16)
    wc = _combined_weight(weights, Cin, Cout).astype(jnp.bfloat16)

    # Fold channel mask and op-mixing alphas into one per-column scale (applied
    # after the ReLU inside the kernel -> identical to the module's semantics).
    m = jnp.dot(alphas_channels.astype(jnp.float32).reshape(1, -1),
                channel_masks.astype(jnp.float32))                    # (1, Cout)
    an = alphas_normal.astype(jnp.float32).reshape(-1)                # (3,)
    s = jnp.concatenate([an[0] * m, an[1] * m, an[2] * m], axis=-1)   # (1, 3*Cout)

    # Generation-aware VMEM budget: default scoped limits (16/32 MiB) are far
    # below physical VMEM (128 MiB v5e/v6e, 64 MiB v7x); raise the limit but
    # stay well inside the smallest physical VMEM of any generation.
    try:
        vmem_cap = pltpu.get_tpu_info().vmem_capacity_bytes
    except Exception:
        vmem_cap = 64 * 1024 * 1024
    vmem_limit = int(min(3 * vmem_cap // 4, 96 * 1024 * 1024))

    kernel = functools.partial(_mixed_op_kernel, Wp)
    out = pl.pallas_call(
        kernel,
        out_shape=jax.ShapeDtypeStruct((N, L, Cout), jnp.float32),
        grid=(N,),
        in_specs=[
            pl.BlockSpec((None, Lp, Cin), lambda n: (n, 0, 0)),        # streamed per image
            pl.BlockSpec((25, Cin, 3 * Cout), lambda n: (0, 0, 0)),    # resident weights
            pl.BlockSpec((1, 3 * Cout), lambda n: (0, 0)),             # resident scale
        ],
        out_specs=pl.BlockSpec((None, L, Cout), lambda n: (n, 0, 0)),
        compiler_params=pltpu.CompilerParams(
            dimension_semantics=("parallel",),     # shards images over both TCs on v7x
            vmem_limit_bytes=vmem_limit),
    )(xf, wc, s)

    # Drop the (Wp - W) junk columns introduced by the flattened-shift formulation.
    return out.reshape(N, H, Wp, Cout)[:, :, :W, :]


def reference_forward(x, weights, alphas_normal, alphas_channels, channel_masks):
    """Pure-JAX f32 reference of MixedOp.forward (NHWC)."""
    m = jnp.sum(alphas_channels.reshape(-1, 1) * channel_masks, axis=0)
    m = m.reshape(1, 1, 1, -1)
    out = jnp.zeros(x.shape[:3] + (weights[1].shape[-1],), jnp.float32)
    for i, k in enumerate((1, 3, 5)):
        conv = lax.conv_general_dilated(
            x, weights[k], window_strides=(1, 1), padding='SAME',
            dimension_numbers=('NHWC', 'HWIO', 'NHWC'))
        out = out + alphas_normal[0, i] * (m * jnp.maximum(conv, 0.0))
    return out


if __name__ == "__main__":
    N, H, W = 2, 16, 16
    Cin, Cout, csf = 4, 8, 2

    key = jax.random.PRNGKey(0)
    kx, k1, k3, k5, ka, kc = jax.random.split(key, 6)
    x = jax.random.normal(kx, (N, H, W, Cin), jnp.float32)
    weights = {
        1: 0.1 * jax.random.normal(k1, (1, 1, Cin, Cout), jnp.float32),
        3: 0.1 * jax.random.normal(k3, (3, 3, Cin, Cout), jnp.float32),
        5: 0.1 * jax.random.normal(k5, (5, 5, Cin, Cout), jnp.float32),
    }
    alphas_normal = jax.nn.softmax(
        jax.random.normal(ka, (1, 3), jnp.float32), axis=-1)
    alphas_channels = jax.nn.softmax(
        jax.random.normal(kc, (Cout // csf,), jnp.float32))
    channel_masks = make_channel_masks(Cout, csf)

    out = mixed_op_forward(x, weights, alphas_normal, alphas_channels,
                           channel_masks)
    out = jax.block_until_ready(out)

    ref = reference_forward(x, weights, alphas_normal, alphas_channels,
                            channel_masks)
    assert out.shape == (N, H, W, Cout), out.shape
    err = float(jnp.max(jnp.abs(out - ref)))
    # bf16 operands on the MXU (f32 accumulation) vs an all-f32 reference.
    assert jnp.allclose(out, ref, atol=5e-2, rtol=5e-2), err
    print("KERNEL_OK")
</pallas_src>

<mosaic_0001>
module attributes {stable_mosaic.version = 11 : i64} {
  func.func @_mixed_op_kernel(%arg0: i32, %arg1: memref<1x404x4xbf16, #tpu.memory_space<vmem>>, %arg2: memref<25x4x24xbf16, #tpu.memory_space<vmem>>, %arg3: memref<1x24xf32, #tpu.memory_space<vmem>>, %arg4: memref<1x320x8xf32, #tpu.memory_space<vmem>>) attributes {dimension_semantics = [#tpu.dimension_semantics<parallel>], iteration_bounds = array<i64: 2>, scalar_prefetch = 0 : i64, scratch_operands = 0 : i64, tpu.core_type = #tpu.core_type<tc>, window_params = [{transform_indices = @transform_0, window_bounds = array<i64: 1, 404, 4>}, {pipeline_mode = #tpu.pipeline_mode<synchronous>, transform_indices = @transform_1, window_bounds = array<i64: 25, 4, 24>}, {pipeline_mode = #tpu.pipeline_mode<synchronous>, transform_indices = @transform_2, window_bounds = array<i64: 1, 24>}, {transform_indices = @transform_3, window_bounds = array<i64: 1, 320, 8>}]} {
    %c0 = arith.constant 0 : index
    %c0_0 = arith.constant 0 : index
    %c0_1 = arith.constant 0 : index
    %0 = vector.load %arg1[%c0, %c0_0, %c0_1] : memref<1x404x4xbf16, #tpu.memory_space<vmem>>, vector<1x320x4xbf16>
    %1 = vector.shape_cast %0 : vector<1x320x4xbf16> to vector<320x4xbf16>
    %c0_2 = arith.constant 0 : index
    %c0_3 = arith.constant 0 : index
    %c0_4 = arith.constant 0 : index
    %2 = vector.load %arg2[%c0_2, %c0_3, %c0_4] : memref<25x4x24xbf16, #tpu.memory_space<vmem>>, vector<1x4x24xbf16>
    %3 = vector.shape_cast %2 : vector<1x4x24xbf16> to vector<4x24xbf16>
    %cst = arith.constant dense<0.000000e+00> : vector<320x24xf32>
    %4 = tpu.matmul %1, %3, %cst {dimension_numbers = #tpu.dot_dimension_numbers<[1], [0], [0], [1], [0, 0, 1, 1], [], []>} : vector<320x4xbf16>, vector<4x24xbf16>, vector<320x24xf32> -> vector<320x24xf32>
    %c0_5 = arith.constant 0 : index
    %c1 = arith.constant 1 : index
    %c0_6 = arith.constant 0 : index
    %5 = vector.load %arg1[%c0_5, %c1, %c0_6] : memref<1x404x4xbf16, #tpu.memory_space<vmem>>, vector<1x320x4xbf16>
    %6 = vector.shape_cast %5 : vector<1x320x4xbf16> to vector<320x4xbf16>
    %c1_7 = arith.constant 1 : index
    %c0_8 = arith.constant 0 : index
    %c0_9 = arith.constant 0 : index
    %7 = vector.load %arg2[%c1_7, %c0_8, %c0_9] : memref<25x4x24xbf16, #tpu.memory_space<vmem>>, vector<1x4x24xbf16>
    %8 = vector.shape_cast %7 : vector<1x4x24xbf16> to vector<4x24xbf16>
    %cst_10 = arith.constant dense<0.000000e+00> : vector<320x24xf32>
    %9 = tpu.matmul %6, %8, %cst_10 {dimension_numbers = #tpu.dot_dimension_numbers<[1], [0], [0], [1], [0, 0, 1, 1], [], []>} : vector<320x4xbf16>, vector<4x24xbf16>, vector<320x24xf32> -> vector<320x24xf32>
    %10 = arith.addf %4, %9 : vector<320x24xf32>
    %c0_11 = arith.constant 0 : index
    %c2 = arith.constant 2 : index
    %c0_12 = arith.constant 0 : index
    %11 = vector.load %arg1[%c0_11, %c2, %c0_12] : memref<1x404x4xbf16, #tpu.memory_space<vmem>>, vector<1x320x4xbf16>
    %12 = vector.shape_cast %11 : vector<1x320x4xbf16> to vector<320x4xbf16>
    %c2_13 = arith.constant 2 : index
    %c0_14 = arith.constant 0 : index
    %c0_15 = arith.constant 0 : index
    %13 = vector.load %arg2[%c2_13, %c0_14, %c0_15] : memref<25x4x24xbf16, #tpu.memory_space<vmem>>, vector<1x4x24xbf16>
    %14 = vector.shape_cast %13 : vector<1x4x24xbf16> to vector<4x24xbf16>
    %cst_16 = arith.constant dense<0.000000e+00> : vector<320x24xf32>
    %15 = tpu.matmul %12, %14, %cst_16 {dimension_numbers = #tpu.dot_dimension_numbers<[1], [0], [0], [1], [0, 0, 1, 1], [], []>} : vector<320x4xbf16>, vector<4x24xbf16>, vector<320x24xf32> -> vector<320x24xf32>
    %16 = arith.addf %10, %15 : vector<320x24xf32>
    %c0_17 = arith.constant 0 : index
    %c3 = arith.constant 3 : index
    %c0_18 = arith.constant 0 : index
    %17 = vector.load %arg1[%c0_17, %c3, %c0_18] : memref<1x404x4xbf16, #tpu.memory_space<vmem>>, vector<1x320x4xbf16>
    %18 = vector.shape_cast %17 : vector<1x320x4xbf16> to vector<320x4xbf16>
    %c3_19 = arith.constant 3 : index
    %c0_20 = arith.constant 0 : index
    %c0_21 = arith.constant 0 : index
    %19 = vector.load %arg2[%c3_19, %c0_20, %c0_21] : memref<25x4x24xbf16, #tpu.memory_space<vmem>>, vector<1x4x24xbf16>
    %20 = vector.shape_cast %19 : vector<1x4x24xbf16> to vector<4x24xbf16>
    %cst_22 = arith.constant dense<0.000000e+00> : vector<320x24xf32>
    %21 = tpu.matmul %18, %20, %cst_22 {dimension_numbers = #tpu.dot_dimension_numbers<[1], [0], [0], [1], [0, 0, 1, 1], [], []>} : vector<320x4xbf16>, vector<4x24xbf16>, vector<320x24xf32> -> vector<320x24xf32>
    %22 = arith.addf %16, %21 : vector<320x24xf32>
    %c0_23 = arith.constant 0 : index
    %c4 = arith.constant 4 : index
    %c0_24 = arith.constant 0 : index
    %23 = vector.load %arg1[%c0_23, %c4, %c0_24] : memref<1x404x4xbf16, #tpu.memory_space<vmem>>, vector<1x320x4xbf16>
    %24 = vector.shape_cast %23 : vector<1x320x4xbf16> to vector<320x4xbf16>
    %c4_25 = arith.constant 4 : index
    %c0_26 = arith.constant 0 : index
    %c0_27 = arith.constant 0 : index
    %25 = vector.load %arg2[%c4_25, %c0_26, %c0_27] : memref<25x4x24xbf16, #tpu.memory_space<vmem>>, vector<1x4x24xbf16>
    %26 = vector.shape_cast %25 : vector<1x4x24xbf16> to vector<4x24xbf16>
    %cst_28 = arith.constant dense<0.000000e+00> : vector<320x24xf32>
    %27 = tpu.matmul %24, %26, %cst_28 {dimension_numbers = #tpu.dot_dimension_numbers<[1], [0], [0], [1], [0, 0, 1, 1], [], []>} : vector<320x4xbf16>, vector<4x24xbf16>, vector<320x24xf32> -> vector<320x24xf32>
    %28 = arith.addf %22, %27 : vector<320x24xf32>
    %c0_29 = arith.constant 0 : index
    %c20 = arith.constant 20 : index
    %c0_30 = arith.constant 0 : index
    %29 = vector.load %arg1[%c0_29, %c20, %c0_30] : memref<1x404x4xbf16, #tpu.memory_space<vmem>>, vector<1x320x4xbf16>
    %30 = vector.shape_cast %29 : vector<1x320x4xbf16> to vector<320x4xbf16>
    %c5 = arith.constant 5 : index
    %c0_31 = arith.constant 0 : index
    %c0_32 = arith.constant 0 : index
    %31 = vector.load %arg2[%c5, %c0_31, %c0_32] : memref<25x4x24xbf16, #tpu.memory_space<vmem>>, vector<1x4x24xbf16>
    %32 = vector.shape_cast %31 : vector<1x4x24xbf16> to vector<4x24xbf16>
    %cst_33 = arith.constant dense<0.000000e+00> : vector<320x24xf32>
    %33 = tpu.matmul %30, %32, %cst_33 {dimension_numbers = #tpu.dot_dimension_numbers<[1], [0], [0], [1], [0, 0, 1, 1], [], []>} : vector<320x4xbf16>, vector<4x24xbf16>, vector<320x24xf32> -> vector<320x24xf32>
    %34 = arith.addf %28, %33 : vector<320x24xf32>
    %c0_34 = arith.constant 0 : index
    %c21 = arith.constant 21 : index
    %c0_35 = arith.constant 0 : index
    %35 = vector.load %arg1[%c0_34, %c21, %c0_35] : memref<1x404x4xbf16, #tpu.memory_space<vmem>>, vector<1x320x4xbf16>
    %36 = vector.shape_cast %35 : vector<1x320x4xbf16> to vector<320x4xbf16>
    %c6 = arith.constant 6 : index
    %c0_36 = arith.constant 0 : index
    %c0_37 = arith.constant 0 : index
    %37 = vector.load %arg2[%c6, %c0_36, %c0_37] : memref<25x4x24xbf16, #tpu.memory_space<vmem>>, vector<1x4x24xbf16>
    %38 = vector.shape_cast %37 : vector<1x4x24xbf16> to vector<4x24xbf16>
    %cst_38 = arith.constant dense<0.000000e+00> : vector<320x24xf32>
    %39 = tpu.matmul %36, %38, %cst_38 {dimension_numbers = #tpu.dot_dimension_numbers<[1], [0], [0], [1], [0, 0, 1, 1], [], []>} : vector<320x4xbf16>, vector<4x24xbf16>, vector<320x24xf32> -> vector<320x24xf32>
    %40 = arith.addf %34, %39 : vector<320x24xf32>
    %c0_39 = arith.constant 0 : index
    %c22 = arith.constant 22 : index
    %c0_40 = arith.constant 0 : index
    %41 = vector.load %arg1[%c0_39, %c22, %c0_40] : memref<1x404x4xbf16, #tpu.memory_space<vmem>>, vector<1x320x4xbf16>
    %42 = vector.shape_cast %41 : vector<1x320x4xbf16> to vector<320x4xbf16>
    %c7 = arith.constant 7 : index
    %c0_41 = arith.constant 0 : index
    %c0_42 = arith.constant 0 : index
    %43 = vector.load %arg2[%c7, %c0_41, %c0_42] : memref<25x4x24xbf16, #tpu.memory_space<vmem>>, vector<1x4x24xbf16>
    %44 = vector.shape_cast %43 : vector<1x4x24xbf16> to vector<4x24xbf16>
    %cst_43 = arith.constant dense<0.000000e+00> : vector<320x24xf32>
    %45 = tpu.matmul %42, %44, %cst_43 {dimension_numbers = #tpu.dot_dimension_numbers<[1], [0], [0], [1], [0, 0, 1, 1], [], []>} : vector<320x4xbf16>, vector<4x24xbf16>, vector<320x24xf32> -> vector<320x24xf32>
    %46 = arith.addf %40, %45 : vector<320x24xf32>
    %c0_44 = arith.constant 0 : index
    %c23 = arith.constant 23 : index
    %c0_45 = arith.constant 0 : index
    %47 = vector.load %arg1[%c0_44, %c23, %c0_45] : memref<1x404x4xbf16, #tpu.memory_space<vmem>>, vector<1x320x4xbf16>
    %48 = vector.shape_cast %47 : vector<1x320x4xbf16> to vector<320x4xbf16>
    %c8 = arith.constant 8 : index
    %c0_46 = arith.constant 0 : index
    %c0_47 = arith.constant 0 : index
    %49 = vector.load %arg2[%c8, %c0_46, %c0_47] : memref<25x4x24xbf16, #tpu.memory_space<vmem>>, vector<1x4x24xbf16>
    %50 = vector.shape_cast %49 : vector<1x4x24xbf16> to vector<4x24xbf16>
    %cst_48 = arith.constant dense<0.000000e+00> : vector<320x24xf32>
    %51 = tpu.matmul %48, %50, %cst_48 {dimension_numbers = #tpu.dot_dimension_numbers<[1], [0], [0], [1], [0, 0, 1, 1], [], []>} : vector<320x4xbf16>, vector<4x24xbf16>, vector<320x24xf32> -> vector<320x24xf32>
    %52 = arith.addf %46, %51 : vector<320x24xf32>
    %c0_49 = arith.constant 0 : index
    %c24 = arith.constant 24 : index
    %c0_50 = arith.constant 0 : index
    %53 = vector.load %arg1[%c0_49, %c24, %c0_50] : memref<1x404x4xbf16, #tpu.memory_space<vmem>>, vector<1x320x4xbf16>
    %54 = vector.shape_cast %53 : vector<1x320x4xbf16> to vector<320x4xbf16>
    %c9 = arith.constant 9 : index
    %c0_51 = arith.constant 0 : index
    %c0_52 = arith.constant 0 : index
    %55 = vector.load %arg2[%c9, %c0_51, %c0_52] : memref<25x4x24xbf16, #tpu.memory_space<vmem>>, vector<1x4x24xbf16>
    %56 = vector.shape_cast %55 : vector<1x4x24xbf16> to vector<4x24xbf16>
    %cst_53 = arith.constant dense<0.000000e+00> : vector<320x24xf32>
    %57 = tpu.matmul %54, %56, %cst_53 {dimension_numbers = #tpu.dot_dimension_numbers<[1], [0], [0], [1], [0, 0, 1, 1], [], []>} : vector<320x4xbf16>, vector<4x24xbf16>, vector<320x24xf32> -> vector<320x24xf32>
    %58 = arith.addf %52, %57 : vector<320x24xf32>
    %c0_54 = arith.constant 0 : index
    %c40 = arith.constant 40 : index
    %c0_55 = arith.constant 0 : index
    %59 = vector.load %arg1[%c0_54, %c40, %c0_55] : memref<1x404x4xbf16, #tpu.memory_space<vmem>>, vector<1x320x4xbf16>
    %60 = vector.shape_cast %59 : vector<1x320x4xbf16> to vector<320x4xbf16>
    %c10 = arith.constant 10 : index
    %c0_56 = arith.constant 0 : index
    %c0_57 = arith.constant 0 : index
    %61 = vector.load %arg2[%c10, %c0_56, %c0_57] : memref<25x4x24xbf16, #tpu.memory_space<vmem>>, vector<1x4x24xbf16>
    %62 = vector.shape_cast %61 : vector<1x4x24xbf16> to vector<4x24xbf16>
    %cst_58 = arith.constant dense<0.000000e+00> : vector<320x24xf32>
    %63 = tpu.matmul %60, %62, %cst_58 {dimension_numbers = #tpu.dot_dimension_numbers<[1], [0], [0], [1], [0, 0, 1, 1], [], []>} : vector<320x4xbf16>, vector<4x24xbf16>, vector<320x24xf32> -> vector<320x24xf32>
    %64 = arith.addf %58, %63 : vector<320x24xf32>
    %c0_59 = arith.constant 0 : index
    %c41 = arith.constant 41 : index
    %c0_60 = arith.constant 0 : index
    %65 = vector.load %arg1[%c0_59, %c41, %c0_60] : memref<1x404x4xbf16, #tpu.memory_space<vmem>>, vector<1x320x4xbf16>
    %66 = vector.shape_cast %65 : vector<1x320x4xbf16> to vector<320x4xbf16>
    %c11 = arith.constant 11 : index
    %c0_61 = arith.constant 0 : index
    %c0_62 = arith.constant 0 : index
    %67 = vector.load %arg2[%c11, %c0_61, %c0_62] : memref<25x4x24xbf16, #tpu.memory_space<vmem>>, vector<1x4x24xbf16>
    %68 = vector.shape_cast %67 : vector<1x4x24xbf16> to vector<4x24xbf16>
    %cst_63 = arith.constant dense<0.000000e+00> : vector<320x24xf32>
    %69 = tpu.matmul %66, %68, %cst_63 {dimension_numbers = #tpu.dot_dimension_numbers<[1], [0], [0], [1], [0, 0, 1, 1], [], []>} : vector<320x4xbf16>, vector<4x24xbf16>, vector<320x24xf32> -> vector<320x24xf32>
    %70 = arith.addf %64, %69 : vector<320x24xf32>
    %c0_64 = arith.constant 0 : index
    %c42 = arith.constant 42 : index
    %c0_65 = arith.constant 0 : index
    %71 = vector.load %arg1[%c0_64, %c42, %c0_65] : memref<1x404x4xbf16, #tpu.memory_space<vmem>>, vector<1x320x4xbf16>
    %72 = vector.shape_cast %71 : vector<1x320x4xbf16> to vector<320x4xbf16>
    %c12 = arith.constant 12 : index
    %c0_66 = arith.constant 0 : index
    %c0_67 = arith.constant 0 : index
    %73 = vector.load %arg2[%c12, %c0_66, %c0_67] : memref<25x4x24xbf16, #tpu.memory_space<vmem>>, vector<1x4x24xbf16>
    %74 = vector.shape_cast %73 : vector<1x4x24xbf16> to vector<4x24xbf16>
    %cst_68 = arith.constant dense<0.000000e+00> : vector<320x24xf32>
    %75 = tpu.matmul %72, %74, %cst_68 {dimension_numbers = #tpu.dot_dimension_numbers<[1], [0], [0], [1], [0, 0, 1, 1], [], []>} : vector<320x4xbf16>, vector<4x24xbf16>, vector<320x24xf32> -> vector<320x24xf32>
    %76 = arith.addf %70, %75 : vector<320x24xf32>
    %c0_69 = arith.constant 0 : index
    %c43 = arith.constant 43 : index
    %c0_70 = arith.constant 0 : index
    %77 = vector.load %arg1[%c0_69, %c43, %c0_70] : memref<1x404x4xbf16, #tpu.memory_space<vmem>>, vector<1x320x4xbf16>
    %78 = vector.shape_cast %77 : vector<1x320x4xbf16> to vector<320x4xbf16>
    %c13 = arith.constant 13 : index
    %c0_71 = arith.constant 0 : index
    %c0_72 = arith.constant 0 : index
    %79 = vector.load %arg2[%c13, %c0_71, %c0_72] : memref<25x4x24xbf16, #tpu.memory_space<vmem>>, vector<1x4x24xbf16>
    %80 = vector.shape_cast %79 : vector<1x4x24xbf16> to vector<4x24xbf16>
    %cst_73 = arith.constant dense<0.000000e+00> : vector<320x24xf32>
    %81 = tpu.matmul %78, %80, %cst_73 {dimension_numbers = #tpu.dot_dimension_numbers<[1], [0], [0], [1], [0, 0, 1, 1], [], []>} : vector<320x4xbf16>, vector<4x24xbf16>, vector<320x24xf32> -> vector<320x24xf32>
    %82 = arith.addf %76, %81 : vector<320x24xf32>
    %c0_74 = arith.constant 0 : index
    %c44 = arith.constant 44 : index
    %c0_75 = arith.constant 0 : index
    %83 = vector.load %arg1[%c0_74, %c44, %c0_75] : memref<1x404x4xbf16, #tpu.memory_space<vmem>>, vector<1x320x4xbf16>
    %84 = vector.shape_cast %83 : vector<1x320x4xbf16> to vector<320x4xbf16>
    %c14 = arith.constant 14 : index
    %c0_76 = arith.constant 0 : index
    %c0_77 = arith.constant 0 : index
    %85 = vector.load %arg2[%c14, %c0_76, %c0_77] : memref<25x4x24xbf16, #tpu.memory_space<vmem>>, vector<1x4x24xbf16>
    %86 = vector.shape_cast %85 : vector<1x4x24xbf16> to vector<4x24xbf16>
    %cst_78 = arith.constant dense<0.000000e+00> : vector<320x24xf32>
    %87 = tpu.matmul %84, %86, %cst_78 {dimension_numbers = #tpu.dot_dimension_numbers<[1], [0], [0], [1], [0, 0, 1, 1], [], []>} : vector<320x4xbf16>, vector<4x24xbf16>, vector<320x24xf32> -> vector<320x24xf32>
    %88 = arith.addf %82, %87 : vector<320x24xf32>
    %c0_79 = arith.constant 0 : index
    %c60 = arith.constant 60 : index
    %c0_80 = arith.constant 0 : index
    %89 = vector.load %arg1[%c0_79, %c60, %c0_80] : memref<1x404x4xbf16, #tpu.memory_space<vmem>>, vector<1x320x4xbf16>
    %90 = vector.shape_cast %89 : vector<1x320x4xbf16> to vector<320x4xbf16>
    %c15 = arith.constant 15 : index
    %c0_81 = arith.constant 0 : index
    %c0_82 = arith.constant 0 : index
    %91 = vector.load %arg2[%c15, %c0_81, %c0_82] : memref<25x4x24xbf16, #tpu.memory_space<vmem>>, vector<1x4x24xbf16>
    %92 = vector.shape_cast %91 : vector<1x4x24xbf16> to vector<4x24xbf16>
    %cst_83 = arith.constant dense<0.000000e+00> : vector<320x24xf32>
    %93 = tpu.matmul %90, %92, %cst_83 {dimension_numbers = #tpu.dot_dimension_numbers<[1], [0], [0], [1], [0, 0, 1, 1], [], []>} : vector<320x4xbf16>, vector<4x24xbf16>, vector<320x24xf32> -> vector<320x24xf32>
    %94 = arith.addf %88, %93 : vector<320x24xf32>
    %c0_84 = arith.constant 0 : index
    %c61 = arith.constant 61 : index
    %c0_85 = arith.constant 0 : index
    %95 = vector.load %arg1[%c0_84, %c61, %c0_85] : memref<1x404x4xbf16, #tpu.memory_space<vmem>>, vector<1x320x4xbf16>
    %96 = vector.shape_cast %95 : vector<1x320x4xbf16> to vector<320x4xbf16>
    %c16 = arith.constant 16 : index
    %c0_86 = arith.constant 0 : index
    %c0_87 = arith.constant 0 : index
    %97 = vector.load %arg2[%c16, %c0_86, %c0_87] : memref<25x4x24xbf16, #tpu.memory_space<vmem>>, vector<1x4x24xbf16>
    %98 = vector.shape_cast %97 : vector<1x4x24xbf16> to vector<4x24xbf16>
    %cst_88 = arith.constant dense<0.000000e+00> : vector<320x24xf32>
    %99 = tpu.matmul %96, %98, %cst_88 {dimension_numbers = #tpu.dot_dimension_numbers<[1], [0], [0], [1], [0, 0, 1, 1], [], []>} : vector<320x4xbf16>, vector<4x24xbf16>, vector<320x24xf32> -> vector<320x24xf32>
    %100 = arith.addf %94, %99 : vector<320x24xf32>
    %c0_89 = arith.constant 0 : index
    %c62 = arith.constant 62 : index
    %c0_90 = arith.constant 0 : index
    %101 = vector.load %arg1[%c0_89, %c62, %c0_90] : memref<1x404x4xbf16, #tpu.memory_space<vmem>>, vector<1x320x4xbf16>
    %102 = vector.shape_cast %101 : vector<1x320x4xbf16> to vector<320x4xbf16>
    %c17 = arith.constant 17 : index
    %c0_91 = arith.constant 0 : index
    %c0_92 = arith.constant 0 : index
    %103 = vector.load %arg2[%c17, %c0_91, %c0_92] : memref<25x4x24xbf16, #tpu.memory_space<vmem>>, vector<1x4x24xbf16>
    %104 = vector.shape_cast %103 : vector<1x4x24xbf16> to vector<4x24xbf16>
    %cst_93 = arith.constant dense<0.000000e+00> : vector<320x24xf32>
    %105 = tpu.matmul %102, %104, %cst_93 {dimension_numbers = #tpu.dot_dimension_numbers<[1], [0], [0], [1], [0, 0, 1, 1], [], []>} : vector<320x4xbf16>, vector<4x24xbf16>, vector<320x24xf32> -> vector<320x24xf32>
    %106 = arith.addf %100, %105 : vector<320x24xf32>
    %c0_94 = arith.constant 0 : index
    %c63 = arith.constant 63 : index
    %c0_95 = arith.constant 0 : index
    %107 = vector.load %arg1[%c0_94, %c63, %c0_95] : memref<1x404x4xbf16, #tpu.memory_space<vmem>>, vector<1x320x4xbf16>
    %108 = vector.shape_cast %107 : vector<1x320x4xbf16> to vector<320x4xbf16>
    %c18 = arith.constant 18 : index
    %c0_96 = arith.constant 0 : index
    %c0_97 = arith.constant 0 : index
    %109 = vector.load %arg2[%c18, %c0_96, %c0_97] : memref<25x4x24xbf16, #tpu.memory_space<vmem>>, vector<1x4x24xbf16>
    %110 = vector.shape_cast %109 : vector<1x4x24xbf16> to vector<4x24xbf16>
    %cst_98 = arith.constant dense<0.000000e+00> : vector<320x24xf32>
    %111 = tpu.matmul %108, %110, %cst_98 {dimension_numbers = #tpu.dot_dimension_numbers<[1], [0], [0], [1], [0, 0, 1, 1], [], []>} : vector<320x4xbf16>, vector<4x24xbf16>, vector<320x24xf32> -> vector<320x24xf32>
    %112 = arith.addf %106, %111 : vector<320x24xf32>
    %c0_99 = arith.constant 0 : index
    %c64 = arith.constant 64 : index
    %c0_100 = arith.constant 0 : index
    %113 = vector.load %arg1[%c0_99, %c64, %c0_100] : memref<1x404x4xbf16, #tpu.memory_space<vmem>>, vector<1x320x4xbf16>
    %114 = vector.shape_cast %113 : vector<1x320x4xbf16> to vector<320x4xbf16>
    %c19 = arith.constant 19 : index
    %c0_101 = arith.constant 0 : index
    %c0_102 = arith.constant 0 : index
    %115 = vector.load %arg2[%c19, %c0_101, %c0_102] : memref<25x4x24xbf16, #tpu.memory_space<vmem>>, vector<1x4x24xbf16>
    %116 = vector.shape_cast %115 : vector<1x4x24xbf16> to vector<4x24xbf16>
    %cst_103 = arith.constant dense<0.000000e+00> : vector<320x24xf32>
    %117 = tpu.matmul %114, %116, %cst_103 {dimension_numbers = #tpu.dot_dimension_numbers<[1], [0], [0], [1], [0, 0, 1, 1], [], []>} : vector<320x4xbf16>, vector<4x24xbf16>, vector<320x24xf32> -> vector<320x24xf32>
    %118 = arith.addf %112, %117 : vector<320x24xf32>
    %c0_104 = arith.constant 0 : index
    %c80 = arith.constant 80 : index
    %c0_105 = arith.constant 0 : index
    %119 = vector.load %arg1[%c0_104, %c80, %c0_105] : memref<1x404x4xbf16, #tpu.memory_space<vmem>>, vector<1x320x4xbf16>
    %120 = vector.shape_cast %119 : vector<1x320x4xbf16> to vector<320x4xbf16>
    %c20_106 = arith.constant 20 : index
    %c0_107 = arith.constant 0 : index
    %c0_108 = arith.constant 0 : index
    %121 = vector.load %arg2[%c20_106, %c0_107, %c0_108] : memref<25x4x24xbf16, #tpu.memory_space<vmem>>, vector<1x4x24xbf16>
    %122 = vector.shape_cast %121 : vector<1x4x24xbf16> to vector<4x24xbf16>
    %cst_109 = arith.constant dense<0.000000e+00> : vector<320x24xf32>
    %123 = tpu.matmul %120, %122, %cst_109 {dimension_numbers = #tpu.dot_dimension_numbers<[1], [0], [0], [1], [0, 0, 1, 1], [], []>} : vector<320x4xbf16>, vector<4x24xbf16>, vector<320x24xf32> -> vector<320x24xf32>
    %124 = arith.addf %118, %123 : vector<320x24xf32>
    %c0_110 = arith.constant 0 : index
    %c81 = arith.constant 81 : index
    %c0_111 = arith.constant 0 : index
    %125 = vector.load %arg1[%c0_110, %c81, %c0_111] : memref<1x404x4xbf16, #tpu.memory_space<vmem>>, vector<1x320x4xbf16>
    %126 = vector.shape_cast %125 : vector<1x320x4xbf16> to vector<320x4xbf16>
    %c21_112 = arith.constant 21 : index
    %c0_113 = arith.constant 0 : index
    %c0_114 = arith.constant 0 : index
    %127 = vector.load %arg2[%c21_112, %c0_113, %c0_114] : memref<25x4x24xbf16, #tpu.memory_space<vmem>>, vector<1x4x24xbf16>
    %128 = vector.shape_cast %127 : vector<1x4x24xbf16> to vector<4x24xbf16>
    %cst_115 = arith.constant dense<0.000000e+00> : vector<320x24xf32>
    %129 = tpu.matmul %126, %128, %cst_115 {dimension_numbers = #tpu.dot_dimension_numbers<[1], [0], [0], [1], [0, 0, 1, 1], [], []>} : vector<320x4xbf16>, vector<4x24xbf16>, vector<320x24xf32> -> vector<320x24xf32>
    %130 = arith.addf %124, %129 : vector<320x24xf32>
    %c0_116 = arith.constant 0 : index
    %c82 = arith.constant 82 : index
    %c0_117 = arith.constant 0 : index
    %131 = vector.load %arg1[%c0_116, %c82, %c0_117] : memref<1x404x4xbf16, #tpu.memory_space<vmem>>, vector<1x320x4xbf16>
    %132 = vector.shape_cast %131 : vector<1x320x4xbf16> to vector<320x4xbf16>
    %c22_118 = arith.constant 22 : index
    %c0_119 = arith.constant 0 : index
    %c0_120 = arith.constant 0 : index
    %133 = vector.load %arg2[%c22_118, %c0_119, %c0_120] : memref<25x4x24xbf16, #tpu.memory_space<vmem>>, vector<1x4x24xbf16>
    %134 = vector.shape_cast %133 : vector<1x4x24xbf16> to vector<4x24xbf16>
    %cst_121 = arith.constant dense<0.000000e+00> : vector<320x24xf32>
    %135 = tpu.matmul %132, %134, %cst_121 {dimension_numbers = #tpu.dot_dimension_numbers<[1], [0], [0], [1], [0, 0, 1, 1], [], []>} : vector<320x4xbf16>, vector<4x24xbf16>, vector<320x24xf32> -> vector<320x24xf32>
    %136 = arith.addf %130, %135 : vector<320x24xf32>
    %c0_122 = arith.constant 0 : index
    %c83 = arith.constant 83 : index
    %c0_123 = arith.constant 0 : index
    %137 = vector.load %arg1[%c0_122, %c83, %c0_123] : memref<1x404x4xbf16, #tpu.memory_space<vmem>>, vector<1x320x4xbf16>
    %138 = vector.shape_cast %137 : vector<1x320x4xbf16> to vector<320x4xbf16>
    %c23_124 = arith.constant 23 : index
    %c0_125 = arith.constant 0 : index
    %c0_126 = arith.constant 0 : index
    %139 = vector.load %arg2[%c23_124, %c0_125, %c0_126] : memref<25x4x24xbf16, #tpu.memory_space<vmem>>, vector<1x4x24xbf16>
    %140 = vector.shape_cast %139 : vector<1x4x24xbf16> to vector<4x24xbf16>
    %cst_127 = arith.constant dense<0.000000e+00> : vector<320x24xf32>
    %141 = tpu.matmul %138, %140, %cst_127 {dimension_numbers = #tpu.dot_dimension_numbers<[1], [0], [0], [1], [0, 0, 1, 1], [], []>} : vector<320x4xbf16>, vector<4x24xbf16>, vector<320x24xf32> -> vector<320x24xf32>
    %142 = arith.addf %136, %141 : vector<320x24xf32>
    %c0_128 = arith.constant 0 : index
    %c84 = arith.constant 84 : index
    %c0_129 = arith.constant 0 : index
    %143 = vector.load %arg1[%c0_128, %c84, %c0_129] : memref<1x404x4xbf16, #tpu.memory_space<vmem>>, vector<1x320x4xbf16>
    %144 = vector.shape_cast %143 : vector<1x320x4xbf16> to vector<320x4xbf16>
    %c24_130 = arith.constant 24 : index
    %c0_131 = arith.constant 0 : index
    %c0_132 = arith.constant 0 : index
    %145 = vector.load %arg2[%c24_130, %c0_131, %c0_132] : memref<25x4x24xbf16, #tpu.memory_space<vmem>>, vector<1x4x24xbf16>
    %146 = vector.shape_cast %145 : vector<1x4x24xbf16> to vector<4x24xbf16>
    %cst_133 = arith.constant dense<0.000000e+00> : vector<320x24xf32>
    %147 = tpu.matmul %144, %146, %cst_133 {dimension_numbers = #tpu.dot_dimension_numbers<[1], [0], [0], [1], [0, 0, 1, 1], [], []>} : vector<320x4xbf16>, vector<4x24xbf16>, vector<320x24xf32> -> vector<320x24xf32>
    %148 = arith.addf %142, %147 : vector<320x24xf32>
    %cst_134 = arith.constant 0.000000e+00 : f32
    %149 = vector.broadcast %cst_134 : f32 to vector<320x24xf32>
    %150 = arith.maximumf %148, %149 : vector<320x24xf32>
    %c0_135 = arith.constant 0 : index
    %c0_136 = arith.constant 0 : index
    %151 = vector.load %arg3[%c0_135, %c0_136] : memref<1x24xf32, #tpu.memory_space<vmem>>, vector<1x24xf32>
    %152 = vector.broadcast %151 : vector<1x24xf32> to vector<320x24xf32>
    %153 = arith.mulf %150, %152 : vector<320x24xf32>
    %154 = vector.extract_strided_slice %153 {offsets = [0, 0], sizes = [320, 8], strides = [1, 1]} : vector<320x24xf32> to vector<320x8xf32>
    %155 = vector.extract_strided_slice %153 {offsets = [0, 8], sizes = [320, 8], strides = [1, 1]} : vector<320x24xf32> to vector<320x8xf32>
    %156 = arith.addf %154, %155 : vector<320x8xf32>
    %157 = vector.extract_strided_slice %153 {offsets = [0, 16], sizes = [320, 8], strides = [1, 1]} : vector<320x24xf32> to vector<320x8xf32>
    %158 = arith.addf %156, %157 : vector<320x8xf32>
    %c0_137 = arith.constant 0 : index
    %c0_138 = arith.constant 0 : index
    %c0_139 = arith.constant 0 : index
    %159 = vector.load %arg4[%c0_137, %c0_138, %c0_139] : memref<1x320x8xf32, #tpu.memory_space<vmem>>, vector<1x320x8xf32>
    %160 = vector.shape_cast %159 : vector<1x320x8xf32> to vector<320x8xf32>
    %161 = vector.shape_cast %158 : vector<320x8xf32> to vector<1x320x8xf32>
    tpu.vector_store %arg4[%c0_137, %c0_138, %c0_139], %161 {strides = array<i32>} : memref<1x320x8xf32, #tpu.memory_space<vmem>>, vector<1x320x8xf32>,
    return
  }
  func.func @transform_0(%arg0: i32) -> (i32, i32, i32) {
    %c0_i32 = arith.constant 0 : i32
    %c0_i32_0 = arith.constant 0 : i32
    %c0_i32_1 = arith.constant 0 : i32
    return %arg0, %c0_i32, %c0_i32_0 : i32, i32, i32
  }
  func.func @transform_1(%arg0: i32) -> (i32, i32, i32) {
    %c0_i32 = arith.constant 0 : i32
    %c0_i32_0 = arith.constant 0 : i32
    %c0_i32_1 = arith.constant 0 : i32
    %c0_i32_2 = arith.constant 0 : i32
    return %c0_i32, %c0_i32_0, %c0_i32_1 : i32, i32, i32
  }
  func.func @transform_2(%arg0: i32) -> (i32, i32) {
    %c0_i32 = arith.constant 0 : i32
    %c0_i32_0 = arith.constant 0 : i32
    %c0_i32_1 = arith.constant 0 : i32
    return %c0_i32, %c0_i32_0 : i32, i32
  }
  func.func @transform_3(%arg0: i32) -> (i32, i32, i32) {
    %c0_i32 = arith.constant 0 : i32
    %c0_i32_0 = arith.constant 0 : i32
    %c0_i32_1 = arith.constant 0 : i32
    return %arg0, %c0_i32, %c0_i32_0 : i32, i32, i32
  }
}

</mosaic_0001>

<llo_original>
// kernel: tpu_custom_call.1
$region0: #{tpu_custom_call.1}
  #allocation0 [shape = 'u32[]', space=smem, size = 0x4, offset = 0x4, fixed_abs, tag = 'smem constant byte address 0x4 - core index']
  #allocation1 [shape = 'u32[144,128]{1,0:T(1,128)}', space=vmem, size = 0x12000, scoped, tag = 'internal scratch']
  %s0 = inlined_call_operand.vmem [shape: bf16[2,404,4], index: 0, kind: input, shape index: {}]
  %s1 = inlined_call_operand.vmem [shape: bf16[25,4,24], index: 1, kind: input, shape index: {}]
  %s2 = inlined_call_operand.vmem [shape: f32[1,24], index: 2, kind: input, shape index: {}]
  %s3 = inlined_call_operand.vmem [shape: f32[2,320,8], index: 3, kind: output, shape index: {}]
  %s4 = sld [smem:[#allocation0]]
  $region45: #{tpu_custom_call.1} parent=0
    _
  %s6 = ssub.s32 1, %s4
  %s7 = scalar_select 0, %s6, %s4
  loop: start=0, step=1, limit=4
  $region2: #{tpu_custom_call.1} parent=0 // loop_pre_header
    _
  $region3: #{tpu_custom_call.1} parent=0 // loop_header
    %s9 = sphi 0, %s13
    %p10 = scmp.ge.s32.totalorder %s9, 4
    %s19 = sphi 0, %s21
    %s22 = sphi 0, %s19
    %s23 = sphi 0, %s22
    %s39 = sphi 0, %s23
    %s43 = sphi 0, %s43
    %s45 = sphi 0, %s43
    %s46 = sphi 0, %s45
    %s60 = sphi 0, %s46
    %s64 = sphi 0, %s64
    %s66 = sphi 0, %s64
    %s67 = sphi 0, %s66
    %s81 = sphi 0, %s67
    %s87 = sphi 0, %s89
    %s90 = sphi 0, %s87
    %s91 = sphi 0, %s90
    %s107 = sphi 0, %s91
  $region4: #{tpu_custom_call.1} parent=0 // loop_header_branch
    %12 = sbr.rel (%p10) target = $region8
  $region5: #{tpu_custom_call.1} parent=0 // loop_body
    %s14 = ssub.s32 %s9, 1
    %s15 = ssub.s32 %s9, 2
    %s16 = sadd.s32 %s9, 1
    %s17 = ssub.s32 %s9, %s16
    %p18 = scmp.eq.s32.totalorder %s17, 0
    %s20 = sadd.s32 %s19, 1
    %s21 = scalar_select %p18, %s19, %s20
    %p24 = pneg %p18
    %p25 = scmp.eq.s32.totalorder %s9, 1
    %p26 = por %p24, %p25
    %p27 = scmp.ne.s32.totalorder %s19, %s22
    %p28 = scmp.eq.s32.totalorder %s9, 0
    %p29 = por %p27, %p28
    %p30 = scmp.ne.s32.totalorder %s19, %s22
    %p31 = scmp.eq.s32.totalorder %s14, 1
    %p32 = por %p30, %p31
    %p33 = scmp.ne.s32.totalorder %s22, %s23
    %p34 = scmp.eq.s32.totalorder %s14, 0
    %p35 = por %p33, %p34
    %p36 = scmp.ne.s32.totalorder %s22, %s23
    %p37 = scmp.eq.s32.totalorder %s15, 1
    %p38 = por %p36, %p37
    %p40 = scmp.ne.s32.totalorder %s23, %s39
    %p41 = scmp.eq.s32.totalorder %s15, 0
    %p42 = por %p40, %p41
    %s44 = sadd.s32 %s43, 1
    %p47 = scmp.eq.s32.totalorder %s9, 1
    %p48 = scmp.ne.s32.totalorder %s43, %s45
    %p49 = scmp.eq.s32.totalorder %s9, 0
    %p50 = por %p48, %p49
    %p51 = scmp.ne.s32.totalorder %s43, %s45
    %p52 = scmp.eq.s32.totalorder %s14, 1
    %p53 = por %p51, %p52
    %p54 = scmp.ne.s32.totalorder %s45, %s46
    %p55 = scmp.eq.s32.totalorder %s14, 0
    %p56 = por %p54, %p55
    %p57 = scmp.ne.s32.totalorder %s45, %s46
    %p58 = scmp.eq.s32.totalorder %s15, 1
    %p59 = por %p57, %p58
    %p61 = scmp.ne.s32.totalorder %s46, %s60
    %p62 = scmp.eq.s32.totalorder %s15, 0
    %p63 = por %p61, %p62
    %s65 = sadd.s32 %s64, 1
    %p68 = scmp.eq.s32.totalorder %s9, 1
    %p69 = scmp.ne.s32.totalorder %s64, %s66
    %p70 = scmp.eq.s32.totalorder %s9, 0
    %p71 = por %p69, %p70
    %p72 = scmp.ne.s32.totalorder %s64, %s66
    %p73 = scmp.eq.s32.totalorder %s14, 1
    %p74 = por %p72, %p73
    %p75 = scmp.ne.s32.totalorder %s66, %s67
    %p76 = scmp.eq.s32.totalorder %s14, 0
    %p77 = por %p75, %p76
    %p78 = scmp.ne.s32.totalorder %s66, %s67
    %p79 = scmp.eq.s32.totalorder %s15, 1
    %p80 = por %p78, %p79
    %p82 = scmp.ne.s32.totalorder %s67, %s81
    %p83 = scmp.eq.s32.totalorder %s15, 0
    %p84 = por %p82, %p83
    %s85 = ssub.s32 %s9, %s16
    %p86 = scmp.eq.s32.totalorder %s85, 0
    %s88 = sadd.s32 %s87, 1
    %s89 = scalar_select %p86, %s87, %s88
    %p92 = pneg %p86
    %p93 = scmp.eq.s32.totalorder %s9, 1
    %p94 = por %p92, %p93
    %p95 = scmp.ne.s32.totalorder %s87, %s90
    %p96 = scmp.eq.s32.totalorder %s9, 0
    %p97 = por %p95, %p96
    %p98 = scmp.ne.s32.totalorder %s87, %s90
    %p99 = scmp.eq.s32.totalorder %s14, 1
    %p100 = por %p98, %p99
    %p101 = scmp.ne.s32.totalorder %s90, %s91
    %p102 = scmp.eq.s32.totalorder %s14, 0
    %p103 = por %p101, %p102
    %p104 = scmp.ne.s32.totalorder %s90, %s91
    %p105 = scmp.eq.s32.totalorder %s15, 1
    %p106 = por %p104, %p105
    %p108 = scmp.ne.s32.totalorder %s91, %s107
    %p109 = scmp.eq.s32.totalorder %s15, 0
    %p110 = por %p108, %p109
    %p111 = scmp.le.s32.totalorder 1, %s9
    %p112 = scmp.lt.s32.totalorder %s9, 3
    %p113 = pnand %p111, %p112
    %p114 = pneg %p113
    // Predicated region
    $region9: #{tpu_custom_call.1} parent=5 // pred_check
      _
    $region10: #{tpu_custom_call.1} parent=5 // pred_check_branch
      %116 = sbr.rel (%p113) target = $region12
    $region11: #{tpu_custom_call.1} parent=5 // pred_region
      %s117 = ssub.s32 %s9, 1
      // Predicated region
      $region13: #{tpu_custom_call.1} parent=11 // pred_check
        %p118 = pneg %p56
      $region14: #{tpu_custom_call.1} parent=11 // pred_check_branch
        %120 = sbr.rel (%p118) target = $region16
      $region15: #{tpu_custom_call.1} parent=11 // pred_region
        _
      $region16: #{tpu_custom_call.1} parent=11 // pred_fallthru
        _
      // Predicated region
      $region17: #{tpu_custom_call.1} parent=11 // pred_check
        %p121 = pneg %p77
      $region18: #{tpu_custom_call.1} parent=11 // pred_check_branch
        %123 = sbr.rel (%p121) target = $region20
      $region19: #{tpu_custom_call.1} parent=11 // pred_region
        _
      $region20: #{tpu_custom_call.1} parent=11 // pred_fallthru
        _
    $region12: #{tpu_custom_call.1} parent=5 // pred_fallthru
      _
    %p124 = scmp.lt.s32.totalorder %s9, 2
    // Predicated region
    $region21: #{tpu_custom_call.1} parent=5 // pred_check
      %p125 = pneg %p124
    $region22: #{tpu_custom_call.1} parent=5 // pred_check_branch
      %127 = sbr.rel (%p125) target = $region24
    $region23: #{tpu_custom_call.1} parent=5 // pred_region
      // Predicated region
      $region25: #{tpu_custom_call.1} parent=23 // pred_check
        %p128 = pneg %p29
      $region26: #{tpu_custom_call.1} parent=23 // pred_check_branch
        %130 = sbr.rel (%p128) target = $region28
      $region27: #{tpu_custom_call.1} parent=23 // pred_region
        %p131 = scmp.lt.s32.totalorder %s9, 1
        %s132 = scalar_select %p131, %s9, 1
        %s133 = smul.addr %s132, 51
        %s134 = smul.addr %s133, 4
        %s135 = scalar_lea.vmem %s0, %s134
      $region28: #{tpu_custom_call.1} parent=23 // pred_fallthru
        _
    $region24: #{tpu_custom_call.1} parent=5 // pred_fallthru
      _
    %p136 = scmp.le.s32.totalorder 1, %s9
    %p137 = scmp.lt.s32.totalorder %s9, 3
    %p138 = pnand %p136, %p137
    %p139 = pneg %p138
    // Predicated region
    $region29: #{tpu_custom_call.1} parent=5 // pred_check
      _
    $region30: #{tpu_custom_call.1} parent=5 // pred_check_branch
      %141 = sbr.rel (%p138) target = $region32
    $region31: #{tpu_custom_call.1} parent=5 // pred_region
      %s142 = ssub.s32 %s9, 1
      %p143 = scmp.lt.s32.totalorder %s14, 1
      %s144 = scalar_select %p143, %s14, 1
      %s145 = smul.addr %s144, 51
      %s146 = smul.addr %s145, 4
      %s147 = scalar_lea.vmem %s0, %s146
      %p148 = pneg %p35
      %p149 = pneg %p32
      %p150 = pneg %p56
      %p151 = pneg %p53
      %p152 = pneg %p77
      %p153 = pneg %p74
      %p154 = pneg %p103
      %p155 = pneg %p100
      %p156 = scmp.lt.s32.totalorder %s14, 1
      %s157 = scalar_select %p156, %s14, 1
      %s158 = smul.addr %s157, 40
      %s159 = smul.addr %s158, 8
      %s160 = scalar_lea.vmem %s3, %s159
      %p161 = scmp.lt.s32.totalorder %s14, 1
      %s162 = scalar_select %p161, %s14, 1
      %s163 = smul.addr %s162, 51
      %s164 = smul.addr %s163, 4
      %s165 = scalar_lea.vmem %s0, %s164
      %p166 = scmp.lt.s32.totalorder %s14, 1
      %s167 = scalar_select %p166, %s14, 1
      %s168 = smul.addr %s167, 40
      %s169 = smul.addr %s168, 8
      %s170 = scalar_lea.vmem %s3, %s169
      %v172 = vld [vmem:[%s165] sm:$0xf]
      %v173 = vld [vmem:[%s165 + $0x4] sm:$0xf]
      %v174 = vld [vmem:[%s165 + $0x8] sm:$0xf]
      %v175 = vld [vmem:[%s165 + $0xc] sm:$0xf]
      %v176 = vld [vmem:[%s165 + $0x10] sm:$0xf]
      %v177 = vld [vmem:[%s165 + $0x14] sm:$0xf]
      %v178 = vld [vmem:[%s165 + $0x18] sm:$0xf]
      %v179 = vld [vmem:[%s165 + $0x1c] sm:$0xf]
      %v180 = vld [vmem:[%s165 + $0x20] sm:$0xf]
      %v181 = vld [vmem:[%s165 + $0x24] sm:$0xf]
      %v182 = vld [vmem:[%s165 + $0x28] sm:$0xf]
      %v183 = vld [vmem:[%s165 + $0x2c] sm:$0xf]
      %v184 = vld [vmem:[%s165 + $0x30] sm:$0xf]
      %v185 = vld [vmem:[%s165 + $0x34] sm:$0xf]
      %v186 = vld [vmem:[%s165 + $0x38] sm:$0xf]
      %v187 = vld [vmem:[%s165 + $0x3c] sm:$0xf]
      %v188 = vld [vmem:[%s165 + $0x40] sm:$0xf]
      %v189 = vld [vmem:[%s165 + $0x44] sm:$0xf]
      %v190 = vld [vmem:[%s165 + $0x48] sm:$0xf]
      %v191 = vld [vmem:[%s165 + $0x4c] sm:$0xf]
      %v192 = vld [vmem:[%s165 + $0x50] sm:$0xf]
      %v193 = vld [vmem:[%s165 + $0x54] sm:$0xf]
      %v194 = vld [vmem:[%s165 + $0x58] sm:$0xf]
      %v195 = vld [vmem:[%s165 + $0x5c] sm:$0xf]
      %v196 = vld [vmem:[%s165 + $0x60] sm:$0xf]
      %v197 = vld [vmem:[%s165 + $0x64] sm:$0xf]
      %v198 = vld [vmem:[%s165 + $0x68] sm:$0xf]
      %v199 = vld [vmem:[%s165 + $0x6c] sm:$0xf]
      %v200 = vld [vmem:[%s165 + $0x70] sm:$0xf]
      %v201 = vld [vmem:[%s165 + $0x74] sm:$0xf]
      %v202 = vld [vmem:[%s165 + $0x78] sm:$0xf]
      %v203 = vld [vmem:[%s165 + $0x7c] sm:$0xf]
      %v204 = vld [vmem:[%s165 + $0x80] sm:$0xf]
      %v205 = vld [vmem:[%s165 + $0x84] sm:$0xf]
      %v206 = vld [vmem:[%s165 + $0x88] sm:$0xf]
      %v207 = vld [vmem:[%s165 + $0x8c] sm:$0xf]
      %v208 = vld [vmem:[%s165 + $0x90] sm:$0xf]
      %v209 = vld [vmem:[%s165 + $0x94] sm:$0xf]
      %v210 = vld [vmem:[%s165 + $0x98] sm:$0xf]
      %v211 = vld [vmem:[%s165 + $0x9c] sm:$0xf]
      %v212 = vld [vmem:[%s1] sm:$0x3]
      %v213 = vld [vmem:[%s165 + $0xa0] sm:$0x1]
      %s214 = scalar_lea.vmem %s1, 2
      %v215 = vld [vmem:[%s214] sm:$0x3]
      %v257 = vunpack.c.l.b16 %v172
      %v258 = vunpack.c.l.b16 %v173
      %v259 = vunpack.c.l.b16 %v174
      %v260 = vunpack.c.l.b16 %v175
      %v261 = vunpack.c.l.b16 %v176
      %v262 = vunpack.c.l.b16 %v177
      %v263 = vunpack.c.l.b16 %v178
      %v264 = vunpack.c.l.b16 %v179
      %v265 = vunpack.c.l.b16 %v180
      %v266 = vunpack.c.l.b16 %v181
      %v267 = vunpack.c.l.b16 %v182
      %v268 = vunpack.c.l.b16 %v183
      %v269 = vunpack.c.l.b16 %v184
      %v270 = vunpack.c.l.b16 %v185
      %v271 = vunpack.c.l.b16 %v186
      %v272 = vunpack.c.l.b16 %v187
      %v273 = vunpack.c.l.b16 %v188
      %v274 = vunpack.c.l.b16 %v189
      %v275 = vunpack.c.l.b16 %v190
      %v276 = vunpack.c.l.b16 %v191
      %v277 = vunpack.c.l.b16 %v192
      %v278 = vunpack.c.l.b16 %v193
      %v279 = vunpack.c.l.b16 %v194
      %v280 = vunpack.c.l.b16 %v195
      %v281 = vunpack.c.l.b16 %v196
      %v282 = vunpack.c.l.b16 %v197
      %v283 = vunpack.c.l.b16 %v198
      %v284 = vunpack.c.l.b16 %v199
      %v285 = vunpack.c.l.b16 %v200
      %v286 = vunpack.c.l.b16 %v201
      %v287 = vunpack.c.l.b16 %v202
      %v288 = vunpack.c.l.b16 %v203
      %v289 = vunpack.c.l.b16 %v204
      %v290 = vunpack.c.l.b16 %v205
      %v291 = vunpack.c.l.b16 %v206
      %v292 = vunpack.c.l.b16 %v207
      %v293 = vunpack.c.l.b16 %v208
      %v294 = vunpack.c.l.b16 %v209
      %v295 = vunpack.c.l.b16 %v210
      %v296 = vunpack.c.l.b16 %v211
      %v297 = vunpack.c.l.b16 %v213
      %v298 = vpack.c.b16 %v258, %v257
      %v299 = vpack.c.b16 %v260, %v259
      %v300 = vpack.c.b16 %v262, %v261
      %v301 = vpack.c.b16 %v264, %v263
      %v302 = vpack.c.b16 %v266, %v265
      %v303 = vpack.c.b16 %v268, %v267
      %v304 = vpack.c.b16 %v270, %v269
      %v305 = vpack.c.b16 %v272, %v271
      %v306 = vpack.c.b16 %v274, %v273
      %v307 = vpack.c.b16 %v276, %v275
      %v308 = vpack.c.b16 %v278, %v277
      %v309 = vpack.c.b16 %v280, %v279
      %v310 = vpack.c.b16 %v282, %v281
      %v311 = vpack.c.b16 %v284, %v283
      %v312 = vpack.c.b16 %v286, %v285
      %v313 = vpack.c.b16 %v288, %v287
      %v314 = vpack.c.b16 %v290, %v289
      %v315 = vpack.c.b16 %v292, %v291
      %v316 = vpack.c.b16 %v294, %v293
      %v317 = vpack.c.b16 %v296, %v295
      %v318 = vpack.c.b16 %v297, %v297
      %vm319 = vsmask.f32 7424
      %v321 = vshrl.u32 %v298, 16
      %v323 = vshll.u32 %v298, 16
      %v325 = vrot.slane %v323, 1
      %v326 = vor.u32 %v321, %v325
      %v328 = vshll.u32 %v299, 16
      %v330 = vrot.slane %v328, 1
      %v331 = vsel %vm319, %v326, %v330
      %v332 = vshrl.u32 %v299, 16
      %v334 = vor.u32 %v332, %v330
      %v336 = vshll.u32 %v300, 16
      %v338 = vrot.slane %v336, 1
      %v339 = vsel %vm319, %v334, %v338
      %v340 = vshrl.u32 %v300, 16
      %v342 = vor.u32 %v340, %v338
      %v344 = vshll.u32 %v301, 16
      %v346 = vrot.slane %v344, 1
      %v347 = vsel %vm319, %v342, %v346
      %v348 = vshrl.u32 %v301, 16
      %v350 = vor.u32 %v348, %v346
      %v352 = vshll.u32 %v302, 16
      %v354 = vrot.slane %v352, 1
      %v355 = vsel %vm319, %v350, %v354
      %v356 = vshrl.u32 %v302, 16
      %v358 = vor.u32 %v356, %v354
      %v360 = vshll.u32 %v303, 16
      %v362 = vrot.slane %v360, 1
      %v363 = vsel %vm319, %v358, %v362
      %v364 = vshrl.u32 %v303, 16
      %v366 = vor.u32 %v364, %v362
      %v368 = vshll.u32 %v304, 16
      %v370 = vrot.slane %v368, 1
      %v371 = vsel %vm319, %v366, %v370
      %v372 = vshrl.u32 %v304, 16
      %v374 = vor.u32 %v372, %v370
      %v376 = vshll.u32 %v305, 16
      %v378 = vrot.slane %v376, 1
      %v379 = vsel %vm319, %v374, %v378
      %v380 = vshrl.u32 %v305, 16
      %v382 = vor.u32 %v380, %v378
      %v384 = vshll.u32 %v306, 16
      %v386 = vrot.slane %v384, 1
      %v387 = vsel %vm319, %v382, %v386
      %v388 = vshrl.u32 %v306, 16
      %v390 = vor.u32 %v388, %v386
      %v392 = vshll.u32 %v307, 16
      %v394 = vrot.slane %v392, 1
      %v395 = vsel %vm319, %v390, %v394
      %v396 = vshrl.u32 %v307, 16
      %v398 = vor.u32 %v396, %v394
      %v400 = vshll.u32 %v308, 16
      %v402 = vrot.slane %v400, 1
      %v403 = vsel %vm319, %v398, %v402
      %v404 = vshrl.u32 %v308, 16
      %v406 = vor.u32 %v404, %v402
      %v408 = vshll.u32 %v309, 16
      %v410 = vrot.slane %v408, 1
      %v411 = vsel %vm319, %v406, %v410
      %v412 = vshrl.u32 %v309, 16
      %v414 = vor.u32 %v412, %v410
      %v416 = vshll.u32 %v310, 16
      %v418 = vrot.slane %v416, 1
      %v419 = vsel %vm319, %v414, %v418
      %v420 = vshrl.u32 %v310, 16
      %v422 = vor.u32 %v420, %v418
      %v424 = vshll.u32 %v311, 16
      %v426 = vrot.slane %v424, 1
      %v427 = vsel %vm319, %v422, %v426
      %v428 = vshrl.u32 %v311, 16
      %v430 = vor.u32 %v428, %v426
      %v432 = vshll.u32 %v312, 16
      %v434 = vrot.slane %v432, 1
      %v435 = vsel %vm319, %v430, %v434
      %v436 = vshrl.u32 %v312, 16
      %v438 = vor.u32 %v436, %v434
      %v440 = vshll.u32 %v313, 16
      %v442 = vrot.slane %v440, 1
      %v443 = vsel %vm319, %v438, %v442
      %v444 = vshrl.u32 %v313, 16
      %v446 = vor.u32 %v444, %v442
      %v448 = vshll.u32 %v314, 16
      %v450 = vrot.slane %v448, 1
      %v451 = vsel %vm319, %v446, %v450
      %v452 = vshrl.u32 %v314, 16
      %v454 = vor.u32 %v452, %v450
      %v456 = vshll.u32 %v315, 16
      %v458 = vrot.slane %v456, 1
      %v459 = vsel %vm319, %v454, %v458
      %v460 = vshrl.u32 %v315, 16
      %v462 = vor.u32 %v460, %v458
      %v464 = vshll.u32 %v316, 16
      %v466 = vrot.slane %v464, 1
      %v467 = vsel %vm319, %v462, %v466
      %v468 = vshrl.u32 %v316, 16
      %v470 = vor.u32 %v468, %v466
      %v472 = vshll.u32 %v317, 16
      %v474 = vrot.slane %v472, 1
      %v475 = vsel %vm319, %v470, %v474
      %v476 = vshrl.u32 %v317, 16
      %v478 = vor.u32 %v476, %v474
      %v480 = vshll.u32 %v318, 16
      %v482 = vrot.slane %v480, 1
      %v483 = vsel %vm319, %v478, %v482
      %vm484 = vcmask 31744
      %v486 = vsel %vm484, %v331, 0
      %v489 = vsel %vm484, %v339, 0
      %v492 = vsel %vm484, %v347, 0
      %v495 = vsel %vm484, %v355, 0
      %v498 = vsel %vm484, %v363, 0
      %v501 = vsel %vm484, %v371, 0
      %v504 = vsel %vm484, %v379, 0
      %v507 = vsel %vm484, %v387, 0
      %v510 = vsel %vm484, %v395, 0
      %v513 = vsel %vm484, %v403, 0
      %v516 = vsel %vm484, %v411, 0
      %v519 = vsel %vm484, %v419, 0
      %v522 = vsel %vm484, %v427, 0
      %v525 = vsel %vm484, %v435, 0
      %v528 = vsel %vm484, %v443, 0
      %v531 = vsel %vm484, %v451, 0
      %v534 = vsel %vm484, %v459, 0
      %v537 = vsel %vm484, %v467, 0
      %v540 = vsel %vm484, %v475, 0
      %v543 = vsel %vm484, %v483, 0
      %vm545 = vcmask 1041408
      %v547 = vsel %vm545, %v215, 0
      %549 = vmatprep.subr.bf16.mxu0 0
      %550 = vmatpush1.bf16.msra.mxu0 0
      %551 = vmatprep.subr.bf16.mxu0 0
      %552 = vmatpush1.bf16.msra.mxu0 0
      %553 = vmatprep.subr.bf16.mxu0 0
      %554 = vmatpush1.bf16.msra.mxu0 0
      %555 = vmatprep.subr.bf16.mxu0 0
      %556 = vmatpush1.bf16.msra.mxu0 0
      %557 = vmatprep.subr.bf16.mxu0 0
      %558 = vmatpush1.bf16.msra.mxu0 0
      %559 = vmatprep.subr.bf16.mxu0 0
      %560 = vmatpush1.bf16.msra.mxu0 0
      %561 = vmatprep.subr.bf16.mxu0 0
      %562 = vmatpush1.bf16.msra.mxu0 0
      %563 = vmatprep.subr.bf16.mxu0 0
      %564 = vmatpush1.bf16.msra.mxu0 %v547
      %565 = vmatprep.subr.bf16.mxu0 0
      %566 = vmatpush2.bf16.msra.mxu0 0
      %567 = vmatprep.subr.bf16.mxu0 0
      %568 = vmatpush2.bf16.msra.mxu0 0
      %569 = vmatprep.subr.bf16.mxu0 0
      %570 = vmatpush2.bf16.msra.mxu0 0
      %571 = vmatprep.subr.bf16.mxu0 0
      %572 = vmatpush2.bf16.msra.mxu0 0
      %573 = vmatprep.subr.bf16.mxu0 0
      %574 = vmatpush2.bf16.msra.mxu0 0
      %575 = vmatprep.subr.bf16.mxu0 0
      %576 = vmatpush2.bf16.msra.mxu0 0
      %577 = vmatprep.subr.bf16.mxu0 0
      %578 = vmatpush2.bf16.msra.mxu0 0
      %579 = vmatprep.subr.bf16.mxu0 0
      %580 = vmatpush2.bf16.msra.mxu0 0
      %581 = vmatprep.mubr.bf16.mxu0 0
      %582 = vmatmul.mubr.bf16.gmra.mxu0 %v486
      %v583 = vpop.f32.mrf.mxu0
      %v584 = vadd.f32 0.0, %v583
      %v585 = vpop.f32.mrf.mxu0
      %v586 = vpop.f32.mrf.mxu0
      %v587 = vadd.f32 0.0, %v586
      %v588 = vpop.f32.mrf.mxu0
      %589 = vmatprep.mubr.bf16.mxu0 0
      %590 = vmatmul.mubr.bf16.gmra.mxu0 %v489
      %v591 = vpop.f32.mrf.mxu0
      %v592 = vadd.f32 0.0, %v591
      %v593 = vpop.f32.mrf.mxu0
      %v594 = vpop.f32.mrf.mxu0
      %v595 = vadd.f32 0.0, %v594
      %v596 = vpop.f32.mrf.mxu0
      %597 = vmatprep.mubr.bf16.mxu0 0
      %598 = vmatmul.mubr.bf16.gmra.mxu0 %v492
      %v599 = vpop.f32.mrf.mxu0
      %v600 = vadd.f32 0.0, %v599
      %v601 = vpop.f32.mrf.mxu0
      %v602 = vpop.f32.mrf.mxu0
      %v603 = vadd.f32 0.0, %v602
      %v604 = vpop.f32.mrf.mxu0
      %605 = vmatprep.mubr.bf16.mxu0 0
      %606 = vmatmul.mubr.bf16.gmra.mxu0 %v495
      %v607 = vpop.f32.mrf.mxu0
      %v608 = vadd.f32 0.0, %v607
      %v609 = vpop.f32.mrf.mxu0
      %v610 = vpop.f32.mrf.mxu0
      %v611 = vadd.f32 0.0, %v610
      %v612 = vpop.f32.mrf.mxu0
      %613 = vmatprep.mubr.bf16.mxu0 0
      %614 = vmatmul.mubr.bf16.gmra.mxu0 %v498
      %v615 = vpop.f32.mrf.mxu0
      %v616 = vadd.f32 0.0, %v615
      %v617 = vpop.f32.mrf.mxu0
      %v618 = vpop.f32.mrf.mxu0
      %v619 = vadd.f32 0.0, %v618
      %v620 = vpop.f32.mrf.mxu0
      %621 = vmatprep.mubr.bf16.mxu0 0
      %622 = vmatmul.mubr.bf16.gmra.mxu0 %v501
      %v623 = vpop.f32.mrf.mxu0
      %v624 = vadd.f32 0.0, %v623
      %v625 = vpop.f32.mrf.mxu0
      %v626 = vpop.f32.mrf.mxu0
      %v627 = vadd.f32 0.0, %v626
      %v628 = vpop.f32.mrf.mxu0
      %629 = vmatprep.mubr.bf16.mxu0 0
      %630 = vmatmul.mubr.bf16.gmra.mxu0 %v504
      %v631 = vpop.f32.mrf.mxu0
      %v632 = vadd.f32 0.0, %v631
      %v633 = vpop.f32.mrf.mxu0
      %v634 = vpop.f32.mrf.mxu0
      %v635 = vadd.f32 0.0, %v634
      %v636 = vpop.f32.mrf.mxu0
      %637 = vmatprep.mubr.bf16.mxu0 0
      %638 = vmatmul.mubr.bf16.gmra.mxu0 %v507
      %v639 = vpop.f32.mrf.mxu0
      %v640 = vadd.f32 0.0, %v639
      %v641 = vpop.f32.mrf.mxu0
      %v642 = vpop.f32.mrf.mxu0
      %v643 = vadd.f32 0.0, %v642
      %v644 = vpop.f32.mrf.mxu0
      %645 = vmatprep.mubr.bf16.mxu0 0
      %646 = vmatmul.mubr.bf16.gmra.mxu0 %v510
      %v647 = vpop.f32.mrf.mxu0
      %v648 = vadd.f32 0.0, %v647
      %v649 = vpop.f32.mrf.mxu0
      %v650 = vpop.f32.mrf.mxu0
      %v651 = vadd.f32 0.0, %v650
      %v652 = vpop.f32.mrf.mxu0
      %653 = vmatprep.mubr.bf16.mxu0 0
      %654 = vmatmul.mubr.bf16.gmra.mxu0 %v513
      %v655 = vpop.f32.mrf.mxu0
      %v656 = vadd.f32 0.0, %v655
      %v657 = vpop.f32.mrf.mxu0
      %v658 = vpop.f32.mrf.mxu0
      %v659 = vadd.f32 0.0, %v658
      %v660 = vpop.f32.mrf.mxu0
      %661 = vmatprep.mubr.bf16.mxu0 0
      %662 = vmatmul.mubr.bf16.gmra.mxu0 %v516
      %v663 = vpop.f32.mrf.mxu0
      %v664 = vadd.f32 0.0, %v663
      %v665 = vpop.f32.mrf.mxu0
      %v666 = vpop.f32.mrf.mxu0
      %v667 = vadd.f32 0.0, %v666
      %v668 = vpop.f32.mrf.mxu0
      %669 = vmatprep.mubr.bf16.mxu0 0
      %670 = vmatmul.mubr.bf16.gmra.mxu0 %v519
      %v671 = vpop.f32.mrf.mxu0
      %v672 = vadd.f32 0.0, %v671
      %v673 = vpop.f32.mrf.mxu0
      %v674 = vpop.f32.mrf.mxu0
      %v675 = vadd.f32 0.0, %v674
      %v676 = vpop.f32.mrf.mxu0
      %677 = vmatprep.mubr.bf16.mxu0 0
      %678 = vmatmul.mubr.bf16.gmra.mxu0 %v522
      %v679 = vpop.f32.mrf.mxu0
      %v680 = vadd.f32 0.0, %v679
      %v681 = vpop.f32.mrf.mxu0
      %v682 = vpop.f32.mrf.mxu0
      %v683 = vadd.f32 0.0, %v682
      %v684 = vpop.f32.mrf.mxu0
      %685 = vmatprep.mubr.bf16.mxu0 0
      %686 = vmatmul.mubr.bf16.gmra.mxu0 %v525
      %v687 = vpop.f32.mrf.mxu0
      %v688 = vadd.f32 0.0, %v687
      %v689 = vpop.f32.mrf.mxu0
      %v690 = vpop.f32.mrf.mxu0
      %v691 = vadd.f32 0.0, %v690
      %v692 = vpop.f32.mrf.mxu0
      %693 = vmatprep.mubr.bf16.mxu0 0
      %694 = vmatmul.mubr.bf16.gmra.mxu0 %v528
      %v695 = vpop.f32.mrf.mxu0
      %v696 = vadd.f32 0.0, %v695
      %v697 = vpop.f32.mrf.mxu0
      %v698 = vpop.f32.mrf.mxu0
      %v699 = vadd.f32 0.0, %v698
      %v700 = vpop.f32.mrf.mxu0
      %701 = vmatprep.mubr.bf16.mxu0 0
      %702 = vmatmul.mubr.bf16.gmra.mxu0 %v531
      %v703 = vpop.f32.mrf.mxu0
      %v704 = vadd.f32 0.0, %v703
      %v705 = vpop.f32.mrf.mxu0
      %v706 = vpop.f32.mrf.mxu0
      %v707 = vadd.f32 0.0, %v706
      %v708 = vpop.f32.mrf.mxu0
      %709 = vmatprep.mubr.bf16.mxu0 0
      %710 = vmatmul.mubr.bf16.gmra.mxu0 %v534
      %v711 = vpop.f32.mrf.mxu0
      %v712 = vadd.f32 0.0, %v711
      %v713 = vpop.f32.mrf.mxu0
      %v714 = vpop.f32.mrf.mxu0
      %v715 = vadd.f32 0.0, %v714
      %v716 = vpop.f32.mrf.mxu0
      %717 = vmatprep.mubr.bf16.mxu0 0
      %718 = vmatmul.mubr.bf16.gmra.mxu0 %v537
      %v719 = vpop.f32.mrf.mxu0
      %v720 = vadd.f32 0.0, %v719
      %v721 = vpop.f32.mrf.mxu0
      %v722 = vpop.f32.mrf.mxu0
      %v723 = vadd.f32 0.0, %v722
      %v724 = vpop.f32.mrf.mxu0
      %725 = vmatprep.mubr.bf16.mxu0 0
      %726 = vmatmul.mubr.bf16.gmra.mxu0 %v540
      %v727 = vpop.f32.mrf.mxu0
      %v728 = vadd.f32 0.0, %v727
      %v729 = vpop.f32.mrf.mxu0
      %v730 = vpop.f32.mrf.mxu0
      %v731 = vadd.f32 0.0, %v730
      %v732 = vpop.f32.mrf.mxu0
      %733 = vmatprep.mubr.bf16.mxu0 0
      %734 = vmatmul.mubr.bf16.gmra.mxu0 %v543
      %v735 = vpop.f32.mrf.mxu0
      %v736 = vadd.f32 0.0, %v735
      %v737 = vpop.f32.mrf.mxu0
      %v738 = vpop.f32.mrf.mxu0
      %v739 = vadd.f32 0.0, %v738
      %v740 = vpop.f32.mrf.mxu0
      %741 = vdwg.mxu0
      %v742 = vsel %vm484, %v298, 0
      %v744 = vsel %vm484, %v299, 0
      %v746 = vsel %vm484, %v300, 0
      %v748 = vsel %vm484, %v301, 0
      %v750 = vsel %vm484, %v302, 0
      %v752 = vsel %vm484, %v303, 0
      %v754 = vsel %vm484, %v304, 0
      %v756 = vsel %vm484, %v305, 0
      %v758 = vsel %vm484, %v306, 0
      %v760 = vsel %vm484, %v307, 0
      %v762 = vsel %vm484, %v308, 0
      %v764 = vsel %vm484, %v309, 0
      %v766 = vsel %vm484, %v310, 0
      %v768 = vsel %vm484, %v311, 0
      %v770 = vsel %vm484, %v312, 0
      %v772 = vsel %vm484, %v313, 0
      %v774 = vsel %vm484, %v314, 0
      %v776 = vsel %vm484, %v315, 0
      %v778 = vsel %vm484, %v316, 0
      %v780 = vsel %vm484, %v317, 0
      %v783 = vsel %vm545, %v212, 0
      %785 = vmatprep.subr.bf16.mxu0 0
      %786 = vmatpush1.bf16.msra.mxu0 0
      %787 = vmatprep.subr.bf16.mxu0 0
      %788 = vmatpush1.bf16.msra.mxu0 0
      %789 = vmatprep.subr.bf16.mxu0 0
      %790 = vmatpush1.bf16.msra.mxu0 0
      %791 = vmatprep.subr.bf16.mxu0 0
      %792 = vmatpush1.bf16.msra.mxu0 0
      %793 = vmatprep.subr.bf16.mxu0 0
      %794 = vmatpush1.bf16.msra.mxu0 0
      %795 = vmatprep.subr.bf16.mxu0 0
      %796 = vmatpush1.bf16.msra.mxu0 0
      %797 = vmatprep.subr.bf16.mxu0 0
      %798 = vmatpush1.bf16.msra.mxu0 0
      %799 = vmatprep.subr.bf16.mxu0 0
      %800 = vmatpush1.bf16.msra.mxu0 %v783
      %801 = vmatprep.subr.bf16.mxu0 0
      %802 = vmatpush2.bf16.msra.mxu0 0
      %803 = vmatprep.subr.bf16.mxu0 0
      %804 = vmatpush2.bf16.msra.mxu0 0
      %805 = vmatprep.subr.bf16.mxu0 0
      %806 = vmatpush2.bf16.msra.mxu0 0
      %807 = vmatprep.subr.bf16.mxu0 0
      %808 = vmatpush2.bf16.msra.mxu0 0
      %809 = vmatprep.subr.bf16.mxu0 0
      %810 = vmatpush2.bf16.msra.mxu0 0
      %811 = vmatprep.subr.bf16.mxu0 0
      %812 = vmatpush2.bf16.msra.mxu0 0
      %813 = vmatprep.subr.bf16.mxu0 0
      %814 = vmatpush2.bf16.msra.mxu0 0
      %815 = vmatprep.subr.bf16.mxu0 0
      %816 = vmatpush2.bf16.msra.mxu0 0
      %817 = vmatprep.mubr.bf16.mxu0 0
      %818 = vmatmul.mubr.bf16.gmra.mxu0 %v742
      %v819 = vpop.f32.mrf.mxu0
      %v820 = vadd.f32 %v584, %v819
      %v821 = vpop.f32.mrf.mxu0
      %v822 = vpop.f32.mrf.mxu0
      %v823 = vadd.f32 %v587, %v822
      %v824 = vpop.f32.mrf.mxu0
      %825 = vmatprep.mubr.bf16.mxu0 0
      %826 = vmatmul.mubr.bf16.gmra.mxu0 %v744
      %v827 = vpop.f32.mrf.mxu0
      %v828 = vadd.f32 %v592, %v827
      %v829 = vpop.f32.mrf.mxu0
      %v830 = vpop.f32.mrf.mxu0
      %v831 = vadd.f32 %v595, %v830
      %v832 = vpop.f32.mrf.mxu0
      %833 = vmatprep.mubr.bf16.mxu0 0
      %834 = vmatmul.mubr.bf16.gmra.mxu0 %v746
      %v835 = vpop.f32.mrf.mxu0
      %v836 = vadd.f32 %v600, %v835
      %v837 = vpop.f32.mrf.mxu0
      %v838 = vpop.f32.mrf.mxu0
      %v839 = vadd.f32 %v603, %v838
      %v840 = vpop.f32.mrf.mxu0
      %841 = vmatprep.mubr.bf16.mxu0 0
      %842 = vmatmul.mubr.bf16.gmra.mxu0 %v748
      %v843 = vpop.f32.mrf.mxu0
      %v844 = vadd.f32 %v608, %v843
      %v845 = vpop.f32.mrf.mxu0
      %v846 = vpop.f32.mrf.mxu0
      %v847 = vadd.f32 %v611, %v846
      %v848 = vpop.f32.mrf.mxu0
      %849 = vmatprep.mubr.bf16.mxu0 0
      %850 = vmatmul.mubr.bf16.gmra.mxu0 %v750
      %v851 = vpop.f32.mrf.mxu0
      %v852 = vadd.f32 %v616, %v851
      %v853 = vpop.f32.mrf.mxu0
      %v854 = vpop.f32.mrf.mxu0
      %v855 = vadd.f32 %v619, %v854
      %v856 = vpop.f32.mrf.mxu0
      %857 = vmatprep.mubr.bf16.mxu0 0
      %858 = vmatmul.mubr.bf16.gmra.mxu0 %v752
      %v859 = vpop.f32.mrf.mxu0
      %v860 = vadd.f32 %v624, %v859
      %v861 = vpop.f32.mrf.mxu0
      %v862 = vpop.f32.mrf.mxu0
      %v863 = vadd.f32 %v627, %v862
      %v864 = vpop.f32.mrf.mxu0
      %865 = vmatprep.mubr.bf16.mxu0 0
      %866 = vmatmul.mubr.bf16.gmra.mxu0 %v754
      %v867 = vpop.f32.mrf.mxu0
      %v868 = vadd.f32 %v632, %v867
      %v869 = vpop.f32.mrf.mxu0
      %v870 = vpop.f32.mrf.mxu0
      %v871 = vadd.f32 %v635, %v870
      %v872 = vpop.f32.mrf.mxu0
      %873 = vmatprep.mubr.bf16.mxu0 0
      %874 = vmatmul.mubr.bf16.gmra.mxu0 %v756
      %v875 = vpop.f32.mrf.mxu0
      %v876 = vadd.f32 %v640, %v875
      %v877 = vpop.f32.mrf.mxu0
      %v878 = vpop.f32.mrf.mxu0
      %v879 = vadd.f32 %v643, %v878
      %v880 = vpop.f32.mrf.mxu0
      %881 = vmatprep.mubr.bf16.mxu0 0
      %882 = vmatmul.mubr.bf16.gmra.mxu0 %v758
      %v883 = vpop.f32.mrf.mxu0
      %v884 = vadd.f32 %v648, %v883
      %v885 = vpop.f32.mrf.mxu0
      %v886 = vpop.f32.mrf.mxu0
      %v887 = vadd.f32 %v651, %v886
      %v888 = vpop.f32.mrf.mxu0
      %889 = vmatprep.mubr.bf16.mxu0 0
      %890 = vmatmul.mubr.bf16.gmra.mxu0 %v760
      %v891 = vpop.f32.mrf.mxu0
      %v892 = vadd.f32 %v656, %v891
      %v893 = vpop.f32.mrf.mxu0
      %v894 = vpop.f32.mrf.mxu0
      %v895 = vadd.f32 %v659, %v894
      %v896 = vpop.f32.mrf.mxu0
      %897 = vmatprep.mubr.bf16.mxu0 0
      %898 = vmatmul.mubr.bf16.gmra.mxu0 %v762
      %v899 = vpop.f32.mrf.mxu0
      %v900 = vadd.f32 %v664, %v899
      %v901 = vpop.f32.mrf.mxu0
      %v902 = vpop.f32.mrf.mxu0
      %v903 = vadd.f32 %v667, %v902
      %v904 = vpop.f32.mrf.mxu0
      %905 = vmatprep.mubr.bf16.mxu0 0
      %906 = vmatmul.mubr.bf16.gmra.mxu0 %v764
      %v907 = vpop.f32.mrf.mxu0
      %v908 = vadd.f32 %v672, %v907
      %v909 = vpop.f32.mrf.mxu0
      %v910 = vpop.f32.mrf.mxu0
      %v911 = vadd.f32 %v675, %v910
      %v912 = vpop.f32.mrf.mxu0
      %913 = vmatprep.mubr.bf16.mxu0 0
      %914 = vmatmul.mubr.bf16.gmra.mxu0 %v766
      %v915 = vpop.f32.mrf.mxu0
      %v916 = vadd.f32 %v680, %v915
      %v917 = vpop.f32.mrf.mxu0
      %v918 = vpop.f32.mrf.mxu0
      %v919 = vadd.f32 %v683, %v918
      %v920 = vpop.f32.mrf.mxu0
      %921 = vmatprep.mubr.bf16.mxu0 0
      %922 = vmatmul.mubr.bf16.gmra.mxu0 %v768
      %v923 = vpop.f32.mrf.mxu0
      %v924 = vadd.f32 %v688, %v923
      %v925 = vpop.f32.mrf.mxu0
      %v926 = vpop.f32.mrf.mxu0
      %v927 = vadd.f32 %v691, %v926
      %v928 = vpop.f32.mrf.mxu0
      %929 = vmatprep.mubr.bf16.mxu0 0
      %930 = vmatmul.mubr.bf16.gmra.mxu0 %v770
      %v931 = vpop.f32.mrf.mxu0
      %v932 = vadd.f32 %v696, %v931
      %v933 = vpop.f32.mrf.mxu0
      %v934 = vpop.f32.mrf.mxu0
      %v935 = vadd.f32 %v699, %v934
      %v936 = vpop.f32.mrf.mxu0
      %937 = vmatprep.mubr.bf16.mxu0 0
      %938 = vmatmul.mubr.bf16.gmra.mxu0 %v772
      %v939 = vpop.f32.mrf.mxu0
      %v940 = vadd.f32 %v704, %v939
      %v941 = vpop.f32.mrf.mxu0
      %v942 = vpop.f32.mrf.mxu0
      %v943 = vadd.f32 %v707, %v942
      %v944 = vpop.f32.mrf.mxu0
      %945 = vmatprep.mubr.bf16.mxu0 0
      %946 = vmatmul.mubr.bf16.gmra.mxu0 %v774
      %v947 = vpop.f32.mrf.mxu0
      %v948 = vadd.f32 %v712, %v947
      %v949 = vpop.f32.mrf.mxu0
      %v950 = vpop.f32.mrf.mxu0
      %v951 = vadd.f32 %v715, %v950
      %v952 = vpop.f32.mrf.mxu0
      %953 = vmatprep.mubr.bf16.mxu0 0
      %954 = vmatmul.mubr.bf16.gmra.mxu0 %v776
      %v955 = vpop.f32.mrf.mxu0
      %v956 = vadd.f32 %v720, %v955
      %v957 = vpop.f32.mrf.mxu0
      %v958 = vpop.f32.mrf.mxu0
      %v959 = vadd.f32 %v723, %v958
      %v960 = vpop.f32.mrf.mxu0
      %961 = vmatprep.mubr.bf16.mxu0 0
      %962 = vmatmul.mubr.bf16.gmra.mxu0 %v778
      %v963 = vpop.f32.mrf.mxu0
      %v964 = vadd.f32 %v728, %v963
      %v965 = vpop.f32.mrf.mxu0
      %v966 = vpop.f32.mrf.mxu0
      %v967 = vadd.f32 %v731, %v966
      %v968 = vpop.f32.mrf.mxu0
      %969 = vmatprep.mubr.bf16.mxu0 0
      %970 = vmatmul.mubr.bf16.gmra.mxu0 %v780
      %v971 = vpop.f32.mrf.mxu0
      %v972 = vadd.f32 %v736, %v971
      %v973 = vpop.f32.mrf.mxu0
      %v974 = vpop.f32.mrf.mxu0
      %v975 = vadd.f32 %v739, %v974
      %v976 = vpop.f32.mrf.mxu0
      %977 = vdwg.mxu0
      %v978 = vld [vmem:[%s165] sm:$0xe]
      %s979 = scalar_lea.vmem %s1, 4
      %v980 = vld [vmem:[%s979] sm:$0x3]
      %v982 = vunpack.c.l.b16 %v978
      %v983 = vpack.c.b16 %v258, %v982
      %vm984 = vcmask 1046528
      %v985 = vrot.slane %v983, 1
      %v986 = vrot.slane %v299, 1
      %v987 = vsel %vm984, %v985, %v986
      %v988 = vrot.slane %v300, 1
      %v989 = vsel %vm984, %v986, %v988
      %v990 = vrot.slane %v301, 1
      %v991 = vsel %vm984, %v988, %v990
      %v992 = vrot.slane %v302, 1
      %v993 = vsel %vm984, %v990, %v992
      %v994 = vrot.slane %v303, 1
      %v995 = vsel %vm984, %v992, %v994
      %v996 = vrot.slane %v304, 1
      %v997 = vsel %vm984, %v994, %v996
      %v998 = vrot.slane %v305, 1
      %v999 = vsel %vm984, %v996, %v998
      %v1000 = vrot.slane %v306, 1
      %v1001 = vsel %vm984, %v998, %v1000
      %v1002 = vrot.slane %v307, 1
      %v1003 = vsel %vm984, %v1000, %v1002
      %v1004 = vrot.slane %v308, 1
      %v1005 = vsel %vm984, %v1002, %v1004
      %v1006 = vrot.slane %v309, 1
      %v1007 = vsel %vm984, %v1004, %v1006
      %v1008 = vrot.slane %v310, 1
      %v1009 = vsel %vm984, %v1006, %v1008
      %v1010 = vrot.slane %v311, 1
      %v1011 = vsel %vm984, %v1008, %v1010
      %v1012 = vrot.slane %v312, 1
      %v1013 = vsel %vm984, %v1010, %v1012
      %v1014 = vrot.slane %v313, 1
      %v1015 = vsel %vm984, %v1012, %v1014
      %v1016 = vrot.slane %v314, 1
      %v1017 = vsel %vm984, %v1014, %v1016
      %v1018 = vrot.slane %v315, 1
      %v1019 = vsel %vm984, %v1016, %v1018
      %v1020 = vrot.slane %v316, 1
      %v1021 = vsel %vm984, %v1018, %v1020
      %v1022 = vrot.slane %v317, 1
      %v1023 = vsel %vm984, %v1020, %v1022
      %v1024 = vrot.slane %v318, 1
      %v1025 = vsel %vm984, %v1022, %v1024
      %v1027 = vsel %vm484, %v987, 0
      %v1030 = vsel %vm484, %v989, 0
      %v1033 = vsel %vm484, %v991, 0
      %v1036 = vsel %vm484, %v993, 0
      %v1039 = vsel %vm484, %v995, 0
      %v1042 = vsel %vm484, %v997, 0
      %v1045 = vsel %vm484, %v999, 0
      %v1048 = vsel %vm484, %v1001, 0
      %v1051 = vsel %vm484, %v1003, 0
      %v1054 = vsel %vm484, %v1005, 0
      %v1057 = vsel %vm484, %v1007, 0
      %v1060 = vsel %vm484, %v1009, 0
      %v1063 = vsel %vm484, %v1011, 0
      %v1066 = vsel %vm484, %v1013, 0
      %v1069 = vsel %vm484, %v1015, 0
      %v1072 = vsel %vm484, %v1017, 0
      %v1075 = vsel %vm484, %v1019, 0
      %v1078 = vsel %vm484, %v1021, 0
      %v1081 = vsel %vm484, %v1023, 0
      %v1084 = vsel %vm484, %v1025, 0
      %v1087 = vsel %vm545, %v980, 0
      %1089 = vmatprep.subr.bf16.mxu0 0
      %1090 = vmatpush1.bf16.msra.mxu0 0
      %1091 = vmatprep.subr.bf16.mxu0 0
      %1092 = vmatpush1.bf16.msra.mxu0 0
      %1093 = vmatprep.subr.bf16.mxu0 0
      %1094 = vmatpush1.bf16.msra.mxu0 0
      %1095 = vmatprep.subr.bf16.mxu0 0
      %1096 = vmatpush1.bf16.msra.mxu0 0
      %1097 = vmatprep.subr.bf16.mxu0 0
      %1098 = vmatpush1.bf16.msra.mxu0 0
      %1099 = vmatprep.subr.bf16.mxu0 0
      %1100 = vmatpush1.bf16.msra.mxu0 0
      %1101 = vmatprep.subr.bf16.mxu0 0
      %1102 = vmatpush1.bf16.msra.mxu0 0
      %1103 = vmatprep.subr.bf16.mxu0 0
      %1104 = vmatpush1.bf16.msra.mxu0 %v1087
      %1105 = vmatprep.subr.bf16.mxu0 0
      %1106 = vmatpush2.bf16.msra.mxu0 0
      %1107 = vmatprep.subr.bf16.mxu0 0
      %1108 = vmatpush2.bf16.msra.mxu0 0
      %1109 = vmatprep.subr.bf16.mxu0 0
      %1110 = vmatpush2.bf16.msra.mxu0 0
      %1111 = vmatprep.subr.bf16.mxu0 0
      %1112 = vmatpush2.bf16.msra.mxu0 0
      %1113 = vmatprep.subr.bf16.mxu0 0
      %1114 = vmatpush2.bf16.msra.mxu0 0
      %1115 = vmatprep.subr.bf16.mxu0 0
      %1116 = vmatpush2.bf16.msra.mxu0 0
      %1117 = vmatprep.subr.bf16.mxu0 0
      %1118 = vmatpush2.bf16.msra.mxu0 0
      %1119 = vmatprep.subr.bf16.mxu0 0
      %1120 = vmatpush2.bf16.msra.mxu0 0
      %1121 = vmatprep.mubr.bf16.mxu0 0
      %1122 = vmatmul.mubr.bf16.gmra.mxu0 %v1027
      %v1123 = vpop.f32.mrf.mxu0
      %v1124 = vadd.f32 0.0, %v1123
      %v1125 = vpop.f32.mrf.mxu0
      %v1126 = vpop.f32.mrf.mxu0
      %v1127 = vadd.f32 0.0, %v1126
      %v1128 = vpop.f32.mrf.mxu0
      %1129 = vmatprep.mubr.bf16.mxu0 0
      %1130 = vmatmul.mubr.bf16.gmra.mxu0 %v1030
      %v1131 = vpop.f32.mrf.mxu0
      %v1132 = vadd.f32 0.0, %v1131
      %v1133 = vpop.f32.mrf.mxu0
      %v1134 = vpop.f32.mrf.mxu0
      %v1135 = vadd.f32 0.0, %v1134
      %v1136 = vpop.f32.mrf.mxu0
      %1137 = vmatprep.mubr.bf16.mxu0 0
      %1138 = vmatmul.mubr.bf16.gmra.mxu0 %v1033
      %v1139 = vpop.f32.mrf.mxu0
      %v1140 = vadd.f32 0.0, %v1139
      %v1141 = vpop.f32.mrf.mxu0
      %v1142 = vpop.f32.mrf.mxu0
      %v1143 = vadd.f32 0.0, %v1142
      %v1144 = vpop.f32.mrf.mxu0
      %1145 = vmatprep.mubr.bf16.mxu0 0
      %1146 = vmatmul.mubr.bf16.gmra.mxu0 %v1036
      %v1147 = vpop.f32.mrf.mxu0
      %v1148 = vadd.f32 0.0, %v1147
      %v1149 = vpop.f32.mrf.mxu0
      %v1150 = vpop.f32.mrf.mxu0
      %v1151 = vadd.f32 0.0, %v1150
      %v1152 = vpop.f32.mrf.mxu0
      %1153 = vmatprep.mubr.bf16.mxu0 0
      %1154 = vmatmul.mubr.bf16.gmra.mxu0 %v1039
      %v1155 = vpop.f32.mrf.mxu0
      %v1156 = vadd.f32 0.0, %v1155
      %v1157 = vpop.f32.mrf.mxu0
      %v1158 = vpop.f32.mrf.mxu0
      %v1159 = vadd.f32 0.0, %v1158
      %v1160 = vpop.f32.mrf.mxu0
      %1161 = vmatprep.mubr.bf16.mxu0 0
      %1162 = vmatmul.mubr.bf16.gmra.mxu0 %v1042
      %v1163 = vpop.f32.mrf.mxu0
      %v1164 = vadd.f32 0.0, %v1163
      %v1165 = vpop.f32.mrf.mxu0
      %v1166 = vpop.f32.mrf.mxu0
      %v1167 = vadd.f32 0.0, %v1166
      %v1168 = vpop.f32.mrf.mxu0
      %1169 = vmatprep.mubr.bf16.mxu0 0
      %1170 = vmatmul.mubr.bf16.gmra.mxu0 %v1045
      %v1171 = vpop.f32.mrf.mxu0
      %v1172 = vadd.f32 0.0, %v1171
      %v1173 = vpop.f32.mrf.mxu0
      %v1174 = vpop.f32.mrf.mxu0
      %v1175 = vadd.f32 0.0, %v1174
      %v1176 = vpop.f32.mrf.mxu0
      %1177 = vmatprep.mubr.bf16.mxu0 0
      %1178 = vmatmul.mubr.bf16.gmra.mxu0 %v1048
      %v1179 = vpop.f32.mrf.mxu0
      %v1180 = vadd.f32 0.0, %v1179
      %v1181 = vpop.f32.mrf.mxu0
      %v1182 = vpop.f32.mrf.mxu0
      %v1183 = vadd.f32 0.0, %v1182
      %v1184 = vpop.f32.mrf.mxu0
      %1185 = vmatprep.mubr.bf16.mxu0 0
      %1186 = vmatmul.mubr.bf16.gmra.mxu0 %v1051
      %v1187 = vpop.f32.mrf.mxu0
      %v1188 = vadd.f32 0.0, %v1187
      %v1189 = vpop.f32.mrf.mxu0
      %v1190 = vpop.f32.mrf.mxu0
      %v1191 = vadd.f32 0.0, %v1190
      %v1192 = vpop.f32.mrf.mxu0
      %1193 = vmatprep.mubr.bf16.mxu0 0
      %1194 = vmatmul.mubr.bf16.gmra.mxu0 %v1054
      %v1195 = vpop.f32.mrf.mxu0
      %v1196 = vadd.f32 0.0, %v1195
      %v1197 = vpop.f32.mrf.mxu0
      %v1198 = vpop.f32.mrf.mxu0
      %v1199 = vadd.f32 0.0, %v1198
      %v1200 = vpop.f32.mrf.mxu0
      %1201 = vmatprep.mubr.bf16.mxu0 0
      %1202 = vmatmul.mubr.bf16.gmra.mxu0 %v1057
      %v1203 = vpop.f32.mrf.mxu0
      %v1204 = vadd.f32 0.0, %v1203
      %v1205 = vpop.f32.mrf.mxu0
      %v1206 = vpop.f32.mrf.mxu0
      %v1207 = vadd.f32 0.0, %v1206
      %v1208 = vpop.f32.mrf.mxu0
      %1209 = vmatprep.mubr.bf16.mxu0 0
      %1210 = vmatmul.mubr.bf16.gmra.mxu0 %v1060
      %v1211 = vpop.f32.mrf.mxu0
      %v1212 = vadd.f32 0.0, %v1211
      %v1213 = vpop.f32.mrf.mxu0
      %v1214 = vpop.f32.mrf.mxu0
      %v1215 = vadd.f32 0.0, %v1214
      %v1216 = vpop.f32.mrf.mxu0
      %1217 = vmatprep.mubr.bf16.mxu0 0
      %1218 = vmatmul.mubr.bf16.gmra.mxu0 %v1063
      %v1219 = vpop.f32.mrf.mxu0
      %v1220 = vadd.f32 0.0, %v1219
      %v1221 = vpop.f32.mrf.mxu0
      %v1222 = vpop.f32.mrf.mxu0
      %v1223 = vadd.f32 0.0, %v1222
      %v1224 = vpop.f32.mrf.mxu0
      %1225 = vmatprep.mubr.bf16.mxu0 0
      %1226 = vmatmul.mubr.bf16.gmra.mxu0 %v1066
      %v1227 = vpop.f32.mrf.mxu0
      %v1228 = vadd.f32 0.0, %v1227
      %v1229 = vpop.f32.mrf.mxu0
      %v1230 = vpop.f32.mrf.mxu0
      %v1231 = vadd.f32 0.0, %v1230
      %v1232 = vpop.f32.mrf.mxu0
      %1233 = vmatprep.mubr.bf16.mxu0 0
      %1234 = vmatmul.mubr.bf16.gmra.mxu0 %v1069
      %v1235 = vpop.f32.mrf.mxu0
      %v1236 = vadd.f32 0.0, %v1235
      %v1237 = vpop.f32.mrf.mxu0
      %v1238 = vpop.f32.mrf.mxu0
      %v1239 = vadd.f32 0.0, %v1238
      %v1240 = vpop.f32.mrf.mxu0
      %1241 = vmatprep.mubr.bf16.mxu0 0
      %1242 = vmatmul.mubr.bf16.gmra.mxu0 %v1072
      %v1243 = vpop.f32.mrf.mxu0
      %v1244 = vadd.f32 0.0, %v1243
      %v1245 = vpop.f32.mrf.mxu0
      %v1246 = vpop.f32.mrf.mxu0
      %v1247 = vadd.f32 0.0, %v1246
      %v1248 = vpop.f32.mrf.mxu0
      %1249 = vmatprep.mubr.bf16.mxu0 0
      %1250 = vmatmul.mubr.bf16.gmra.mxu0 %v1075
      %v1251 = vpop.f32.mrf.mxu0
      %v1252 = vadd.f32 0.0, %v1251
      %v1253 = vpop.f32.mrf.mxu0
      %v1254 = vpop.f32.mrf.mxu0
      %v1255 = vadd.f32 0.0, %v1254
      %v1256 = vpop.f32.mrf.mxu0
      %1257 = vmatprep.mubr.bf16.mxu0 0
      %1258 = vmatmul.mubr.bf16.gmra.mxu0 %v1078
      %v1259 = vpop.f32.mrf.mxu0
      %v1260 = vadd.f32 0.0, %v1259
      %v1261 = vpop.f32.mrf.mxu0
      %v1262 = vpop.f32.mrf.mxu0
      %v1263 = vadd.f32 0.0, %v1262
      %v1264 = vpop.f32.mrf.mxu0
      %1265 = vmatprep.mubr.bf16.mxu0 0
      %1266 = vmatmul.mubr.bf16.gmra.mxu0 %v1081
      %v1267 = vpop.f32.mrf.mxu0
      %v1268 = vadd.f32 0.0, %v1267
      %v1269 = vpop.f32.mrf.mxu0
      %v1270 = vpop.f32.mrf.mxu0
      %v1271 = vadd.f32 0.0, %v1270
      %v1272 = vpop.f32.mrf.mxu0
      %1273 = vmatprep.mubr.bf16.mxu0 0
      %1274 = vmatmul.mubr.bf16.gmra.mxu0 %v1084
      %v1275 = vpop.f32.mrf.mxu0
      %v1276 = vadd.f32 0.0, %v1275
      %v1277 = vpop.f32.mrf.mxu0
      %v1278 = vpop.f32.mrf.mxu0
      %v1279 = vadd.f32 0.0, %v1278
      %v1280 = vpop.f32.mrf.mxu0
      %1281 = vdwg.mxu0
      %v1282 = vadd.f32 %v820, %v1124
      %v1283 = vadd.f32 %v823, %v1127
      %v1284 = vadd.f32 %v828, %v1132
      %v1285 = vadd.f32 %v831, %v1135
      %v1286 = vadd.f32 %v836, %v1140
      %v1287 = vadd.f32 %v839, %v1143
      %v1288 = vadd.f32 %v844, %v1148
      %v1289 = vadd.f32 %v847, %v1151
      %v1290 = vadd.f32 %v852, %v1156
      %v1291 = vadd.f32 %v855, %v1159
      %v1292 = vadd.f32 %v860, %v1164
      %v1293 = vadd.f32 %v863, %v1167
      %v1294 = vadd.f32 %v868, %v1172
      %v1295 = vadd.f32 %v871, %v1175
      %v1296 = vadd.f32 %v876, %v1180
      %v1297 = vadd.f32 %v879, %v1183
      %v1298 = vadd.f32 %v884, %v1188
      %v1299 = vadd.f32 %v887, %v1191
      %v1300 = vadd.f32 %v892, %v1196
      %v1301 = vadd.f32 %v895, %v1199
      %v1302 = vadd.f32 %v900, %v1204
      %v1303 = vadd.f32 %v903, %v1207
      %v1304 = vadd.f32 %v908, %v1212
      %v1305 = vadd.f32 %v911, %v1215
      %v1306 = vadd.f32 %v916, %v1220
      %v1307 = vadd.f32 %v919, %v1223
      %v1308 = vadd.f32 %v924, %v1228
      %v1309 = vadd.f32 %v927, %v1231
      %v1310 = vadd.f32 %v932, %v1236
      %v1311 = vadd.f32 %v935, %v1239
      %v1312 = vadd.f32 %v940, %v1244
      %v1313 = vadd.f32 %v943, %v1247
      %v1314 = vadd.f32 %v948, %v1252
      %v1315 = vadd.f32 %v951, %v1255
      %v1316 = vadd.f32 %v956, %v1260
      %v1317 = vadd.f32 %v959, %v1263
      %v1318 = vadd.f32 %v964, %v1268
      %v1319 = vadd.f32 %v967, %v1271
      %v1320 = vadd.f32 %v972, %v1276
      %v1321 = vadd.f32 %v975, %v1279
      %v1322 = vld [vmem:[%s165 + $0xa0] sm:$0x3]
      %s1323 = scalar_lea.vmem %s1, 6
      %v1324 = vld [vmem:[%s1323] sm:$0x3]
      %v1326 = vunpack.c.l.b16 %v1322
      %v1327 = vpack.c.b16 %v1326, %v1326
      %vm1328 = vsmask.f32 6400
      %v1330 = vshrl.u32 %v983, 16
      %v1332 = vrot.slane %v1330, 1
      %v1333 = vshll.u32 %v983, 16
      %v1335 = vrot.slane %v1333, 2
      %v1336 = vor.u32 %v1332, %v1335
      %v1337 = vrot.slane %v332, 1
      %v1338 = vrot.slane %v328, 2
      %v1339 = vor.u32 %v1337, %v1338
      %v1340 = vsel %vm1328, %v1336, %v1339
      %v1341 = vrot.slane %v340, 1
      %v1342 = vrot.slane %v336, 2
      %v1343 = vor.u32 %v1341, %v1342
      %v1344 = vsel %vm1328, %v1339, %v1343
      %v1345 = vrot.slane %v348, 1
      %v1346 = vrot.slane %v344, 2
      %v1347 = vor.u32 %v1345, %v1346
      %v1348 = vsel %vm1328, %v1343, %v1347
      %v1349 = vrot.slane %v356, 1
      %v1350 = vrot.slane %v352, 2
      %v1351 = vor.u32 %v1349, %v1350
      %v1352 = vsel %vm1328, %v1347, %v1351
      %v1353 = vrot.slane %v364, 1
      %v1354 = vrot.slane %v360, 2
      %v1355 = vor.u32 %v1353, %v1354
      %v1356 = vsel %vm1328, %v1351, %v1355
      %v1357 = vrot.slane %v372, 1
      %v1358 = vrot.slane %v368, 2
      %v1359 = vor.u32 %v1357, %v1358
      %v1360 = vsel %vm1328, %v1355, %v1359
      %v1361 = vrot.slane %v380, 1
      %v1362 = vrot.slane %v376, 2
      %v1363 = vor.u32 %v1361, %v1362
      %v1364 = vsel %vm1328, %v1359, %v1363
      %v1365 = vrot.slane %v388, 1
      %v1366 = vrot.slane %v384, 2
      %v1367 = vor.u32 %v1365, %v1366
      %v1368 = vsel %vm1328, %v1363, %v1367
      %v1369 = vrot.slane %v396, 1
      %v1370 = vrot.slane %v392, 2
      %v1371 = vor.u32 %v1369, %v1370
      %v1372 = vsel %vm1328, %v1367, %v1371
      %v1373 = vrot.slane %v404, 1
      %v1374 = vrot.slane %v400, 2
      %v1375 = vor.u32 %v1373, %v1374
      %v1376 = vsel %vm1328, %v1371, %v1375
      %v1377 = vrot.slane %v412, 1
      %v1378 = vrot.slane %v408, 2
      %v1379 = vor.u32 %v1377, %v1378
      %v1380 = vsel %vm1328, %v1375, %v1379
      %v1381 = vrot.slane %v420, 1
      %v1382 = vrot.slane %v416, 2
      %v1383 = vor.u32 %v1381, %v1382
      %v1384 = vsel %vm1328, %v1379, %v1383
      %v1385 = vrot.slane %v428, 1
      %v1386 = vrot.slane %v424, 2
      %v1387 = vor.u32 %v1385, %v1386
      %v1388 = vsel %vm1328, %v1383, %v1387
      %v1389 = vrot.slane %v436, 1
      %v1390 = vrot.slane %v432, 2
      %v1391 = vor.u32 %v1389, %v1390
      %v1392 = vsel %vm1328, %v1387, %v1391
      %v1393 = vrot.slane %v444, 1
      %v1394 = vrot.slane %v440, 2
      %v1395 = vor.u32 %v1393, %v1394
      %v1396 = vsel %vm1328, %v1391, %v1395
      %v1397 = vrot.slane %v452, 1
      %v1398 = vrot.slane %v448, 2
      %v1399 = vor.u32 %v1397, %v1398
      %v1400 = vsel %vm1328, %v1395, %v1399
      %v1401 = vrot.slane %v460, 1
      %v1402 = vrot.slane %v456, 2
      %v1403 = vor.u32 %v1401, %v1402
      %v1404 = vsel %vm1328, %v1399, %v1403
      %v1405 = vrot.slane %v468, 1
      %v1406 = vrot.slane %v464, 2
      %v1407 = vor.u32 %v1405, %v1406
      %v1408 = vsel %vm1328, %v1403, %v1407
      %v1409 = vrot.slane %v476, 1
      %v1410 = vrot.slane %v472, 2
      %v1411 = vor.u32 %v1409, %v1410
      %v1412 = vsel %vm1328, %v1407, %v1411
      %v1414 = vshrl.u32 %v1327, 16
      %v1416 = vrot.slane %v1414, 1
      %v1417 = vshll.u32 %v1327, 16
      %v1419 = vrot.slane %v1417, 2
      %v1420 = vor.u32 %v1416, %v1419
      %v1421 = vsel %vm1328, %v1411, %v1420
      %v1423 = vsel %vm484, %v1340, 0
      %v1426 = vsel %vm484, %v1344, 0
      %v1429 = vsel %vm484, %v1348, 0
      %v1432 = vsel %vm484, %v1352, 0
      %v1435 = vsel %vm484, %v1356, 0
      %v1438 = vsel %vm484, %v1360, 0
      %v1441 = vsel %vm484, %v1364, 0
      %v1444 = vsel %vm484, %v1368, 0
      %v1447 = vsel %vm484, %v1372, 0
      %v1450 = vsel %vm484, %v1376, 0
      %v1453 = vsel %vm484, %v1380, 0
      %v1456 = vsel %vm484, %v1384, 0
      %v1459 = vsel %vm484, %v1388, 0
      %v1462 = vsel %vm484, %v1392, 0
      %v1465 = vsel %vm484, %v1396, 0
      %v1468 = vsel %vm484, %v1400, 0
      %v1471 = vsel %vm484, %v1404, 0
      %v1474 = vsel %vm484, %v1408, 0
      %v1477 = vsel %vm484, %v1412, 0
      %v1480 = vsel %vm484, %v1421, 0
      %v1483 = vsel %vm545, %v1324, 0
      %1485 = vmatprep.subr.bf16.mxu0 0
      %1486 = vmatpush1.bf16.msra.mxu0 0
      %1487 = vmatprep.subr.bf16.mxu0 0
      %1488 = vmatpush1.bf16.msra.mxu0 0
      %1489 = vmatprep.subr.bf16.mxu0 0
      %1490 = vmatpush1.bf16.msra.mxu0 0
      %1491 = vmatprep.subr.bf16.mxu0 0
      %1492 = vmatpush1.bf16.msra.mxu0 0
      %1493 = vmatprep.subr.bf16.mxu0 0
      %1494 = vmatpush1.bf16.msra.mxu0 0
      %1495 = vmatprep.subr.bf16.mxu0 0
      %1496 = vmatpush1.bf16.msra.mxu0 0
      %1497 = vmatprep.subr.bf16.mxu0 0
      %1498 = vmatpush1.bf16.msra.mxu0 0
      %1499 = vmatprep.subr.bf16.mxu0 0
      %1500 = vmatpush1.bf16.msra.mxu0 %v1483
      %1501 = vmatprep.subr.bf16.mxu0 0
      %1502 = vmatpush2.bf16.msra.mxu0 0
      %1503 = vmatprep.subr.bf16.mxu0 0
      %1504 = vmatpush2.bf16.msra.mxu0 0
      %1505 = vmatprep.subr.bf16.mxu0 0
      %1506 = vmatpush2.bf16.msra.mxu0 0
      %1507 = vmatprep.subr.bf16.mxu0 0
      %1508 = vmatpush2.bf16.msra.mxu0 0
      %1509 = vmatprep.subr.bf16.mxu0 0
      %1510 = vmatpush2.bf16.msra.mxu0 0
      %1511 = vmatprep.subr.bf16.mxu0 0
      %1512 = vmatpush2.bf16.msra.mxu0 0
      %1513 = vmatprep.subr.bf16.mxu0 0
      %1514 = vmatpush2.bf16.msra.mxu0 0
      %1515 = vmatprep.subr.bf16.mxu0 0
      %1516 = vmatpush2.bf16.msra.mxu0 0
      %1517 = vmatprep.mubr.bf16.mxu0 0
      %1518 = vmatmul.mubr.bf16.gmra.mxu0 %v1423
      %v1519 = vpop.f32.mrf.mxu0
      %v1520 = vadd.f32 0.0, %v1519
      %v1521 = vpop.f32.mrf.mxu0
      %v1522 = vpop.f32.mrf.mxu0
      %v1523 = vadd.f32 0.0, %v1522
      %v1524 = vpop.f32.mrf.mxu0
      %1525 = vmatprep.mubr.bf16.mxu0 0
      %1526 = vmatmul.mubr.bf16.gmra.mxu0 %v1426
      %v1527 = vpop.f32.mrf.mxu0
      %v1528 = vadd.f32 0.0, %v1527
      %v1529 = vpop.f32.mrf.mxu0
      %v1530 = vpop.f32.mrf.mxu0
      %v1531 = vadd.f32 0.0, %v1530
      %v1532 = vpop.f32.mrf.mxu0
      %1533 = vmatprep.mubr.bf16.mxu0 0
      %1534 = vmatmul.mubr.bf16.gmra.mxu0 %v1429
      %v1535 = vpop.f32.mrf.mxu0
      %v1536 = vadd.f32 0.0, %v1535
      %v1537 = vpop.f32.mrf.mxu0
      %v1538 = vpop.f32.mrf.mxu0
      %v1539 = vadd.f32 0.0, %v1538
      %v1540 = vpop.f32.mrf.mxu0
      %1541 = vmatprep.mubr.bf16.mxu0 0
      %1542 = vmatmul.mubr.bf16.gmra.mxu0 %v1432
      %v1543 = vpop.f32.mrf.mxu0
      %v1544 = vadd.f32 0.0, %v1543
      %v1545 = vpop.f32.mrf.mxu0
      %v1546 = vpop.f32.mrf.mxu0
      %v1547 = vadd.f32 0.0, %v1546
      %v1548 = vpop.f32.mrf.mxu0
      %1549 = vmatprep.mubr.bf16.mxu0 0
      %1550 = vmatmul.mubr.bf16.gmra.mxu0 %v1435
      %v1551 = vpop.f32.mrf.mxu0
      %v1552 = vadd.f32 0.0, %v1551
      %v1553 = vpop.f32.mrf.mxu0
      %v1554 = vpop.f32.mrf.mxu0
      %v1555 = vadd.f32 0.0, %v1554
      %v1556 = vpop.f32.mrf.mxu0
      %1557 = vmatprep.mubr.bf16.mxu0 0
      %1558 = vmatmul.mubr.bf16.gmra.mxu0 %v1438
      %v1559 = vpop.f32.mrf.mxu0
      %v1560 = vadd.f32 0.0, %v1559
      %v1561 = vpop.f32.mrf.mxu0
      %v1562 = vpop.f32.mrf.mxu0
      %v1563 = vadd.f32 0.0, %v1562
      %v1564 = vpop.f32.mrf.mxu0
      %1565 = vmatprep.mubr.bf16.mxu0 0
      %1566 = vmatmul.mubr.bf16.gmra.mxu0 %v1441
      %v1567 = vpop.f32.mrf.mxu0
      %v1568 = vadd.f32 0.0, %v1567
      %v1569 = vpop.f32.mrf.mxu0
      %v1570 = vpop.f32.mrf.mxu0
      %v1571 = vadd.f32 0.0, %v1570
      %v1572 = vpop.f32.mrf.mxu0
      %1573 = vmatprep.mubr.bf16.mxu0 0
      %1574 = vmatmul.mubr.bf16.gmra.mxu0 %v1444
      %v1575 = vpop.f32.mrf.mxu0
      %v1576 = vadd.f32 0.0, %v1575
      %v1577 = vpop.f32.mrf.mxu0
      %v1578 = vpop.f32.mrf.mxu0
      %v1579 = vadd.f32 0.0, %v1578
      %v1580 = vpop.f32.mrf.mxu0
      %1581 = vmatprep.mubr.bf16.mxu0 0
      %1582 = vmatmul.mubr.bf16.gmra.mxu0 %v1447
      %v1583 = vpop.f32.mrf.mxu0
      %v1584 = vadd.f32 0.0, %v1583
      %v1585 = vpop.f32.mrf.mxu0
      %v1586 = vpop.f32.mrf.mxu0
      %v1587 = vadd.f32 0.0, %v1586
      %v1588 = vpop.f32.mrf.mxu0
      %1589 = vmatprep.mubr.bf16.mxu0 0
      %1590 = vmatmul.mubr.bf16.gmra.mxu0 %v1450
      %v1591 = vpop.f32.mrf.mxu0
      %v1592 = vadd.f32 0.0, %v1591
      %v1593 = vpop.f32.mrf.mxu0
      %v1594 = vpop.f32.mrf.mxu0
      %v1595 = vadd.f32 0.0, %v1594
      %v1596 = vpop.f32.mrf.mxu0
      %1597 = vmatprep.mubr.bf16.mxu0 0
      %1598 = vmatmul.mubr.bf16.gmra.mxu0 %v1453
      %v1599 = vpop.f32.mrf.mxu0
      %v1600 = vadd.f32 0.0, %v1599
      %v1601 = vpop.f32.mrf.mxu0
      %v1602 = vpop.f32.mrf.mxu0
      %v1603 = vadd.f32 0.0, %v1602
      %v1604 = vpop.f32.mrf.mxu0
      %1605 = vmatprep.mubr.bf16.mxu0 0
      %1606 = vmatmul.mubr.bf16.gmra.mxu0 %v1456
      %v1607 = vpop.f32.mrf.mxu0
      %v1608 = vadd.f32 0.0, %v1607
      %v1609 = vpop.f32.mrf.mxu0
      %v1610 = vpop.f32.mrf.mxu0
      %v1611 = vadd.f32 0.0, %v1610
      %v1612 = vpop.f32.mrf.mxu0
      %1613 = vmatprep.mubr.bf16.mxu0 0
      %1614 = vmatmul.mubr.bf16.gmra.mxu0 %v1459
      %v1615 = vpop.f32.mrf.mxu0
      %v1616 = vadd.f32 0.0, %v1615
      %v1617 = vpop.f32.mrf.mxu0
      %v1618 = vpop.f32.mrf.mxu0
      %v1619 = vadd.f32 0.0, %v1618
      %v1620 = vpop.f32.mrf.mxu0
      %1621 = vmatprep.mubr.bf16.mxu0 0
      %1622 = vmatmul.mubr.bf16.gmra.mxu0 %v1462
      %v1623 = vpop.f32.mrf.mxu0
      %v1624 = vadd.f32 0.0, %v1623
      %v1625 = vpop.f32.mrf.mxu0
      %v1626 = vpop.f32.mrf.mxu0
      %v1627 = vadd.f32 0.0, %v1626
      %v1628 = vpop.f32.mrf.mxu0
      %1629 = vmatprep.mubr.bf16.mxu0 0
      %1630 = vmatmul.mubr.bf16.gmra.mxu0 %v1465
      %v1631 = vpop.f32.mrf.mxu0
      %v1632 = vadd.f32 0.0, %v1631
      %v1633 = vpop.f32.mrf.mxu0
      %v1634 = vpop.f32.mrf.mxu0
      %v1635 = vadd.f32 0.0, %v1634
      %v1636 = vpop.f32.mrf.mxu0
      %1637 = vmatprep.mubr.bf16.mxu0 0
      %1638 = vmatmul.mubr.bf16.gmra.mxu0 %v1468
      %v1639 = vpop.f32.mrf.mxu0
      %v1640 = vadd.f32 0.0, %v1639
      %v1641 = vpop.f32.mrf.mxu0
      %v1642 = vpop.f32.mrf.mxu0
      %v1643 = vadd.f32 0.0, %v1642
      %v1644 = vpop.f32.mrf.mxu0
      %1645 = vmatprep.mubr.bf16.mxu0 0
      %1646 = vmatmul.mubr.bf16.gmra.mxu0 %v1471
      %v1647 = vpop.f32.mrf.mxu0
      %v1648 = vadd.f32 0.0, %v1647
      %v1649 = vpop.f32.mrf.mxu0
      %v1650 = vpop.f32.mrf.mxu0
      %v1651 = vadd.f32 0.0, %v1650
      %v1652 = vpop.f32.mrf.mxu0
      %1653 = vmatprep.mubr.bf16.mxu0 0
      %1654 = vmatmul.mubr.bf16.gmra.mxu0 %v1474
      %v1655 = vpop.f32.mrf.mxu0
      %v1656 = vadd.f32 0.0, %v1655
      %v1657 = vpop.f32.mrf.mxu0
      %v1658 = vpop.f32.mrf.mxu0
      %v1659 = vadd.f32 0.0, %v1658
      %v1660 = vpop.f32.mrf.mxu0
      %1661 = vmatprep.mubr.bf16.mxu0 0
      %1662 = vmatmul.mubr.bf16.gmra.mxu0 %v1477
      %v1663 = vpop.f32.mrf.mxu0
      %v1664 = vadd.f32 0.0, %v1663
      %v1665 = vpop.f32.mrf.mxu0
      %v1666 = vpop.f32.mrf.mxu0
      %v1667 = vadd.f32 0.0, %v1666
      %v1668 = vpop.f32.mrf.mxu0
      %1669 = vmatprep.mubr.bf16.mxu0 0
      %1670 = vmatmul.mubr.bf16.gmra.mxu0 %v1480
      %v1671 = vpop.f32.mrf.mxu0
      %v1672 = vadd.f32 0.0, %v1671
      %v1673 = vpop.f32.mrf.mxu0
      %v1674 = vpop.f32.mrf.mxu0
      %v1675 = vadd.f32 0.0, %v1674
      %v1676 = vpop.f32.mrf.mxu0
      %1677 = vdwg.mxu0
      %v1678 = vadd.f32 %v1282, %v1520
      %v1679 = vadd.f32 %v1283, %v1523
      %v1680 = vadd.f32 %v1284, %v1528
      %v1681 = vadd.f32 %v1285, %v1531
      %v1682 = vadd.f32 %v1286, %v1536
      %v1683 = vadd.f32 %v1287, %v1539
      %v1684 = vadd.f32 %v1288, %v1544
      %v1685 = vadd.f32 %v1289, %v1547
      %v1686 = vadd.f32 %v1290, %v1552
      %v1687 = vadd.f32 %v1291, %v1555
      %v1688 = vadd.f32 %v1292, %v1560
      %v1689 = vadd.f32 %v1293, %v1563
      %v1690 = vadd.f32 %v1294, %v1568
      %v1691 = vadd.f32 %v1295, %v1571
      %v1692 = vadd.f32 %v1296, %v1576
      %v1693 = vadd.f32 %v1297, %v1579
      %v1694 = vadd.f32 %v1298, %v1584
      %v1695 = vadd.f32 %v1299, %v1587
      %v1696 = vadd.f32 %v1300, %v1592
      %v1697 = vadd.f32 %v1301, %v1595
      %v1698 = vadd.f32 %v1302, %v1600
      %v1699 = vadd.f32 %v1303, %v1603
      %v1700 = vadd.f32 %v1304, %v1608
      %v1701 = vadd.f32 %v1305, %v1611
      %v1702 = vadd.f32 %v1306, %v1616
      %v1703 = vadd.f32 %v1307, %v1619
      %v1704 = vadd.f32 %v1308, %v1624
      %v1705 = vadd.f32 %v1309, %v1627
      %v1706 = vadd.f32 %v1310, %v1632
      %v1707 = vadd.f32 %v1311, %v1635
      %v1708 = vadd.f32 %v1312, %v1640
      %v1709 = vadd.f32 %v1313, %v1643
      %v1710 = vadd.f32 %v1314, %v1648
      %v1711 = vadd.f32 %v1315, %v1651
      %v1712 = vadd.f32 %v1316, %v1656
      %v1713 = vadd.f32 %v1317, %v1659
      %v1714 = vadd.f32 %v1318, %v1664
      %v1715 = vadd.f32 %v1319, %v1667
      %v1716 = vadd.f32 %v1320, %v1672
      %v1717 = vadd.f32 %v1321, %v1675
      %v1718 = vld [vmem:[%s165] sm:$0xc]
      %s1719 = scalar_lea.vmem %s1, 8
      %v1720 = vld [vmem:[%s1719] sm:$0x3]
      %v1722 = vunpack.c.l.b16 %v1718
      %v1723 = vpack.c.b16 %v258, %v1722
      %vm1724 = vcmask 1045504
      %v1725 = vrot.slane %v1723, 2
      %v1726 = vrot.slane %v299, 2
      %v1727 = vsel %vm1724, %v1725, %v1726
      %v1728 = vrot.slane %v300, 2
      %v1729 = vsel %vm1724, %v1726, %v1728
      %v1730 = vrot.slane %v301, 2
      %v1731 = vsel %vm1724, %v1728, %v1730
      %v1732 = vrot.slane %v302, 2
      %v1733 = vsel %vm1724, %v1730, %v1732
      %v1734 = vrot.slane %v303, 2
      %v1735 = vsel %vm1724, %v1732, %v1734
      %v1736 = vrot.slane %v304, 2
      %v1737 = vsel %vm1724, %v1734, %v1736
      %v1738 = vrot.slane %v305, 2
      %v1739 = vsel %vm1724, %v1736, %v1738
      %v1740 = vrot.slane %v306, 2
      %v1741 = vsel %vm1724, %v1738, %v1740
      %v1742 = vrot.slane %v307, 2
      %v1743 = vsel %vm1724, %v1740, %v1742
      %v1744 = vrot.slane %v308, 2
      %v1745 = vsel %vm1724, %v1742, %v1744
      %v1746 = vrot.slane %v309, 2
      %v1747 = vsel %vm1724, %v1744, %v1746
      %v1748 = vrot.slane %v310, 2
      %v1749 = vsel %vm1724, %v1746, %v1748
      %v1750 = vrot.slane %v311, 2
      %v1751 = vsel %vm1724, %v1748, %v1750
      %v1752 = vrot.slane %v312, 2
      %v1753 = vsel %vm1724, %v1750, %v1752
      %v1754 = vrot.slane %v313, 2
      %v1755 = vsel %vm1724, %v1752, %v1754
      %v1756 = vrot.slane %v314, 2
      %v1757 = vsel %vm1724, %v1754, %v1756
      %v1758 = vrot.slane %v315, 2
      %v1759 = vsel %vm1724, %v1756, %v1758
      %v1760 = vrot.slane %v316, 2
      %v1761 = vsel %vm1724, %v1758, %v1760
      %v1762 = vrot.slane %v317, 2
      %v1763 = vsel %vm1724, %v1760, %v1762
      %v1764 = vrot.slane %v1327, 2
      %v1765 = vsel %vm1724, %v1762, %v1764
      %v1767 = vsel %vm484, %v1727, 0
      %v1770 = vsel %vm484, %v1729, 0
      %v1773 = vsel %vm484, %v1731, 0
      %v1776 = vsel %vm484, %v1733, 0
      %v1779 = vsel %vm484, %v1735, 0
      %v1782 = vsel %vm484, %v1737, 0
      %v1785 = vsel %vm484, %v1739, 0
      %v1788 = vsel %vm484, %v1741, 0
      %v1791 = vsel %vm484, %v1743, 0
      %v1794 = vsel %vm484, %v1745, 0
      %v1797 = vsel %vm484, %v1747, 0
      %v1800 = vsel %vm484, %v1749, 0
      %v1803 = vsel %vm484, %v1751, 0
      %v1806 = vsel %vm484, %v1753, 0
      %v1809 = vsel %vm484, %v1755, 0
      %v1812 = vsel %vm484, %v1757, 0
      %v1815 = vsel %vm484, %v1759, 0
      %v1818 = vsel %vm484, %v1761, 0
      %v1821 = vsel %vm484, %v1763, 0
      %v1824 = vsel %vm484, %v1765, 0
      %v1827 = vsel %vm545, %v1720, 0
      %1829 = vmatprep.subr.bf16.mxu0 0
      %1830 = vmatpush1.bf16.msra.mxu0 0
      %1831 = vmatprep.subr.bf16.mxu0 0
      %1832 = vmatpush1.bf16.msra.mxu0 0
      %1833 = vmatprep.subr.bf16.mxu0 0
      %1834 = vmatpush1.bf16.msra.mxu0 0
      %1835 = vmatprep.subr.bf16.mxu0 0
      %1836 = vmatpush1.bf16.msra.mxu0 0
      %1837 = vmatprep.subr.bf16.mxu0 0
      %1838 = vmatpush1.bf16.msra.mxu0 0
      %1839 = vmatprep.subr.bf16.mxu0 0
      %1840 = vmatpush1.bf16.msra.mxu0 0
      %1841 = vmatprep.subr.bf16.mxu0 0
      %1842 = vmatpush1.bf16.msra.mxu0 0
      %1843 = vmatprep.subr.bf16.mxu0 0
      %1844 = vmatpush1.bf16.msra.mxu0 %v1827
      %1845 = vmatprep.subr.bf16.mxu0 0
      %1846 = vmatpush2.bf16.msra.mxu0 0
      %1847 = vmatprep.subr.bf16.mxu0 0
      %1848 = vmatpush2.bf16.msra.mxu0 0
      %1849 = vmatprep.subr.bf16.mxu0 0
      %1850 = vmatpush2.bf16.msra.mxu0 0
      %1851 = vmatprep.subr.bf16.mxu0 0
      %1852 = vmatpush2.bf16.msra.mxu0 0
      %1853 = vmatprep.subr.bf16.mxu0 0
      %1854 = vmatpush2.bf16.msra.mxu0 0
      %1855 = vmatprep.subr.bf16.mxu0 0
      %1856 = vmatpush2.bf16.msra.mxu0 0
      %1857 = vmatprep.subr.bf16.mxu0 0
      %1858 = vmatpush2.bf16.msra.mxu0 0
      %1859 = vmatprep.subr.bf16.mxu0 0
      %1860 = vmatpush2.bf16.msra.mxu0 0
      %1861 = vmatprep.mubr.bf16.mxu0 0
      %1862 = vmatmul.mubr.bf16.gmra.mxu0 %v1767
      %v1863 = vpop.f32.mrf.mxu0
      %v1864 = vadd.f32 0.0, %v1863
      %v1865 = vpop.f32.mrf.mxu0
      %v1866 = vpop.f32.mrf.mxu0
      %v1867 = vadd.f32 0.0, %v1866
      %v1868 = vpop.f32.mrf.mxu0
      %1869 = vmatprep.mubr.bf16.mxu0 0
      %1870 = vmatmul.mubr.bf16.gmra.mxu0 %v1770
      %v1871 = vpop.f32.mrf.mxu0
      %v1872 = vadd.f32 0.0, %v1871
      %v1873 = vpop.f32.mrf.mxu0
      %v1874 = vpop.f32.mrf.mxu0
      %v1875 = vadd.f32 0.0, %v1874
      %v1876 = vpop.f32.mrf.mxu0
      %1877 = vmatprep.mubr.bf16.mxu0 0
      %1878 = vmatmul.mubr.bf16.gmra.mxu0 %v1773
      %v1879 = vpop.f32.mrf.mxu0
      %v1880 = vadd.f32 0.0, %v1879
      %v1881 = vpop.f32.mrf.mxu0
      %v1882 = vpop.f32.mrf.mxu0
      %v1883 = vadd.f32 0.0, %v1882
      %v1884 = vpop.f32.mrf.mxu0
      %1885 = vmatprep.mubr.bf16.mxu0 0
      %1886 = vmatmul.mubr.bf16.gmra.mxu0 %v1776
      %v1887 = vpop.f32.mrf.mxu0
      %v1888 = vadd.f32 0.0, %v1887
      %v1889 = vpop.f32.mrf.mxu0
      %v1890 = vpop.f32.mrf.mxu0
      %v1891 = vadd.f32 0.0, %v1890
      %v1892 = vpop.f32.mrf.mxu0
      %1893 = vmatprep.mubr.bf16.mxu0 0
      %1894 = vmatmul.mubr.bf16.gmra.mxu0 %v1779
      %v1895 = vpop.f32.mrf.mxu0
      %v1896 = vadd.f32 0.0, %v1895
      %v1897 = vpop.f32.mrf.mxu0
      %v1898 = vpop.f32.mrf.mxu0
      %v1899 = vadd.f32 0.0, %v1898
      %v1900 = vpop.f32.mrf.mxu0
      %1901 = vmatprep.mubr.bf16.mxu0 0
      %1902 = vmatmul.mubr.bf16.gmra.mxu0 %v1782
      %v1903 = vpop.f32.mrf.mxu0
      %v1904 = vadd.f32 0.0, %v1903
      %v1905 = vpop.f32.mrf.mxu0
      %v1906 = vpop.f32.mrf.mxu0
      %v1907 = vadd.f32 0.0, %v1906
      %v1908 = vpop.f32.mrf.mxu0
      %1909 = vmatprep.mubr.bf16.mxu0 0
      %1910 = vmatmul.mubr.bf16.gmra.mxu0 %v1785
      %v1911 = vpop.f32.mrf.mxu0
      %v1912 = vadd.f32 0.0, %v1911
      %v1913 = vpop.f32.mrf.mxu0
      %v1914 = vpop.f32.mrf.mxu0
      %v1915 = vadd.f32 0.0, %v1914
      %v1916 = vpop.f32.mrf.mxu0
      %1917 = vmatprep.mubr.bf16.mxu0 0
      %1918 = vmatmul.mubr.bf16.gmra.mxu0 %v1788
      %v1919 = vpop.f32.mrf.mxu0
      %v1920 = vadd.f32 0.0, %v1919
      %v1921 = vpop.f32.mrf.mxu0
      %v1922 = vpop.f32.mrf.mxu0
      %v1923 = vadd.f32 0.0, %v1922
      %v1924 = vpop.f32.mrf.mxu0
      %1925 = vmatprep.mubr.bf16.mxu0 0
      %1926 = vmatmul.mubr.bf16.gmra.mxu0 %v1791
      %v1927 = vpop.f32.mrf.mxu0
      %v1928 = vadd.f32 0.0, %v1927
      %v1929 = vpop.f32.mrf.mxu0
      %v1930 = vpop.f32.mrf.mxu0
      %v1931 = vadd.f32 0.0, %v1930
      %v1932 = vpop.f32.mrf.mxu0
      %1933 = vmatprep.mubr.bf16.mxu0 0
      %1934 = vmatmul.mubr.bf16.gmra.mxu0 %v1794
      %v1935 = vpop.f32.mrf.mxu0
      %v1936 = vadd.f32 0.0, %v1935
      %v1937 = vpop.f32.mrf.mxu0
      %v1938 = vpop.f32.mrf.mxu0
      %v1939 = vadd.f32 0.0, %v1938
      %v1940 = vpop.f32.mrf.mxu0
      %1941 = vmatprep.mubr.bf16.mxu0 0
      %1942 = vmatmul.mubr.bf16.gmra.mxu0 %v1797
      %v1943 = vpop.f32.mrf.mxu0
      %v1944 = vadd.f32 0.0, %v1943
      %v1945 = vpop.f32.mrf.mxu0
      %v1946 = vpop.f32.mrf.mxu0
      %v1947 = vadd.f32 0.0, %v1946
      %v1948 = vpop.f32.mrf.mxu0
      %1949 = vmatprep.mubr.bf16.mxu0 0
      %1950 = vmatmul.mubr.bf16.gmra.mxu0 %v1800
      %v1951 = vpop.f32.mrf.mxu0
      %v1952 = vadd.f32 0.0, %v1951
      %v1953 = vpop.f32.mrf.mxu0
      %v1954 = vpop.f32.mrf.mxu0
      %v1955 = vadd.f32 0.0, %v1954
      %v1956 = vpop.f32.mrf.mxu0
      %1957 = vmatprep.mubr.bf16.mxu0 0
      %1958 = vmatmul.mubr.bf16.gmra.mxu0 %v1803
      %v1959 = vpop.f32.mrf.mxu0
      %v1960 = vadd.f32 0.0, %v1959
      %v1961 = vpop.f32.mrf.mxu0
      %v1962 = vpop.f32.mrf.mxu0
      %v1963 = vadd.f32 0.0, %v1962
      %v1964 = vpop.f32.mrf.mxu0
      %1965 = vmatprep.mubr.bf16.mxu0 0
      %1966 = vmatmul.mubr.bf16.gmra.mxu0 %v1806
      %v1967 = vpop.f32.mrf.mxu0
      %v1968 = vadd.f32 0.0, %v1967
      %v1969 = vpop.f32.mrf.mxu0
      %v1970 = vpop.f32.mrf.mxu0
      %v1971 = vadd.f32 0.0, %v1970
      %v1972 = vpop.f32.mrf.mxu0
      %1973 = vmatprep.mubr.bf16.mxu0 0
      %1974 = vmatmul.mubr.bf16.gmra.mxu0 %v1809
      %v1975 = vpop.f32.mrf.mxu0
      %v1976 = vadd.f32 0.0, %v1975
      %v1977 = vpop.f32.mrf.mxu0
      %v1978 = vpop.f32.mrf.mxu0
      %v1979 = vadd.f32 0.0, %v1978
      %v1980 = vpop.f32.mrf.mxu0
      %1981 = vmatprep.mubr.bf16.mxu0 0
      %1982 = vmatmul.mubr.bf16.gmra.mxu0 %v1812
      %v1983 = vpop.f32.mrf.mxu0
      %v1984 = vadd.f32 0.0, %v1983
      %v1985 = vpop.f32.mrf.mxu0
      %v1986 = vpop.f32.mrf.mxu0
      %v1987 = vadd.f32 0.0, %v1986
      %v1988 = vpop.f32.mrf.mxu0
      %1989 = vmatprep.mubr.bf16.mxu0 0
      %1990 = vmatmul.mubr.bf16.gmra.mxu0 %v1815
      %v1991 = vpop.f32.mrf.mxu0
      %v1992 = vadd.f32 0.0, %v1991
      %v1993 = vpop.f32.mrf.mxu0
      %v1994 = vpop.f32.mrf.mxu0
      %v1995 = vadd.f32 0.0, %v1994
      %v1996 = vpop.f32.mrf.mxu0
      %1997 = vmatprep.mubr.bf16.mxu0 0
      %1998 = vmatmul.mubr.bf16.gmra.mxu0 %v1818
      %v1999 = vpop.f32.mrf.mxu0
      %v2000 = vadd.f32 0.0, %v1999
      %v2001 = vpop.f32.mrf.mxu0
      %v2002 = vpop.f32.mrf.mxu0
      %v2003 = vadd.f32 0.0, %v2002
      %v2004 = vpop.f32.mrf.mxu0
      %2005 = vmatprep.mubr.bf16.mxu0 0
      %2006 = vmatmul.mubr.bf16.gmra.mxu0 %v1821
      %v2007 = vpop.f32.mrf.mxu0
      %v2008 = vadd.f32 0.0, %v2007
      %v2009 = vpop.f32.mrf.mxu0
      %v2010 = vpop.f32.mrf.mxu0
      %v2011 = vadd.f32 0.0, %v2010
      %v2012 = vpop.f32.mrf.mxu0
      %2013 = vmatprep.mubr.bf16.mxu0 0
      %2014 = vmatmul.mubr.bf16.gmra.mxu0 %v1824
      %v2015 = vpop.f32.mrf.mxu0
      %v2016 = vadd.f32 0.0, %v2015
      %v2017 = vpop.f32.mrf.mxu0
      %v2018 = vpop.f32.mrf.mxu0
      %v2019 = vadd.f32 0.0, %v2018
      %v2020 = vpop.f32.mrf.mxu0
      %2021 = vdwg.mxu0
      %v2022 = vadd.f32 %v1678, %v1864
      %v2023 = vadd.f32 %v1679, %v1867
      %v2024 = vadd.f32 %v1680, %v1872
      %v2025 = vadd.f32 %v1681, %v1875
      %v2026 = vadd.f32 %v1682, %v1880
      %v2027 = vadd.f32 %v1683, %v1883
      %v2028 = vadd.f32 %v1684, %v1888
      %v2029 = vadd.f32 %v1685, %v1891
      %v2030 = vadd.f32 %v1686, %v1896
      %v2031 = vadd.f32 %v1687, %v1899
      %v2032 = vadd.f32 %v1688, %v1904
      %v2033 = vadd.f32 %v1689, %v1907
      %v2034 = vadd.f32 %v1690, %v1912
      %v2035 = vadd.f32 %v1691, %v1915
      %v2036 = vadd.f32 %v1692, %v1920
      %v2037 = vadd.f32 %v1693, %v1923
      %v2038 = vadd.f32 %v1694, %v1928
      %v2039 = vadd.f32 %v1695, %v1931
      %v2040 = vadd.f32 %v1696, %v1936
      %v2041 = vadd.f32 %v1697, %v1939
      %v2042 = vadd.f32 %v1698, %v1944
      %v2043 = vadd.f32 %v1699, %v1947
      %v2044 = vadd.f32 %v1700, %v1952
      %v2045 = vadd.f32 %v1701, %v1955
      %v2046 = vadd.f32 %v1702, %v1960
      %v2047 = vadd.f32 %v1703, %v1963
      %v2048 = vadd.f32 %v1704, %v1968
      %v2049 = vadd.f32 %v1705, %v1971
      %v2050 = vadd.f32 %v1706, %v1976
      %v2051 = vadd.f32 %v1707, %v1979
      %v2052 = vadd.f32 %v1708, %v1984
      %v2053 = vadd.f32 %v1709, %v1987
      %v2054 = vadd.f32 %v1710, %v1992
      %v2055 = vadd.f32 %v1711, %v1995
      %v2056 = vadd.f32 %v1712, %v2000
      %v2057 = vadd.f32 %v1713, %v2003
      %v2058 = vadd.f32 %v1714, %v2008
      %v2059 = vadd.f32 %v1715, %v2011
      %v2060 = vadd.f32 %v1716, %v2016
      %v2061 = vadd.f32 %v1717, %v2019
      %v2062 = vld [vmem:[%s165 + $0x8] sm:$0xc]
      %v2063 = vld [vmem:[%s165 + $0xc] sm:$0xf]
      %v2064 = vld [vmem:[%s165 + $0x10] sm:$0xf]
      %v2065 = vld [vmem:[%s165 + $0x14] sm:$0xf]
      %v2066 = vld [vmem:[%s165 + $0x18] sm:$0xf]
      %v2067 = vld [vmem:[%s165 + $0x1c] sm:$0xf]
      %v2068 = vld [vmem:[%s165 + $0x20] sm:$0xf]
      %v2069 = vld [vmem:[%s165 + $0x24] sm:$0xf]
      %v2070 = vld [vmem:[%s165 + $0x28] sm:$0xf]
      %v2071 = vld [vmem:[%s165 + $0x2c] sm:$0xf]
      %v2072 = vld [vmem:[%s165 + $0x30] sm:$0xf]
      %v2073 = vld [vmem:[%s165 + $0x34] sm:$0xf]
      %v2074 = vld [vmem:[%s165 + $0x38] sm:$0xf]
      %v2075 = vld [vmem:[%s165 + $0x3c] sm:$0xf]
      %v2076 = vld [vmem:[%s165 + $0x40] sm:$0xf]
      %v2077 = vld [vmem:[%s165 + $0x44] sm:$0xf]
      %v2078 = vld [vmem:[%s165 + $0x48] sm:$0xf]
      %v2079 = vld [vmem:[%s165 + $0x4c] sm:$0xf]
      %v2080 = vld [vmem:[%s165 + $0x50] sm:$0xf]
      %v2081 = vld [vmem:[%s165 + $0x54] sm:$0xf]
      %v2082 = vld [vmem:[%s165 + $0x58] sm:$0xf]
      %v2083 = vld [vmem:[%s165 + $0x5c] sm:$0xf]
      %v2084 = vld [vmem:[%s165 + $0x60] sm:$0xf]
      %v2085 = vld [vmem:[%s165 + $0x64] sm:$0xf]
      %v2086 = vld [vmem:[%s165 + $0x68] sm:$0xf]
      %v2087 = vld [vmem:[%s165 + $0x6c] sm:$0xf]
      %v2088 = vld [vmem:[%s165 + $0x70] sm:$0xf]
      %v2089 = vld [vmem:[%s165 + $0x74] sm:$0xf]
      %v2090 = vld [vmem:[%s165 + $0x78] sm:$0xf]
      %v2091 = vld [vmem:[%s165 + $0x7c] sm:$0xf]
      %v2092 = vld [vmem:[%s165 + $0x80] sm:$0xf]
      %v2093 = vld [vmem:[%s165 + $0x84] sm:$0xf]
      %v2094 = vld [vmem:[%s165 + $0x88] sm:$0xf]
      %v2095 = vld [vmem:[%s165 + $0x8c] sm:$0xf]
      %v2096 = vld [vmem:[%s165 + $0x90] sm:$0xf]
      %v2097 = vld [vmem:[%s165 + $0x94] sm:$0xf]
      %v2098 = vld [vmem:[%s165 + $0x98] sm:$0xf]
      %v2099 = vld [vmem:[%s165 + $0x9c] sm:$0xf]
      %v2100 = vld [vmem:[%s165 + $0xa0] sm:$0xf]
      %v2101 = vld [vmem:[%s165 + $0xa4] sm:$0xf]
      %v2102 = vld [vmem:[%s165 + $0xa8] sm:$0x3]
      %s2103 = scalar_lea.vmem %s1, 10
      %v2104 = vld [vmem:[%s2103] sm:$0x3]
      %v2146 = vunpack.c.l.b16 %v2062
      %v2147 = vunpack.c.l.b16 %v2063
      %v2148 = vunpack.c.l.b16 %v2064
      %v2149 = vunpack.c.l.b16 %v2065
      %v2150 = vunpack.c.l.b16 %v2066
      %v2151 = vunpack.c.l.b16 %v2067
      %v2152 = vunpack.c.l.b16 %v2068
      %v2153 = vunpack.c.l.b16 %v2069
      %v2154 = vunpack.c.l.b16 %v2070
      %v2155 = vunpack.c.l.b16 %v2071
      %v2156 = vunpack.c.l.b16 %v2072
      %v2157 = vunpack.c.l.b16 %v2073
      %v2158 = vunpack.c.l.b16 %v2074
      %v2159 = vunpack.c.l.b16 %v2075
      %v2160 = vunpack.c.l.b16 %v2076
      %v2161 = vunpack.c.l.b16 %v2077
      %v2162 = vunpack.c.l.b16 %v2078
      %v2163 = vunpack.c.l.b16 %v2079
      %v2164 = vunpack.c.l.b16 %v2080
      %v2165 = vunpack.c.l.b16 %v2081
      %v2166 = vunpack.c.l.b16 %v2082
      %v2167 = vunpack.c.l.b16 %v2083
      %v2168 = vunpack.c.l.b16 %v2084
      %v2169 = vunpack.c.l.b16 %v2085
      %v2170 = vunpack.c.l.b16 %v2086
      %v2171 = vunpack.c.l.b16 %v2087
      %v2172 = vunpack.c.l.b16 %v2088
      %v2173 = vunpack.c.l.b16 %v2089
      %v2174 = vunpack.c.l.b16 %v2090
      %v2175 = vunpack.c.l.b16 %v2091
      %v2176 = vunpack.c.l.b16 %v2092
      %v2177 = vunpack.c.l.b16 %v2093
      %v2178 = vunpack.c.l.b16 %v2094
      %v2179 = vunpack.c.l.b16 %v2095
      %v2180 = vunpack.c.l.b16 %v2096
      %v2181 = vunpack.c.l.b16 %v2097
      %v2182 = vunpack.c.l.b16 %v2098
      %v2183 = vunpack.c.l.b16 %v2099
      %v2184 = vunpack.c.l.b16 %v2100
      %v2185 = vunpack.c.l.b16 %v2101
      %v2186 = vunpack.c.l.b16 %v2102
      %v2187 = vpack.c.b16 %v2147, %v2146
      %v2188 = vpack.c.b16 %v2149, %v2148
      %v2189 = vpack.c.b16 %v2151, %v2150
      %v2190 = vpack.c.b16 %v2153, %v2152
      %v2191 = vpack.c.b16 %v2155, %v2154
      %v2192 = vpack.c.b16 %v2157, %v2156
      %v2193 = vpack.c.b16 %v2159, %v2158
      %v2194 = vpack.c.b16 %v2161, %v2160
      %v2195 = vpack.c.b16 %v2163, %v2162
      %v2196 = vpack.c.b16 %v2165, %v2164
      %v2197 = vpack.c.b16 %v2167, %v2166
      %v2198 = vpack.c.b16 %v2169, %v2168
      %v2199 = vpack.c.b16 %v2171, %v2170
      %v2200 = vpack.c.b16 %v2173, %v2172
      %v2201 = vpack.c.b16 %v2175, %v2174
      %v2202 = vpack.c.b16 %v2177, %v2176
      %v2203 = vpack.c.b16 %v2179, %v2178
      %v2204 = vpack.c.b16 %v2181, %v2180
      %v2205 = vpack.c.b16 %v2183, %v2182
      %v2206 = vpack.c.b16 %v2185, %v2184
      %v2207 = vpack.c.b16 %v2186, %v2186
      %v2208 = vrot.slane %v2187, 2
      %v2209 = vrot.slane %v2188, 2
      %v2210 = vsel %vm1724, %v2208, %v2209
      %v2211 = vrot.slane %v2189, 2
      %v2212 = vsel %vm1724, %v2209, %v2211
      %v2213 = vrot.slane %v2190, 2
      %v2214 = vsel %vm1724, %v2211, %v2213
      %v2215 = vrot.slane %v2191, 2
      %v2216 = vsel %vm1724, %v2213, %v2215
      %v2217 = vrot.slane %v2192, 2
      %v2218 = vsel %vm1724, %v2215, %v2217
      %v2219 = vrot.slane %v2193, 2
      %v2220 = vsel %vm1724, %v2217, %v2219
      %v2221 = vrot.slane %v2194, 2
      %v2222 = vsel %vm1724, %v2219, %v2221
      %v2223 = vrot.slane %v2195, 2
      %v2224 = vsel %vm1724, %v2221, %v2223
      %v2225 = vrot.slane %v2196, 2
      %v2226 = vsel %vm1724, %v2223, %v2225
      %v2227 = vrot.slane %v2197, 2
      %v2228 = vsel %vm1724, %v2225, %v2227
      %v2229 = vrot.slane %v2198, 2
      %v2230 = vsel %vm1724, %v2227, %v2229
      %v2231 = vrot.slane %v2199, 2
      %v2232 = vsel %vm1724, %v2229, %v2231
      %v2233 = vrot.slane %v2200, 2
      %v2234 = vsel %vm1724, %v2231, %v2233
      %v2235 = vrot.slane %v2201, 2
      %v2236 = vsel %vm1724, %v2233, %v2235
      %v2237 = vrot.slane %v2202, 2
      %v2238 = vsel %vm1724, %v2235, %v2237
      %v2239 = vrot.slane %v2203, 2
      %v2240 = vsel %vm1724, %v2237, %v2239
      %v2241 = vrot.slane %v2204, 2
      %v2242 = vsel %vm1724, %v2239, %v2241
      %v2243 = vrot.slane %v2205, 2
      %v2244 = vsel %vm1724, %v2241, %v2243
      %v2245 = vrot.slane %v2206, 2
      %v2246 = vsel %vm1724, %v2243, %v2245
      %v2247 = vrot.slane %v2207, 2
      %v2248 = vsel %vm1724, %v2245, %v2247
      %v2250 = vsel %vm484, %v2210, 0
      %v2253 = vsel %vm484, %v2212, 0
      %v2256 = vsel %vm484, %v2214, 0
      %v2259 = vsel %vm484, %v2216, 0
      %v2262 = vsel %vm484, %v2218, 0
      %v2265 = vsel %vm484, %v2220, 0
      %v2268 = vsel %vm484, %v2222, 0
      %v2271 = vsel %vm484, %v2224, 0
      %v2274 = vsel %vm484, %v2226, 0
      %v2277 = vsel %vm484, %v2228, 0
      %v2280 = vsel %vm484, %v2230, 0
      %v2283 = vsel %vm484, %v2232, 0
      %v2286 = vsel %vm484, %v2234, 0
      %v2289 = vsel %vm484, %v2236, 0
      %v2292 = vsel %vm484, %v2238, 0
      %v2295 = vsel %vm484, %v2240, 0
      %v2298 = vsel %vm484, %v2242, 0
      %v2301 = vsel %vm484, %v2244, 0
      %v2304 = vsel %vm484, %v2246, 0
      %v2307 = vsel %vm484, %v2248, 0
      %v2310 = vsel %vm545, %v2104, 0
      %2312 = vmatprep.subr.bf16.mxu0 0
      %2313 = vmatpush1.bf16.msra.mxu0 0
      %2314 = vmatprep.subr.bf16.mxu0 0
      %2315 = vmatpush1.bf16.msra.mxu0 0
      %2316 = vmatprep.subr.bf16.mxu0 0
      %2317 = vmatpush1.bf16.msra.mxu0 0
      %2318 = vmatprep.subr.bf16.mxu0 0
      %2319 = vmatpush1.bf16.msra.mxu0 0
      %2320 = vmatprep.subr.bf16.mxu0 0
      %2321 = vmatpush1.bf16.msra.mxu0 0
      %2322 = vmatprep.subr.bf16.mxu0 0
      %2323 = vmatpush1.bf16.msra.mxu0 0
      %2324 = vmatprep.subr.bf16.mxu0 0
      %2325 = vmatpush1.bf16.msra.mxu0 0
      %2326 = vmatprep.subr.bf16.mxu0 0
      %2327 = vmatpush1.bf16.msra.mxu0 %v2310
      %2328 = vmatprep.subr.bf16.mxu0 0
      %2329 = vmatpush2.bf16.msra.mxu0 0
      %2330 = vmatprep.subr.bf16.mxu0 0
      %2331 = vmatpush2.bf16.msra.mxu0 0
      %2332 = vmatprep.subr.bf16.mxu0 0
      %2333 = vmatpush2.bf16.msra.mxu0 0
      %2334 = vmatprep.subr.bf16.mxu0 0
      %2335 = vmatpush2.bf16.msra.mxu0 0
      %2336 = vmatprep.subr.bf16.mxu0 0
      %2337 = vmatpush2.bf16.msra.mxu0 0
      %2338 = vmatprep.subr.bf16.mxu0 0
      %2339 = vmatpush2.bf16.msra.mxu0 0
      %2340 = vmatprep.subr.bf16.mxu0 0
      %2341 = vmatpush2.bf16.msra.mxu0 0
      %2342 = vmatprep.subr.bf16.mxu0 0
      %2343 = vmatpush2.bf16.msra.mxu0 0
      %2344 = vmatprep.mubr.bf16.mxu0 0
      %2345 = vmatmul.mubr.bf16.gmra.mxu0 %v2250
      %v2346 = vpop.f32.mrf.mxu0
      %v2347 = vadd.f32 0.0, %v2346
      %v2348 = vpop.f32.mrf.mxu0
      %v2349 = vpop.f32.mrf.mxu0
      %v2350 = vadd.f32 0.0, %v2349
      %v2351 = vpop.f32.mrf.mxu0
      %2352 = vmatprep.mubr.bf16.mxu0 0
      %2353 = vmatmul.mubr.bf16.gmra.mxu0 %v2253
      %v2354 = vpop.f32.mrf.mxu0
      %v2355 = vadd.f32 0.0, %v2354
      %v2356 = vpop.f32.mrf.mxu0
      %v2357 = vpop.f32.mrf.mxu0
      %v2358 = vadd.f32 0.0, %v2357
      %v2359 = vpop.f32.mrf.mxu0
      %2360 = vmatprep.mubr.bf16.mxu0 0
      %2361 = vmatmul.mubr.bf16.gmra.mxu0 %v2256
      %v2362 = vpop.f32.mrf.mxu0
      %v2363 = vadd.f32 0.0, %v2362
      %v2364 = vpop.f32.mrf.mxu0
      %v2365 = vpop.f32.mrf.mxu0
      %v2366 = vadd.f32 0.0, %v2365
      %v2367 = vpop.f32.mrf.mxu0
      %2368 = vmatprep.mubr.bf16.mxu0 0
      %2369 = vmatmul.mubr.bf16.gmra.mxu0 %v2259
      %v2370 = vpop.f32.mrf.mxu0
      %v2371 = vadd.f32 0.0, %v2370
      %v2372 = vpop.f32.mrf.mxu0
      %v2373 = vpop.f32.mrf.mxu0
      %v2374 = vadd.f32 0.0, %v2373
      %v2375 = vpop.f32.mrf.mxu0
      %2376 = vmatprep.mubr.bf16.mxu0 0
      %2377 = vmatmul.mubr.bf16.gmra.mxu0 %v2262
      %v2378 = vpop.f32.mrf.mxu0
      %v2379 = vadd.f32 0.0, %v2378
      %v2380 = vpop.f32.mrf.mxu0
      %v2381 = vpop.f32.mrf.mxu0
      %v2382 = vadd.f32 0.0, %v2381
      %v2383 = vpop.f32.mrf.mxu0
      %2384 = vmatprep.mubr.bf16.mxu0 0
      %2385 = vmatmul.mubr.bf16.gmra.mxu0 %v2265
      %v2386 = vpop.f32.mrf.mxu0
      %v2387 = vadd.f32 0.0, %v2386
      %v2388 = vpop.f32.mrf.mxu0
      %v2389 = vpop.f32.mrf.mxu0
      %v2390 = vadd.f32 0.0, %v2389
      %v2391 = vpop.f32.mrf.mxu0
      %2392 = vmatprep.mubr.bf16.mxu0 0
      %2393 = vmatmul.mubr.bf16.gmra.mxu0 %v2268
      %v2394 = vpop.f32.mrf.mxu0
      %v2395 = vadd.f32 0.0, %v2394
      %v2396 = vpop.f32.mrf.mxu0
      %v2397 = vpop.f32.mrf.mxu0
      %v2398 = vadd.f32 0.0, %v2397
      %v2399 = vpop.f32.mrf.mxu0
      %2400 = vmatprep.mubr.bf16.mxu0 0
      %2401 = vmatmul.mubr.bf16.gmra.mxu0 %v2271
      %v2402 = vpop.f32.mrf.mxu0
      %v2403 = vadd.f32 0.0, %v2402
      %v2404 = vpop.f32.mrf.mxu0
      %v2405 = vpop.f32.mrf.mxu0
      %v2406 = vadd.f32 0.0, %v2405
      %v2407 = vpop.f32.mrf.mxu0
      %2408 = vmatprep.mubr.bf16.mxu0 0
      %2409 = vmatmul.mubr.bf16.gmra.mxu0 %v2274
      %v2410 = vpop.f32.mrf.mxu0
      %v2411 = vadd.f32 0.0, %v2410
      %v2412 = vpop.f32.mrf.mxu0
      %v2413 = vpop.f32.mrf.mxu0
      %v2414 = vadd.f32 0.0, %v2413
      %v2415 = vpop.f32.mrf.mxu0
      %2416 = vmatprep.mubr.bf16.mxu0 0
      %2417 = vmatmul.mubr.bf16.gmra.mxu0 %v2277
      %v2418 = vpop.f32.mrf.mxu0
      %v2419 = vadd.f32 0.0, %v2418
      %v2420 = vpop.f32.mrf.mxu0
      %v2421 = vpop.f32.mrf.mxu0
      %v2422 = vadd.f32 0.0, %v2421
      %v2423 = vpop.f32.mrf.mxu0
      %2424 = vmatprep.mubr.bf16.mxu0 0
      %2425 = vmatmul.mubr.bf16.gmra.mxu0 %v2280
      %v2426 = vpop.f32.mrf.mxu0
      %v2427 = vadd.f32 0.0, %v2426
      %v2428 = vpop.f32.mrf.mxu0
      %v2429 = vpop.f32.mrf.mxu0
      %v2430 = vadd.f32 0.0, %v2429
      %v2431 = vpop.f32.mrf.mxu0
      %2432 = vmatprep.mubr.bf16.mxu0 0
      %2433 = vmatmul.mubr.bf16.gmra.mxu0 %v2283
      %v2434 = vpop.f32.mrf.mxu0
      %v2435 = vadd.f32 0.0, %v2434
      %v2436 = vpop.f32.mrf.mxu0
      %v2437 = vpop.f32.mrf.mxu0
      %v2438 = vadd.f32 0.0, %v2437
      %v2439 = vpop.f32.mrf.mxu0
      %2440 = vmatprep.mubr.bf16.mxu0 0
      %2441 = vmatmul.mubr.bf16.gmra.mxu0 %v2286
      %v2442 = vpop.f32.mrf.mxu0
      %v2443 = vadd.f32 0.0, %v2442
      %v2444 = vpop.f32.mrf.mxu0
      %v2445 = vpop.f32.mrf.mxu0
      %v2446 = vadd.f32 0.0, %v2445
      %v2447 = vpop.f32.mrf.mxu0
      %2448 = vmatprep.mubr.bf16.mxu0 0
      %2449 = vmatmul.mubr.bf16.gmra.mxu0 %v2289
      %v2450 = vpop.f32.mrf.mxu0
      %v2451 = vadd.f32 0.0, %v2450
      %v2452 = vpop.f32.mrf.mxu0
      %v2453 = vpop.f32.mrf.mxu0
      %v2454 = vadd.f32 0.0, %v2453
      %v2455 = vpop.f32.mrf.mxu0
      %2456 = vmatprep.mubr.bf16.mxu0 0
      %2457 = vmatmul.mubr.bf16.gmra.mxu0 %v2292
      %v2458 = vpop.f32.mrf.mxu0
      %v2459 = vadd.f32 0.0, %v2458
      %v2460 = vpop.f32.mrf.mxu0
      %v2461 = vpop.f32.mrf.mxu0
      %v2462 = vadd.f32 0.0, %v2461
      %v2463 = vpop.f32.mrf.mxu0
      %2464 = vmatprep.mubr.bf16.mxu0 0
      %2465 = vmatmul.mubr.bf16.gmra.mxu0 %v2295
      %v2466 = vpop.f32.mrf.mxu0
      %v2467 = vadd.f32 0.0, %v2466
      %v2468 = vpop.f32.mrf.mxu0
      %v2469 = vpop.f32.mrf.mxu0
      %v2470 = vadd.f32 0.0, %v2469
      %v2471 = vpop.f32.mrf.mxu0
      %2472 = vmatprep.mubr.bf16.mxu0 0
      %2473 = vmatmul.mubr.bf16.gmra.mxu0 %v2298
      %v2474 = vpop.f32.mrf.mxu0
      %v2475 = vadd.f32 0.0, %v2474
      %v2476 = vpop.f32.mrf.mxu0
      %v2477 = vpop.f32.mrf.mxu0
      %v2478 = vadd.f32 0.0, %v2477
      %v2479 = vpop.f32.mrf.mxu0
      %2480 = vmatprep.mubr.bf16.mxu0 0
      %2481 = vmatmul.mubr.bf16.gmra.mxu0 %v2301
      %v2482 = vpop.f32.mrf.mxu0
      %v2483 = vadd.f32 0.0, %v2482
      %v2484 = vpop.f32.mrf.mxu0
      %v2485 = vpop.f32.mrf.mxu0
      %v2486 = vadd.f32 0.0, %v2485
      %v2487 = vpop.f32.mrf.mxu0
      %2488 = vmatprep.mubr.bf16.mxu0 0
      %2489 = vmatmul.mubr.bf16.gmra.mxu0 %v2304
      %v2490 = vpop.f32.mrf.mxu0
      %v2491 = vadd.f32 0.0, %v2490
      %v2492 = vpop.f32.mrf.mxu0
      %v2493 = vpop.f32.mrf.mxu0
      %v2494 = vadd.f32 0.0, %v2493
      %v2495 = vpop.f32.mrf.mxu0
      %2496 = vmatprep.mubr.bf16.mxu0 0
      %2497 = vmatmul.mubr.bf16.gmra.mxu0 %v2307
      %v2498 = vpop.f32.mrf.mxu0
      %v2499 = vadd.f32 0.0, %v2498
      %v2500 = vpop.f32.mrf.mxu0
      %v2501 = vpop.f32.mrf.mxu0
      %v2502 = vadd.f32 0.0, %v2501
      %v2503 = vpop.f32.mrf.mxu0
      %2504 = vdwg.mxu0
      %v2505 = vadd.f32 %v2022, %v2347
      %v2506 = vadd.f32 %v2023, %v2350
      %v2507 = vadd.f32 %v2024, %v2355
      %v2508 = vadd.f32 %v2025, %v2358
      %v2509 = vadd.f32 %v2026, %v2363
      %v2510 = vadd.f32 %v2027, %v2366
      %v2511 = vadd.f32 %v2028, %v2371
      %v2512 = vadd.f32 %v2029, %v2374
      %v2513 = vadd.f32 %v2030, %v2379
      %v2514 = vadd.f32 %v2031, %v2382
      %v2515 = vadd.f32 %v2032, %v2387
      %v2516 = vadd.f32 %v2033, %v2390
      %v2517 = vadd.f32 %v2034, %v2395
      %v2518 = vadd.f32 %v2035, %v2398
      %v2519 = vadd.f32 %v2036, %v2403
      %v2520 = vadd.f32 %v2037, %v2406
      %v2521 = vadd.f32 %v2038, %v2411
      %v2522 = vadd.f32 %v2039, %v2414
      %v2523 = vadd.f32 %v2040, %v2419
      %v2524 = vadd.f32 %v2041, %v2422
      %v2525 = vadd.f32 %v2042, %v2427
      %v2526 = vadd.f32 %v2043, %v2430
      %v2527 = vadd.f32 %v2044, %v2435
      %v2528 = vadd.f32 %v2045, %v2438
      %v2529 = vadd.f32 %v2046, %v2443
      %v2530 = vadd.f32 %v2047, %v2446
      %v2531 = vadd.f32 %v2048, %v2451
      %v2532 = vadd.f32 %v2049, %v2454
      %v2533 = vadd.f32 %v2050, %v2459
      %v2534 = vadd.f32 %v2051, %v2462
      %v2535 = vadd.f32 %v2052, %v2467
      %v2536 = vadd.f32 %v2053, %v2470
      %v2537 = vadd.f32 %v2054, %v2475
      %v2538 = vadd.f32 %v2055, %v2478
      %v2539 = vadd.f32 %v2056, %v2483
      %v2540 = vadd.f32 %v2057, %v2486
      %v2541 = vadd.f32 %v2058, %v2491
      %v2542 = vadd.f32 %v2059, %v2494
      %v2543 = vadd.f32 %v2060, %v2499
      %v2544 = vadd.f32 %v2061, %v2502
      %v2545 = vld [vmem:[%s165 + $0xa8] sm:$0x7]
      %s2546 = scalar_lea.vmem %s1, 12
      %v2547 = vld [vmem:[%s2546] sm:$0x3]
      %v2549 = vunpack.c.l.b16 %v2545
      %v2550 = vpack.c.b16 %v2549, %v2549
      %vm2551 = vsmask.f32 5376
      %v2553 = vshrl.u32 %v2187, 16
      %v2555 = vrot.slane %v2553, 2
      %v2556 = vshll.u32 %v2187, 16
      %v2558 = vrot.slane %v2556, 3
      %v2559 = vor.u32 %v2555, %v2558
      %v2561 = vshrl.u32 %v2188, 16
      %v2563 = vrot.slane %v2561, 2
      %v2564 = vshll.u32 %v2188, 16
      %v2566 = vrot.slane %v2564, 3
      %v2567 = vor.u32 %v2563, %v2566
      %v2568 = vsel %vm2551, %v2559, %v2567
      %v2570 = vshrl.u32 %v2189, 16
      %v2572 = vrot.slane %v2570, 2
      %v2573 = vshll.u32 %v2189, 16
      %v2575 = vrot.slane %v2573, 3
      %v2576 = vor.u32 %v2572, %v2575
      %v2577 = vsel %vm2551, %v2567, %v2576
      %v2579 = vshrl.u32 %v2190, 16
      %v2581 = vrot.slane %v2579, 2
      %v2582 = vshll.u32 %v2190, 16
      %v2584 = vrot.slane %v2582, 3
      %v2585 = vor.u32 %v2581, %v2584
      %v2586 = vsel %vm2551, %v2576, %v2585
      %v2588 = vshrl.u32 %v2191, 16
      %v2590 = vrot.slane %v2588, 2
      %v2591 = vshll.u32 %v2191, 16
      %v2593 = vrot.slane %v2591, 3
      %v2594 = vor.u32 %v2590, %v2593
      %v2595 = vsel %vm2551, %v2585, %v2594
      %v2597 = vshrl.u32 %v2192, 16
      %v2599 = vrot.slane %v2597, 2
      %v2600 = vshll.u32 %v2192, 16
      %v2602 = vrot.slane %v2600, 3
      %v2603 = vor.u32 %v2599, %v2602
      %v2604 = vsel %vm2551, %v2594, %v2603
      %v2606 = vshrl.u32 %v2193, 16
      %v2608 = vrot.slane %v2606, 2
      %v2609 = vshll.u32 %v2193, 16
      %v2611 = vrot.slane %v2609, 3
      %v2612 = vor.u32 %v2608, %v2611
      %v2613 = vsel %vm2551, %v2603, %v2612
      %v2615 = vshrl.u32 %v2194, 16
      %v2617 = vrot.slane %v2615, 2
      %v2618 = vshll.u32 %v2194, 16
      %v2620 = vrot.slane %v2618, 3
      %v2621 = vor.u32 %v2617, %v2620
      %v2622 = vsel %vm2551, %v2612, %v2621
      %v2624 = vshrl.u32 %v2195, 16
      %v2626 = vrot.slane %v2624, 2
      %v2627 = vshll.u32 %v2195, 16
      %v2629 = vrot.slane %v2627, 3
      %v2630 = vor.u32 %v2626, %v2629
      %v2631 = vsel %vm2551, %v2621, %v2630
      %v2633 = vshrl.u32 %v2196, 16
      %v2635 = vrot.slane %v2633, 2
      %v2636 = vshll.u32 %v2196, 16
      %v2638 = vrot.slane %v2636, 3
      %v2639 = vor.u32 %v2635, %v2638
      %v2640 = vsel %vm2551, %v2630, %v2639
      %v2642 = vshrl.u32 %v2197, 16
      %v2644 = vrot.slane %v2642, 2
      %v2645 = vshll.u32 %v2197, 16
      %v2647 = vrot.slane %v2645, 3
      %v2648 = vor.u32 %v2644, %v2647
      %v2649 = vsel %vm2551, %v2639, %v2648
      %v2651 = vshrl.u32 %v2198, 16
      %v2653 = vrot.slane %v2651, 2
      %v2654 = vshll.u32 %v2198, 16
      %v2656 = vrot.slane %v2654, 3
      %v2657 = vor.u32 %v2653, %v2656
      %v2658 = vsel %vm2551, %v2648, %v2657
      %v2660 = vshrl.u32 %v2199, 16
      %v2662 = vrot.slane %v2660, 2
      %v2663 = vshll.u32 %v2199, 16
      %v2665 = vrot.slane %v2663, 3
      %v2666 = vor.u32 %v2662, %v2665
      %v2667 = vsel %vm2551, %v2657, %v2666
      %v2669 = vshrl.u32 %v2200, 16
      %v2671 = vrot.slane %v2669, 2
      %v2672 = vshll.u32 %v2200, 16
      %v2674 = vrot.slane %v2672, 3
      %v2675 = vor.u32 %v2671, %v2674
      %v2676 = vsel %vm2551, %v2666, %v2675
      %v2678 = vshrl.u32 %v2201, 16
      %v2680 = vrot.slane %v2678, 2
      %v2681 = vshll.u32 %v2201, 16
      %v2683 = vrot.slane %v2681, 3
      %v2684 = vor.u32 %v2680, %v2683
      %v2685 = vsel %vm2551, %v2675, %v2684
      %v2687 = vshrl.u32 %v2202, 16
      %v2689 = vrot.slane %v2687, 2
      %v2690 = vshll.u32 %v2202, 16
      %v2692 = vrot.slane %v2690, 3
      %v2693 = vor.u32 %v2689, %v2692
      %v2694 = vsel %vm2551, %v2684, %v2693
      %v2696 = vshrl.u32 %v2203, 16
      %v2698 = vrot.slane %v2696, 2
      %v2699 = vshll.u32 %v2203, 16
      %v2701 = vrot.slane %v2699, 3
      %v2702 = vor.u32 %v2698, %v2701
      %v2703 = vsel %vm2551, %v2693, %v2702
      %v2705 = vshrl.u32 %v2204, 16
      %v2707 = vrot.slane %v2705, 2
      %v2708 = vshll.u32 %v2204, 16
      %v2710 = vrot.slane %v2708, 3
      %v2711 = vor.u32 %v2707, %v2710
      %v2712 = vsel %vm2551, %v2702, %v2711
      %v2714 = vshrl.u32 %v2205, 16
      %v2716 = vrot.slane %v2714, 2
      %v2717 = vshll.u32 %v2205, 16
      %v2719 = vrot.slane %v2717, 3
      %v2720 = vor.u32 %v2716, %v2719
      %v2721 = vsel %vm2551, %v2711, %v2720
      %v2723 = vshrl.u32 %v2206, 16
      %v2725 = vrot.slane %v2723, 2
      %v2726 = vshll.u32 %v2206, 16
      %v2728 = vrot.slane %v2726, 3
      %v2729 = vor.u32 %v2725, %v2728
      %v2730 = vsel %vm2551, %v2720, %v2729
      %v2732 = vshrl.u32 %v2550, 16
      %v2734 = vrot.slane %v2732, 2
      %v2735 = vshll.u32 %v2550, 16
      %v2737 = vrot.slane %v2735, 3
      %v2738 = vor.u32 %v2734, %v2737
      %v2739 = vsel %vm2551, %v2729, %v2738
      %v2741 = vsel %vm484, %v2568, 0
      %v2744 = vsel %vm484, %v2577, 0
      %v2747 = vsel %vm484, %v2586, 0
      %v2750 = vsel %vm484, %v2595, 0
      %v2753 = vsel %vm484, %v2604, 0
      %v2756 = vsel %vm484, %v2613, 0
      %v2759 = vsel %vm484, %v2622, 0
      %v2762 = vsel %vm484, %v2631, 0
      %v2765 = vsel %vm484, %v2640, 0
      %v2768 = vsel %vm484, %v2649, 0
      %v2771 = vsel %vm484, %v2658, 0
      %v2774 = vsel %vm484, %v2667, 0
      %v2777 = vsel %vm484, %v2676, 0
      %v2780 = vsel %vm484, %v2685, 0
      %v2783 = vsel %vm484, %v2694, 0
      %v2786 = vsel %vm484, %v2703, 0
      %v2789 = vsel %vm484, %v2712, 0
      %v2792 = vsel %vm484, %v2721, 0
      %v2795 = vsel %vm484, %v2730, 0
      %v2798 = vsel %vm484, %v2739, 0
      %v2801 = vsel %vm545, %v2547, 0
      %2803 = vmatprep.subr.bf16.mxu0 0
      %2804 = vmatpush1.bf16.msra.mxu0 0
      %2805 = vmatprep.subr.bf16.mxu0 0
      %2806 = vmatpush1.bf16.msra.mxu0 0
      %2807 = vmatprep.subr.bf16.mxu0 0
      %2808 = vmatpush1.bf16.msra.mxu0 0
      %2809 = vmatprep.subr.bf16.mxu0 0
      %2810 = vmatpush1.bf16.msra.mxu0 0
      %2811 = vmatprep.subr.bf16.mxu0 0
      %2812 = vmatpush1.bf16.msra.mxu0 0
      %2813 = vmatprep.subr.bf16.mxu0 0
      %2814 = vmatpush1.bf16.msra.mxu0 0
      %2815 = vmatprep.subr.bf16.mxu0 0
      %2816 = vmatpush1.bf16.msra.mxu0 0
      %2817 = vmatprep.subr.bf16.mxu0 0
      %2818 = vmatpush1.bf16.msra.mxu0 %v2801
      %2819 = vmatprep.subr.bf16.mxu0 0
      %2820 = vmatpush2.bf16.msra.mxu0 0
      %2821 = vmatprep.subr.bf16.mxu0 0
      %2822 = vmatpush2.bf16.msra.mxu0 0
      %2823 = vmatprep.subr.bf16.mxu0 0
      %2824 = vmatpush2.bf16.msra.mxu0 0
      %2825 = vmatprep.subr.bf16.mxu0 0
      %2826 = vmatpush2.bf16.msra.mxu0 0
      %2827 = vmatprep.subr.bf16.mxu0 0
      %2828 = vmatpush2.bf16.msra.mxu0 0
      %2829 = vmatprep.subr.bf16.mxu0 0
      %2830 = vmatpush2.bf16.msra.mxu0 0
      %2831 = vmatprep.subr.bf16.mxu0 0
      %2832 = vmatpush2.bf16.msra.mxu0 0
      %2833 = vmatprep.subr.bf16.mxu0 0
      %2834 = vmatpush2.bf16.msra.mxu0 0
      %2835 = vmatprep.mubr.bf16.mxu0 0
      %2836 = vmatmul.mubr.bf16.gmra.mxu0 %v2741
      %v2837 = vpop.f32.mrf.mxu0
      %v2838 = vadd.f32 0.0, %v2837
      %v2839 = vpop.f32.mrf.mxu0
      %v2840 = vpop.f32.mrf.mxu0
      %v2841 = vadd.f32 0.0, %v2840
      %v2842 = vpop.f32.mrf.mxu0
      %2843 = vmatprep.mubr.bf16.mxu0 0
      %2844 = vmatmul.mubr.bf16.gmra.mxu0 %v2744
      %v2845 = vpop.f32.mrf.mxu0
      %v2846 = vadd.f32 0.0, %v2845
      %v2847 = vpop.f32.mrf.mxu0
      %v2848 = vpop.f32.mrf.mxu0
      %v2849 = vadd.f32 0.0, %v2848
      %v2850 = vpop.f32.mrf.mxu0
      %2851 = vmatprep.mubr.bf16.mxu0 0
      %2852 = vmatmul.mubr.bf16.gmra.mxu0 %v2747
      %v2853 = vpop.f32.mrf.mxu0
      %v2854 = vadd.f32 0.0, %v2853
      %v2855 = vpop.f32.mrf.mxu0
      %v2856 = vpop.f32.mrf.mxu0
      %v2857 = vadd.f32 0.0, %v2856
      %v2858 = vpop.f32.mrf.mxu0
      %2859 = vmatprep.mubr.bf16.mxu0 0
      %2860 = vmatmul.mubr.bf16.gmra.mxu0 %v2750
      %v2861 = vpop.f32.mrf.mxu0
      %v2862 = vadd.f32 0.0, %v2861
      %v2863 = vpop.f32.mrf.mxu0
      %v2864 = vpop.f32.mrf.mxu0
      %v2865 = vadd.f32 0.0, %v2864
      %v2866 = vpop.f32.mrf.mxu0
      %2867 = vmatprep.mubr.bf16.mxu0 0
      %2868 = vmatmul.mubr.bf16.gmra.mxu0 %v2753
      %v2869 = vpop.f32.mrf.mxu0
      %v2870 = vadd.f32 0.0, %v2869
      %v2871 = vpop.f32.mrf.mxu0
      %v2872 = vpop.f32.mrf.mxu0
      %v2873 = vadd.f32 0.0, %v2872
      %v2874 = vpop.f32.mrf.mxu0
      %2875 = vmatprep.mubr.bf16.mxu0 0
      %2876 = vmatmul.mubr.bf16.gmra.mxu0 %v2756
      %v2877 = vpop.f32.mrf.mxu0
      %v2878 = vadd.f32 0.0, %v2877
      %v2879 = vpop.f32.mrf.mxu0
      %v2880 = vpop.f32.mrf.mxu0
      %v2881 = vadd.f32 0.0, %v2880
      %v2882 = vpop.f32.mrf.mxu0
      %2883 = vmatprep.mubr.bf16.mxu0 0
      %2884 = vmatmul.mubr.bf16.gmra.mxu0 %v2759
      %v2885 = vpop.f32.mrf.mxu0
      %v2886 = vadd.f32 0.0, %v2885
      %v2887 = vpop.f32.mrf.mxu0
      %v2888 = vpop.f32.mrf.mxu0
      %v2889 = vadd.f32 0.0, %v2888
      %v2890 = vpop.f32.mrf.mxu0
      %2891 = vmatprep.mubr.bf16.mxu0 0
      %2892 = vmatmul.mubr.bf16.gmra.mxu0 %v2762
      %v2893 = vpop.f32.mrf.mxu0
      %v2894 = vadd.f32 0.0, %v2893
      %v2895 = vpop.f32.mrf.mxu0
      %v2896 = vpop.f32.mrf.mxu0
      %v2897 = vadd.f32 0.0, %v2896
      %v2898 = vpop.f32.mrf.mxu0
      %2899 = vmatprep.mubr.bf16.mxu0 0
      %2900 = vmatmul.mubr.bf16.gmra.mxu0 %v2765
      %v2901 = vpop.f32.mrf.mxu0
      %v2902 = vadd.f32 0.0, %v2901
      %v2903 = vpop.f32.mrf.mxu0
      %v2904 = vpop.f32.mrf.mxu0
      %v2905 = vadd.f32 0.0, %v2904
      %v2906 = vpop.f32.mrf.mxu0
      %2907 = vmatprep.mubr.bf16.mxu0 0
      %2908 = vmatmul.mubr.bf16.gmra.mxu0 %v2768
      %v2909 = vpop.f32.mrf.mxu0
      %v2910 = vadd.f32 0.0, %v2909
      %v2911 = vpop.f32.mrf.mxu0
      %v2912 = vpop.f32.mrf.mxu0
      %v2913 = vadd.f32 0.0, %v2912
      %v2914 = vpop.f32.mrf.mxu0
      %2915 = vmatprep.mubr.bf16.mxu0 0
      %2916 = vmatmul.mubr.bf16.gmra.mxu0 %v2771
      %v2917 = vpop.f32.mrf.mxu0
      %v2918 = vadd.f32 0.0, %v2917
      %v2919 = vpop.f32.mrf.mxu0
      %v2920 = vpop.f32.mrf.mxu0
      %v2921 = vadd.f32 0.0, %v2920
      %v2922 = vpop.f32.mrf.mxu0
      %2923 = vmatprep.mubr.bf16.mxu0 0
      %2924 = vmatmul.mubr.bf16.gmra.mxu0 %v2774
      %v2925 = vpop.f32.mrf.mxu0
      %v2926 = vadd.f32 0.0, %v2925
      %v2927 = vpop.f32.mrf.mxu0
      %v2928 = vpop.f32.mrf.mxu0
      %v2929 = vadd.f32 0.0, %v2928
      %v2930 = vpop.f32.mrf.mxu0
      %2931 = vmatprep.mubr.bf16.mxu0 0
      %2932 = vmatmul.mubr.bf16.gmra.mxu0 %v2777
      %v2933 = vpop.f32.mrf.mxu0
      %v2934 = vadd.f32 0.0, %v2933
      %v2935 = vpop.f32.mrf.mxu0
      %v2936 = vpop.f32.mrf.mxu0
      %v2937 = vadd.f32 0.0, %v2936
      %v2938 = vpop.f32.mrf.mxu0
      %2939 = vmatprep.mubr.bf16.mxu0 0
      %2940 = vmatmul.mubr.bf16.gmra.mxu0 %v2780
      %v2941 = vpop.f32.mrf.mxu0
      %v2942 = vadd.f32 0.0, %v2941
      %v2943 = vpop.f32.mrf.mxu0
      %v2944 = vpop.f32.mrf.mxu0
      %v2945 = vadd.f32 0.0, %v2944
      %v2946 = vpop.f32.mrf.mxu0
      %2947 = vmatprep.mubr.bf16.mxu0 0
      %2948 = vmatmul.mubr.bf16.gmra.mxu0 %v2783
      %v2949 = vpop.f32.mrf.mxu0
      %v2950 = vadd.f32 0.0, %v2949
      %v2951 = vpop.f32.mrf.mxu0
      %v2952 = vpop.f32.mrf.mxu0
      %v2953 = vadd.f32 0.0, %v2952
      %v2954 = vpop.f32.mrf.mxu0
      %2955 = vmatprep.mubr.bf16.mxu0 0
      %2956 = vmatmul.mubr.bf16.gmra.mxu0 %v2786
      %v2957 = vpop.f32.mrf.mxu0
      %v2958 = vadd.f32 0.0, %v2957
      %v2959 = vpop.f32.mrf.mxu0
      %v2960 = vpop.f32.mrf.mxu0
      %v2961 = vadd.f32 0.0, %v2960
      %v2962 = vpop.f32.mrf.mxu0
      %2963 = vmatprep.mubr.bf16.mxu0 0
      %2964 = vmatmul.mubr.bf16.gmra.mxu0 %v2789
      %v2965 = vpop.f32.mrf.mxu0
      %v2966 = vadd.f32 0.0, %v2965
      %v2967 = vpop.f32.mrf.mxu0
      %v2968 = vpop.f32.mrf.mxu0
      %v2969 = vadd.f32 0.0, %v2968
      %v2970 = vpop.f32.mrf.mxu0
      %2971 = vmatprep.mubr.bf16.mxu0 0
      %2972 = vmatmul.mubr.bf16.gmra.mxu0 %v2792
      %v2973 = vpop.f32.mrf.mxu0
      %v2974 = vadd.f32 0.0, %v2973
      %v2975 = vpop.f32.mrf.mxu0
      %v2976 = vpop.f32.mrf.mxu0
      %v2977 = vadd.f32 0.0, %v2976
      %v2978 = vpop.f32.mrf.mxu0
      %2979 = vmatprep.mubr.bf16.mxu0 0
      %2980 = vmatmul.mubr.bf16.gmra.mxu0 %v2795
      %v2981 = vpop.f32.mrf.mxu0
      %v2982 = vadd.f32 0.0, %v2981
      %v2983 = vpop.f32.mrf.mxu0
      %v2984 = vpop.f32.mrf.mxu0
      %v2985 = vadd.f32 0.0, %v2984
      %v2986 = vpop.f32.mrf.mxu0
      %2987 = vmatprep.mubr.bf16.mxu0 0
      %2988 = vmatmul.mubr.bf16.gmra.mxu0 %v2798
      %v2989 = vpop.f32.mrf.mxu0
      %v2990 = vadd.f32 0.0, %v2989
      %v2991 = vpop.f32.mrf.mxu0
      %v2992 = vpop.f32.mrf.mxu0
      %v2993 = vadd.f32 0.0, %v2992
      %v2994 = vpop.f32.mrf.mxu0
      %2995 = vdwg.mxu0
      %v2996 = vadd.f32 %v2505, %v2838
      %v2997 = vadd.f32 %v2506, %v2841
      %v2998 = vadd.f32 %v2507, %v2846
      %v2999 = vadd.f32 %v2508, %v2849
      %v3000 = vadd.f32 %v2509, %v2854
      %v3001 = vadd.f32 %v2510, %v2857
      %v3002 = vadd.f32 %v2511, %v2862
      %v3003 = vadd.f32 %v2512, %v2865
      %v3004 = vadd.f32 %v2513, %v2870
      %v3005 = vadd.f32 %v2514, %v2873
      %v3006 = vadd.f32 %v2515, %v2878
      %v3007 = vadd.f32 %v2516, %v2881
      %v3008 = vadd.f32 %v2517, %v2886
      %v3009 = vadd.f32 %v2518, %v2889
      %v3010 = vadd.f32 %v2519, %v2894
      %v3011 = vadd.f32 %v2520, %v2897
      %v3012 = vadd.f32 %v2521, %v2902
      %v3013 = vadd.f32 %v2522, %v2905
      %v3014 = vadd.f32 %v2523, %v2910
      %v3015 = vadd.f32 %v2524, %v2913
      %v3016 = vadd.f32 %v2525, %v2918
      %v3017 = vadd.f32 %v2526, %v2921
      %v3018 = vadd.f32 %v2527, %v2926
      %v3019 = vadd.f32 %v2528, %v2929
      %v3020 = vadd.f32 %v2529, %v2934
      %v3021 = vadd.f32 %v2530, %v2937
      %v3022 = vadd.f32 %v2531, %v2942
      %v3023 = vadd.f32 %v2532, %v2945
      %v3024 = vadd.f32 %v2533, %v2950
      %v3025 = vadd.f32 %v2534, %v2953
      %v3026 = vadd.f32 %v2535, %v2958
      %v3027 = vadd.f32 %v2536, %v2961
      %v3028 = vadd.f32 %v2537, %v2966
      %v3029 = vadd.f32 %v2538, %v2969
      %v3030 = vadd.f32 %v2539, %v2974
      %v3031 = vadd.f32 %v2540, %v2977
      %v3032 = vadd.f32 %v2541, %v2982
      %v3033 = vadd.f32 %v2542, %v2985
      %v3034 = vadd.f32 %v2543, %v2990
      %v3035 = vadd.f32 %v2544, %v2993
      %v3036 = vld [vmem:[%s165 + $0x8] sm:$0x8]
      %s3037 = scalar_lea.vmem %s1, 14
      %v3038 = vld [vmem:[%s3037] sm:$0x3]
      %v3040 = vunpack.c.l.b16 %v3036
      %v3041 = vpack.c.b16 %v2147, %v3040
      %vm3042 = vcmask 1044480
      %v3043 = vrot.slane %v3041, 3
      %v3044 = vrot.slane %v2188, 3
      %v3045 = vsel %vm3042, %v3043, %v3044
      %v3046 = vrot.slane %v2189, 3
      %v3047 = vsel %vm3042, %v3044, %v3046
      %v3048 = vrot.slane %v2190, 3
      %v3049 = vsel %vm3042, %v3046, %v3048
      %v3050 = vrot.slane %v2191, 3
      %v3051 = vsel %vm3042, %v3048, %v3050
      %v3052 = vrot.slane %v2192, 3
      %v3053 = vsel %vm3042, %v3050, %v3052
      %v3054 = vrot.slane %v2193, 3
      %v3055 = vsel %vm3042, %v3052, %v3054
      %v3056 = vrot.slane %v2194, 3
      %v3057 = vsel %vm3042, %v3054, %v3056
      %v3058 = vrot.slane %v2195, 3
      %v3059 = vsel %vm3042, %v3056, %v3058
      %v3060 = vrot.slane %v2196, 3
      %v3061 = vsel %vm3042, %v3058, %v3060
      %v3062 = vrot.slane %v2197, 3
      %v3063 = vsel %vm3042, %v3060, %v3062
      %v3064 = vrot.slane %v2198, 3
      %v3065 = vsel %vm3042, %v3062, %v3064
      %v3066 = vrot.slane %v2199, 3
      %v3067 = vsel %vm3042, %v3064, %v3066
      %v3068 = vrot.slane %v2200, 3
      %v3069 = vsel %vm3042, %v3066, %v3068
      %v3070 = vrot.slane %v2201, 3
      %v3071 = vsel %vm3042, %v3068, %v3070
      %v3072 = vrot.slane %v2202, 3
      %v3073 = vsel %vm3042, %v3070, %v3072
      %v3074 = vrot.slane %v2203, 3
      %v3075 = vsel %vm3042, %v3072, %v3074
      %v3076 = vrot.slane %v2204, 3
      %v3077 = vsel %vm3042, %v3074, %v3076
      %v3078 = vrot.slane %v2205, 3
      %v3079 = vsel %vm3042, %v3076, %v3078
      %v3080 = vrot.slane %v2206, 3
      %v3081 = vsel %vm3042, %v3078, %v3080
      %v3082 = vrot.slane %v2550, 3
      %v3083 = vsel %vm3042, %v3080, %v3082
      %v3085 = vsel %vm484, %v3045, 0
      %v3088 = vsel %vm484, %v3047, 0
      %v3091 = vsel %vm484, %v3049, 0
      %v3094 = vsel %vm484, %v3051, 0
      %v3097 = vsel %vm484, %v3053, 0
      %v3100 = vsel %vm484, %v3055, 0
      %v3103 = vsel %vm484, %v3057, 0
      %v3106 = vsel %vm484, %v3059, 0
      %v3109 = vsel %vm484, %v3061, 0
      %v3112 = vsel %vm484, %v3063, 0
      %v3115 = vsel %vm484, %v3065, 0
      %v3118 = vsel %vm484, %v3067, 0
      %v3121 = vsel %vm484, %v3069, 0
      %v3124 = vsel %vm484, %v3071, 0
      %v3127 = vsel %vm484, %v3073, 0
      %v3130 = vsel %vm484, %v3075, 0
      %v3133 = vsel %vm484, %v3077, 0
      %v3136 = vsel %vm484, %v3079, 0
      %v3139 = vsel %vm484, %v3081, 0
      %v3142 = vsel %vm484, %v3083, 0
      %v3145 = vsel %vm545, %v3038, 0
      %3147 = vmatprep.subr.bf16.mxu0 0
      %3148 = vmatpush1.bf16.msra.mxu0 0
      %3149 = vmatprep.subr.bf16.mxu0 0
      %3150 = vmatpush1.bf16.msra.mxu0 0
      %3151 = vmatprep.subr.bf16.mxu0 0
      %3152 = vmatpush1.bf16.msra.mxu0 0
      %3153 = vmatprep.subr.bf16.mxu0 0
      %3154 = vmatpush1.bf16.msra.mxu0 0
      %3155 = vmatprep.subr.bf16.mxu0 0
      %3156 = vmatpush1.bf16.msra.mxu0 0
      %3157 = vmatprep.subr.bf16.mxu0 0
      %3158 = vmatpush1.bf16.msra.mxu0 0
      %3159 = vmatprep.subr.bf16.mxu0 0
      %3160 = vmatpush1.bf16.msra.mxu0 0
      %3161 = vmatprep.subr.bf16.mxu0 0
      %3162 = vmatpush1.bf16.msra.mxu0 %v3145
      %3163 = vmatprep.subr.bf16.mxu0 0
      %3164 = vmatpush2.bf16.msra.mxu0 0
      %3165 = vmatprep.subr.bf16.mxu0 0
      %3166 = vmatpush2.bf16.msra.mxu0 0
      %3167 = vmatprep.subr.bf16.mxu0 0
      %3168 = vmatpush2.bf16.msra.mxu0 0
      %3169 = vmatprep.subr.bf16.mxu0 0
      %3170 = vmatpush2.bf16.msra.mxu0 0
      %3171 = vmatprep.subr.bf16.mxu0 0
      %3172 = vmatpush2.bf16.msra.mxu0 0
      %3173 = vmatprep.subr.bf16.mxu0 0
      %3174 = vmatpush2.bf16.msra.mxu0 0
      %3175 = vmatprep.subr.bf16.mxu0 0
      %3176 = vmatpush2.bf16.msra.mxu0 0
      %3177 = vmatprep.subr.bf16.mxu0 0
      %3178 = vmatpush2.bf16.msra.mxu0 0
      %3179 = vmatprep.mubr.bf16.mxu0 0
      %3180 = vmatmul.mubr.bf16.gmra.mxu0 %v3085
      %v3181 = vpop.f32.mrf.mxu0
      %v3182 = vadd.f32 0.0, %v3181
      %v3183 = vpop.f32.mrf.mxu0
      %v3184 = vpop.f32.mrf.mxu0
      %v3185 = vadd.f32 0.0, %v3184
      %v3186 = vpop.f32.mrf.mxu0
      %3187 = vmatprep.mubr.bf16.mxu0 0
      %3188 = vmatmul.mubr.bf16.gmra.mxu0 %v3088
      %v3189 = vpop.f32.mrf.mxu0
      %v3190 = vadd.f32 0.0, %v3189
      %v3191 = vpop.f32.mrf.mxu0
      %v3192 = vpop.f32.mrf.mxu0
      %v3193 = vadd.f32 0.0, %v3192
      %v3194 = vpop.f32.mrf.mxu0
      %3195 = vmatprep.mubr.bf16.mxu0 0
      %3196 = vmatmul.mubr.bf16.gmra.mxu0 %v3091
      %v3197 = vpop.f32.mrf.mxu0
      %v3198 = vadd.f32 0.0, %v3197
      %v3199 = vpop.f32.mrf.mxu0
      %v3200 = vpop.f32.mrf.mxu0
      %v3201 = vadd.f32 0.0, %v3200
      %v3202 = vpop.f32.mrf.mxu0
      %3203 = vmatprep.mubr.bf16.mxu0 0
      %3204 = vmatmul.mubr.bf16.gmra.mxu0 %v3094
      %v3205 = vpop.f32.mrf.mxu0
      %v3206 = vadd.f32 0.0, %v3205
      %v3207 = vpop.f32.mrf.mxu0
      %v3208 = vpop.f32.mrf.mxu0
      %v3209 = vadd.f32 0.0, %v3208
      %v3210 = vpop.f32.mrf.mxu0
      %3211 = vmatprep.mubr.bf16.mxu0 0
      %3212 = vmatmul.mubr.bf16.gmra.mxu0 %v3097
      %v3213 = vpop.f32.mrf.mxu0
      %v3214 = vadd.f32 0.0, %v3213
      %v3215 = vpop.f32.mrf.mxu0
      %v3216 = vpop.f32.mrf.mxu0
      %v3217 = vadd.f32 0.0, %v3216
      %v3218 = vpop.f32.mrf.mxu0
      %3219 = vmatprep.mubr.bf16.mxu0 0
      %3220 = vmatmul.mubr.bf16.gmra.mxu0 %v3100
      %v3221 = vpop.f32.mrf.mxu0
      %v3222 = vadd.f32 0.0, %v3221
      %v3223 = vpop.f32.mrf.mxu0
      %v3224 = vpop.f32.mrf.mxu0
      %v3225 = vadd.f32 0.0, %v3224
      %v3226 = vpop.f32.mrf.mxu0
      %3227 = vmatprep.mubr.bf16.mxu0 0
      %3228 = vmatmul.mubr.bf16.gmra.mxu0 %v3103
      %v3229 = vpop.f32.mrf.mxu0
      %v3230 = vadd.f32 0.0, %v3229
      %v3231 = vpop.f32.mrf.mxu0
      %v3232 = vpop.f32.mrf.mxu0
      %v3233 = vadd.f32 0.0, %v3232
      %v3234 = vpop.f32.mrf.mxu0
      %3235 = vmatprep.mubr.bf16.mxu0 0
      %3236 = vmatmul.mubr.bf16.gmra.mxu0 %v3106
      %v3237 = vpop.f32.mrf.mxu0
      %v3238 = vadd.f32 0.0, %v3237
      %v3239 = vpop.f32.mrf.mxu0
      %v3240 = vpop.f32.mrf.mxu0
      %v3241 = vadd.f32 0.0, %v3240
      %v3242 = vpop.f32.mrf.mxu0
      %3243 = vmatprep.mubr.bf16.mxu0 0
      %3244 = vmatmul.mubr.bf16.gmra.mxu0 %v3109
      %v3245 = vpop.f32.mrf.mxu0
      %v3246 = vadd.f32 0.0, %v3245
      %v3247 = vpop.f32.mrf.mxu0
      %v3248 = vpop.f32.mrf.mxu0
      %v3249 = vadd.f32 0.0, %v3248
      %v3250 = vpop.f32.mrf.mxu0
      %3251 = vmatprep.mubr.bf16.mxu0 0
      %3252 = vmatmul.mubr.bf16.gmra.mxu0 %v3112
      %v3253 = vpop.f32.mrf.mxu0
      %v3254 = vadd.f32 0.0, %v3253
      %v3255 = vpop.f32.mrf.mxu0
      %v3256 = vpop.f32.mrf.mxu0
      %v3257 = vadd.f32 0.0, %v3256
      %v3258 = vpop.f32.mrf.mxu0
      %3259 = vmatprep.mubr.bf16.mxu0 0
      %3260 = vmatmul.mubr.bf16.gmra.mxu0 %v3115
      %v3261 = vpop.f32.mrf.mxu0
      %v3262 = vadd.f32 0.0, %v3261
      %v3263 = vpop.f32.mrf.mxu0
      %v3264 = vpop.f32.mrf.mxu0
      %v3265 = vadd.f32 0.0, %v3264
      %v3266 = vpop.f32.mrf.mxu0
      %3267 = vmatprep.mubr.bf16.mxu0 0
      %3268 = vmatmul.mubr.bf16.gmra.mxu0 %v3118
      %v3269 = vpop.f32.mrf.mxu0
      %v3270 = vadd.f32 0.0, %v3269
      %v3271 = vpop.f32.mrf.mxu0
      %v3272 = vpop.f32.mrf.mxu0
      %v3273 = vadd.f32 0.0, %v3272
      %v3274 = vpop.f32.mrf.mxu0
      %3275 = vmatprep.mubr.bf16.mxu0 0
      %3276 = vmatmul.mubr.bf16.gmra.mxu0 %v3121
      %v3277 = vpop.f32.mrf.mxu0
      %v3278 = vadd.f32 0.0, %v3277
      %v3279 = vpop.f32.mrf.mxu0
      %v3280 = vpop.f32.mrf.mxu0
      %v3281 = vadd.f32 0.0, %v3280
      %v3282 = vpop.f32.mrf.mxu0
      %3283 = vmatprep.mubr.bf16.mxu0 0
      %3284 = vmatmul.mubr.bf16.gmra.mxu0 %v3124
      %v3285 = vpop.f32.mrf.mxu0
      %v3286 = vadd.f32 0.0, %v3285
      %v3287 = vpop.f32.mrf.mxu0
      %v3288 = vpop.f32.mrf.mxu0
      %v3289 = vadd.f32 0.0, %v3288
      %v3290 = vpop.f32.mrf.mxu0
      %3291 = vmatprep.mubr.bf16.mxu0 0
      %3292 = vmatmul.mubr.bf16.gmra.mxu0 %v3127
      %v3293 = vpop.f32.mrf.mxu0
      %v3294 = vadd.f32 0.0, %v3293
      %v3295 = vpop.f32.mrf.mxu0
      %v3296 = vpop.f32.mrf.mxu0
      %v3297 = vadd.f32 0.0, %v3296
      %v3298 = vpop.f32.mrf.mxu0
      %3299 = vmatprep.mubr.bf16.mxu0 0
      %3300 = vmatmul.mubr.bf16.gmra.mxu0 %v3130
      %v3301 = vpop.f32.mrf.mxu0
      %v3302 = vadd.f32 0.0, %v3301
      %v3303 = vpop.f32.mrf.mxu0
      %v3304 = vpop.f32.mrf.mxu0
      %v3305 = vadd.f32 0.0, %v3304
      %v3306 = vpop.f32.mrf.mxu0
      %3307 = vmatprep.mubr.bf16.mxu0 0
      %3308 = vmatmul.mubr.bf16.gmra.mxu0 %v3133
      %v3309 = vpop.f32.mrf.mxu0
      %v3310 = vadd.f32 0.0, %v3309
      %v3311 = vpop.f32.mrf.mxu0
      %v3312 = vpop.f32.mrf.mxu0
      %v3313 = vadd.f32 0.0, %v3312
      %v3314 = vpop.f32.mrf.mxu0
      %3315 = vmatprep.mubr.bf16.mxu0 0
      %3316 = vmatmul.mubr.bf16.gmra.mxu0 %v3136
      %v3317 = vpop.f32.mrf.mxu0
      %v3318 = vadd.f32 0.0, %v3317
      %v3319 = vpop.f32.mrf.mxu0
      %v3320 = vpop.f32.mrf.mxu0
      %v3321 = vadd.f32 0.0, %v3320
      %v3322 = vpop.f32.mrf.mxu0
      %3323 = vmatprep.mubr.bf16.mxu0 0
      %3324 = vmatmul.mubr.bf16.gmra.mxu0 %v3139
      %v3325 = vpop.f32.mrf.mxu0
      %v3326 = vadd.f32 0.0, %v3325
      %v3327 = vpop.f32.mrf.mxu0
      %v3328 = vpop.f32.mrf.mxu0
      %v3329 = vadd.f32 0.0, %v3328
      %v3330 = vpop.f32.mrf.mxu0
      %3331 = vmatprep.mubr.bf16.mxu0 0
      %3332 = vmatmul.mubr.bf16.gmra.mxu0 %v3142
      %v3333 = vpop.f32.mrf.mxu0
      %v3334 = vadd.f32 0.0, %v3333
      %v3335 = vpop.f32.mrf.mxu0
      %v3336 = vpop.f32.mrf.mxu0
      %v3337 = vadd.f32 0.0, %v3336
      %v3338 = vpop.f32.mrf.mxu0
      %3339 = vdwg.mxu0
      %v3340 = vadd.f32 %v2996, %v3182
      %v3341 = vadd.f32 %v2997, %v3185
      %v3342 = vadd.f32 %v2998, %v3190
      %v3343 = vadd.f32 %v2999, %v3193
      %v3344 = vadd.f32 %v3000, %v3198
      %v3345 = vadd.f32 %v3001, %v3201
      %v3346 = vadd.f32 %v3002, %v3206
      %v3347 = vadd.f32 %v3003, %v3209
      %v3348 = vadd.f32 %v3004, %v3214
      %v3349 = vadd.f32 %v3005, %v3217
      %v3350 = vadd.f32 %v3006, %v3222
      %v3351 = vadd.f32 %v3007, %v3225
      %v3352 = vadd.f32 %v3008, %v3230
      %v3353 = vadd.f32 %v3009, %v3233
      %v3354 = vadd.f32 %v3010, %v3238
      %v3355 = vadd.f32 %v3011, %v3241
      %v3356 = vadd.f32 %v3012, %v3246
      %v3357 = vadd.f32 %v3013, %v3249
      %v3358 = vadd.f32 %v3014, %v3254
      %v3359 = vadd.f32 %v3015, %v3257
      %v3360 = vadd.f32 %v3016, %v3262
      %v3361 = vadd.f32 %v3017, %v3265
      %v3362 = vadd.f32 %v3018, %v3270
      %v3363 = vadd.f32 %v3019, %v3273
      %v3364 = vadd.f32 %v3020, %v3278
      %v3365 = vadd.f32 %v3021, %v3281
      %v3366 = vadd.f32 %v3022, %v3286
      %v3367 = vadd.f32 %v3023, %v3289
      %v3368 = vadd.f32 %v3024, %v3294
      %v3369 = vadd.f32 %v3025, %v3297
      %v3370 = vadd.f32 %v3026, %v3302
      %v3371 = vadd.f32 %v3027, %v3305
      %v3372 = vadd.f32 %v3028, %v3310
      %v3373 = vadd.f32 %v3029, %v3313
      %v3374 = vadd.f32 %v3030, %v3318
      %v3375 = vadd.f32 %v3031, %v3321
      %v3376 = vadd.f32 %v3032, %v3326
      %v3377 = vadd.f32 %v3033, %v3329
      %v3378 = vadd.f32 %v3034, %v3334
      %v3379 = vadd.f32 %v3035, %v3337
      %v3380 = vld [vmem:[%s165 + $0xa8] sm:$0xf]
      %s3381 = scalar_lea.vmem %s1, 16
      %v3382 = vld [vmem:[%s3381] sm:$0x3]
      %v3384 = vunpack.c.l.b16 %v3380
      %v3385 = vpack.c.b16 %v3384, %v3384
      %vm3386 = vsmask.f32 4352
      %v3388 = vshrl.u32 %v3041, 16
      %v3390 = vrot.slane %v3388, 3
      %v3391 = vshll.u32 %v3041, 16
      %v3393 = vrot.slane %v3391, 4
      %v3394 = vor.u32 %v3390, %v3393
      %v3395 = vrot.slane %v2561, 3
      %v3396 = vrot.slane %v2564, 4
      %v3397 = vor.u32 %v3395, %v3396
      %v3398 = vsel %vm3386, %v3394, %v3397
      %v3399 = vrot.slane %v2570, 3
      %v3400 = vrot.slane %v2573, 4
      %v3401 = vor.u32 %v3399, %v3400
      %v3402 = vsel %vm3386, %v3397, %v3401
      %v3403 = vrot.slane %v2579, 3
      %v3404 = vrot.slane %v2582, 4
      %v3405 = vor.u32 %v3403, %v3404
      %v3406 = vsel %vm3386, %v3401, %v3405
      %v3407 = vrot.slane %v2588, 3
      %v3408 = vrot.slane %v2591, 4
      %v3409 = vor.u32 %v3407, %v3408
      %v3410 = vsel %vm3386, %v3405, %v3409
      %v3411 = vrot.slane %v2597, 3
      %v3412 = vrot.slane %v2600, 4
      %v3413 = vor.u32 %v3411, %v3412
      %v3414 = vsel %vm3386, %v3409, %v3413
      %v3415 = vrot.slane %v2606, 3
      %v3416 = vrot.slane %v2609, 4
      %v3417 = vor.u32 %v3415, %v3416
      %v3418 = vsel %vm3386, %v3413, %v3417
      %v3419 = vrot.slane %v2615, 3
      %v3420 = vrot.slane %v2618, 4
      %v3421 = vor.u32 %v3419, %v3420
      %v3422 = vsel %vm3386, %v3417, %v3421
      %v3423 = vrot.slane %v2624, 3
      %v3424 = vrot.slane %v2627, 4
      %v3425 = vor.u32 %v3423, %v3424
      %v3426 = vsel %vm3386, %v3421, %v3425
      %v3427 = vrot.slane %v2633, 3
      %v3428 = vrot.slane %v2636, 4
      %v3429 = vor.u32 %v3427, %v3428
      %v3430 = vsel %vm3386, %v3425, %v3429
      %v3431 = vrot.slane %v2642, 3
      %v3432 = vrot.slane %v2645, 4
      %v3433 = vor.u32 %v3431, %v3432
      %v3434 = vsel %vm3386, %v3429, %v3433
      %v3435 = vrot.slane %v2651, 3
      %v3436 = vrot.slane %v2654, 4
      %v3437 = vor.u32 %v3435, %v3436
      %v3438 = vsel %vm3386, %v3433, %v3437
      %v3439 = vrot.slane %v2660, 3
      %v3440 = vrot.slane %v2663, 4
      %v3441 = vor.u32 %v3439, %v3440
      %v3442 = vsel %vm3386, %v3437, %v3441
      %v3443 = vrot.slane %v2669, 3
      %v3444 = vrot.slane %v2672, 4
      %v3445 = vor.u32 %v3443, %v3444
      %v3446 = vsel %vm3386, %v3441, %v3445
      %v3447 = vrot.slane %v2678, 3
      %v3448 = vrot.slane %v2681, 4
      %v3449 = vor.u32 %v3447, %v3448
      %v3450 = vsel %vm3386, %v3445, %v3449
      %v3451 = vrot.slane %v2687, 3
      %v3452 = vrot.slane %v2690, 4
      %v3453 = vor.u32 %v3451, %v3452
      %v3454 = vsel %vm3386, %v3449, %v3453
      %v3455 = vrot.slane %v2696, 3
      %v3456 = vrot.slane %v2699, 4
      %v3457 = vor.u32 %v3455, %v3456
      %v3458 = vsel %vm3386, %v3453, %v3457
      %v3459 = vrot.slane %v2705, 3
      %v3460 = vrot.slane %v2708, 4
      %v3461 = vor.u32 %v3459, %v3460
      %v3462 = vsel %vm3386, %v3457, %v3461
      %v3463 = vrot.slane %v2714, 3
      %v3464 = vrot.slane %v2717, 4
      %v3465 = vor.u32 %v3463, %v3464
      %v3466 = vsel %vm3386, %v3461, %v3465
      %v3467 = vrot.slane %v2723, 3
      %v3468 = vrot.slane %v2726, 4
      %v3469 = vor.u32 %v3467, %v3468
      %v3470 = vsel %vm3386, %v3465, %v3469
      %v3472 = vshrl.u32 %v3385, 16
      %v3474 = vrot.slane %v3472, 3
      %v3475 = vshll.u32 %v3385, 16
      %v3477 = vrot.slane %v3475, 4
      %v3478 = vor.u32 %v3474, %v3477
      %v3479 = vsel %vm3386, %v3469, %v3478
      %v3481 = vsel %vm484, %v3398, 0
      %v3484 = vsel %vm484, %v3402, 0
      %v3487 = vsel %vm484, %v3406, 0
      %v3490 = vsel %vm484, %v3410, 0
      %v3493 = vsel %vm484, %v3414, 0
      %v3496 = vsel %vm484, %v3418, 0
      %v3499 = vsel %vm484, %v3422, 0
      %v3502 = vsel %vm484, %v3426, 0
      %v3505 = vsel %vm484, %v3430, 0
      %v3508 = vsel %vm484, %v3434, 0
      %v3511 = vsel %vm484, %v3438, 0
      %v3514 = vsel %vm484, %v3442, 0
      %v3517 = vsel %vm484, %v3446, 0
      %v3520 = vsel %vm484, %v3450, 0
      %v3523 = vsel %vm484, %v3454, 0
      %v3526 = vsel %vm484, %v3458, 0
      %v3529 = vsel %vm484, %v3462, 0
      %v3532 = vsel %vm484, %v3466, 0
      %v3535 = vsel %vm484, %v3470, 0
      %v3538 = vsel %vm484, %v3479, 0
      %v3541 = vsel %vm545, %v3382, 0
      %3543 = vmatprep.subr.bf16.mxu0 0
      %3544 = vmatpush1.bf16.msra.mxu0 0
      %3545 = vmatprep.subr.bf16.mxu0 0
      %3546 = vmatpush1.bf16.msra.mxu0 0
      %3547 = vmatprep.subr.bf16.mxu0 0
      %3548 = vmatpush1.bf16.msra.mxu0 0
      %3549 = vmatprep.subr.bf16.mxu0 0
      %3550 = vmatpush1.bf16.msra.mxu0 0
      %3551 = vmatprep.subr.bf16.mxu0 0
      %3552 = vmatpush1.bf16.msra.mxu0 0
      %3553 = vmatprep.subr.bf16.mxu0 0
      %3554 = vmatpush1.bf16.msra.mxu0 0
      %3555 = vmatprep.subr.bf16.mxu0 0
      %3556 = vmatpush1.bf16.msra.mxu0 0
      %3557 = vmatprep.subr.bf16.mxu0 0
      %3558 = vmatpush1.bf16.msra.mxu0 %v3541
      %3559 = vmatprep.subr.bf16.mxu0 0
      %3560 = vmatpush2.bf16.msra.mxu0 0
      %3561 = vmatprep.subr.bf16.mxu0 0
      %3562 = vmatpush2.bf16.msra.mxu0 0
      %3563 = vmatprep.subr.bf16.mxu0 0
      %3564 = vmatpush2.bf16.msra.mxu0 0
      %3565 = vmatprep.subr.bf16.mxu0 0
      %3566 = vmatpush2.bf16.msra.mxu0 0
      %3567 = vmatprep.subr.bf16.mxu0 0
      %3568 = vmatpush2.bf16.msra.mxu0 0
      %3569 = vmatprep.subr.bf16.mxu0 0
      %3570 = vmatpush2.bf16.msra.mxu0 0
      %3571 = vmatprep.subr.bf16.mxu0 0
      %3572 = vmatpush2.bf16.msra.mxu0 0
      %3573 = vmatprep.subr.bf16.mxu0 0
      %3574 = vmatpush2.bf16.msra.mxu0 0
      %3575 = vmatprep.mubr.bf16.mxu0 0
      %3576 = vmatmul.mubr.bf16.gmra.mxu0 %v3481
      %v3577 = vpop.f32.mrf.mxu0
      %v3578 = vadd.f32 0.0, %v3577
      %v3579 = vpop.f32.mrf.mxu0
      %v3580 = vpop.f32.mrf.mxu0
      %v3581 = vadd.f32 0.0, %v3580
      %v3582 = vpop.f32.mrf.mxu0
      %3583 = vmatprep.mubr.bf16.mxu0 0
      %3584 = vmatmul.mubr.bf16.gmra.mxu0 %v3484
      %v3585 = vpop.f32.mrf.mxu0
      %v3586 = vadd.f32 0.0, %v3585
      %v3587 = vpop.f32.mrf.mxu0
      %v3588 = vpop.f32.mrf.mxu0
      %v3589 = vadd.f32 0.0, %v3588
      %v3590 = vpop.f32.mrf.mxu0
      %3591 = vmatprep.mubr.bf16.mxu0 0
      %3592 = vmatmul.mubr.bf16.gmra.mxu0 %v3487
      %v3593 = vpop.f32.mrf.mxu0
      %v3594 = vadd.f32 0.0, %v3593
      %v3595 = vpop.f32.mrf.mxu0
      %v3596 = vpop.f32.mrf.mxu0
      %v3597 = vadd.f32 0.0, %v3596
      %v3598 = vpop.f32.mrf.mxu0
      %3599 = vmatprep.mubr.bf16.mxu0 0
      %3600 = vmatmul.mubr.bf16.gmra.mxu0 %v3490
      %v3601 = vpop.f32.mrf.mxu0
      %v3602 = vadd.f32 0.0, %v3601
      %v3603 = vpop.f32.mrf.mxu0
      %v3604 = vpop.f32.mrf.mxu0
      %v3605 = vadd.f32 0.0, %v3604
      %v3606 = vpop.f32.mrf.mxu0
      %3607 = vmatprep.mubr.bf16.mxu0 0
      %3608 = vmatmul.mubr.bf16.gmra.mxu0 %v3493
      %v3609 = vpop.f32.mrf.mxu0
      %v3610 = vadd.f32 0.0, %v3609
      %v3611 = vpop.f32.mrf.mxu0
      %v3612 = vpop.f32.mrf.mxu0
      %v3613 = vadd.f32 0.0, %v3612
      %v3614 = vpop.f32.mrf.mxu0
      %3615 = vmatprep.mubr.bf16.mxu0 0
      %3616 = vmatmul.mubr.bf16.gmra.mxu0 %v3496
      %v3617 = vpop.f32.mrf.mxu0
      %v3618 = vadd.f32 0.0, %v3617
      %v3619 = vpop.f32.mrf.mxu0
      %v3620 = vpop.f32.mrf.mxu0
      %v3621 = vadd.f32 0.0, %v3620
      %v3622 = vpop.f32.mrf.mxu0
      %3623 = vmatprep.mubr.bf16.mxu0 0
      %3624 = vmatmul.mubr.bf16.gmra.mxu0 %v3499
      %v3625 = vpop.f32.mrf.mxu0
      %v3626 = vadd.f32 0.0, %v3625
      %v3627 = vpop.f32.mrf.mxu0
      %v3628 = vpop.f32.mrf.mxu0
      %v3629 = vadd.f32 0.0, %v3628
      %v3630 = vpop.f32.mrf.mxu0
      %3631 = vmatprep.mubr.bf16.mxu0 0
      %3632 = vmatmul.mubr.bf16.gmra.mxu0 %v3502
      %v3633 = vpop.f32.mrf.mxu0
      %v3634 = vadd.f32 0.0, %v3633
      %v3635 = vpop.f32.mrf.mxu0
      %v3636 = vpop.f32.mrf.mxu0
      %v3637 = vadd.f32 0.0, %v3636
      %v3638 = vpop.f32.mrf.mxu0
      %3639 = vmatprep.mubr.bf16.mxu0 0
      %3640 = vmatmul.mubr.bf16.gmra.mxu0 %v3505
      %v3641 = vpop.f32.mrf.mxu0
      %v3642 = vadd.f32 0.0, %v3641
      %v3643 = vpop.f32.mrf.mxu0
      %v3644 = vpop.f32.mrf.mxu0
      %v3645 = vadd.f32 0.0, %v3644
      %v3646 = vpop.f32.mrf.mxu0
      %3647 = vmatprep.mubr.bf16.mxu0 0
      %3648 = vmatmul.mubr.bf16.gmra.mxu0 %v3508
      %v3649 = vpop.f32.mrf.mxu0
      %v3650 = vadd.f32 0.0, %v3649
      %v3651 = vpop.f32.mrf.mxu0
      %v3652 = vpop.f32.mrf.mxu0
      %v3653 = vadd.f32 0.0, %v3652
      %v3654 = vpop.f32.mrf.mxu0
      %3655 = vmatprep.mubr.bf16.mxu0 0
      %3656 = vmatmul.mubr.bf16.gmra.mxu0 %v3511
      %v3657 = vpop.f32.mrf.mxu0
      %v3658 = vadd.f32 0.0, %v3657
      %v3659 = vpop.f32.mrf.mxu0
      %v3660 = vpop.f32.mrf.mxu0
      %v3661 = vadd.f32 0.0, %v3660
      %v3662 = vpop.f32.mrf.mxu0
      %3663 = vmatprep.mubr.bf16.mxu0 0
      %3664 = vmatmul.mubr.bf16.gmra.mxu0 %v3514
      %v3665 = vpop.f32.mrf.mxu0
      %v3666 = vadd.f32 0.0, %v3665
      %v3667 = vpop.f32.mrf.mxu0
      %v3668 = vpop.f32.mrf.mxu0
      %v3669 = vadd.f32 0.0, %v3668
      %v3670 = vpop.f32.mrf.mxu0
      %3671 = vmatprep.mubr.bf16.mxu0 0
      %3672 = vmatmul.mubr.bf16.gmra.mxu0 %v3517
      %v3673 = vpop.f32.mrf.mxu0
      %v3674 = vadd.f32 0.0, %v3673
      %v3675 = vpop.f32.mrf.mxu0
      %v3676 = vpop.f32.mrf.mxu0
      %v3677 = vadd.f32 0.0, %v3676
      %v3678 = vpop.f32.mrf.mxu0
      %3679 = vmatprep.mubr.bf16.mxu0 0
      %3680 = vmatmul.mubr.bf16.gmra.mxu0 %v3520
      %v3681 = vpop.f32.mrf.mxu0
      %v3682 = vadd.f32 0.0, %v3681
      %v3683 = vpop.f32.mrf.mxu0
      %v3684 = vpop.f32.mrf.mxu0
      %v3685 = vadd.f32 0.0, %v3684
      %v3686 = vpop.f32.mrf.mxu0
      %3687 = vmatprep.mubr.bf16.mxu0 0
      %3688 = vmatmul.mubr.bf16.gmra.mxu0 %v3523
      %v3689 = vpop.f32.mrf.mxu0
      %v3690 = vadd.f32 0.0, %v3689
      %v3691 = vpop.f32.mrf.mxu0
      %v3692 = vpop.f32.mrf.mxu0
      %v3693 = vadd.f32 0.0, %v3692
      %v3694 = vpop.f32.mrf.mxu0
      %3695 = vmatprep.mubr.bf16.mxu0 0
      %3696 = vmatmul.mubr.bf16.gmra.mxu0 %v3526
      %v3697 = vpop.f32.mrf.mxu0
      %v3698 = vadd.f32 0.0, %v3697
      %v3699 = vpop.f32.mrf.mxu0
      %v3700 = vpop.f32.mrf.mxu0
      %v3701 = vadd.f32 0.0, %v3700
      %v3702 = vpop.f32.mrf.mxu0
      %3703 = vmatprep.mubr.bf16.mxu0 0
      %3704 = vmatmul.mubr.bf16.gmra.mxu0 %v3529
      %v3705 = vpop.f32.mrf.mxu0
      %v3706 = vadd.f32 0.0, %v3705
      %v3707 = vpop.f32.mrf.mxu0
      %v3708 = vpop.f32.mrf.mxu0
      %v3709 = vadd.f32 0.0, %v3708
      %v3710 = vpop.f32.mrf.mxu0
      %3711 = vmatprep.mubr.bf16.mxu0 0
      %3712 = vmatmul.mubr.bf16.gmra.mxu0 %v3532
      %v3713 = vpop.f32.mrf.mxu0
      %v3714 = vadd.f32 0.0, %v3713
      %v3715 = vpop.f32.mrf.mxu0
      %v3716 = vpop.f32.mrf.mxu0
      %v3717 = vadd.f32 0.0, %v3716
      %v3718 = vpop.f32.mrf.mxu0
      %3719 = vmatprep.mubr.bf16.mxu0 0
      %3720 = vmatmul.mubr.bf16.gmra.mxu0 %v3535
      %v3721 = vpop.f32.mrf.mxu0
      %v3722 = vadd.f32 0.0, %v3721
      %v3723 = vpop.f32.mrf.mxu0
      %v3724 = vpop.f32.mrf.mxu0
      %v3725 = vadd.f32 0.0, %v3724
      %v3726 = vpop.f32.mrf.mxu0
      %3727 = vmatprep.mubr.bf16.mxu0 0
      %3728 = vmatmul.mubr.bf16.gmra.mxu0 %v3538
      %v3729 = vpop.f32.mrf.mxu0
      %v3730 = vadd.f32 0.0, %v3729
      %v3731 = vpop.f32.mrf.mxu0
      %v3732 = vpop.f32.mrf.mxu0
      %v3733 = vadd.f32 0.0, %v3732
      %v3734 = vpop.f32.mrf.mxu0
      %3735 = vdwg.mxu0
      %v3736 = vadd.f32 %v3340, %v3578
      %v3737 = vadd.f32 %v3341, %v3581
      %v3738 = vadd.f32 %v3342, %v3586
      %v3739 = vadd.f32 %v3343, %v3589
      %v3740 = vadd.f32 %v3344, %v3594
      %v3741 = vadd.f32 %v3345, %v3597
      %v3742 = vadd.f32 %v3346, %v3602
      %v3743 = vadd.f32 %v3347, %v3605
      %v3744 = vadd.f32 %v3348, %v3610
      %v3745 = vadd.f32 %v3349, %v3613
      %v3746 = vadd.f32 %v3350, %v3618
      %v3747 = vadd.f32 %v3351, %v3621
      %v3748 = vadd.f32 %v3352, %v3626
      %v3749 = vadd.f32 %v3353, %v3629
      %v3750 = vadd.f32 %v3354, %v3634
      %v3751 = vadd.f32 %v3355, %v3637
      %v3752 = vadd.f32 %v3356, %v3642
      %v3753 = vadd.f32 %v3357, %v3645
      %v3754 = vadd.f32 %v3358, %v3650
      %v3755 = vadd.f32 %v3359, %v3653
      %v3756 = vadd.f32 %v3360, %v3658
      %v3757 = vadd.f32 %v3361, %v3661
      %v3758 = vadd.f32 %v3362, %v3666
      %v3759 = vadd.f32 %v3363, %v3669
      %v3760 = vadd.f32 %v3364, %v3674
      %v3761 = vadd.f32 %v3365, %v3677
      %v3762 = vadd.f32 %v3366, %v3682
      %v3763 = vadd.f32 %v3367, %v3685
      %v3764 = vadd.f32 %v3368, %v3690
      %v3765 = vadd.f32 %v3369, %v3693
      %v3766 = vadd.f32 %v3370, %v3698
      %v3767 = vadd.f32 %v3371, %v3701
      %v3768 = vadd.f32 %v3372, %v3706
      %v3769 = vadd.f32 %v3373, %v3709
      %v3770 = vadd.f32 %v3374, %v3714
      %v3771 = vadd.f32 %v3375, %v3717
      %v3772 = vadd.f32 %v3376, %v3722
      %v3773 = vadd.f32 %v3377, %v3725
      %v3774 = vadd.f32 %v3378, %v3730
      %v3775 = vadd.f32 %v3379, %v3733
      %s3776 = scalar_lea.vmem %s1, 18
      %v3777 = vld [vmem:[%s3776] sm:$0x3]
      %v3778 = vpack.c.b16 %v2148, %v2147
      %v3779 = vpack.c.b16 %v2150, %v2149
      %v3780 = vpack.c.b16 %v2152, %v2151
      %v3781 = vpack.c.b16 %v2154, %v2153
      %v3782 = vpack.c.b16 %v2156, %v2155
      %v3783 = vpack.c.b16 %v2158, %v2157
      %v3784 = vpack.c.b16 %v2160, %v2159
      %v3785 = vpack.c.b16 %v2162, %v2161
      %v3786 = vpack.c.b16 %v2164, %v2163
      %v3787 = vpack.c.b16 %v2166, %v2165
      %v3788 = vpack.c.b16 %v2168, %v2167
      %v3789 = vpack.c.b16 %v2170, %v2169
      %v3790 = vpack.c.b16 %v2172, %v2171
      %v3791 = vpack.c.b16 %v2174, %v2173
      %v3792 = vpack.c.b16 %v2176, %v2175
      %v3793 = vpack.c.b16 %v2178, %v2177
      %v3794 = vpack.c.b16 %v2180, %v2179
      %v3795 = vpack.c.b16 %v2182, %v2181
      %v3796 = vpack.c.b16 %v2184, %v2183
      %v3797 = vpack.c.b16 %v3384, %v2185
      %v3799 = vsel %vm484, %v3778, 0
      %v3802 = vsel %vm484, %v3779, 0
      %v3805 = vsel %vm484, %v3780, 0
      %v3808 = vsel %vm484, %v3781, 0
      %v3811 = vsel %vm484, %v3782, 0
      %v3814 = vsel %vm484, %v3783, 0
      %v3817 = vsel %vm484, %v3784, 0
      %v3820 = vsel %vm484, %v3785, 0
      %v3823 = vsel %vm484, %v3786, 0
      %v3826 = vsel %vm484, %v3787, 0
      %v3829 = vsel %vm484, %v3788, 0
      %v3832 = vsel %vm484, %v3789, 0
      %v3835 = vsel %vm484, %v3790, 0
      %v3838 = vsel %vm484, %v3791, 0
      %v3841 = vsel %vm484, %v3792, 0
      %v3844 = vsel %vm484, %v3793, 0
      %v3847 = vsel %vm484, %v3794, 0
      %v3850 = vsel %vm484, %v3795, 0
      %v3853 = vsel %vm484, %v3796, 0
      %v3856 = vsel %vm484, %v3797, 0
      %v3859 = vsel %vm545, %v3777, 0
      %3861 = vmatprep.subr.bf16.mxu0 0
      %3862 = vmatpush1.bf16.msra.mxu0 0
      %3863 = vmatprep.subr.bf16.mxu0 0
      %3864 = vmatpush1.bf16.msra.mxu0 0
      %3865 = vmatprep.subr.bf16.mxu0 0
      %3866 = vmatpush1.bf16.msra.mxu0 0
      %3867 = vmatprep.subr.bf16.mxu0 0
      %3868 = vmatpush1.bf16.msra.mxu0 0
      %3869 = vmatprep.subr.bf16.mxu0 0
      %3870 = vmatpush1.bf16.msra.mxu0 0
      %3871 = vmatprep.subr.bf16.mxu0 0
      %3872 = vmatpush1.bf16.msra.mxu0 0
      %3873 = vmatprep.subr.bf16.mxu0 0
      %3874 = vmatpush1.bf16.msra.mxu0 0
      %3875 = vmatprep.subr.bf16.mxu0 0
      %3876 = vmatpush1.bf16.msra.mxu0 %v3859
      %3877 = vmatprep.subr.bf16.mxu0 0
      %3878 = vmatpush2.bf16.msra.mxu0 0
      %3879 = vmatprep.subr.bf16.mxu0 0
      %3880 = vmatpush2.bf16.msra.mxu0 0
      %3881 = vmatprep.subr.bf16.mxu0 0
      %3882 = vmatpush2.bf16.msra.mxu0 0
      %3883 = vmatprep.subr.bf16.mxu0 0
      %3884 = vmatpush2.bf16.msra.mxu0 0
      %3885 = vmatprep.subr.bf16.mxu0 0
      %3886 = vmatpush2.bf16.msra.mxu0 0
      %3887 = vmatprep.subr.bf16.mxu0 0
      %3888 = vmatpush2.bf16.msra.mxu0 0
      %3889 = vmatprep.subr.bf16.mxu0 0
      %3890 = vmatpush2.bf16.msra.mxu0 0
      %3891 = vmatprep.subr.bf16.mxu0 0
      %3892 = vmatpush2.bf16.msra.mxu0 0
      %3893 = vmatprep.mubr.bf16.mxu0 0
      %3894 = vmatmul.mubr.bf16.gmra.mxu0 %v3799
      %v3895 = vpop.f32.mrf.mxu0
      %v3896 = vadd.f32 0.0, %v3895
      %v3897 = vpop.f32.mrf.mxu0
      %v3898 = vpop.f32.mrf.mxu0
      %v3899 = vadd.f32 0.0, %v3898
      %v3900 = vpop.f32.mrf.mxu0
      %3901 = vmatprep.mubr.bf16.mxu0 0
      %3902 = vmatmul.mubr.bf16.gmra.mxu0 %v3802
      %v3903 = vpop.f32.mrf.mxu0
      %v3904 = vadd.f32 0.0, %v3903
      %v3905 = vpop.f32.mrf.mxu0
      %v3906 = vpop.f32.mrf.mxu0
      %v3907 = vadd.f32 0.0, %v3906
      %v3908 = vpop.f32.mrf.mxu0
      %3909 = vmatprep.mubr.bf16.mxu0 0
      %3910 = vmatmul.mubr.bf16.gmra.mxu0 %v3805
      %v3911 = vpop.f32.mrf.mxu0
      %v3912 = vadd.f32 0.0, %v3911
      %v3913 = vpop.f32.mrf.mxu0
      %v3914 = vpop.f32.mrf.mxu0
      %v3915 = vadd.f32 0.0, %v3914
      %v3916 = vpop.f32.mrf.mxu0
      %3917 = vmatprep.mubr.bf16.mxu0 0
      %3918 = vmatmul.mubr.bf16.gmra.mxu0 %v3808
      %v3919 = vpop.f32.mrf.mxu0
      %v3920 = vadd.f32 0.0, %v3919
      %v3921 = vpop.f32.mrf.mxu0
      %v3922 = vpop.f32.mrf.mxu0
      %v3923 = vadd.f32 0.0, %v3922
      %v3924 = vpop.f32.mrf.mxu0
      %3925 = vmatprep.mubr.bf16.mxu0 0
      %3926 = vmatmul.mubr.bf16.gmra.mxu0 %v3811
      %v3927 = vpop.f32.mrf.mxu0
      %v3928 = vadd.f32 0.0, %v3927
      %v3929 = vpop.f32.mrf.mxu0
      %v3930 = vpop.f32.mrf.mxu0
      %v3931 = vadd.f32 0.0, %v3930
      %v3932 = vpop.f32.mrf.mxu0
      %3933 = vmatprep.mubr.bf16.mxu0 0
      %3934 = vmatmul.mubr.bf16.gmra.mxu0 %v3814
      %v3935 = vpop.f32.mrf.mxu0
      %v3936 = vadd.f32 0.0, %v3935
      %v3937 = vpop.f32.mrf.mxu0
      %v3938 = vpop.f32.mrf.mxu0
      %v3939 = vadd.f32 0.0, %v3938
      %v3940 = vpop.f32.mrf.mxu0
      %3941 = vmatprep.mubr.bf16.mxu0 0
      %3942 = vmatmul.mubr.bf16.gmra.mxu0 %v3817
      %v3943 = vpop.f32.mrf.mxu0
      %v3944 = vadd.f32 0.0, %v3943
      %v3945 = vpop.f32.mrf.mxu0
      %v3946 = vpop.f32.mrf.mxu0
      %v3947 = vadd.f32 0.0, %v3946
      %v3948 = vpop.f32.mrf.mxu0
      %3949 = vmatprep.mubr.bf16.mxu0 0
      %3950 = vmatmul.mubr.bf16.gmra.mxu0 %v3820
      %v3951 = vpop.f32.mrf.mxu0
      %v3952 = vadd.f32 0.0, %v3951
      %v3953 = vpop.f32.mrf.mxu0
      %v3954 = vpop.f32.mrf.mxu0
      %v3955 = vadd.f32 0.0, %v3954
      %v3956 = vpop.f32.mrf.mxu0
      %3957 = vmatprep.mubr.bf16.mxu0 0
      %3958 = vmatmul.mubr.bf16.gmra.mxu0 %v3823
      %v3959 = vpop.f32.mrf.mxu0
      %v3960 = vadd.f32 0.0, %v3959
      %v3961 = vpop.f32.mrf.mxu0
      %v3962 = vpop.f32.mrf.mxu0
      %v3963 = vadd.f32 0.0, %v3962
      %v3964 = vpop.f32.mrf.mxu0
      %3965 = vmatprep.mubr.bf16.mxu0 0
      %3966 = vmatmul.mubr.bf16.gmra.mxu0 %v3826
      %v3967 = vpop.f32.mrf.mxu0
      %v3968 = vadd.f32 0.0, %v3967
      %v3969 = vpop.f32.mrf.mxu0
      %v3970 = vpop.f32.mrf.mxu0
      %v3971 = vadd.f32 0.0, %v3970
      %v3972 = vpop.f32.mrf.mxu0
      %3973 = vmatprep.mubr.bf16.mxu0 0
      %3974 = vmatmul.mubr.bf16.gmra.mxu0 %v3829
      %v3975 = vpop.f32.mrf.mxu0
      %v3976 = vadd.f32 0.0, %v3975
      %v3977 = vpop.f32.mrf.mxu0
      %v3978 = vpop.f32.mrf.mxu0
      %v3979 = vadd.f32 0.0, %v3978
      %v3980 = vpop.f32.mrf.mxu0
      %3981 = vmatprep.mubr.bf16.mxu0 0
      %3982 = vmatmul.mubr.bf16.gmra.mxu0 %v3832
      %v3983 = vpop.f32.mrf.mxu0
      %v3984 = vadd.f32 0.0, %v3983
      %v3985 = vpop.f32.mrf.mxu0
      %v3986 = vpop.f32.mrf.mxu0
      %v3987 = vadd.f32 0.0, %v3986
      %v3988 = vpop.f32.mrf.mxu0
      %3989 = vmatprep.mubr.bf16.mxu0 0
      %3990 = vmatmul.mubr.bf16.gmra.mxu0 %v3835
      %v3991 = vpop.f32.mrf.mxu0
      %v3992 = vadd.f32 0.0, %v3991
      %v3993 = vpop.f32.mrf.mxu0
      %v3994 = vpop.f32.mrf.mxu0
      %v3995 = vadd.f32 0.0, %v3994
      %v3996 = vpop.f32.mrf.mxu0
      %3997 = vmatprep.mubr.bf16.mxu0 0
      %3998 = vmatmul.mubr.bf16.gmra.mxu0 %v3838
      %v3999 = vpop.f32.mrf.mxu0
      %v4000 = vadd.f32 0.0, %v3999
      %v4001 = vpop.f32.mrf.mxu0
      %v4002 = vpop.f32.mrf.mxu0
      %v4003 = vadd.f32 0.0, %v4002
      %v4004 = vpop.f32.mrf.mxu0
      %4005 = vmatprep.mubr.bf16.mxu0 0
      %4006 = vmatmul.mubr.bf16.gmra.mxu0 %v3841
      %v4007 = vpop.f32.mrf.mxu0
      %v4008 = vadd.f32 0.0, %v4007
      %v4009 = vpop.f32.mrf.mxu0
      %v4010 = vpop.f32.mrf.mxu0
      %v4011 = vadd.f32 0.0, %v4010
      %v4012 = vpop.f32.mrf.mxu0
      %4013 = vmatprep.mubr.bf16.mxu0 0
      %4014 = vmatmul.mubr.bf16.gmra.mxu0 %v3844
      %v4015 = vpop.f32.mrf.mxu0
      %v4016 = vadd.f32 0.0, %v4015
      %v4017 = vpop.f32.mrf.mxu0
      %v4018 = vpop.f32.mrf.mxu0
      %v4019 = vadd.f32 0.0, %v4018
      %v4020 = vpop.f32.mrf.mxu0
      %4021 = vmatprep.mubr.bf16.mxu0 0
      %4022 = vmatmul.mubr.bf16.gmra.mxu0 %v3847
      %v4023 = vpop.f32.mrf.mxu0
      %v4024 = vadd.f32 0.0, %v4023
      %v4025 = vpop.f32.mrf.mxu0
      %v4026 = vpop.f32.mrf.mxu0
      %v4027 = vadd.f32 0.0, %v4026
      %v4028 = vpop.f32.mrf.mxu0
      %4029 = vmatprep.mubr.bf16.mxu0 0
      %4030 = vmatmul.mubr.bf16.gmra.mxu0 %v3850
      %v4031 = vpop.f32.mrf.mxu0
      %v4032 = vadd.f32 0.0, %v4031
      %v4033 = vpop.f32.mrf.mxu0
      %v4034 = vpop.f32.mrf.mxu0
      %v4035 = vadd.f32 0.0, %v4034
      %v4036 = vpop.f32.mrf.mxu0
      %4037 = vmatprep.mubr.bf16.mxu0 0
      %4038 = vmatmul.mubr.bf16.gmra.mxu0 %v3853
      %v4039 = vpop.f32.mrf.mxu0
      %v4040 = vadd.f32 0.0, %v4039
      %v4041 = vpop.f32.mrf.mxu0
      %v4042 = vpop.f32.mrf.mxu0
      %v4043 = vadd.f32 0.0, %v4042
      %v4044 = vpop.f32.mrf.mxu0
      %4045 = vmatprep.mubr.bf16.mxu0 0
      %4046 = vmatmul.mubr.bf16.gmra.mxu0 %v3856
      %v4047 = vpop.f32.mrf.mxu0
      %v4048 = vadd.f32 0.0, %v4047
      %v4049 = vpop.f32.mrf.mxu0
      %v4050 = vpop.f32.mrf.mxu0
      %v4051 = vadd.f32 0.0, %v4050
      %v4052 = vpop.f32.mrf.mxu0
      %4053 = vdwg.mxu0
      %v4054 = vadd.f32 %v3736, %v3896
      %v4055 = vadd.f32 %v3737, %v3899
      %v4056 = vadd.f32 %v3738, %v3904
      %v4057 = vadd.f32 %v3739, %v3907
      %v4058 = vadd.f32 %v3740, %v3912
      %v4059 = vadd.f32 %v3741, %v3915
      %v4060 = vadd.f32 %v3742, %v3920
      %v4061 = vadd.f32 %v3743, %v3923
      %v4062 = vadd.f32 %v3744, %v3928
      %v4063 = vadd.f32 %v3745, %v3931
      %v4064 = vadd.f32 %v3746, %v3936
      %v4065 = vadd.f32 %v3747, %v3939
      %v4066 = vadd.f32 %v3748, %v3944
      %v4067 = vadd.f32 %v3749, %v3947
      %v4068 = vadd.f32 %v3750, %v3952
      %v4069 = vadd.f32 %v3751, %v3955
      %v4070 = vadd.f32 %v3752, %v3960
      %v4071 = vadd.f32 %v3753, %v3963
      %v4072 = vadd.f32 %v3754, %v3968
      %v4073 = vadd.f32 %v3755, %v3971
      %v4074 = vadd.f32 %v3756, %v3976
      %v4075 = vadd.f32 %v3757, %v3979
      %v4076 = vadd.f32 %v3758, %v3984
      %v4077 = vadd.f32 %v3759, %v3987
      %v4078 = vadd.f32 %v3760, %v3992
      %v4079 = vadd.f32 %v3761, %v3995
      %v4080 = vadd.f32 %v3762, %v4000
      %v4081 = vadd.f32 %v3763, %v4003
      %v4082 = vadd.f32 %v3764, %v4008
      %v4083 = vadd.f32 %v3765, %v4011
      %v4084 = vadd.f32 %v3766, %v4016
      %v4085 = vadd.f32 %v3767, %v4019
      %v4086 = vadd.f32 %v3768, %v4024
      %v4087 = vadd.f32 %v3769, %v4027
      %v4088 = vadd.f32 %v3770, %v4032
      %v4089 = vadd.f32 %v3771, %v4035
      %v4090 = vadd.f32 %v3772, %v4040
      %v4091 = vadd.f32 %v3773, %v4043
      %v4092 = vadd.f32 %v3774, %v4048
      %v4093 = vadd.f32 %v3775, %v4051
      %v4094 = vld [vmem:[%s165 + $0x14] sm:$0xf]
      %v4095 = vld [vmem:[%s165 + $0x18] sm:$0xf]
      %v4096 = vld [vmem:[%s165 + $0x1c] sm:$0xf]
      %v4097 = vld [vmem:[%s165 + $0x20] sm:$0xf]
      %v4098 = vld [vmem:[%s165 + $0x24] sm:$0xf]
      %v4099 = vld [vmem:[%s165 + $0x28] sm:$0xf]
      %v4100 = vld [vmem:[%s165 + $0x2c] sm:$0xf]
      %v4101 = vld [vmem:[%s165 + $0x30] sm:$0xf]
      %v4102 = vld [vmem:[%s165 + $0x34] sm:$0xf]
      %v4103 = vld [vmem:[%s165 + $0x38] sm:$0xf]
      %v4104 = vld [vmem:[%s165 + $0x3c] sm:$0xf]
      %v4105 = vld [vmem:[%s165 + $0x40] sm:$0xf]
      %v4106 = vld [vmem:[%s165 + $0x44] sm:$0xf]
      %v4107 = vld [vmem:[%s165 + $0x48] sm:$0xf]
      %v4108 = vld [vmem:[%s165 + $0x4c] sm:$0xf]
      %v4109 = vld [vmem:[%s165 + $0x50] sm:$0xf]
      %v4110 = vld [vmem:[%s165 + $0x54] sm:$0xf]
      %v4111 = vld [vmem:[%s165 + $0x58] sm:$0xf]
      %v4112 = vld [vmem:[%s165 + $0x5c] sm:$0xf]
      %v4113 = vld [vmem:[%s165 + $0x60] sm:$0xf]
      %v4114 = vld [vmem:[%s165 + $0x64] sm:$0xf]
      %v4115 = vld [vmem:[%s165 + $0x68] sm:$0xf]
      %v4116 = vld [vmem:[%s165 + $0x6c] sm:$0xf]
      %v4117 = vld [vmem:[%s165 + $0x70] sm:$0xf]
      %v4118 = vld [vmem:[%s165 + $0x74] sm:$0xf]
      %v4119 = vld [vmem:[%s165 + $0x78] sm:$0xf]
      %v4120 = vld [vmem:[%s165 + $0x7c] sm:$0xf]
      %v4121 = vld [vmem:[%s165 + $0x80] sm:$0xf]
      %v4122 = vld [vmem:[%s165 + $0x84] sm:$0xf]
      %v4123 = vld [vmem:[%s165 + $0x88] sm:$0xf]
      %v4124 = vld [vmem:[%s165 + $0x8c] sm:$0xf]
      %v4125 = vld [vmem:[%s165 + $0x90] sm:$0xf]
      %v4126 = vld [vmem:[%s165 + $0x94] sm:$0xf]
      %v4127 = vld [vmem:[%s165 + $0x98] sm:$0xf]
      %v4128 = vld [vmem:[%s165 + $0x9c] sm:$0xf]
      %v4129 = vld [vmem:[%s165 + $0xa0] sm:$0xf]
      %v4130 = vld [vmem:[%s165 + $0xa4] sm:$0xf]
      %v4131 = vld [vmem:[%s165 + $0xa8] sm:$0xf]
      %v4132 = vld [vmem:[%s165 + $0xac] sm:$0xf]
      %v4133 = vld [vmem:[%s165 + $0xb0] sm:$0xf]
      %s4134 = scalar_lea.vmem %s1, 20
      %v4135 = vld [vmem:[%s4134] sm:$0x3]
      %v4176 = vunpack.c.l.b16 %v4094
      %v4177 = vunpack.c.l.b16 %v4095
      %v4178 = vunpack.c.l.b16 %v4096
      %v4179 = vunpack.c.l.b16 %v4097
      %v4180 = vunpack.c.l.b16 %v4098
      %v4181 = vunpack.c.l.b16 %v4099
      %v4182 = vunpack.c.l.b16 %v4100
      %v4183 = vunpack.c.l.b16 %v4101
      %v4184 = vunpack.c.l.b16 %v4102
      %v4185 = vunpack.c.l.b16 %v4103
      %v4186 = vunpack.c.l.b16 %v4104
      %v4187 = vunpack.c.l.b16 %v4105
      %v4188 = vunpack.c.l.b16 %v4106
      %v4189 = vunpack.c.l.b16 %v4107
      %v4190 = vunpack.c.l.b16 %v4108
      %v4191 = vunpack.c.l.b16 %v4109
      %v4192 = vunpack.c.l.b16 %v4110
      %v4193 = vunpack.c.l.b16 %v4111
      %v4194 = vunpack.c.l.b16 %v4112
      %v4195 = vunpack.c.l.b16 %v4113
      %v4196 = vunpack.c.l.b16 %v4114
      %v4197 = vunpack.c.l.b16 %v4115
      %v4198 = vunpack.c.l.b16 %v4116
      %v4199 = vunpack.c.l.b16 %v4117
      %v4200 = vunpack.c.l.b16 %v4118
      %v4201 = vunpack.c.l.b16 %v4119
      %v4202 = vunpack.c.l.b16 %v4120
      %v4203 = vunpack.c.l.b16 %v4121
      %v4204 = vunpack.c.l.b16 %v4122
      %v4205 = vunpack.c.l.b16 %v4123
      %v4206 = vunpack.c.l.b16 %v4124
      %v4207 = vunpack.c.l.b16 %v4125
      %v4208 = vunpack.c.l.b16 %v4126
      %v4209 = vunpack.c.l.b16 %v4127
      %v4210 = vunpack.c.l.b16 %v4128
      %v4211 = vunpack.c.l.b16 %v4129
      %v4212 = vunpack.c.l.b16 %v4130
      %v4213 = vunpack.c.l.b16 %v4131
      %v4214 = vunpack.c.l.b16 %v4132
      %v4215 = vunpack.c.l.b16 %v4133
      %v4216 = vpack.c.b16 %v4177, %v4176
      %v4217 = vpack.c.b16 %v4179, %v4178
      %v4218 = vpack.c.b16 %v4181, %v4180
      %v4219 = vpack.c.b16 %v4183, %v4182
      %v4220 = vpack.c.b16 %v4185, %v4184
      %v4221 = vpack.c.b16 %v4187, %v4186
      %v4222 = vpack.c.b16 %v4189, %v4188
      %v4223 = vpack.c.b16 %v4191, %v4190
      %v4224 = vpack.c.b16 %v4193, %v4192
      %v4225 = vpack.c.b16 %v4195, %v4194
      %v4226 = vpack.c.b16 %v4197, %v4196
      %v4227 = vpack.c.b16 %v4199, %v4198
      %v4228 = vpack.c.b16 %v4201, %v4200
      %v4229 = vpack.c.b16 %v4203, %v4202
      %v4230 = vpack.c.b16 %v4205, %v4204
      %v4231 = vpack.c.b16 %v4207, %v4206
      %v4232 = vpack.c.b16 %v4209, %v4208
      %v4233 = vpack.c.b16 %v4211, %v4210
      %v4234 = vpack.c.b16 %v4213, %v4212
      %v4235 = vpack.c.b16 %v4215, %v4214
      %v4237 = vsel %vm484, %v4216, 0
      %v4240 = vsel %vm484, %v4217, 0
      %v4243 = vsel %vm484, %v4218, 0
      %v4246 = vsel %vm484, %v4219, 0
      %v4249 = vsel %vm484, %v4220, 0
      %v4252 = vsel %vm484, %v4221, 0
      %v4255 = vsel %vm484, %v4222, 0
      %v4258 = vsel %vm484, %v4223, 0
      %v4261 = vsel %vm484, %v4224, 0
      %v4264 = vsel %vm484, %v4225, 0
      %v4267 = vsel %vm484, %v4226, 0
      %v4270 = vsel %vm484, %v4227, 0
      %v4273 = vsel %vm484, %v4228, 0
      %v4276 = vsel %vm484, %v4229, 0
      %v4279 = vsel %vm484, %v4230, 0
      %v4282 = vsel %vm484, %v4231, 0
      %v4285 = vsel %vm484, %v4232, 0
      %v4288 = vsel %vm484, %v4233, 0
      %v4291 = vsel %vm484, %v4234, 0
      %v4294 = vsel %vm484, %v4235, 0
      %v4297 = vsel %vm545, %v4135, 0
      %4299 = vmatprep.subr.bf16.mxu0 0
      %4300 = vmatpush1.bf16.msra.mxu0 0
      %4301 = vmatprep.subr.bf16.mxu0 0
      %4302 = vmatpush1.bf16.msra.mxu0 0
      %4303 = vmatprep.subr.bf16.mxu0 0
      %4304 = vmatpush1.bf16.msra.mxu0 0
      %4305 = vmatprep.subr.bf16.mxu0 0
      %4306 = vmatpush1.bf16.msra.mxu0 0
      %4307 = vmatprep.subr.bf16.mxu0 0
      %4308 = vmatpush1.bf16.msra.mxu0 0
      %4309 = vmatprep.subr.bf16.mxu0 0
      %4310 = vmatpush1.bf16.msra.mxu0 0
      %4311 = vmatprep.subr.bf16.mxu0 0
      %4312 = vmatpush1.bf16.msra.mxu0 0
      %4313 = vmatprep.subr.bf16.mxu0 0
      %4314 = vmatpush1.bf16.msra.mxu0 %v4297
      %4315 = vmatprep.subr.bf16.mxu0 0
      %4316 = vmatpush2.bf16.msra.mxu0 0
      %4317 = vmatprep.subr.bf16.mxu0 0
      %4318 = vmatpush2.bf16.msra.mxu0 0
      %4319 = vmatprep.subr.bf16.mxu0 0
      %4320 = vmatpush2.bf16.msra.mxu0 0
      %4321 = vmatprep.subr.bf16.mxu0 0
      %4322 = vmatpush2.bf16.msra.mxu0 0
      %4323 = vmatprep.subr.bf16.mxu0 0
      %4324 = vmatpush2.bf16.msra.mxu0 0
      %4325 = vmatprep.subr.bf16.mxu0 0
      %4326 = vmatpush2.bf16.msra.mxu0 0
      %4327 = vmatprep.subr.bf16.mxu0 0
      %4328 = vmatpush2.bf16.msra.mxu0 0
      %4329 = vmatprep.subr.bf16.mxu0 0
      %4330 = vmatpush2.bf16.msra.mxu0 0
      %4331 = vmatprep.mubr.bf16.mxu0 0
      %4332 = vmatmul.mubr.bf16.gmra.mxu0 %v4237
      %v4333 = vpop.f32.mrf.mxu0
      %v4334 = vadd.f32 0.0, %v4333
      %v4335 = vpop.f32.mrf.mxu0
      %v4336 = vpop.f32.mrf.mxu0
      %v4337 = vadd.f32 0.0, %v4336
      %v4338 = vpop.f32.mrf.mxu0
      %4339 = vmatprep.mubr.bf16.mxu0 0
      %4340 = vmatmul.mubr.bf16.gmra.mxu0 %v4240
      %v4341 = vpop.f32.mrf.mxu0
      %v4342 = vadd.f32 0.0, %v4341
      %v4343 = vpop.f32.mrf.mxu0
      %v4344 = vpop.f32.mrf.mxu0
      %v4345 = vadd.f32 0.0, %v4344
      %v4346 = vpop.f32.mrf.mxu0
      %4347 = vmatprep.mubr.bf16.mxu0 0
      %4348 = vmatmul.mubr.bf16.gmra.mxu0 %v4243
      %v4349 = vpop.f32.mrf.mxu0
      %v4350 = vadd.f32 0.0, %v4349
      %v4351 = vpop.f32.mrf.mxu0
      %v4352 = vpop.f32.mrf.mxu0
      %v4353 = vadd.f32 0.0, %v4352
      %v4354 = vpop.f32.mrf.mxu0
      %4355 = vmatprep.mubr.bf16.mxu0 0
      %4356 = vmatmul.mubr.bf16.gmra.mxu0 %v4246
      %v4357 = vpop.f32.mrf.mxu0
      %v4358 = vadd.f32 0.0, %v4357
      %v4359 = vpop.f32.mrf.mxu0
      %v4360 = vpop.f32.mrf.mxu0
      %v4361 = vadd.f32 0.0, %v4360
      %v4362 = vpop.f32.mrf.mxu0
      %4363 = vmatprep.mubr.bf16.mxu0 0
      %4364 = vmatmul.mubr.bf16.gmra.mxu0 %v4249
      %v4365 = vpop.f32.mrf.mxu0
      %v4366 = vadd.f32 0.0, %v4365
      %v4367 = vpop.f32.mrf.mxu0
      %v4368 = vpop.f32.mrf.mxu0
      %v4369 = vadd.f32 0.0, %v4368
      %v4370 = vpop.f32.mrf.mxu0
      %4371 = vmatprep.mubr.bf16.mxu0 0
      %4372 = vmatmul.mubr.bf16.gmra.mxu0 %v4252
      %v4373 = vpop.f32.mrf.mxu0
      %v4374 = vadd.f32 0.0, %v4373
      %v4375 = vpop.f32.mrf.mxu0
      %v4376 = vpop.f32.mrf.mxu0
      %v4377 = vadd.f32 0.0, %v4376
      %v4378 = vpop.f32.mrf.mxu0
      %4379 = vmatprep.mubr.bf16.mxu0 0
      %4380 = vmatmul.mubr.bf16.gmra.mxu0 %v4255
      %v4381 = vpop.f32.mrf.mxu0
      %v4382 = vadd.f32 0.0, %v4381
      %v4383 = vpop.f32.mrf.mxu0
      %v4384 = vpop.f32.mrf.mxu0
      %v4385 = vadd.f32 0.0, %v4384
      %v4386 = vpop.f32.mrf.mxu0
      %4387 = vmatprep.mubr.bf16.mxu0 0
      %4388 = vmatmul.mubr.bf16.gmra.mxu0 %v4258
      %v4389 = vpop.f32.mrf.mxu0
      %v4390 = vadd.f32 0.0, %v4389
      %v4391 = vpop.f32.mrf.mxu0
      %v4392 = vpop.f32.mrf.mxu0
      %v4393 = vadd.f32 0.0, %v4392
      %v4394 = vpop.f32.mrf.mxu0
      %4395 = vmatprep.mubr.bf16.mxu0 0
      %4396 = vmatmul.mubr.bf16.gmra.mxu0 %v4261
      %v4397 = vpop.f32.mrf.mxu0
      %v4398 = vadd.f32 0.0, %v4397
      %v4399 = vpop.f32.mrf.mxu0
      %v4400 = vpop.f32.mrf.mxu0
      %v4401 = vadd.f32 0.0, %v4400
      %v4402 = vpop.f32.mrf.mxu0
      %4403 = vmatprep.mubr.bf16.mxu0 0
      %4404 = vmatmul.mubr.bf16.gmra.mxu0 %v4264
      %v4405 = vpop.f32.mrf.mxu0
      %v4406 = vadd.f32 0.0, %v4405
      %v4407 = vpop.f32.mrf.mxu0
      %v4408 = vpop.f32.mrf.mxu0
      %v4409 = vadd.f32 0.0, %v4408
      %v4410 = vpop.f32.mrf.mxu0
      %4411 = vmatprep.mubr.bf16.mxu0 0
      %4412 = vmatmul.mubr.bf16.gmra.mxu0 %v4267
      %v4413 = vpop.f32.mrf.mxu0
      %v4414 = vadd.f32 0.0, %v4413
      %v4415 = vpop.f32.mrf.mxu0
      %v4416 = vpop.f32.mrf.mxu0
      %v4417 = vadd.f32 0.0, %v4416
      %v4418 = vpop.f32.mrf.mxu0
      %4419 = vmatprep.mubr.bf16.mxu0 0
      %4420 = vmatmul.mubr.bf16.gmra.mxu0 %v4270
      %v4421 = vpop.f32.mrf.mxu0
      %v4422 = vadd.f32 0.0, %v4421
      %v4423 = vpop.f32.mrf.mxu0
      %v4424 = vpop.f32.mrf.mxu0
      %v4425 = vadd.f32 0.0, %v4424
      %v4426 = vpop.f32.mrf.mxu0
      %4427 = vmatprep.mubr.bf16.mxu0 0
      %4428 = vmatmul.mubr.bf16.gmra.mxu0 %v4273
      %v4429 = vpop.f32.mrf.mxu0
      %v4430 = vadd.f32 0.0, %v4429
      %v4431 = vpop.f32.mrf.mxu0
      %v4432 = vpop.f32.mrf.mxu0
      %v4433 = vadd.f32 0.0, %v4432
      %v4434 = vpop.f32.mrf.mxu0
      %4435 = vmatprep.mubr.bf16.mxu0 0
      %4436 = vmatmul.mubr.bf16.gmra.mxu0 %v4276
      %v4437 = vpop.f32.mrf.mxu0
      %v4438 = vadd.f32 0.0, %v4437
      %v4439 = vpop.f32.mrf.mxu0
      %v4440 = vpop.f32.mrf.mxu0
      %v4441 = vadd.f32 0.0, %v4440
      %v4442 = vpop.f32.mrf.mxu0
      %4443 = vmatprep.mubr.bf16.mxu0 0
      %4444 = vmatmul.mubr.bf16.gmra.mxu0 %v4279
      %v4445 = vpop.f32.mrf.mxu0
      %v4446 = vadd.f32 0.0, %v4445
      %v4447 = vpop.f32.mrf.mxu0
      %v4448 = vpop.f32.mrf.mxu0
      %v4449 = vadd.f32 0.0, %v4448
      %v4450 = vpop.f32.mrf.mxu0
      %4451 = vmatprep.mubr.bf16.mxu0 0
      %4452 = vmatmul.mubr.bf16.gmra.mxu0 %v4282
      %v4453 = vpop.f32.mrf.mxu0
      %v4454 = vadd.f32 0.0, %v4453
      %v4455 = vpop.f32.mrf.mxu0
      %v4456 = vpop.f32.mrf.mxu0
      %v4457 = vadd.f32 0.0, %v4456
      %v4458 = vpop.f32.mrf.mxu0
      %4459 = vmatprep.mubr.bf16.mxu0 0
      %4460 = vmatmul.mubr.bf16.gmra.mxu0 %v4285
      %v4461 = vpop.f32.mrf.mxu0
      %v4462 = vadd.f32 0.0, %v4461
      %v4463 = vpop.f32.mrf.mxu0
      %v4464 = vpop.f32.mrf.mxu0
      %v4465 = vadd.f32 0.0, %v4464
      %v4466 = vpop.f32.mrf.mxu0
      %4467 = vmatprep.mubr.bf16.mxu0 0
      %4468 = vmatmul.mubr.bf16.gmra.mxu0 %v4288
      %v4469 = vpop.f32.mrf.mxu0
      %v4470 = vadd.f32 0.0, %v4469
      %v4471 = vpop.f32.mrf.mxu0
      %v4472 = vpop.f32.mrf.mxu0
      %v4473 = vadd.f32 0.0, %v4472
      %v4474 = vpop.f32.mrf.mxu0
      %4475 = vmatprep.mubr.bf16.mxu0 0
      %4476 = vmatmul.mubr.bf16.gmra.mxu0 %v4291
      %v4477 = vpop.f32.mrf.mxu0
      %v4478 = vadd.f32 0.0, %v4477
      %v4479 = vpop.f32.mrf.mxu0
      %v4480 = vpop.f32.mrf.mxu0
      %v4481 = vadd.f32 0.0, %v4480
      %v4482 = vpop.f32.mrf.mxu0
      %4483 = vmatprep.mubr.bf16.mxu0 0
      %4484 = vmatmul.mubr.bf16.gmra.mxu0 %v4294
      %v4485 = vpop.f32.mrf.mxu0
      %v4486 = vadd.f32 0.0, %v4485
      %v4487 = vpop.f32.mrf.mxu0
      %v4488 = vpop.f32.mrf.mxu0
      %v4489 = vadd.f32 0.0, %v4488
      %v4490 = vpop.f32.mrf.mxu0
      %4491 = vdwg.mxu0
      %v4492 = vadd.f32 %v4054, %v4334
      %v4493 = vadd.f32 %v4055, %v4337
      %v4494 = vadd.f32 %v4056, %v4342
      %v4495 = vadd.f32 %v4057, %v4345
      %v4496 = vadd.f32 %v4058, %v4350
      %v4497 = vadd.f32 %v4059, %v4353
      %v4498 = vadd.f32 %v4060, %v4358
      %v4499 = vadd.f32 %v4061, %v4361
      %v4500 = vadd.f32 %v4062, %v4366
      %v4501 = vadd.f32 %v4063, %v4369
      %v4502 = vadd.f32 %v4064, %v4374
      %v4503 = vadd.f32 %v4065, %v4377
      %v4504 = vadd.f32 %v4066, %v4382
      %v4505 = vadd.f32 %v4067, %v4385
      %v4506 = vadd.f32 %v4068, %v4390
      %v4507 = vadd.f32 %v4069, %v4393
      %v4508 = vadd.f32 %v4070, %v4398
      %v4509 = vadd.f32 %v4071, %v4401
      %v4510 = vadd.f32 %v4072, %v4406
      %v4511 = vadd.f32 %v4073, %v4409
      %v4512 = vadd.f32 %v4074, %v4414
      %v4513 = vadd.f32 %v4075, %v4417
      %v4514 = vadd.f32 %v4076, %v4422
      %v4515 = vadd.f32 %v4077, %v4425
      %v4516 = vadd.f32 %v4078, %v4430
      %v4517 = vadd.f32 %v4079, %v4433
      %v4518 = vadd.f32 %v4080, %v4438
      %v4519 = vadd.f32 %v4081, %v4441
      %v4520 = vadd.f32 %v4082, %v4446
      %v4521 = vadd.f32 %v4083, %v4449
      %v4522 = vadd.f32 %v4084, %v4454
      %v4523 = vadd.f32 %v4085, %v4457
      %v4524 = vadd.f32 %v4086, %v4462
      %v4525 = vadd.f32 %v4087, %v4465
      %v4526 = vadd.f32 %v4088, %v4470
      %v4527 = vadd.f32 %v4089, %v4473
      %v4528 = vadd.f32 %v4090, %v4478
      %v4529 = vadd.f32 %v4091, %v4481
      %v4530 = vadd.f32 %v4092, %v4486
      %v4531 = vadd.f32 %v4093, %v4489
      %v4532 = vld [vmem:[%s165 + $0x14] sm:$0xf]
      %v4533 = vld [vmem:[%s165 + $0x18] sm:$0xf]
      %v4534 = vld [vmem:[%s165 + $0x1c] sm:$0xf]
      %v4535 = vld [vmem:[%s165 + $0x20] sm:$0xf]
      %v4536 = vld [vmem:[%s165 + $0x24] sm:$0xf]
      %v4537 = vld [vmem:[%s165 + $0x28] sm:$0xf]
      %v4538 = vld [vmem:[%s165 + $0x2c] sm:$0xf]
      %v4539 = vld [vmem:[%s165 + $0x30] sm:$0xf]
      %v4540 = vld [vmem:[%s165 + $0x34] sm:$0xf]
      %v4541 = vld [vmem:[%s165 + $0x38] sm:$0xf]
      %v4542 = vld [vmem:[%s165 + $0x3c] sm:$0xf]
      %v4543 = vld [vmem:[%s165 + $0x40] sm:$0xf]
      %v4544 = vld [vmem:[%s165 + $0x44] sm:$0xf]
      %v4545 = vld [vmem:[%s165 + $0x48] sm:$0xf]
      %v4546 = vld [vmem:[%s165 + $0x4c] sm:$0xf]
      %v4547 = vld [vmem:[%s165 + $0x50] sm:$0xf]
      %v4548 = vld [vmem:[%s165 + $0x54] sm:$0xf]
      %v4549 = vld [vmem:[%s165 + $0x58] sm:$0xf]
      %v4550 = vld [vmem:[%s165 + $0x5c] sm:$0xf]
      %v4551 = vld [vmem:[%s165 + $0x60] sm:$0xf]
      %v4552 = vld [vmem:[%s165 + $0x64] sm:$0xf]
      %v4553 = vld [vmem:[%s165 + $0x68] sm:$0xf]
      %v4554 = vld [vmem:[%s165 + $0x6c] sm:$0xf]
      %v4555 = vld [vmem:[%s165 + $0x70] sm:$0xf]
      %v4556 = vld [vmem:[%s165 + $0x74] sm:$0xf]
      %v4557 = vld [vmem:[%s165 + $0x78] sm:$0xf]
      %v4558 = vld [vmem:[%s165 + $0x7c] sm:$0xf]
      %v4559 = vld [vmem:[%s165 + $0x80] sm:$0xf]
      %v4560 = vld [vmem:[%s165 + $0x84] sm:$0xf]
      %v4561 = vld [vmem:[%s165 + $0x88] sm:$0xf]
      %v4562 = vld [vmem:[%s165 + $0x8c] sm:$0xf]
      %v4563 = vld [vmem:[%s165 + $0x90] sm:$0xf]
      %v4564 = vld [vmem:[%s165 + $0x94] sm:$0xf]
      %v4565 = vld [vmem:[%s165 + $0x98] sm:$0xf]
      %v4566 = vld [vmem:[%s165 + $0x9c] sm:$0xf]
      %v4567 = vld [vmem:[%s165 + $0xa0] sm:$0xf]
      %v4568 = vld [vmem:[%s165 + $0xa4] sm:$0xf]
      %v4569 = vld [vmem:[%s165 + $0xa8] sm:$0xf]
      %v4570 = vld [vmem:[%s165 + $0xac] sm:$0xf]
      %v4571 = vld [vmem:[%s165 + $0xb0] sm:$0xf]
      %v4572 = vld [vmem:[%s165 + $0xb4] sm:$0x1]
      %s4573 = scalar_lea.vmem %s1, 22
      %v4574 = vld [vmem:[%s4573] sm:$0x3]
      %v4616 = vunpack.c.l.b16 %v4532
      %v4617 = vunpack.c.l.b16 %v4533
      %v4618 = vunpack.c.l.b16 %v4534
      %v4619 = vunpack.c.l.b16 %v4535
      %v4620 = vunpack.c.l.b16 %v4536
      %v4621 = vunpack.c.l.b16 %v4537
      %v4622 = vunpack.c.l.b16 %v4538
      %v4623 = vunpack.c.l.b16 %v4539
      %v4624 = vunpack.c.l.b16 %v4540
      %v4625 = vunpack.c.l.b16 %v4541
      %v4626 = vunpack.c.l.b16 %v4542
      %v4627 = vunpack.c.l.b16 %v4543
      %v4628 = vunpack.c.l.b16 %v4544
      %v4629 = vunpack.c.l.b16 %v4545
      %v4630 = vunpack.c.l.b16 %v4546
      %v4631 = vunpack.c.l.b16 %v4547
      %v4632 = vunpack.c.l.b16 %v4548
      %v4633 = vunpack.c.l.b16 %v4549
      %v4634 = vunpack.c.l.b16 %v4550
      %v4635 = vunpack.c.l.b16 %v4551
      %v4636 = vunpack.c.l.b16 %v4552
      %v4637 = vunpack.c.l.b16 %v4553
      %v4638 = vunpack.c.l.b16 %v4554
      %v4639 = vunpack.c.l.b16 %v4555
      %v4640 = vunpack.c.l.b16 %v4556
      %v4641 = vunpack.c.l.b16 %v4557
      %v4642 = vunpack.c.l.b16 %v4558
      %v4643 = vunpack.c.l.b16 %v4559
      %v4644 = vunpack.c.l.b16 %v4560
      %v4645 = vunpack.c.l.b16 %v4561
      %v4646 = vunpack.c.l.b16 %v4562
      %v4647 = vunpack.c.l.b16 %v4563
      %v4648 = vunpack.c.l.b16 %v4564
      %v4649 = vunpack.c.l.b16 %v4565
      %v4650 = vunpack.c.l.b16 %v4566
      %v4651 = vunpack.c.l.b16 %v4567
      %v4652 = vunpack.c.l.b16 %v4568
      %v4653 = vunpack.c.l.b16 %v4569
      %v4654 = vunpack.c.l.b16 %v4570
      %v4655 = vunpack.c.l.b16 %v4571
      %v4656 = vunpack.c.l.b16 %v4572
      %v4657 = vpack.c.b16 %v4617, %v4616
      %v4658 = vpack.c.b16 %v4619, %v4618
      %v4659 = vpack.c.b16 %v4621, %v4620
      %v4660 = vpack.c.b16 %v4623, %v4622
      %v4661 = vpack.c.b16 %v4625, %v4624
      %v4662 = vpack.c.b16 %v4627, %v4626
      %v4663 = vpack.c.b16 %v4629, %v4628
      %v4664 = vpack.c.b16 %v4631, %v4630
      %v4665 = vpack.c.b16 %v4633, %v4632
      %v4666 = vpack.c.b16 %v4635, %v4634
      %v4667 = vpack.c.b16 %v4637, %v4636
      %v4668 = vpack.c.b16 %v4639, %v4638
      %v4669 = vpack.c.b16 %v4641, %v4640
      %v4670 = vpack.c.b16 %v4643, %v4642
      %v4671 = vpack.c.b16 %v4645, %v4644
      %v4672 = vpack.c.b16 %v4647, %v4646
      %v4673 = vpack.c.b16 %v4649, %v4648
      %v4674 = vpack.c.b16 %v4651, %v4650
      %v4675 = vpack.c.b16 %v4653, %v4652
      %v4676 = vpack.c.b16 %v4655, %v4654
      %v4677 = vpack.c.b16 %v4656, %v4656
      %v4679 = vshrl.u32 %v4657, 16
      %v4681 = vshll.u32 %v4657, 16
      %v4683 = vrot.slane %v4681, 1
      %v4684 = vor.u32 %v4679, %v4683
      %v4686 = vshll.u32 %v4658, 16
      %v4688 = vrot.slane %v4686, 1
      %v4689 = vsel %vm319, %v4684, %v4688
      %v4690 = vshrl.u32 %v4658, 16
      %v4692 = vor.u32 %v4690, %v4688
      %v4694 = vshll.u32 %v4659, 16
      %v4696 = vrot.slane %v4694, 1
      %v4697 = vsel %vm319, %v4692, %v4696
      %v4698 = vshrl.u32 %v4659, 16
      %v4700 = vor.u32 %v4698, %v4696
      %v4702 = vshll.u32 %v4660, 16
      %v4704 = vrot.slane %v4702, 1
      %v4705 = vsel %vm319, %v4700, %v4704
      %v4706 = vshrl.u32 %v4660, 16
      %v4708 = vor.u32 %v4706, %v4704
      %v4710 = vshll.u32 %v4661, 16
      %v4712 = vrot.slane %v4710, 1
      %v4713 = vsel %vm319, %v4708, %v4712
      %v4714 = vshrl.u32 %v4661, 16
      %v4716 = vor.u32 %v4714, %v4712
      %v4718 = vshll.u32 %v4662, 16
      %v4720 = vrot.slane %v4718, 1
      %v4721 = vsel %vm319, %v4716, %v4720
      %v4722 = vshrl.u32 %v4662, 16
      %v4724 = vor.u32 %v4722, %v4720
      %v4726 = vshll.u32 %v4663, 16
      %v4728 = vrot.slane %v4726, 1
      %v4729 = vsel %vm319, %v4724, %v4728
      %v4730 = vshrl.u32 %v4663, 16
      %v4732 = vor.u32 %v4730, %v4728
      %v4734 = vshll.u32 %v4664, 16
      %v4736 = vrot.slane %v4734, 1
      %v4737 = vsel %vm319, %v4732, %v4736
      %v4738 = vshrl.u32 %v4664, 16
      %v4740 = vor.u32 %v4738, %v4736
      %v4742 = vshll.u32 %v4665, 16
      %v4744 = vrot.slane %v4742, 1
      %v4745 = vsel %vm319, %v4740, %v4744
      %v4746 = vshrl.u32 %v4665, 16
      %v4748 = vor.u32 %v4746, %v4744
      %v4750 = vshll.u32 %v4666, 16
      %v4752 = vrot.slane %v4750, 1
      %v4753 = vsel %vm319, %v4748, %v4752
      %v4754 = vshrl.u32 %v4666, 16
      %v4756 = vor.u32 %v4754, %v4752
      %v4758 = vshll.u32 %v4667, 16
      %v4760 = vrot.slane %v4758, 1
      %v4761 = vsel %vm319, %v4756, %v4760
      %v4762 = vshrl.u32 %v4667, 16
      %v4764 = vor.u32 %v4762, %v4760
      %v4766 = vshll.u32 %v4668, 16
      %v4768 = vrot.slane %v4766, 1
      %v4769 = vsel %vm319, %v4764, %v4768
      %v4770 = vshrl.u32 %v4668, 16
      %v4772 = vor.u32 %v4770, %v4768
      %v4774 = vshll.u32 %v4669, 16
      %v4776 = vrot.slane %v4774, 1
      %v4777 = vsel %vm319, %v4772, %v4776
      %v4778 = vshrl.u32 %v4669, 16
      %v4780 = vor.u32 %v4778, %v4776
      %v4782 = vshll.u32 %v4670, 16
      %v4784 = vrot.slane %v4782, 1
      %v4785 = vsel %vm319, %v4780, %v4784
      %v4786 = vshrl.u32 %v4670, 16
      %v4788 = vor.u32 %v4786, %v4784
      %v4790 = vshll.u32 %v4671, 16
      %v4792 = vrot.slane %v4790, 1
      %v4793 = vsel %vm319, %v4788, %v4792
      %v4794 = vshrl.u32 %v4671, 16
      %v4796 = vor.u32 %v4794, %v4792
      %v4798 = vshll.u32 %v4672, 16
      %v4800 = vrot.slane %v4798, 1
      %v4801 = vsel %vm319, %v4796, %v4800
      %v4802 = vshrl.u32 %v4672, 16
      %v4804 = vor.u32 %v4802, %v4800
      %v4806 = vshll.u32 %v4673, 16
      %v4808 = vrot.slane %v4806, 1
      %v4809 = vsel %vm319, %v4804, %v4808
      %v4810 = vshrl.u32 %v4673, 16
      %v4812 = vor.u32 %v4810, %v4808
      %v4814 = vshll.u32 %v4674, 16
      %v4816 = vrot.slane %v4814, 1
      %v4817 = vsel %vm319, %v4812, %v4816
      %v4818 = vshrl.u32 %v4674, 16
      %v4820 = vor.u32 %v4818, %v4816
      %v4822 = vshll.u32 %v4675, 16
      %v4824 = vrot.slane %v4822, 1
      %v4825 = vsel %vm319, %v4820, %v4824
      %v4826 = vshrl.u32 %v4675, 16
      %v4828 = vor.u32 %v4826, %v4824
      %v4830 = vshll.u32 %v4676, 16
      %v4832 = vrot.slane %v4830, 1
      %v4833 = vsel %vm319, %v4828, %v4832
      %v4834 = vshrl.u32 %v4676, 16
      %v4836 = vor.u32 %v4834, %v4832
      %v4838 = vshll.u32 %v4677, 16
      %v4840 = vrot.slane %v4838, 1
      %v4841 = vsel %vm319, %v4836, %v4840
      %v4843 = vsel %vm484, %v4689, 0
      %v4846 = vsel %vm484, %v4697, 0
      %v4849 = vsel %vm484, %v4705, 0
      %v4852 = vsel %vm484, %v4713, 0
      %v4855 = vsel %vm484, %v4721, 0
      %v4858 = vsel %vm484, %v4729, 0
      %v4861 = vsel %vm484, %v4737, 0
      %v4864 = vsel %vm484, %v4745, 0
      %v4867 = vsel %vm484, %v4753, 0
      %v4870 = vsel %vm484, %v4761, 0
      %v4873 = vsel %vm484, %v4769, 0
      %v4876 = vsel %vm484, %v4777, 0
      %v4879 = vsel %vm484, %v4785, 0
      %v4882 = vsel %vm484, %v4793, 0
      %v4885 = vsel %vm484, %v4801, 0
      %v4888 = vsel %vm484, %v4809, 0
      %v4891 = vsel %vm484, %v4817, 0
      %v4894 = vsel %vm484, %v4825, 0
      %v4897 = vsel %vm484, %v4833, 0
      %v4900 = vsel %vm484, %v4841, 0
      %v4903 = vsel %vm545, %v4574, 0
      %4905 = vmatprep.subr.bf16.mxu0 0
      %4906 = vmatpush1.bf16.msra.mxu0 0
      %4907 = vmatprep.subr.bf16.mxu0 0
      %4908 = vmatpush1.bf16.msra.mxu0 0
      %4909 = vmatprep.subr.bf16.mxu0 0
      %4910 = vmatpush1.bf16.msra.mxu0 0
      %4911 = vmatprep.subr.bf16.mxu0 0
      %4912 = vmatpush1.bf16.msra.mxu0 0
      %4913 = vmatprep.subr.bf16.mxu0 0
      %4914 = vmatpush1.bf16.msra.mxu0 0
      %4915 = vmatprep.subr.bf16.mxu0 0
      %4916 = vmatpush1.bf16.msra.mxu0 0
      %4917 = vmatprep.subr.bf16.mxu0 0
      %4918 = vmatpush1.bf16.msra.mxu0 0
      %4919 = vmatprep.subr.bf16.mxu0 0
      %4920 = vmatpush1.bf16.msra.mxu0 %v4903
      %4921 = vmatprep.subr.bf16.mxu0 0
      %4922 = vmatpush2.bf16.msra.mxu0 0
      %4923 = vmatprep.subr.bf16.mxu0 0
      %4924 = vmatpush2.bf16.msra.mxu0 0
      %4925 = vmatprep.subr.bf16.mxu0 0
      %4926 = vmatpush2.bf16.msra.mxu0 0
      %4927 = vmatprep.subr.bf16.mxu0 0
      %4928 = vmatpush2.bf16.msra.mxu0 0
      %4929 = vmatprep.subr.bf16.mxu0 0
      %4930 = vmatpush2.bf16.msra.mxu0 0
      %4931 = vmatprep.subr.bf16.mxu0 0
      %4932 = vmatpush2.bf16.msra.mxu0 0
      %4933 = vmatprep.subr.bf16.mxu0 0
      %4934 = vmatpush2.bf16.msra.mxu0 0
      %4935 = vmatprep.subr.bf16.mxu0 0
      %4936 = vmatpush2.bf16.msra.mxu0 0
      %4937 = vmatprep.mubr.bf16.mxu0 0
      %4938 = vmatmul.mubr.bf16.gmra.mxu0 %v4843
      %v4939 = vpop.f32.mrf.mxu0
      %v4940 = vadd.f32 0.0, %v4939
      %v4941 = vpop.f32.mrf.mxu0
      %v4942 = vpop.f32.mrf.mxu0
      %v4943 = vadd.f32 0.0, %v4942
      %v4944 = vpop.f32.mrf.mxu0
      %4945 = vmatprep.mubr.bf16.mxu0 0
      %4946 = vmatmul.mubr.bf16.gmra.mxu0 %v4846
      %v4947 = vpop.f32.mrf.mxu0
      %v4948 = vadd.f32 0.0, %v4947
      %v4949 = vpop.f32.mrf.mxu0
      %v4950 = vpop.f32.mrf.mxu0
      %v4951 = vadd.f32 0.0, %v4950
      %v4952 = vpop.f32.mrf.mxu0
      %4953 = vmatprep.mubr.bf16.mxu0 0
      %4954 = vmatmul.mubr.bf16.gmra.mxu0 %v4849
      %v4955 = vpop.f32.mrf.mxu0
      %v4956 = vadd.f32 0.0, %v4955
      %v4957 = vpop.f32.mrf.mxu0
      %v4958 = vpop.f32.mrf.mxu0
      %v4959 = vadd.f32 0.0, %v4958
      %v4960 = vpop.f32.mrf.mxu0
      %4961 = vmatprep.mubr.bf16.mxu0 0
      %4962 = vmatmul.mubr.bf16.gmra.mxu0 %v4852
      %v4963 = vpop.f32.mrf.mxu0
      %v4964 = vadd.f32 0.0, %v4963
      %v4965 = vpop.f32.mrf.mxu0
      %v4966 = vpop.f32.mrf.mxu0
      %v4967 = vadd.f32 0.0, %v4966
      %v4968 = vpop.f32.mrf.mxu0
      %4969 = vmatprep.mubr.bf16.mxu0 0
      %4970 = vmatmul.mubr.bf16.gmra.mxu0 %v4855
      %v4971 = vpop.f32.mrf.mxu0
      %v4972 = vadd.f32 0.0, %v4971
      %v4973 = vpop.f32.mrf.mxu0
      %v4974 = vpop.f32.mrf.mxu0
      %v4975 = vadd.f32 0.0, %v4974
      %v4976 = vpop.f32.mrf.mxu0
      %4977 = vmatprep.mubr.bf16.mxu0 0
      %4978 = vmatmul.mubr.bf16.gmra.mxu0 %v4858
      %v4979 = vpop.f32.mrf.mxu0
      %v4980 = vadd.f32 0.0, %v4979
      %v4981 = vpop.f32.mrf.mxu0
      %v4982 = vpop.f32.mrf.mxu0
      %v4983 = vadd.f32 0.0, %v4982
      %v4984 = vpop.f32.mrf.mxu0
      %4985 = vmatprep.mubr.bf16.mxu0 0
      %4986 = vmatmul.mubr.bf16.gmra.mxu0 %v4861
      %v4987 = vpop.f32.mrf.mxu0
      %v4988 = vadd.f32 0.0, %v4987
      %v4989 = vpop.f32.mrf.mxu0
      %v4990 = vpop.f32.mrf.mxu0
      %v4991 = vadd.f32 0.0, %v4990
      %v4992 = vpop.f32.mrf.mxu0
      %4993 = vmatprep.mubr.bf16.mxu0 0
      %4994 = vmatmul.mubr.bf16.gmra.mxu0 %v4864
      %v4995 = vpop.f32.mrf.mxu0
      %v4996 = vadd.f32 0.0, %v4995
      %v4997 = vpop.f32.mrf.mxu0
      %v4998 = vpop.f32.mrf.mxu0
      %v4999 = vadd.f32 0.0, %v4998
      %v5000 = vpop.f32.mrf.mxu0
      %5001 = vmatprep.mubr.bf16.mxu0 0
      %5002 = vmatmul.mubr.bf16.gmra.mxu0 %v4867
      %v5003 = vpop.f32.mrf.mxu0
      %v5004 = vadd.f32 0.0, %v5003
      %v5005 = vpop.f32.mrf.mxu0
      %v5006 = vpop.f32.mrf.mxu0
      %v5007 = vadd.f32 0.0, %v5006
      %v5008 = vpop.f32.mrf.mxu0
      %5009 = vmatprep.mubr.bf16.mxu0 0
      %5010 = vmatmul.mubr.bf16.gmra.mxu0 %v4870
      %v5011 = vpop.f32.mrf.mxu0
      %v5012 = vadd.f32 0.0, %v5011
      %v5013 = vpop.f32.mrf.mxu0
      %v5014 = vpop.f32.mrf.mxu0
      %v5015 = vadd.f32 0.0, %v5014
      %v5016 = vpop.f32.mrf.mxu0
      %5017 = vmatprep.mubr.bf16.mxu0 0
      %5018 = vmatmul.mubr.bf16.gmra.mxu0 %v4873
      %v5019 = vpop.f32.mrf.mxu0
      %v5020 = vadd.f32 0.0, %v5019
      %v5021 = vpop.f32.mrf.mxu0
      %v5022 = vpop.f32.mrf.mxu0
      %v5023 = vadd.f32 0.0, %v5022
      %v5024 = vpop.f32.mrf.mxu0
      %5025 = vmatprep.mubr.bf16.mxu0 0
      %5026 = vmatmul.mubr.bf16.gmra.mxu0 %v4876
      %v5027 = vpop.f32.mrf.mxu0
      %v5028 = vadd.f32 0.0, %v5027
      %v5029 = vpop.f32.mrf.mxu0
      %v5030 = vpop.f32.mrf.mxu0
      %v5031 = vadd.f32 0.0, %v5030
      %v5032 = vpop.f32.mrf.mxu0
      %5033 = vmatprep.mubr.bf16.mxu0 0
      %5034 = vmatmul.mubr.bf16.gmra.mxu0 %v4879
      %v5035 = vpop.f32.mrf.mxu0
      %v5036 = vadd.f32 0.0, %v5035
      %v5037 = vpop.f32.mrf.mxu0
      %v5038 = vpop.f32.mrf.mxu0
      %v5039 = vadd.f32 0.0, %v5038
      %v5040 = vpop.f32.mrf.mxu0
      %5041 = vmatprep.mubr.bf16.mxu0 0
      %5042 = vmatmul.mubr.bf16.gmra.mxu0 %v4882
      %v5043 = vpop.f32.mrf.mxu0
      %v5044 = vadd.f32 0.0, %v5043
      %v5045 = vpop.f32.mrf.mxu0
      %v5046 = vpop.f32.mrf.mxu0
      %v5047 = vadd.f32 0.0, %v5046
      %v5048 = vpop.f32.mrf.mxu0
      %5049 = vmatprep.mubr.bf16.mxu0 0
      %5050 = vmatmul.mubr.bf16.gmra.mxu0 %v4885
      %v5051 = vpop.f32.mrf.mxu0
      %v5052 = vadd.f32 0.0, %v5051
      %v5053 = vpop.f32.mrf.mxu0
      %v5054 = vpop.f32.mrf.mxu0
      %v5055 = vadd.f32 0.0, %v5054
      %v5056 = vpop.f32.mrf.mxu0
      %5057 = vmatprep.mubr.bf16.mxu0 0
      %5058 = vmatmul.mubr.bf16.gmra.mxu0 %v4888
      %v5059 = vpop.f32.mrf.mxu0
      %v5060 = vadd.f32 0.0, %v5059
      %v5061 = vpop.f32.mrf.mxu0
      %v5062 = vpop.f32.mrf.mxu0
      %v5063 = vadd.f32 0.0, %v5062
      %v5064 = vpop.f32.mrf.mxu0
      %5065 = vmatprep.mubr.bf16.mxu0 0
      %5066 = vmatmul.mubr.bf16.gmra.mxu0 %v4891
      %v5067 = vpop.f32.mrf.mxu0
      %v5068 = vadd.f32 0.0, %v5067
      %v5069 = vpop.f32.mrf.mxu0
      %v5070 = vpop.f32.mrf.mxu0
      %v5071 = vadd.f32 0.0, %v5070
      %v5072 = vpop.f32.mrf.mxu0
      %5073 = vmatprep.mubr.bf16.mxu0 0
      %5074 = vmatmul.mubr.bf16.gmra.mxu0 %v4894
      %v5075 = vpop.f32.mrf.mxu0
      %v5076 = vadd.f32 0.0, %v5075
      %v5077 = vpop.f32.mrf.mxu0
      %v5078 = vpop.f32.mrf.mxu0
      %v5079 = vadd.f32 0.0, %v5078
      %v5080 = vpop.f32.mrf.mxu0
      %5081 = vmatprep.mubr.bf16.mxu0 0
      %5082 = vmatmul.mubr.bf16.gmra.mxu0 %v4897
      %v5083 = vpop.f32.mrf.mxu0
      %v5084 = vadd.f32 0.0, %v5083
      %v5085 = vpop.f32.mrf.mxu0
      %v5086 = vpop.f32.mrf.mxu0
      %v5087 = vadd.f32 0.0, %v5086
      %v5088 = vpop.f32.mrf.mxu0
      %5089 = vmatprep.mubr.bf16.mxu0 0
      %5090 = vmatmul.mubr.bf16.gmra.mxu0 %v4900
      %v5091 = vpop.f32.mrf.mxu0
      %v5092 = vadd.f32 0.0, %v5091
      %v5093 = vpop.f32.mrf.mxu0
      %v5094 = vpop.f32.mrf.mxu0
      %v5095 = vadd.f32 0.0, %v5094
      %v5096 = vpop.f32.mrf.mxu0
      %5097 = vdwg.mxu0
      %v5098 = vadd.f32 %v4492, %v4940
      %v5099 = vadd.f32 %v4493, %v4943
      %v5100 = vadd.f32 %v4494, %v4948
      %v5101 = vadd.f32 %v4495, %v4951
      %v5102 = vadd.f32 %v4496, %v4956
      %v5103 = vadd.f32 %v4497, %v4959
      %v5104 = vadd.f32 %v4498, %v4964
      %v5105 = vadd.f32 %v4499, %v4967
      %v5106 = vadd.f32 %v4500, %v4972
      %v5107 = vadd.f32 %v4501, %v4975
      %v5108 = vadd.f32 %v4502, %v4980
      %v5109 = vadd.f32 %v4503, %v4983
      %v5110 = vadd.f32 %v4504, %v4988
      %v5111 = vadd.f32 %v4505, %v4991
      %v5112 = vadd.f32 %v4506, %v4996
      %v5113 = vadd.f32 %v4507, %v4999
      %v5114 = vadd.f32 %v4508, %v5004
      %v5115 = vadd.f32 %v4509, %v5007
      %v5116 = vadd.f32 %v4510, %v5012
      %v5117 = vadd.f32 %v4511, %v5015
      %v5118 = vadd.f32 %v4512, %v5020
      %v5119 = vadd.f32 %v4513, %v5023
      %v5120 = vadd.f32 %v4514, %v5028
      %v5121 = vadd.f32 %v4515, %v5031
      %v5122 = vadd.f32 %v4516, %v5036
      %v5123 = vadd.f32 %v4517, %v5039
      %v5124 = vadd.f32 %v4518, %v5044
      %v5125 = vadd.f32 %v4519, %v5047
      %v5126 = vadd.f32 %v4520, %v5052
      %v5127 = vadd.f32 %v4521, %v5055
      %v5128 = vadd.f32 %v4522, %v5060
      %v5129 = vadd.f32 %v4523, %v5063
      %v5130 = vadd.f32 %v4524, %v5068
      %v5131 = vadd.f32 %v4525, %v5071
      %v5132 = vadd.f32 %v4526, %v5076
      %v5133 = vadd.f32 %v4527, %v5079
      %v5134 = vadd.f32 %v4528, %v5084
      %v5135 = vadd.f32 %v4529, %v5087
      %v5136 = vadd.f32 %v4530, %v5092
      %v5137 = vadd.f32 %v4531, %v5095
      %v5138 = vld [vmem:[%s165 + $0x14] sm:$0xe]
      %s5139 = scalar_lea.vmem %s1, 24
      %v5140 = vld [vmem:[%s5139] sm:$0x3]
      %v5142 = vunpack.c.l.b16 %v5138
      %v5143 = vpack.c.b16 %v4617, %v5142
      %v5144 = vrot.slane %v5143, 1
      %v5145 = vrot.slane %v4658, 1
      %v5146 = vsel %vm984, %v5144, %v5145
      %v5147 = vrot.slane %v4659, 1
      %v5148 = vsel %vm984, %v5145, %v5147
      %v5149 = vrot.slane %v4660, 1
      %v5150 = vsel %vm984, %v5147, %v5149
      %v5151 = vrot.slane %v4661, 1
      %v5152 = vsel %vm984, %v5149, %v5151
      %v5153 = vrot.slane %v4662, 1
      %v5154 = vsel %vm984, %v5151, %v5153
      %v5155 = vrot.slane %v4663, 1
      %v5156 = vsel %vm984, %v5153, %v5155
      %v5157 = vrot.slane %v4664, 1
      %v5158 = vsel %vm984, %v5155, %v5157
      %v5159 = vrot.slane %v4665, 1
      %v5160 = vsel %vm984, %v5157, %v5159
      %v5161 = vrot.slane %v4666, 1
      %v5162 = vsel %vm984, %v5159, %v5161
      %v5163 = vrot.slane %v4667, 1
      %v5164 = vsel %vm984, %v5161, %v5163
      %v5165 = vrot.slane %v4668, 1
      %v5166 = vsel %vm984, %v5163, %v5165
      %v5167 = vrot.slane %v4669, 1
      %v5168 = vsel %vm984, %v5165, %v5167
      %v5169 = vrot.slane %v4670, 1
      %v5170 = vsel %vm984, %v5167, %v5169
      %v5171 = vrot.slane %v4671, 1
      %v5172 = vsel %vm984, %v5169, %v5171
      %v5173 = vrot.slane %v4672, 1
      %v5174 = vsel %vm984, %v5171, %v5173
      %v5175 = vrot.slane %v4673, 1
      %v5176 = vsel %vm984, %v5173, %v5175
      %v5177 = vrot.slane %v4674, 1
      %v5178 = vsel %vm984, %v5175, %v5177
      %v5179 = vrot.slane %v4675, 1
      %v5180 = vsel %vm984, %v5177, %v5179
      %v5181 = vrot.slane %v4676, 1
      %v5182 = vsel %vm984, %v5179, %v5181
      %v5183 = vrot.slane %v4677, 1
      %v5184 = vsel %vm984, %v5181, %v5183
      %v5186 = vsel %vm484, %v5146, 0
      %v5189 = vsel %vm484, %v5148, 0
      %v5192 = vsel %vm484, %v5150, 0
      %v5195 = vsel %vm484, %v5152, 0
      %v5198 = vsel %vm484, %v5154, 0
      %v5201 = vsel %vm484, %v5156, 0
      %v5204 = vsel %vm484, %v5158, 0
      %v5207 = vsel %vm484, %v5160, 0
      %v5210 = vsel %vm484, %v5162, 0
      %v5213 = vsel %vm484, %v5164, 0
      %v5216 = vsel %vm484, %v5166, 0
      %v5219 = vsel %vm484, %v5168, 0
      %v5222 = vsel %vm484, %v5170, 0
      %v5225 = vsel %vm484, %v5172, 0
      %v5228 = vsel %vm484, %v5174, 0
      %v5231 = vsel %vm484, %v5176, 0
      %v5234 = vsel %vm484, %v5178, 0
      %v5237 = vsel %vm484, %v5180, 0
      %v5240 = vsel %vm484, %v5182, 0
      %v5243 = vsel %vm484, %v5184, 0
      %v5246 = vsel %vm545, %v5140, 0
      %5248 = vmatprep.subr.bf16.mxu0 0
      %5249 = vmatpush1.bf16.msra.mxu0 0
      %5250 = vmatprep.subr.bf16.mxu0 0
      %5251 = vmatpush1.bf16.msra.mxu0 0
      %5252 = vmatprep.subr.bf16.mxu0 0
      %5253 = vmatpush1.bf16.msra.mxu0 0
      %5254 = vmatprep.subr.bf16.mxu0 0
      %5255 = vmatpush1.bf16.msra.mxu0 0
      %5256 = vmatprep.subr.bf16.mxu0 0
      %5257 = vmatpush1.bf16.msra.mxu0 0
      %5258 = vmatprep.subr.bf16.mxu0 0
      %5259 = vmatpush1.bf16.msra.mxu0 0
      %5260 = vmatprep.subr.bf16.mxu0 0
      %5261 = vmatpush1.bf16.msra.mxu0 0
      %5262 = vmatprep.subr.bf16.mxu0 0
      %5263 = vmatpush1.bf16.msra.mxu0 %v5246
      %5264 = vmatprep.subr.bf16.mxu0 0
      %5265 = vmatpush2.bf16.msra.mxu0 0
      %5266 = vmatprep.subr.bf16.mxu0 0
      %5267 = vmatpush2.bf16.msra.mxu0 0
      %5268 = vmatprep.subr.bf16.mxu0 0
      %5269 = vmatpush2.bf16.msra.mxu0 0
      %5270 = vmatprep.subr.bf16.mxu0 0
      %5271 = vmatpush2.bf16.msra.mxu0 0
      %5272 = vmatprep.subr.bf16.mxu0 0
      %5273 = vmatpush2.bf16.msra.mxu0 0
      %5274 = vmatprep.subr.bf16.mxu0 0
      %5275 = vmatpush2.bf16.msra.mxu0 0
      %5276 = vmatprep.subr.bf16.mxu0 0
      %5277 = vmatpush2.bf16.msra.mxu0 0
      %5278 = vmatprep.subr.bf16.mxu0 0
      %5279 = vmatpush2.bf16.msra.mxu0 0
      %5280 = vmatprep.mubr.bf16.mxu0 0
      %5281 = vmatmul.mubr.bf16.gmra.mxu0 %v5186
      %v5282 = vpop.f32.mrf.mxu0
      %v5283 = vadd.f32 0.0, %v5282
      %v5284 = vpop.f32.mrf.mxu0
      %v5285 = vpop.f32.mrf.mxu0
      %v5286 = vadd.f32 0.0, %v5285
      %v5287 = vpop.f32.mrf.mxu0
      %5288 = vmatprep.mubr.bf16.mxu0 0
      %5289 = vmatmul.mubr.bf16.gmra.mxu0 %v5189
      %v5290 = vpop.f32.mrf.mxu0
      %v5291 = vadd.f32 0.0, %v5290
      %v5292 = vpop.f32.mrf.mxu0
      %v5293 = vpop.f32.mrf.mxu0
      %v5294 = vadd.f32 0.0, %v5293
      %v5295 = vpop.f32.mrf.mxu0
      %5296 = vmatprep.mubr.bf16.mxu0 0
      %5297 = vmatmul.mubr.bf16.gmra.mxu0 %v5192
      %v5298 = vpop.f32.mrf.mxu0
      %v5299 = vadd.f32 0.0, %v5298
      %v5300 = vpop.f32.mrf.mxu0
      %v5301 = vpop.f32.mrf.mxu0
      %v5302 = vadd.f32 0.0, %v5301
      %v5303 = vpop.f32.mrf.mxu0
      %5304 = vmatprep.mubr.bf16.mxu0 0
      %5305 = vmatmul.mubr.bf16.gmra.mxu0 %v5195
      %v5306 = vpop.f32.mrf.mxu0
      %v5307 = vadd.f32 0.0, %v5306
      %v5308 = vpop.f32.mrf.mxu0
      %v5309 = vpop.f32.mrf.mxu0
      %v5310 = vadd.f32 0.0, %v5309
      %v5311 = vpop.f32.mrf.mxu0
      %5312 = vmatprep.mubr.bf16.mxu0 0
      %5313 = vmatmul.mubr.bf16.gmra.mxu0 %v5198
      %v5314 = vpop.f32.mrf.mxu0
      %v5315 = vadd.f32 0.0, %v5314
      %v5316 = vpop.f32.mrf.mxu0
      %v5317 = vpop.f32.mrf.mxu0
      %v5318 = vadd.f32 0.0, %v5317
      %v5319 = vpop.f32.mrf.mxu0
      %5320 = vmatprep.mubr.bf16.mxu0 0
      %5321 = vmatmul.mubr.bf16.gmra.mxu0 %v5201
      %v5322 = vpop.f32.mrf.mxu0
      %v5323 = vadd.f32 0.0, %v5322
      %v5324 = vpop.f32.mrf.mxu0
      %v5325 = vpop.f32.mrf.mxu0
      %v5326 = vadd.f32 0.0, %v5325
      %v5327 = vpop.f32.mrf.mxu0
      %5328 = vmatprep.mubr.bf16.mxu0 0
      %5329 = vmatmul.mubr.bf16.gmra.mxu0 %v5204
      %v5330 = vpop.f32.mrf.mxu0
      %v5331 = vadd.f32 0.0, %v5330
      %v5332 = vpop.f32.mrf.mxu0
      %v5333 = vpop.f32.mrf.mxu0
      %v5334 = vadd.f32 0.0, %v5333
      %v5335 = vpop.f32.mrf.mxu0
      %5336 = vmatprep.mubr.bf16.mxu0 0
      %5337 = vmatmul.mubr.bf16.gmra.mxu0 %v5207
      %v5338 = vpop.f32.mrf.mxu0
      %v5339 = vadd.f32 0.0, %v5338
      %v5340 = vpop.f32.mrf.mxu0
      %v5341 = vpop.f32.mrf.mxu0
      %v5342 = vadd.f32 0.0, %v5341
      %v5343 = vpop.f32.mrf.mxu0
      %5344 = vmatprep.mubr.bf16.mxu0 0
      %5345 = vmatmul.mubr.bf16.gmra.mxu0 %v5210
      %v5346 = vpop.f32.mrf.mxu0
      %v5347 = vadd.f32 0.0, %v5346
      %v5348 = vpop.f32.mrf.mxu0
      %v5349 = vpop.f32.mrf.mxu0
      %v5350 = vadd.f32 0.0, %v5349
      %v5351 = vpop.f32.mrf.mxu0
      %5352 = vmatprep.mubr.bf16.mxu0 0
      %5353 = vmatmul.mubr.bf16.gmra.mxu0 %v5213
      %v5354 = vpop.f32.mrf.mxu0
      %v5355 = vadd.f32 0.0, %v5354
      %v5356 = vpop.f32.mrf.mxu0
      %v5357 = vpop.f32.mrf.mxu0
      %v5358 = vadd.f32 0.0, %v5357
      %v5359 = vpop.f32.mrf.mxu0
      %5360 = vmatprep.mubr.bf16.mxu0 0
      %5361 = vmatmul.mubr.bf16.gmra.mxu0 %v5216
      %v5362 = vpop.f32.mrf.mxu0
      %v5363 = vadd.f32 0.0, %v5362
      %v5364 = vpop.f32.mrf.mxu0
      %v5365 = vpop.f32.mrf.mxu0
      %v5366 = vadd.f32 0.0, %v5365
      %v5367 = vpop.f32.mrf.mxu0
      %5368 = vmatprep.mubr.bf16.mxu0 0
      %5369 = vmatmul.mubr.bf16.gmra.mxu0 %v5219
      %v5370 = vpop.f32.mrf.mxu0
      %v5371 = vadd.f32 0.0, %v5370
      %v5372 = vpop.f32.mrf.mxu0
      %v5373 = vpop.f32.mrf.mxu0
      %v5374 = vadd.f32 0.0, %v5373
      %v5375 = vpop.f32.mrf.mxu0
      %5376 = vmatprep.mubr.bf16.mxu0 0
      %5377 = vmatmul.mubr.bf16.gmra.mxu0 %v5222
      %v5378 = vpop.f32.mrf.mxu0
      %v5379 = vadd.f32 0.0, %v5378
      %v5380 = vpop.f32.mrf.mxu0
      %v5381 = vpop.f32.mrf.mxu0
      %v5382 = vadd.f32 0.0, %v5381
      %v5383 = vpop.f32.mrf.mxu0
      %5384 = vmatprep.mubr.bf16.mxu0 0
      %5385 = vmatmul.mubr.bf16.gmra.mxu0 %v5225
      %v5386 = vpop.f32.mrf.mxu0
      %v5387 = vadd.f32 0.0, %v5386
      %v5388 = vpop.f32.mrf.mxu0
      %v5389 = vpop.f32.mrf.mxu0
      %v5390 = vadd.f32 0.0, %v5389
      %v5391 = vpop.f32.mrf.mxu0
      %5392 = vmatprep.mubr.bf16.mxu0 0
      %5393 = vmatmul.mubr.bf16.gmra.mxu0 %v5228
      %v5394 = vpop.f32.mrf.mxu0
      %v5395 = vadd.f32 0.0, %v5394
      %v5396 = vpop.f32.mrf.mxu0
      %v5397 = vpop.f32.mrf.mxu0
      %v5398 = vadd.f32 0.0, %v5397
      %v5399 = vpop.f32.mrf.mxu0
      %5400 = vmatprep.mubr.bf16.mxu0 0
      %5401 = vmatmul.mubr.bf16.gmra.mxu0 %v5231
      %v5402 = vpop.f32.mrf.mxu0
      %v5403 = vadd.f32 0.0, %v5402
      %v5404 = vpop.f32.mrf.mxu0
      %v5405 = vpop.f32.mrf.mxu0
      %v5406 = vadd.f32 0.0, %v5405
      %v5407 = vpop.f32.mrf.mxu0
      %5408 = vmatprep.mubr.bf16.mxu0 0
      %5409 = vmatmul.mubr.bf16.gmra.mxu0 %v5234
      %v5410 = vpop.f32.mrf.mxu0
      %v5411 = vadd.f32 0.0, %v5410
      %v5412 = vpop.f32.mrf.mxu0
      %v5413 = vpop.f32.mrf.mxu0
      %v5414 = vadd.f32 0.0, %v5413
      %v5415 = vpop.f32.mrf.mxu0
      %5416 = vmatprep.mubr.bf16.mxu0 0
      %5417 = vmatmul.mubr.bf16.gmra.mxu0 %v5237
      %v5418 = vpop.f32.mrf.mxu0
      %v5419 = vadd.f32 0.0, %v5418
      %v5420 = vpop.f32.mrf.mxu0
      %v5421 = vpop.f32.mrf.mxu0
      %v5422 = vadd.f32 0.0, %v5421
      %v5423 = vpop.f32.mrf.mxu0
      %5424 = vmatprep.mubr.bf16.mxu0 0
      %5425 = vmatmul.mubr.bf16.gmra.mxu0 %v5240
      %v5426 = vpop.f32.mrf.mxu0
      %v5427 = vadd.f32 0.0, %v5426
      %v5428 = vpop.f32.mrf.mxu0
      %v5429 = vpop.f32.mrf.mxu0
      %v5430 = vadd.f32 0.0, %v5429
      %v5431 = vpop.f32.mrf.mxu0
      %5432 = vmatprep.mubr.bf16.mxu0 0
      %5433 = vmatmul.mubr.bf16.gmra.mxu0 %v5243
      %v5434 = vpop.f32.mrf.mxu0
      %v5435 = vadd.f32 0.0, %v5434
      %v5436 = vpop.f32.mrf.mxu0
      %v5437 = vpop.f32.mrf.mxu0
      %v5438 = vadd.f32 0.0, %v5437
      %v5439 = vpop.f32.mrf.mxu0
      %5440 = vdwg.mxu0
      %v5441 = vadd.f32 %v5098, %v5283
      %v5442 = vadd.f32 %v5099, %v5286
      %v5443 = vadd.f32 %v5100, %v5291
      %v5444 = vadd.f32 %v5101, %v5294
      %v5445 = vadd.f32 %v5102, %v5299
      %v5446 = vadd.f32 %v5103, %v5302
      %v5447 = vadd.f32 %v5104, %v5307
      %v5448 = vadd.f32 %v5105, %v5310
      %v5449 = vadd.f32 %v5106, %v5315
      %v5450 = vadd.f32 %v5107, %v5318
      %v5451 = vadd.f32 %v5108, %v5323
      %v5452 = vadd.f32 %v5109, %v5326
      %v5453 = vadd.f32 %v5110, %v5331
      %v5454 = vadd.f32 %v5111, %v5334
      %v5455 = vadd.f32 %v5112, %v5339
      %v5456 = vadd.f32 %v5113, %v5342
      %v5457 = vadd.f32 %v5114, %v5347
      %v5458 = vadd.f32 %v5115, %v5350
      %v5459 = vadd.f32 %v5116, %v5355
      %v5460 = vadd.f32 %v5117, %v5358
      %v5461 = vadd.f32 %v5118, %v5363
      %v5462 = vadd.f32 %v5119, %v5366
      %v5463 = vadd.f32 %v5120, %v5371
      %v5464 = vadd.f32 %v5121, %v5374
      %v5465 = vadd.f32 %v5122, %v5379
      %v5466 = vadd.f32 %v5123, %v5382
      %v5467 = vadd.f32 %v5124, %v5387
      %v5468 = vadd.f32 %v5125, %v5390
      %v5469 = vadd.f32 %v5126, %v5395
      %v5470 = vadd.f32 %v5127, %v5398
      %v5471 = vadd.f32 %v5128, %v5403
      %v5472 = vadd.f32 %v5129, %v5406
      %v5473 = vadd.f32 %v5130, %v5411
      %v5474 = vadd.f32 %v5131, %v5414
      %v5475 = vadd.f32 %v5132, %v5419
      %v5476 = vadd.f32 %v5133, %v5422
      %v5477 = vadd.f32 %v5134, %v5427
      %v5478 = vadd.f32 %v5135, %v5430
      %v5479 = vadd.f32 %v5136, %v5435
      %v5480 = vadd.f32 %v5137, %v5438
      %v5481 = vld [vmem:[%s165 + $0xb4] sm:$0x3]
      %s5482 = scalar_lea.vmem %s1, 26
      %v5483 = vld [vmem:[%s5482] sm:$0x3]
      %v5485 = vunpack.c.l.b16 %v5481
      %v5486 = vpack.c.b16 %v5485, %v5485
      %v5488 = vshrl.u32 %v5143, 16
      %v5490 = vrot.slane %v5488, 1
      %v5491 = vshll.u32 %v5143, 16
      %v5493 = vrot.slane %v5491, 2
      %v5494 = vor.u32 %v5490, %v5493
      %v5495 = vrot.slane %v4690, 1
      %v5496 = vrot.slane %v4686, 2
      %v5497 = vor.u32 %v5495, %v5496
      %v5498 = vsel %vm1328, %v5494, %v5497
      %v5499 = vrot.slane %v4698, 1
      %v5500 = vrot.slane %v4694, 2
      %v5501 = vor.u32 %v5499, %v5500
      %v5502 = vsel %vm1328, %v5497, %v5501
      %v5503 = vrot.slane %v4706, 1
      %v5504 = vrot.slane %v4702, 2
      %v5505 = vor.u32 %v5503, %v5504
      %v5506 = vsel %vm1328, %v5501, %v5505
      %v5507 = vrot.slane %v4714, 1
      %v5508 = vrot.slane %v4710, 2
      %v5509 = vor.u32 %v5507, %v5508
      %v5510 = vsel %vm1328, %v5505, %v5509
      %v5511 = vrot.slane %v4722, 1
      %v5512 = vrot.slane %v4718, 2
      %v5513 = vor.u32 %v5511, %v5512
      %v5514 = vsel %vm1328, %v5509, %v5513
      %v5515 = vrot.slane %v4730, 1
      %v5516 = vrot.slane %v4726, 2
      %v5517 = vor.u32 %v5515, %v5516
      %v5518 = vsel %vm1328, %v5513, %v5517
      %v5519 = vrot.slane %v4738, 1
      %v5520 = vrot.slane %v4734, 2
      %v5521 = vor.u32 %v5519, %v5520
      %v5522 = vsel %vm1328, %v5517, %v5521
      %v5523 = vrot.slane %v4746, 1
      %v5524 = vrot.slane %v4742, 2
      %v5525 = vor.u32 %v5523, %v5524
      %v5526 = vsel %vm1328, %v5521, %v5525
      %v5527 = vrot.slane %v4754, 1
      %v5528 = vrot.slane %v4750, 2
      %v5529 = vor.u32 %v5527, %v5528
      %v5530 = vsel %vm1328, %v5525, %v5529
      %v5531 = vrot.slane %v4762, 1
      %v5532 = vrot.slane %v4758, 2
      %v5533 = vor.u32 %v5531, %v5532
      %v5534 = vsel %vm1328, %v5529, %v5533
      %v5535 = vrot.slane %v4770, 1
      %v5536 = vrot.slane %v4766, 2
      %v5537 = vor.u32 %v5535, %v5536
      %v5538 = vsel %vm1328, %v5533, %v5537
      %v5539 = vrot.slane %v4778, 1
      %v5540 = vrot.slane %v4774, 2
      %v5541 = vor.u32 %v5539, %v5540
      %v5542 = vsel %vm1328, %v5537, %v5541
      %v5543 = vrot.slane %v4786, 1
      %v5544 = vrot.slane %v4782, 2
      %v5545 = vor.u32 %v5543, %v5544
      %v5546 = vsel %vm1328, %v5541, %v5545
      %v5547 = vrot.slane %v4794, 1
      %v5548 = vrot.slane %v4790, 2
      %v5549 = vor.u32 %v5547, %v5548
      %v5550 = vsel %vm1328, %v5545, %v5549
      %v5551 = vrot.slane %v4802, 1
      %v5552 = vrot.slane %v4798, 2
      %v5553 = vor.u32 %v5551, %v5552
      %v5554 = vsel %vm1328, %v5549, %v5553
      %v5555 = vrot.slane %v4810, 1
      %v5556 = vrot.slane %v4806, 2
      %v5557 = vor.u32 %v5555, %v5556
      %v5558 = vsel %vm1328, %v5553, %v5557
      %v5559 = vrot.slane %v4818, 1
      %v5560 = vrot.slane %v4814, 2
      %v5561 = vor.u32 %v5559, %v5560
      %v5562 = vsel %vm1328, %v5557, %v5561
      %v5563 = vrot.slane %v4826, 1
      %v5564 = vrot.slane %v4822, 2
      %v5565 = vor.u32 %v5563, %v5564
      %v5566 = vsel %vm1328, %v5561, %v5565
      %v5567 = vrot.slane %v4834, 1
      %v5568 = vrot.slane %v4830, 2
      %v5569 = vor.u32 %v5567, %v5568
      %v5570 = vsel %vm1328, %v5565, %v5569
      %v5572 = vshrl.u32 %v5486, 16
      %v5574 = vrot.slane %v5572, 1
      %v5575 = vshll.u32 %v5486, 16
      %v5577 = vrot.slane %v5575, 2
      %v5578 = vor.u32 %v5574, %v5577
      %v5579 = vsel %vm1328, %v5569, %v5578
      %v5581 = vsel %vm484, %v5498, 0
      %v5584 = vsel %vm484, %v5502, 0
      %v5587 = vsel %vm484, %v5506, 0
      %v5590 = vsel %vm484, %v5510, 0
      %v5593 = vsel %vm484, %v5514, 0
      %v5596 = vsel %vm484, %v5518, 0
      %v5599 = vsel %vm484, %v5522, 0
      %v5602 = vsel %vm484, %v5526, 0
      %v5605 = vsel %vm484, %v5530, 0
      %v5608 = vsel %vm484, %v5534, 0
      %v5611 = vsel %vm484, %v5538, 0
      %v5614 = vsel %vm484, %v5542, 0
      %v5617 = vsel %vm484, %v5546, 0
      %v5620 = vsel %vm484, %v5550, 0
      %v5623 = vsel %vm484, %v5554, 0
      %v5626 = vsel %vm484, %v5558, 0
      %v5629 = vsel %vm484, %v5562, 0
      %v5632 = vsel %vm484, %v5566, 0
      %v5635 = vsel %vm484, %v5570, 0
      %v5638 = vsel %vm484, %v5579, 0
      %v5641 = vsel %vm545, %v5483, 0
      %5643 = vmatprep.subr.bf16.mxu0 0
      %5644 = vmatpush1.bf16.msra.mxu0 0
      %5645 = vmatprep.subr.bf16.mxu0 0
      %5646 = vmatpush1.bf16.msra.mxu0 0
      %5647 = vmatprep.subr.bf16.mxu0 0
      %5648 = vmatpush1.bf16.msra.mxu0 0
      %5649 = vmatprep.subr.bf16.mxu0 0
      %5650 = vmatpush1.bf16.msra.mxu0 0
      %5651 = vmatprep.subr.bf16.mxu0 0
      %5652 = vmatpush1.bf16.msra.mxu0 0
      %5653 = vmatprep.subr.bf16.mxu0 0
      %5654 = vmatpush1.bf16.msra.mxu0 0
      %5655 = vmatprep.subr.bf16.mxu0 0
      %5656 = vmatpush1.bf16.msra.mxu0 0
      %5657 = vmatprep.subr.bf16.mxu0 0
      %5658 = vmatpush1.bf16.msra.mxu0 %v5641
      %5659 = vmatprep.subr.bf16.mxu0 0
      %5660 = vmatpush2.bf16.msra.mxu0 0
      %5661 = vmatprep.subr.bf16.mxu0 0
      %5662 = vmatpush2.bf16.msra.mxu0 0
      %5663 = vmatprep.subr.bf16.mxu0 0
      %5664 = vmatpush2.bf16.msra.mxu0 0
      %5665 = vmatprep.subr.bf16.mxu0 0
      %5666 = vmatpush2.bf16.msra.mxu0 0
      %5667 = vmatprep.subr.bf16.mxu0 0
      %5668 = vmatpush2.bf16.msra.mxu0 0
      %5669 = vmatprep.subr.bf16.mxu0 0
      %5670 = vmatpush2.bf16.msra.mxu0 0
      %5671 = vmatprep.subr.bf16.mxu0 0
      %5672 = vmatpush2.bf16.msra.mxu0 0
      %5673 = vmatprep.subr.bf16.mxu0 0
      %5674 = vmatpush2.bf16.msra.mxu0 0
      %5675 = vmatprep.mubr.bf16.mxu0 0
      %5676 = vmatmul.mubr.bf16.gmra.mxu0 %v5581
      %v5677 = vpop.f32.mrf.mxu0
      %v5678 = vadd.f32 0.0, %v5677
      %v5679 = vpop.f32.mrf.mxu0
      %v5680 = vpop.f32.mrf.mxu0
      %v5681 = vadd.f32 0.0, %v5680
      %v5682 = vpop.f32.mrf.mxu0
      %5683 = vmatprep.mubr.bf16.mxu0 0
      %5684 = vmatmul.mubr.bf16.gmra.mxu0 %v5584
      %v5685 = vpop.f32.mrf.mxu0
      %v5686 = vadd.f32 0.0, %v5685
      %v5687 = vpop.f32.mrf.mxu0
      %v5688 = vpop.f32.mrf.mxu0
      %v5689 = vadd.f32 0.0, %v5688
      %v5690 = vpop.f32.mrf.mxu0
      %5691 = vmatprep.mubr.bf16.mxu0 0
      %5692 = vmatmul.mubr.bf16.gmra.mxu0 %v5587
      %v5693 = vpop.f32.mrf.mxu0
      %v5694 = vadd.f32 0.0, %v5693
      %v5695 = vpop.f32.mrf.mxu0
      %v5696 = vpop.f32.mrf.mxu0
      %v5697 = vadd.f32 0.0, %v5696
      %v5698 = vpop.f32.mrf.mxu0
      %5699 = vmatprep.mubr.bf16.mxu0 0
      %5700 = vmatmul.mubr.bf16.gmra.mxu0 %v5590
      %v5701 = vpop.f32.mrf.mxu0
      %v5702 = vadd.f32 0.0, %v5701
      %v5703 = vpop.f32.mrf.mxu0
      %v5704 = vpop.f32.mrf.mxu0
      %v5705 = vadd.f32 0.0, %v5704
      %v5706 = vpop.f32.mrf.mxu0
      %5707 = vmatprep.mubr.bf16.mxu0 0
      %5708 = vmatmul.mubr.bf16.gmra.mxu0 %v5593
      %v5709 = vpop.f32.mrf.mxu0
      %v5710 = vadd.f32 0.0, %v5709
      %v5711 = vpop.f32.mrf.mxu0
      %v5712 = vpop.f32.mrf.mxu0
      %v5713 = vadd.f32 0.0, %v5712
      %v5714 = vpop.f32.mrf.mxu0
      %5715 = vmatprep.mubr.bf16.mxu0 0
      %5716 = vmatmul.mubr.bf16.gmra.mxu0 %v5596
      %v5717 = vpop.f32.mrf.mxu0
      %v5718 = vadd.f32 0.0, %v5717
      %v5719 = vpop.f32.mrf.mxu0
      %v5720 = vpop.f32.mrf.mxu0
      %v5721 = vadd.f32 0.0, %v5720
      %v5722 = vpop.f32.mrf.mxu0
      %5723 = vmatprep.mubr.bf16.mxu0 0
      %5724 = vmatmul.mubr.bf16.gmra.mxu0 %v5599
      %v5725 = vpop.f32.mrf.mxu0
      %v5726 = vadd.f32 0.0, %v5725
      %v5727 = vpop.f32.mrf.mxu0
      %v5728 = vpop.f32.mrf.mxu0
      %v5729 = vadd.f32 0.0, %v5728
      %v5730 = vpop.f32.mrf.mxu0
      %5731 = vmatprep.mubr.bf16.mxu0 0
      %5732 = vmatmul.mubr.bf16.gmra.mxu0 %v5602
      %v5733 = vpop.f32.mrf.mxu0
      %v5734 = vadd.f32 0.0, %v5733
      %v5735 = vpop.f32.mrf.mxu0
      %v5736 = vpop.f32.mrf.mxu0
      %v5737 = vadd.f32 0.0, %v5736
      %v5738 = vpop.f32.mrf.mxu0
      %5739 = vmatprep.mubr.bf16.mxu0 0
      %5740 = vmatmul.mubr.bf16.gmra.mxu0 %v5605
      %v5741 = vpop.f32.mrf.mxu0
      %v5742 = vadd.f32 0.0, %v5741
      %v5743 = vpop.f32.mrf.mxu0
      %v5744 = vpop.f32.mrf.mxu0
      %v5745 = vadd.f32 0.0, %v5744
      %v5746 = vpop.f32.mrf.mxu0
      %5747 = vmatprep.mubr.bf16.mxu0 0
      %5748 = vmatmul.mubr.bf16.gmra.mxu0 %v5608
      %v5749 = vpop.f32.mrf.mxu0
      %v5750 = vadd.f32 0.0, %v5749
      %v5751 = vpop.f32.mrf.mxu0
      %v5752 = vpop.f32.mrf.mxu0
      %v5753 = vadd.f32 0.0, %v5752
      %v5754 = vpop.f32.mrf.mxu0
      %5755 = vmatprep.mubr.bf16.mxu0 0
      %5756 = vmatmul.mubr.bf16.gmra.mxu0 %v5611
      %v5757 = vpop.f32.mrf.mxu0
      %v5758 = vadd.f32 0.0, %v5757
      %v5759 = vpop.f32.mrf.mxu0
      %v5760 = vpop.f32.mrf.mxu0
      %v5761 = vadd.f32 0.0, %v5760
      %v5762 = vpop.f32.mrf.mxu0
      %5763 = vmatprep.mubr.bf16.mxu0 0
      %5764 = vmatmul.mubr.bf16.gmra.mxu0 %v5614
      %v5765 = vpop.f32.mrf.mxu0
      %v5766 = vadd.f32 0.0, %v5765
      %v5767 = vpop.f32.mrf.mxu0
      %v5768 = vpop.f32.mrf.mxu0
      %v5769 = vadd.f32 0.0, %v5768
      %v5770 = vpop.f32.mrf.mxu0
      %5771 = vmatprep.mubr.bf16.mxu0 0
      %5772 = vmatmul.mubr.bf16.gmra.mxu0 %v5617
      %v5773 = vpop.f32.mrf.mxu0
      %v5774 = vadd.f32 0.0, %v5773
      %v5775 = vpop.f32.mrf.mxu0
      %v5776 = vpop.f32.mrf.mxu0
      %v5777 = vadd.f32 0.0, %v5776
      %v5778 = vpop.f32.mrf.mxu0
      %5779 = vmatprep.mubr.bf16.mxu0 0
      %5780 = vmatmul.mubr.bf16.gmra.mxu0 %v5620
      %v5781 = vpop.f32.mrf.mxu0
      %v5782 = vadd.f32 0.0, %v5781
      %v5783 = vpop.f32.mrf.mxu0
      %v5784 = vpop.f32.mrf.mxu0
      %v5785 = vadd.f32 0.0, %v5784
      %v5786 = vpop.f32.mrf.mxu0
      %5787 = vmatprep.mubr.bf16.mxu0 0
      %5788 = vmatmul.mubr.bf16.gmra.mxu0 %v5623
      %v5789 = vpop.f32.mrf.mxu0
      %v5790 = vadd.f32 0.0, %v5789
      %v5791 = vpop.f32.mrf.mxu0
      %v5792 = vpop.f32.mrf.mxu0
      %v5793 = vadd.f32 0.0, %v5792
      %v5794 = vpop.f32.mrf.mxu0
      %5795 = vmatprep.mubr.bf16.mxu0 0
      %5796 = vmatmul.mubr.bf16.gmra.mxu0 %v5626
      %v5797 = vpop.f32.mrf.mxu0
      %v5798 = vadd.f32 0.0, %v5797
      %v5799 = vpop.f32.mrf.mxu0
      %v5800 = vpop.f32.mrf.mxu0
      %v5801 = vadd.f32 0.0, %v5800
      %v5802 = vpop.f32.mrf.mxu0
      %5803 = vmatprep.mubr.bf16.mxu0 0
      %5804 = vmatmul.mubr.bf16.gmra.mxu0 %v5629
      %v5805 = vpop.f32.mrf.mxu0
      %v5806 = vadd.f32 0.0, %v5805
      %v5807 = vpop.f32.mrf.mxu0
      %v5808 = vpop.f32.mrf.mxu0
      %v5809 = vadd.f32 0.0, %v5808
      %v5810 = vpop.f32.mrf.mxu0
      %5811 = vmatprep.mubr.bf16.mxu0 0
      %5812 = vmatmul.mubr.bf16.gmra.mxu0 %v5632
      %v5813 = vpop.f32.mrf.mxu0
      %v5814 = vadd.f32 0.0, %v5813
      %v5815 = vpop.f32.mrf.mxu0
      %v5816 = vpop.f32.mrf.mxu0
      %v5817 = vadd.f32 0.0, %v5816
      %v5818 = vpop.f32.mrf.mxu0
      %5819 = vmatprep.mubr.bf16.mxu0 0
      %5820 = vmatmul.mubr.bf16.gmra.mxu0 %v5635
      %v5821 = vpop.f32.mrf.mxu0
      %v5822 = vadd.f32 0.0, %v5821
      %v5823 = vpop.f32.mrf.mxu0
      %v5824 = vpop.f32.mrf.mxu0
      %v5825 = vadd.f32 0.0, %v5824
      %v5826 = vpop.f32.mrf.mxu0
      %5827 = vmatprep.mubr.bf16.mxu0 0
      %5828 = vmatmul.mubr.bf16.gmra.mxu0 %v5638
      %v5829 = vpop.f32.mrf.mxu0
      %v5830 = vadd.f32 0.0, %v5829
      %v5831 = vpop.f32.mrf.mxu0
      %v5832 = vpop.f32.mrf.mxu0
      %v5833 = vadd.f32 0.0, %v5832
      %v5834 = vpop.f32.mrf.mxu0
      %5835 = vdwg.mxu0
      %v5836 = vadd.f32 %v5441, %v5678
      %v5837 = vadd.f32 %v5442, %v5681
      %v5838 = vadd.f32 %v5443, %v5686
      %v5839 = vadd.f32 %v5444, %v5689
      %v5840 = vadd.f32 %v5445, %v5694
      %v5841 = vadd.f32 %v5446, %v5697
      %v5842 = vadd.f32 %v5447, %v5702
      %v5843 = vadd.f32 %v5448, %v5705
      %v5844 = vadd.f32 %v5449, %v5710
      %v5845 = vadd.f32 %v5450, %v5713
      %v5846 = vadd.f32 %v5451, %v5718
      %v5847 = vadd.f32 %v5452, %v5721
      %v5848 = vadd.f32 %v5453, %v5726
      %v5849 = vadd.f32 %v5454, %v5729
      %v5850 = vadd.f32 %v5455, %v5734
      %v5851 = vadd.f32 %v5456, %v5737
      %v5852 = vadd.f32 %v5457, %v5742
      %v5853 = vadd.f32 %v5458, %v5745
      %v5854 = vadd.f32 %v5459, %v5750
      %v5855 = vadd.f32 %v5460, %v5753
      %v5856 = vadd.f32 %v5461, %v5758
      %v5857 = vadd.f32 %v5462, %v5761
      %v5858 = vadd.f32 %v5463, %v5766
      %v5859 = vadd.f32 %v5464, %v5769
      %v5860 = vadd.f32 %v5465, %v5774
      %v5861 = vadd.f32 %v5466, %v5777
      %v5862 = vadd.f32 %v5467, %v5782
      %v5863 = vadd.f32 %v5468, %v5785
      %v5864 = vadd.f32 %v5469, %v5790
      %v5865 = vadd.f32 %v5470, %v5793
      %v5866 = vadd.f32 %v5471, %v5798
      %v5867 = vadd.f32 %v5472, %v5801
      %v5868 = vadd.f32 %v5473, %v5806
      %v5869 = vadd.f32 %v5474, %v5809
      %v5870 = vadd.f32 %v5475, %v5814
      %v5871 = vadd.f32 %v5476, %v5817
      %v5872 = vadd.f32 %v5477, %v5822
      %v5873 = vadd.f32 %v5478, %v5825
      %v5874 = vadd.f32 %v5479, %v5830
      %v5875 = vadd.f32 %v5480, %v5833
      %v5876 = vld [vmem:[%s165 + $0x14] sm:$0xc]
      %s5877 = scalar_lea.vmem %s1, 28
      %v5878 = vld [vmem:[%s5877] sm:$0x3]
      %v5880 = vunpack.c.l.b16 %v5876
      %v5881 = vpack.c.b16 %v4617, %v5880
      %v5882 = vrot.slane %v5881, 2
      %v5883 = vrot.slane %v4658, 2
      %v5884 = vsel %vm1724, %v5882, %v5883
      %v5885 = vrot.slane %v4659, 2
      %v5886 = vsel %vm1724, %v5883, %v5885
      %v5887 = vrot.slane %v4660, 2
      %v5888 = vsel %vm1724, %v5885, %v5887
      %v5889 = vrot.slane %v4661, 2
      %v5890 = vsel %vm1724, %v5887, %v5889
      %v5891 = vrot.slane %v4662, 2
      %v5892 = vsel %vm1724, %v5889, %v5891
      %v5893 = vrot.slane %v4663, 2
      %v5894 = vsel %vm1724, %v5891, %v5893
      %v5895 = vrot.slane %v4664, 2
      %v5896 = vsel %vm1724, %v5893, %v5895
      %v5897 = vrot.slane %v4665, 2
      %v5898 = vsel %vm1724, %v5895, %v5897
      %v5899 = vrot.slane %v4666, 2
      %v5900 = vsel %vm1724, %v5897, %v5899
      %v5901 = vrot.slane %v4667, 2
      %v5902 = vsel %vm1724, %v5899, %v5901
      %v5903 = vrot.slane %v4668, 2
      %v5904 = vsel %vm1724, %v5901, %v5903
      %v5905 = vrot.slane %v4669, 2
      %v5906 = vsel %vm1724, %v5903, %v5905
      %v5907 = vrot.slane %v4670, 2
      %v5908 = vsel %vm1724, %v5905, %v5907
      %v5909 = vrot.slane %v4671, 2
      %v5910 = vsel %vm1724, %v5907, %v5909
      %v5911 = vrot.slane %v4672, 2
      %v5912 = vsel %vm1724, %v5909, %v5911
      %v5913 = vrot.slane %v4673, 2
      %v5914 = vsel %vm1724, %v5911, %v5913
      %v5915 = vrot.slane %v4674, 2
      %v5916 = vsel %vm1724, %v5913, %v5915
      %v5917 = vrot.slane %v4675, 2
      %v5918 = vsel %vm1724, %v5915, %v5917
      %v5919 = vrot.slane %v4676, 2
      %v5920 = vsel %vm1724, %v5917, %v5919
      %v5921 = vrot.slane %v5486, 2
      %v5922 = vsel %vm1724, %v5919, %v5921
      %v5924 = vsel %vm484, %v5884, 0
      %v5927 = vsel %vm484, %v5886, 0
      %v5930 = vsel %vm484, %v5888, 0
      %v5933 = vsel %vm484, %v5890, 0
      %v5936 = vsel %vm484, %v5892, 0
      %v5939 = vsel %vm484, %v5894, 0
      %v5942 = vsel %vm484, %v5896, 0
      %v5945 = vsel %vm484, %v5898, 0
      %v5948 = vsel %vm484, %v5900, 0
      %v5951 = vsel %vm484, %v5902, 0
      %v5954 = vsel %vm484, %v5904, 0
      %v5957 = vsel %vm484, %v5906, 0
      %v5960 = vsel %vm484, %v5908, 0
      %v5963 = vsel %vm484, %v5910, 0
      %v5966 = vsel %vm484, %v5912, 0
      %v5969 = vsel %vm484, %v5914, 0
      %v5972 = vsel %vm484, %v5916, 0
      %v5975 = vsel %vm484, %v5918, 0
      %v5978 = vsel %vm484, %v5920, 0
      %v5981 = vsel %vm484, %v5922, 0
      %v5984 = vsel %vm545, %v5878, 0
      %5986 = vmatprep.subr.bf16.mxu0 0
      %5987 = vmatpush1.bf16.msra.mxu0 0
      %5988 = vmatprep.subr.bf16.mxu0 0
      %5989 = vmatpush1.bf16.msra.mxu0 0
      %5990 = vmatprep.subr.bf16.mxu0 0
      %5991 = vmatpush1.bf16.msra.mxu0 0
      %5992 = vmatprep.subr.bf16.mxu0 0
      %5993 = vmatpush1.bf16.msra.mxu0 0
      %5994 = vmatprep.subr.bf16.mxu0 0
      %5995 = vmatpush1.bf16.msra.mxu0 0
      %5996 = vmatprep.subr.bf16.mxu0 0
      %5997 = vmatpush1.bf16.msra.mxu0 0
      %5998 = vmatprep.subr.bf16.mxu0 0
      %5999 = vmatpush1.bf16.msra.mxu0 0
      %6000 = vmatprep.subr.bf16.mxu0 0
      %6001 = vmatpush1.bf16.msra.mxu0 %v5984
      %6002 = vmatprep.subr.bf16.mxu0 0
      %6003 = vmatpush2.bf16.msra.mxu0 0
      %6004 = vmatprep.subr.bf16.mxu0 0
      %6005 = vmatpush2.bf16.msra.mxu0 0
      %6006 = vmatprep.subr.bf16.mxu0 0
      %6007 = vmatpush2.bf16.msra.mxu0 0
      %6008 = vmatprep.subr.bf16.mxu0 0
      %6009 = vmatpush2.bf16.msra.mxu0 0
      %6010 = vmatprep.subr.bf16.mxu0 0
      %6011 = vmatpush2.bf16.msra.mxu0 0
      %6012 = vmatprep.subr.bf16.mxu0 0
      %6013 = vmatpush2.bf16.msra.mxu0 0
      %6014 = vmatprep.subr.bf16.mxu0 0
      %6015 = vmatpush2.bf16.msra.mxu0 0
      %6016 = vmatprep.subr.bf16.mxu0 0
      %6017 = vmatpush2.bf16.msra.mxu0 0
      %6018 = vmatprep.mubr.bf16.mxu0 0
      %6019 = vmatmul.mubr.bf16.gmra.mxu0 %v5924
      %v6020 = vpop.f32.mrf.mxu0
      %v6021 = vadd.f32 0.0, %v6020
      %v6022 = vpop.f32.mrf.mxu0
      %v6023 = vpop.f32.mrf.mxu0
      %v6024 = vadd.f32 0.0, %v6023
      %v6025 = vpop.f32.mrf.mxu0
      %6026 = vmatprep.mubr.bf16.mxu0 0
      %6027 = vmatmul.mubr.bf16.gmra.mxu0 %v5927
      %v6028 = vpop.f32.mrf.mxu0
      %v6029 = vadd.f32 0.0, %v6028
      %v6030 = vpop.f32.mrf.mxu0
      %v6031 = vpop.f32.mrf.mxu0
      %v6032 = vadd.f32 0.0, %v6031
      %v6033 = vpop.f32.mrf.mxu0
      %6034 = vmatprep.mubr.bf16.mxu0 0
      %6035 = vmatmul.mubr.bf16.gmra.mxu0 %v5930
      %v6036 = vpop.f32.mrf.mxu0
      %v6037 = vadd.f32 0.0, %v6036
      %v6038 = vpop.f32.mrf.mxu0
      %v6039 = vpop.f32.mrf.mxu0
      %v6040 = vadd.f32 0.0, %v6039
      %v6041 = vpop.f32.mrf.mxu0
      %6042 = vmatprep.mubr.bf16.mxu0 0
      %6043 = vmatmul.mubr.bf16.gmra.mxu0 %v5933
      %v6044 = vpop.f32.mrf.mxu0
      %v6045 = vadd.f32 0.0, %v6044
      %v6046 = vpop.f32.mrf.mxu0
      %v6047 = vpop.f32.mrf.mxu0
      %v6048 = vadd.f32 0.0, %v6047
      %v6049 = vpop.f32.mrf.mxu0
      %6050 = vmatprep.mubr.bf16.mxu0 0
      %6051 = vmatmul.mubr.bf16.gmra.mxu0 %v5936
      %v6052 = vpop.f32.mrf.mxu0
      %v6053 = vadd.f32 0.0, %v6052
      %v6054 = vpop.f32.mrf.mxu0
      %v6055 = vpop.f32.mrf.mxu0
      %v6056 = vadd.f32 0.0, %v6055
      %v6057 = vpop.f32.mrf.mxu0
      %6058 = vmatprep.mubr.bf16.mxu0 0
      %6059 = vmatmul.mubr.bf16.gmra.mxu0 %v5939
      %v6060 = vpop.f32.mrf.mxu0
      %v6061 = vadd.f32 0.0, %v6060
      %v6062 = vpop.f32.mrf.mxu0
      %v6063 = vpop.f32.mrf.mxu0
      %v6064 = vadd.f32 0.0, %v6063
      %v6065 = vpop.f32.mrf.mxu0
      %6066 = vmatprep.mubr.bf16.mxu0 0
      %6067 = vmatmul.mubr.bf16.gmra.mxu0 %v5942
      %v6068 = vpop.f32.mrf.mxu0
      %v6069 = vadd.f32 0.0, %v6068
      %v6070 = vpop.f32.mrf.mxu0
      %v6071 = vpop.f32.mrf.mxu0
      %v6072 = vadd.f32 0.0, %v6071
      %v6073 = vpop.f32.mrf.mxu0
      %6074 = vmatprep.mubr.bf16.mxu0 0
      %6075 = vmatmul.mubr.bf16.gmra.mxu0 %v5945
      %v6076 = vpop.f32.mrf.mxu0
      %v6077 = vadd.f32 0.0, %v6076
      %v6078 = vpop.f32.mrf.mxu0
      %v6079 = vpop.f32.mrf.mxu0
      %v6080 = vadd.f32 0.0, %v6079
      %v6081 = vpop.f32.mrf.mxu0
      %6082 = vmatprep.mubr.bf16.mxu0 0
      %6083 = vmatmul.mubr.bf16.gmra.mxu0 %v5948
      %v6084 = vpop.f32.mrf.mxu0
      %v6085 = vadd.f32 0.0, %v6084
      %v6086 = vpop.f32.mrf.mxu0
      %v6087 = vpop.f32.mrf.mxu0
      %v6088 = vadd.f32 0.0, %v6087
      %v6089 = vpop.f32.mrf.mxu0
      %6090 = vmatprep.mubr.bf16.mxu0 0
      %6091 = vmatmul.mubr.bf16.gmra.mxu0 %v5951
      %v6092 = vpop.f32.mrf.mxu0
      %v6093 = vadd.f32 0.0, %v6092
      %v6094 = vpop.f32.mrf.mxu0
      %v6095 = vpop.f32.mrf.mxu0
      %v6096 = vadd.f32 0.0, %v6095
      %v6097 = vpop.f32.mrf.mxu0
      %6098 = vmatprep.mubr.bf16.mxu0 0
      %6099 = vmatmul.mubr.bf16.gmra.mxu0 %v5954
      %v6100 = vpop.f32.mrf.mxu0
      %v6101 = vadd.f32 0.0, %v6100
      %v6102 = vpop.f32.mrf.mxu0
      %v6103 = vpop.f32.mrf.mxu0
      %v6104 = vadd.f32 0.0, %v6103
      %v6105 = vpop.f32.mrf.mxu0
      %6106 = vmatprep.mubr.bf16.mxu0 0
      %6107 = vmatmul.mubr.bf16.gmra.mxu0 %v5957
      %v6108 = vpop.f32.mrf.mxu0
      %v6109 = vadd.f32 0.0, %v6108
      %v6110 = vpop.f32.mrf.mxu0
      %v6111 = vpop.f32.mrf.mxu0
      %v6112 = vadd.f32 0.0, %v6111
      %v6113 = vpop.f32.mrf.mxu0
      %6114 = vmatprep.mubr.bf16.mxu0 0
      %6115 = vmatmul.mubr.bf16.gmra.mxu0 %v5960
      %v6116 = vpop.f32.mrf.mxu0
      %v6117 = vadd.f32 0.0, %v6116
      %v6118 = vpop.f32.mrf.mxu0
      %v6119 = vpop.f32.mrf.mxu0
      %v6120 = vadd.f32 0.0, %v6119
      %v6121 = vpop.f32.mrf.mxu0
      %6122 = vmatprep.mubr.bf16.mxu0 0
      %6123 = vmatmul.mubr.bf16.gmra.mxu0 %v5963
      %v6124 = vpop.f32.mrf.mxu0
      %v6125 = vadd.f32 0.0, %v6124
      %v6126 = vpop.f32.mrf.mxu0
      %v6127 = vpop.f32.mrf.mxu0
      %v6128 = vadd.f32 0.0, %v6127
      %v6129 = vpop.f32.mrf.mxu0
      %6130 = vmatprep.mubr.bf16.mxu0 0
      %6131 = vmatmul.mubr.bf16.gmra.mxu0 %v5966
      %v6132 = vpop.f32.mrf.mxu0
      %v6133 = vadd.f32 0.0, %v6132
      %v6134 = vpop.f32.mrf.mxu0
      %v6135 = vpop.f32.mrf.mxu0
      %v6136 = vadd.f32 0.0, %v6135
      %v6137 = vpop.f32.mrf.mxu0
      %6138 = vmatprep.mubr.bf16.mxu0 0
      %6139 = vmatmul.mubr.bf16.gmra.mxu0 %v5969
      %v6140 = vpop.f32.mrf.mxu0
      %v6141 = vadd.f32 0.0, %v6140
      %v6142 = vpop.f32.mrf.mxu0
      %v6143 = vpop.f32.mrf.mxu0
      %v6144 = vadd.f32 0.0, %v6143
      %v6145 = vpop.f32.mrf.mxu0
      %6146 = vmatprep.mubr.bf16.mxu0 0
      %6147 = vmatmul.mubr.bf16.gmra.mxu0 %v5972
      %v6148 = vpop.f32.mrf.mxu0
      %v6149 = vadd.f32 0.0, %v6148
      %v6150 = vpop.f32.mrf.mxu0
      %v6151 = vpop.f32.mrf.mxu0
      %v6152 = vadd.f32 0.0, %v6151
      %v6153 = vpop.f32.mrf.mxu0
      %6154 = vmatprep.mubr.bf16.mxu0 0
      %6155 = vmatmul.mubr.bf16.gmra.mxu0 %v5975
      %v6156 = vpop.f32.mrf.mxu0
      %v6157 = vadd.f32 0.0, %v6156
      %v6158 = vpop.f32.mrf.mxu0
      %v6159 = vpop.f32.mrf.mxu0
      %v6160 = vadd.f32 0.0, %v6159
      %v6161 = vpop.f32.mrf.mxu0
      %6162 = vmatprep.mubr.bf16.mxu0 0
      %6163 = vmatmul.mubr.bf16.gmra.mxu0 %v5978
      %v6164 = vpop.f32.mrf.mxu0
      %v6165 = vadd.f32 0.0, %v6164
      %v6166 = vpop.f32.mrf.mxu0
      %v6167 = vpop.f32.mrf.mxu0
      %v6168 = vadd.f32 0.0, %v6167
      %v6169 = vpop.f32.mrf.mxu0
      %6170 = vmatprep.mubr.bf16.mxu0 0
      %6171 = vmatmul.mubr.bf16.gmra.mxu0 %v5981
      %v6172 = vpop.f32.mrf.mxu0
      %v6173 = vadd.f32 0.0, %v6172
      %v6174 = vpop.f32.mrf.mxu0
      %v6175 = vpop.f32.mrf.mxu0
      %v6176 = vadd.f32 0.0, %v6175
      %v6177 = vpop.f32.mrf.mxu0
      %6178 = vdwg.mxu0
      %v6179 = vadd.f32 %v5836, %v6021
      %v6180 = vadd.f32 %v5837, %v6024
      %v6181 = vadd.f32 %v5838, %v6029
      %v6182 = vadd.f32 %v5839, %v6032
      %v6183 = vadd.f32 %v5840, %v6037
      %v6184 = vadd.f32 %v5841, %v6040
      %v6185 = vadd.f32 %v5842, %v6045
      %v6186 = vadd.f32 %v5843, %v6048
      %v6187 = vadd.f32 %v5844, %v6053
      %v6188 = vadd.f32 %v5845, %v6056
      %v6189 = vadd.f32 %v5846, %v6061
      %v6190 = vadd.f32 %v5847, %v6064
      %v6191 = vadd.f32 %v5848, %v6069
      %v6192 = vadd.f32 %v5849, %v6072
      %v6193 = vadd.f32 %v5850, %v6077
      %v6194 = vadd.f32 %v5851, %v6080
      %v6195 = vadd.f32 %v5852, %v6085
      %v6196 = vadd.f32 %v5853, %v6088
      %v6197 = vadd.f32 %v5854, %v6093
      %v6198 = vadd.f32 %v5855, %v6096
      %v6199 = vadd.f32 %v5856, %v6101
      %v6200 = vadd.f32 %v5857, %v6104
      %v6201 = vadd.f32 %v5858, %v6109
      %v6202 = vadd.f32 %v5859, %v6112
      %v6203 = vadd.f32 %v5860, %v6117
      %v6204 = vadd.f32 %v5861, %v6120
      %v6205 = vadd.f32 %v5862, %v6125
      %v6206 = vadd.f32 %v5863, %v6128
      %v6207 = vadd.f32 %v5864, %v6133
      %v6208 = vadd.f32 %v5865, %v6136
      %v6209 = vadd.f32 %v5866, %v6141
      %v6210 = vadd.f32 %v5867, %v6144
      %v6211 = vadd.f32 %v5868, %v6149
      %v6212 = vadd.f32 %v5869, %v6152
      %v6213 = vadd.f32 %v5870, %v6157
      %v6214 = vadd.f32 %v5871, %v6160
      %v6215 = vadd.f32 %v5872, %v6165
      %v6216 = vadd.f32 %v5873, %v6168
      %v6217 = vadd.f32 %v5874, %v6173
      %v6218 = vadd.f32 %v5875, %v6176
      %v6219 = vld [vmem:[%s165 + $0x1c] sm:$0xc]
      %v6220 = vld [vmem:[%s165 + $0x20] sm:$0xf]
      %v6221 = vld [vmem:[%s165 + $0x24] sm:$0xf]
      %v6222 = vld [vmem:[%s165 + $0x28] sm:$0xf]
      %v6223 = vld [vmem:[%s165 + $0x2c] sm:$0xf]
      %v6224 = vld [vmem:[%s165 + $0x30] sm:$0xf]
      %v6225 = vld [vmem:[%s165 + $0x34] sm:$0xf]
      %v6226 = vld [vmem:[%s165 + $0x38] sm:$0xf]
      %v6227 = vld [vmem:[%s165 + $0x3c] sm:$0xf]
      %v6228 = vld [vmem:[%s165 + $0x40] sm:$0xf]
      %v6229 = vld [vmem:[%s165 + $0x44] sm:$0xf]
      %v6230 = vld [vmem:[%s165 + $0x48] sm:$0xf]
      %v6231 = vld [vmem:[%s165 + $0x4c] sm:$0xf]
      %v6232 = vld [vmem:[%s165 + $0x50] sm:$0xf]
      %v6233 = vld [vmem:[%s165 + $0x54] sm:$0xf]
      %v6234 = vld [vmem:[%s165 + $0x58] sm:$0xf]
      %v6235 = vld [vmem:[%s165 + $0x5c] sm:$0xf]
      %v6236 = vld [vmem:[%s165 + $0x60] sm:$0xf]
      %v6237 = vld [vmem:[%s165 + $0x64] sm:$0xf]
      %v6238 = vld [vmem:[%s165 + $0x68] sm:$0xf]
      %v6239 = vld [vmem:[%s165 + $0x6c] sm:$0xf]
      %v6240 = vld [vmem:[%s165 + $0x70] sm:$0xf]
      %v6241 = vld [vmem:[%s165 + $0x74] sm:$0xf]
      %v6242 = vld [vmem:[%s165 + $0x78] sm:$0xf]
      %v6243 = vld [vmem:[%s165 + $0x7c] sm:$0xf]
      %v6244 = vld [vmem:[%s165 + $0x80] sm:$0xf]
      %v6245 = vld [vmem:[%s165 + $0x84] sm:$0xf]
      %v6246 = vld [vmem:[%s165 + $0x88] sm:$0xf]
      %v6247 = vld [vmem:[%s165 + $0x8c] sm:$0xf]
      %v6248 = vld [vmem:[%s165 + $0x90] sm:$0xf]
      %v6249 = vld [vmem:[%s165 + $0x94] sm:$0xf]
      %v6250 = vld [vmem:[%s165 + $0x98] sm:$0xf]
      %v6251 = vld [vmem:[%s165 + $0x9c] sm:$0xf]
      %v6252 = vld [vmem:[%s165 + $0xa0] sm:$0xf]
      %v6253 = vld [vmem:[%s165 + $0xa4] sm:$0xf]
      %v6254 = vld [vmem:[%s165 + $0xa8] sm:$0xf]
      %v6255 = vld [vmem:[%s165 + $0xac] sm:$0xf]
      %v6256 = vld [vmem:[%s165 + $0xb0] sm:$0xf]
      %v6257 = vld [vmem:[%s165 + $0xb4] sm:$0xf]
      %v6258 = vld [vmem:[%s165 + $0xb8] sm:$0xf]
      %v6259 = vld [vmem:[%s165 + $0xbc] sm:$0x3]
      %s6260 = scalar_lea.vmem %s1, 30
      %v6261 = vld [vmem:[%s6260] sm:$0x3]
      %v6303 = vunpack.c.l.b16 %v6219
      %v6304 = vunpack.c.l.b16 %v6220
      %v6305 = vunpack.c.l.b16 %v6221
      %v6306 = vunpack.c.l.b16 %v6222
      %v6307 = vunpack.c.l.b16 %v6223
      %v6308 = vunpack.c.l.b16 %v6224
      %v6309 = vunpack.c.l.b16 %v6225
      %v6310 = vunpack.c.l.b16 %v6226
      %v6311 = vunpack.c.l.b16 %v6227
      %v6312 = vunpack.c.l.b16 %v6228
      %v6313 = vunpack.c.l.b16 %v6229
      %v6314 = vunpack.c.l.b16 %v6230
      %v6315 = vunpack.c.l.b16 %v6231
      %v6316 = vunpack.c.l.b16 %v6232
      %v6317 = vunpack.c.l.b16 %v6233
      %v6318 = vunpack.c.l.b16 %v6234
      %v6319 = vunpack.c.l.b16 %v6235
      %v6320 = vunpack.c.l.b16 %v6236
      %v6321 = vunpack.c.l.b16 %v6237
      %v6322 = vunpack.c.l.b16 %v6238
      %v6323 = vunpack.c.l.b16 %v6239
      %v6324 = vunpack.c.l.b16 %v6240
      %v6325 = vunpack.c.l.b16 %v6241
      %v6326 = vunpack.c.l.b16 %v6242
      %v6327 = vunpack.c.l.b16 %v6243
      %v6328 = vunpack.c.l.b16 %v6244
      %v6329 = vunpack.c.l.b16 %v6245
      %v6330 = vunpack.c.l.b16 %v6246
      %v6331 = vunpack.c.l.b16 %v6247
      %v6332 = vunpack.c.l.b16 %v6248
      %v6333 = vunpack.c.l.b16 %v6249
      %v6334 = vunpack.c.l.b16 %v6250
      %v6335 = vunpack.c.l.b16 %v6251
      %v6336 = vunpack.c.l.b16 %v6252
      %v6337 = vunpack.c.l.b16 %v6253
      %v6338 = vunpack.c.l.b16 %v6254
      %v6339 = vunpack.c.l.b16 %v6255
      %v6340 = vunpack.c.l.b16 %v6256
      %v6341 = vunpack.c.l.b16 %v6257
      %v6342 = vunpack.c.l.b16 %v6258
      %v6343 = vunpack.c.l.b16 %v6259
      %v6344 = vpack.c.b16 %v6304, %v6303
      %v6345 = vpack.c.b16 %v6306, %v6305
      %v6346 = vpack.c.b16 %v6308, %v6307
      %v6347 = vpack.c.b16 %v6310, %v6309
      %v6348 = vpack.c.b16 %v6312, %v6311
      %v6349 = vpack.c.b16 %v6314, %v6313
      %v6350 = vpack.c.b16 %v6316, %v6315
      %v6351 = vpack.c.b16 %v6318, %v6317
      %v6352 = vpack.c.b16 %v6320, %v6319
      %v6353 = vpack.c.b16 %v6322, %v6321
      %v6354 = vpack.c.b16 %v6324, %v6323
      %v6355 = vpack.c.b16 %v6326, %v6325
      %v6356 = vpack.c.b16 %v6328, %v6327
      %v6357 = vpack.c.b16 %v6330, %v6329
      %v6358 = vpack.c.b16 %v6332, %v6331
      %v6359 = vpack.c.b16 %v6334, %v6333
      %v6360 = vpack.c.b16 %v6336, %v6335
      %v6361 = vpack.c.b16 %v6338, %v6337
      %v6362 = vpack.c.b16 %v6340, %v6339
      %v6363 = vpack.c.b16 %v6342, %v6341
      %v6364 = vpack.c.b16 %v6343, %v6343
      %v6365 = vrot.slane %v6344, 2
      %v6366 = vrot.slane %v6345, 2
      %v6367 = vsel %vm1724, %v6365, %v6366
      %v6368 = vrot.slane %v6346, 2
      %v6369 = vsel %vm1724, %v6366, %v6368
      %v6370 = vrot.slane %v6347, 2
      %v6371 = vsel %vm1724, %v6368, %v6370
      %v6372 = vrot.slane %v6348, 2
      %v6373 = vsel %vm1724, %v6370, %v6372
      %v6374 = vrot.slane %v6349, 2
      %v6375 = vsel %vm1724, %v6372, %v6374
      %v6376 = vrot.slane %v6350, 2
      %v6377 = vsel %vm1724, %v6374, %v6376
      %v6378 = vrot.slane %v6351, 2
      %v6379 = vsel %vm1724, %v6376, %v6378
      %v6380 = vrot.slane %v6352, 2
      %v6381 = vsel %vm1724, %v6378, %v6380
      %v6382 = vrot.slane %v6353, 2
      %v6383 = vsel %vm1724, %v6380, %v6382
      %v6384 = vrot.slane %v6354, 2
      %v6385 = vsel %vm1724, %v6382, %v6384
      %v6386 = vrot.slane %v6355, 2
      %v6387 = vsel %vm1724, %v6384, %v6386
      %v6388 = vrot.slane %v6356, 2
      %v6389 = vsel %vm1724, %v6386, %v6388
      %v6390 = vrot.slane %v6357, 2
      %v6391 = vsel %vm1724, %v6388, %v6390
      %v6392 = vrot.slane %v6358, 2
      %v6393 = vsel %vm1724, %v6390, %v6392
      %v6394 = vrot.slane %v6359, 2
      %v6395 = vsel %vm1724, %v6392, %v6394
      %v6396 = vrot.slane %v6360, 2
      %v6397 = vsel %vm1724, %v6394, %v6396
      %v6398 = vrot.slane %v6361, 2
      %v6399 = vsel %vm1724, %v6396, %v6398
      %v6400 = vrot.slane %v6362, 2
      %v6401 = vsel %vm1724, %v6398, %v6400
      %v6402 = vrot.slane %v6363, 2
      %v6403 = vsel %vm1724, %v6400, %v6402
      %v6404 = vrot.slane %v6364, 2
      %v6405 = vsel %vm1724, %v6402, %v6404
      %v6407 = vsel %vm484, %v6367, 0
      %v6410 = vsel %vm484, %v6369, 0
      %v6413 = vsel %vm484, %v6371, 0
      %v6416 = vsel %vm484, %v6373, 0
      %v6419 = vsel %vm484, %v6375, 0
      %v6422 = vsel %vm484, %v6377, 0
      %v6425 = vsel %vm484, %v6379, 0
      %v6428 = vsel %vm484, %v6381, 0
      %v6431 = vsel %vm484, %v6383, 0
      %v6434 = vsel %vm484, %v6385, 0
      %v6437 = vsel %vm484, %v6387, 0
      %v6440 = vsel %vm484, %v6389, 0
      %v6443 = vsel %vm484, %v6391, 0
      %v6446 = vsel %vm484, %v6393, 0
      %v6449 = vsel %vm484, %v6395, 0
      %v6452 = vsel %vm484, %v6397, 0
      %v6455 = vsel %vm484, %v6399, 0
      %v6458 = vsel %vm484, %v6401, 0
      %v6461 = vsel %vm484, %v6403, 0
      %v6464 = vsel %vm484, %v6405, 0
      %v6467 = vsel %vm545, %v6261, 0
      %6469 = vmatprep.subr.bf16.mxu0 0
      %6470 = vmatpush1.bf16.msra.mxu0 0
      %6471 = vmatprep.subr.bf16.mxu0 0
      %6472 = vmatpush1.bf16.msra.mxu0 0
      %6473 = vmatprep.subr.bf16.mxu0 0
      %6474 = vmatpush1.bf16.msra.mxu0 0
      %6475 = vmatprep.subr.bf16.mxu0 0
      %6476 = vmatpush1.bf16.msra.mxu0 0
      %6477 = vmatprep.subr.bf16.mxu0 0
      %6478 = vmatpush1.bf16.msra.mxu0 0
      %6479 = vmatprep.subr.bf16.mxu0 0
      %6480 = vmatpush1.bf16.msra.mxu0 0
      %6481 = vmatprep.subr.bf16.mxu0 0
      %6482 = vmatpush1.bf16.msra.mxu0 0
      %6483 = vmatprep.subr.bf16.mxu0 0
      %6484 = vmatpush1.bf16.msra.mxu0 %v6467
      %6485 = vmatprep.subr.bf16.mxu0 0
      %6486 = vmatpush2.bf16.msra.mxu0 0
      %6487 = vmatprep.subr.bf16.mxu0 0
      %6488 = vmatpush2.bf16.msra.mxu0 0
      %6489 = vmatprep.subr.bf16.mxu0 0
      %6490 = vmatpush2.bf16.msra.mxu0 0
      %6491 = vmatprep.subr.bf16.mxu0 0
      %6492 = vmatpush2.bf16.msra.mxu0 0
      %6493 = vmatprep.subr.bf16.mxu0 0
      %6494 = vmatpush2.bf16.msra.mxu0 0
      %6495 = vmatprep.subr.bf16.mxu0 0
      %6496 = vmatpush2.bf16.msra.mxu0 0
      %6497 = vmatprep.subr.bf16.mxu0 0
      %6498 = vmatpush2.bf16.msra.mxu0 0
      %6499 = vmatprep.subr.bf16.mxu0 0
      %6500 = vmatpush2.bf16.msra.mxu0 0
      %6501 = vmatprep.mubr.bf16.mxu0 0
      %6502 = vmatmul.mubr.bf16.gmra.mxu0 %v6407
      %v6503 = vpop.f32.mrf.mxu0
      %v6504 = vadd.f32 0.0, %v6503
      %v6505 = vpop.f32.mrf.mxu0
      %v6506 = vpop.f32.mrf.mxu0
      %v6507 = vadd.f32 0.0, %v6506
      %v6508 = vpop.f32.mrf.mxu0
      %6509 = vmatprep.mubr.bf16.mxu0 0
      %6510 = vmatmul.mubr.bf16.gmra.mxu0 %v6410
      %v6511 = vpop.f32.mrf.mxu0
      %v6512 = vadd.f32 0.0, %v6511
      %v6513 = vpop.f32.mrf.mxu0
      %v6514 = vpop.f32.mrf.mxu0
      %v6515 = vadd.f32 0.0, %v6514
      %v6516 = vpop.f32.mrf.mxu0
      %6517 = vmatprep.mubr.bf16.mxu0 0
      %6518 = vmatmul.mubr.bf16.gmra.mxu0 %v6413
      %v6519 = vpop.f32.mrf.mxu0
      %v6520 = vadd.f32 0.0, %v6519
      %v6521 = vpop.f32.mrf.mxu0
      %v6522 = vpop.f32.mrf.mxu0
      %v6523 = vadd.f32 0.0, %v6522
      %v6524 = vpop.f32.mrf.mxu0
      %6525 = vmatprep.mubr.bf16.mxu0 0
      %6526 = vmatmul.mubr.bf16.gmra.mxu0 %v6416
      %v6527 = vpop.f32.mrf.mxu0
      %v6528 = vadd.f32 0.0, %v6527
      %v6529 = vpop.f32.mrf.mxu0
      %v6530 = vpop.f32.mrf.mxu0
      %v6531 = vadd.f32 0.0, %v6530
      %v6532 = vpop.f32.mrf.mxu0
      %6533 = vmatprep.mubr.bf16.mxu0 0
      %6534 = vmatmul.mubr.bf16.gmra.mxu0 %v6419
      %v6535 = vpop.f32.mrf.mxu0
      %v6536 = vadd.f32 0.0, %v6535
      %v6537 = vpop.f32.mrf.mxu0
      %v6538 = vpop.f32.mrf.mxu0
      %v6539 = vadd.f32 0.0, %v6538
      %v6540 = vpop.f32.mrf.mxu0
      %6541 = vmatprep.mubr.bf16.mxu0 0
      %6542 = vmatmul.mubr.bf16.gmra.mxu0 %v6422
      %v6543 = vpop.f32.mrf.mxu0
      %v6544 = vadd.f32 0.0, %v6543
      %v6545 = vpop.f32.mrf.mxu0
      %v6546 = vpop.f32.mrf.mxu0
      %v6547 = vadd.f32 0.0, %v6546
      %v6548 = vpop.f32.mrf.mxu0
      %6549 = vmatprep.mubr.bf16.mxu0 0
      %6550 = vmatmul.mubr.bf16.gmra.mxu0 %v6425
      %v6551 = vpop.f32.mrf.mxu0
      %v6552 = vadd.f32 0.0, %v6551
      %v6553 = vpop.f32.mrf.mxu0
      %v6554 = vpop.f32.mrf.mxu0
      %v6555 = vadd.f32 0.0, %v6554
      %v6556 = vpop.f32.mrf.mxu0
      %6557 = vmatprep.mubr.bf16.mxu0 0
      %6558 = vmatmul.mubr.bf16.gmra.mxu0 %v6428
      %v6559 = vpop.f32.mrf.mxu0
      %v6560 = vadd.f32 0.0, %v6559
      %v6561 = vpop.f32.mrf.mxu0
      %v6562 = vpop.f32.mrf.mxu0
      %v6563 = vadd.f32 0.0, %v6562
      %v6564 = vpop.f32.mrf.mxu0
      %6565 = vmatprep.mubr.bf16.mxu0 0
      %6566 = vmatmul.mubr.bf16.gmra.mxu0 %v6431
      %v6567 = vpop.f32.mrf.mxu0
      %v6568 = vadd.f32 0.0, %v6567
      %v6569 = vpop.f32.mrf.mxu0
      %v6570 = vpop.f32.mrf.mxu0
      %v6571 = vadd.f32 0.0, %v6570
      %v6572 = vpop.f32.mrf.mxu0
      %6573 = vmatprep.mubr.bf16.mxu0 0
      %6574 = vmatmul.mubr.bf16.gmra.mxu0 %v6434
      %v6575 = vpop.f32.mrf.mxu0
      %v6576 = vadd.f32 0.0, %v6575
      %v6577 = vpop.f32.mrf.mxu0
      %v6578 = vpop.f32.mrf.mxu0
      %v6579 = vadd.f32 0.0, %v6578
      %v6580 = vpop.f32.mrf.mxu0
      %6581 = vmatprep.mubr.bf16.mxu0 0
      %6582 = vmatmul.mubr.bf16.gmra.mxu0 %v6437
      %v6583 = vpop.f32.mrf.mxu0
      %v6584 = vadd.f32 0.0, %v6583
      %v6585 = vpop.f32.mrf.mxu0
      %v6586 = vpop.f32.mrf.mxu0
      %v6587 = vadd.f32 0.0, %v6586
      %v6588 = vpop.f32.mrf.mxu0
      %6589 = vmatprep.mubr.bf16.mxu0 0
      %6590 = vmatmul.mubr.bf16.gmra.mxu0 %v6440
      %v6591 = vpop.f32.mrf.mxu0
      %v6592 = vadd.f32 0.0, %v6591
      %v6593 = vpop.f32.mrf.mxu0
      %v6594 = vpop.f32.mrf.mxu0
      %v6595 = vadd.f32 0.0, %v6594
      %v6596 = vpop.f32.mrf.mxu0
      %6597 = vmatprep.mubr.bf16.mxu0 0
      %6598 = vmatmul.mubr.bf16.gmra.mxu0 %v6443
      %v6599 = vpop.f32.mrf.mxu0
      %v6600 = vadd.f32 0.0, %v6599
      %v6601 = vpop.f32.mrf.mxu0
      %v6602 = vpop.f32.mrf.mxu0
      %v6603 = vadd.f32 0.0, %v6602
      %v6604 = vpop.f32.mrf.mxu0
      %6605 = vmatprep.mubr.bf16.mxu0 0
      %6606 = vmatmul.mubr.bf16.gmra.mxu0 %v6446
      %v6607 = vpop.f32.mrf.mxu0
      %v6608 = vadd.f32 0.0, %v6607
      %v6609 = vpop.f32.mrf.mxu0
      %v6610 = vpop.f32.mrf.mxu0
      %v6611 = vadd.f32 0.0, %v6610
      %v6612 = vpop.f32.mrf.mxu0
      %6613 = vmatprep.mubr.bf16.mxu0 0
      %6614 = vmatmul.mubr.bf16.gmra.mxu0 %v6449
      %v6615 = vpop.f32.mrf.mxu0
      %v6616 = vadd.f32 0.0, %v6615
      %v6617 = vpop.f32.mrf.mxu0
      %v6618 = vpop.f32.mrf.mxu0
      %v6619 = vadd.f32 0.0, %v6618
      %v6620 = vpop.f32.mrf.mxu0
      %6621 = vmatprep.mubr.bf16.mxu0 0
      %6622 = vmatmul.mubr.bf16.gmra.mxu0 %v6452
      %v6623 = vpop.f32.mrf.mxu0
      %v6624 = vadd.f32 0.0, %v6623
      %v6625 = vpop.f32.mrf.mxu0
      %v6626 = vpop.f32.mrf.mxu0
      %v6627 = vadd.f32 0.0, %v6626
      %v6628 = vpop.f32.mrf.mxu0
      %6629 = vmatprep.mubr.bf16.mxu0 0
      %6630 = vmatmul.mubr.bf16.gmra.mxu0 %v6455
      %v6631 = vpop.f32.mrf.mxu0
      %v6632 = vadd.f32 0.0, %v6631
      %v6633 = vpop.f32.mrf.mxu0
      %v6634 = vpop.f32.mrf.mxu0
      %v6635 = vadd.f32 0.0, %v6634
      %v6636 = vpop.f32.mrf.mxu0
      %6637 = vmatprep.mubr.bf16.mxu0 0
      %6638 = vmatmul.mubr.bf16.gmra.mxu0 %v6458
      %v6639 = vpop.f32.mrf.mxu0
      %v6640 = vadd.f32 0.0, %v6639
      %v6641 = vpop.f32.mrf.mxu0
      %v6642 = vpop.f32.mrf.mxu0
      %v6643 = vadd.f32 0.0, %v6642
      %v6644 = vpop.f32.mrf.mxu0
      %6645 = vmatprep.mubr.bf16.mxu0 0
      %6646 = vmatmul.mubr.bf16.gmra.mxu0 %v6461
      %v6647 = vpop.f32.mrf.mxu0
      %v6648 = vadd.f32 0.0, %v6647
      %v6649 = vpop.f32.mrf.mxu0
      %v6650 = vpop.f32.mrf.mxu0
      %v6651 = vadd.f32 0.0, %v6650
      %v6652 = vpop.f32.mrf.mxu0
      %6653 = vmatprep.mubr.bf16.mxu0 0
      %6654 = vmatmul.mubr.bf16.gmra.mxu0 %v6464
      %v6655 = vpop.f32.mrf.mxu0
      %v6656 = vadd.f32 0.0, %v6655
      %v6657 = vpop.f32.mrf.mxu0
      %v6658 = vpop.f32.mrf.mxu0
      %v6659 = vadd.f32 0.0, %v6658
      %v6660 = vpop.f32.mrf.mxu0
      %6661 = vdwg.mxu0
      %v6662 = vadd.f32 %v6179, %v6504
      %v6663 = vadd.f32 %v6180, %v6507
      %v6664 = vadd.f32 %v6181, %v6512
      %v6665 = vadd.f32 %v6182, %v6515
      %v6666 = vadd.f32 %v6183, %v6520
      %v6667 = vadd.f32 %v6184, %v6523
      %v6668 = vadd.f32 %v6185, %v6528
      %v6669 = vadd.f32 %v6186, %v6531
      %v6670 = vadd.f32 %v6187, %v6536
      %v6671 = vadd.f32 %v6188, %v6539
      %v6672 = vadd.f32 %v6189, %v6544
      %v6673 = vadd.f32 %v6190, %v6547
      %v6674 = vadd.f32 %v6191, %v6552
      %v6675 = vadd.f32 %v6192, %v6555
      %v6676 = vadd.f32 %v6193, %v6560
      %v6677 = vadd.f32 %v6194, %v6563
      %v6678 = vadd.f32 %v6195, %v6568
      %v6679 = vadd.f32 %v6196, %v6571
      %v6680 = vadd.f32 %v6197, %v6576
      %v6681 = vadd.f32 %v6198, %v6579
      %v6682 = vadd.f32 %v6199, %v6584
      %v6683 = vadd.f32 %v6200, %v6587
      %v6684 = vadd.f32 %v6201, %v6592
      %v6685 = vadd.f32 %v6202, %v6595
      %v6686 = vadd.f32 %v6203, %v6600
      %v6687 = vadd.f32 %v6204, %v6603
      %v6688 = vadd.f32 %v6205, %v6608
      %v6689 = vadd.f32 %v6206, %v6611
      %v6690 = vadd.f32 %v6207, %v6616
      %v6691 = vadd.f32 %v6208, %v6619
      %v6692 = vadd.f32 %v6209, %v6624
      %v6693 = vadd.f32 %v6210, %v6627
      %v6694 = vadd.f32 %v6211, %v6632
      %v6695 = vadd.f32 %v6212, %v6635
      %v6696 = vadd.f32 %v6213, %v6640
      %v6697 = vadd.f32 %v6214, %v6643
      %v6698 = vadd.f32 %v6215, %v6648
      %v6699 = vadd.f32 %v6216, %v6651
      %v6700 = vadd.f32 %v6217, %v6656
      %v6701 = vadd.f32 %v6218, %v6659
      %v6702 = vld [vmem:[%s165 + $0xbc] sm:$0x7]
      %s6703 = scalar_lea.vmem %s1, 32
      %v6704 = vld [vmem:[%s6703] sm:$0x3]
      %v6706 = vunpack.c.l.b16 %v6702
      %v6707 = vpack.c.b16 %v6706, %v6706
      %v6709 = vshrl.u32 %v6344, 16
      %v6711 = vrot.slane %v6709, 2
      %v6712 = vshll.u32 %v6344, 16
      %v6714 = vrot.slane %v6712, 3
      %v6715 = vor.u32 %v6711, %v6714
      %v6717 = vshrl.u32 %v6345, 16
      %v6719 = vrot.slane %v6717, 2
      %v6720 = vshll.u32 %v6345, 16
      %v6722 = vrot.slane %v6720, 3
      %v6723 = vor.u32 %v6719, %v6722
      %v6724 = vsel %vm2551, %v6715, %v6723
      %v6726 = vshrl.u32 %v6346, 16
      %v6728 = vrot.slane %v6726, 2
      %v6729 = vshll.u32 %v6346, 16
      %v6731 = vrot.slane %v6729, 3
      %v6732 = vor.u32 %v6728, %v6731
      %v6733 = vsel %vm2551, %v6723, %v6732
      %v6735 = vshrl.u32 %v6347, 16
      %v6737 = vrot.slane %v6735, 2
      %v6738 = vshll.u32 %v6347, 16
      %v6740 = vrot.slane %v6738, 3
      %v6741 = vor.u32 %v6737, %v6740
      %v6742 = vsel %vm2551, %v6732, %v6741
      %v6744 = vshrl.u32 %v6348, 16
      %v6746 = vrot.slane %v6744, 2
      %v6747 = vshll.u32 %v6348, 16
      %v6749 = vrot.slane %v6747, 3
      %v6750 = vor.u32 %v6746, %v6749
      %v6751 = vsel %vm2551, %v6741, %v6750
      %v6753 = vshrl.u32 %v6349, 16
      %v6755 = vrot.slane %v6753, 2
      %v6756 = vshll.u32 %v6349, 16
      %v6758 = vrot.slane %v6756, 3
      %v6759 = vor.u32 %v6755, %v6758
      %v6760 = vsel %vm2551, %v6750, %v6759
      %v6762 = vshrl.u32 %v6350, 16
      %v6764 = vrot.slane %v6762, 2
      %v6765 = vshll.u32 %v6350, 16
      %v6767 = vrot.slane %v6765, 3
      %v6768 = vor.u32 %v6764, %v6767
      %v6769 = vsel %vm2551, %v6759, %v6768
      %v6771 = vshrl.u32 %v6351, 16
      %v6773 = vrot.slane %v6771, 2
      %v6774 = vshll.u32 %v6351, 16
      %v6776 = vrot.slane %v6774, 3
      %v6777 = vor.u32 %v6773, %v6776
      %v6778 = vsel %vm2551, %v6768, %v6777
      %v6780 = vshrl.u32 %v6352, 16
      %v6782 = vrot.slane %v6780, 2
      %v6783 = vshll.u32 %v6352, 16
      %v6785 = vrot.slane %v6783, 3
      %v6786 = vor.u32 %v6782, %v6785
      %v6787 = vsel %vm2551, %v6777, %v6786
      %v6789 = vshrl.u32 %v6353, 16
      %v6791 = vrot.slane %v6789, 2
      %v6792 = vshll.u32 %v6353, 16
      %v6794 = vrot.slane %v6792, 3
      %v6795 = vor.u32 %v6791, %v6794
      %v6796 = vsel %vm2551, %v6786, %v6795
      %v6798 = vshrl.u32 %v6354, 16
      %v6800 = vrot.slane %v6798, 2
      %v6801 = vshll.u32 %v6354, 16
      %v6803 = vrot.slane %v6801, 3
      %v6804 = vor.u32 %v6800, %v6803
      %v6805 = vsel %vm2551, %v6795, %v6804
      %v6807 = vshrl.u32 %v6355, 16
      %v6809 = vrot.slane %v6807, 2
      %v6810 = vshll.u32 %v6355, 16
      %v6812 = vrot.slane %v6810, 3
      %v6813 = vor.u32 %v6809, %v6812
      %v6814 = vsel %vm2551, %v6804, %v6813
      %v6816 = vshrl.u32 %v6356, 16
      %v6818 = vrot.slane %v6816, 2
      %v6819 = vshll.u32 %v6356, 16
      %v6821 = vrot.slane %v6819, 3
      %v6822 = vor.u32 %v6818, %v6821
      %v6823 = vsel %vm2551, %v6813, %v6822
      %v6825 = vshrl.u32 %v6357, 16
      %v6827 = vrot.slane %v6825, 2
      %v6828 = vshll.u32 %v6357, 16
      %v6830 = vrot.slane %v6828, 3
      %v6831 = vor.u32 %v6827, %v6830
      %v6832 = vsel %vm2551, %v6822, %v6831
      %v6834 = vshrl.u32 %v6358, 16
      %v6836 = vrot.slane %v6834, 2
      %v6837 = vshll.u32 %v6358, 16
      %v6839 = vrot.slane %v6837, 3
      %v6840 = vor.u32 %v6836, %v6839
      %v6841 = vsel %vm2551, %v6831, %v6840
      %v6843 = vshrl.u32 %v6359, 16
      %v6845 = vrot.slane %v6843, 2
      %v6846 = vshll.u32 %v6359, 16
      %v6848 = vrot.slane %v6846, 3
      %v6849 = vor.u32 %v6845, %v6848
      %v6850 = vsel %vm2551, %v6840, %v6849
      %v6852 = vshrl.u32 %v6360, 16
      %v6854 = vrot.slane %v6852, 2
      %v6855 = vshll.u32 %v6360, 16
      %v6857 = vrot.slane %v6855, 3
      %v6858 = vor.u32 %v6854, %v6857
      %v6859 = vsel %vm2551, %v6849, %v6858
      %v6861 = vshrl.u32 %v6361, 16
      %v6863 = vrot.slane %v6861, 2
      %v6864 = vshll.u32 %v6361, 16
      %v6866 = vrot.slane %v6864, 3
      %v6867 = vor.u32 %v6863, %v6866
      %v6868 = vsel %vm2551, %v6858, %v6867
      %v6870 = vshrl.u32 %v6362, 16
      %v6872 = vrot.slane %v6870, 2
      %v6873 = vshll.u32 %v6362, 16
      %v6875 = vrot.slane %v6873, 3
      %v6876 = vor.u32 %v6872, %v6875
      %v6877 = vsel %vm2551, %v6867, %v6876
      %v6879 = vshrl.u32 %v6363, 16
      %v6881 = vrot.slane %v6879, 2
      %v6882 = vshll.u32 %v6363, 16
      %v6884 = vrot.slane %v6882, 3
      %v6885 = vor.u32 %v6881, %v6884
      %v6886 = vsel %vm2551, %v6876, %v6885
      %v6888 = vshrl.u32 %v6707, 16
      %v6890 = vrot.slane %v6888, 2
      %v6891 = vshll.u32 %v6707, 16
      %v6893 = vrot.slane %v6891, 3
      %v6894 = vor.u32 %v6890, %v6893
      %v6895 = vsel %vm2551, %v6885, %v6894
      %v6897 = vsel %vm484, %v6724, 0
      %v6900 = vsel %vm484, %v6733, 0
      %v6903 = vsel %vm484, %v6742, 0
      %v6906 = vsel %vm484, %v6751, 0
      %v6909 = vsel %vm484, %v6760, 0
      %v6912 = vsel %vm484, %v6769, 0
      %v6915 = vsel %vm484, %v6778, 0
      %v6918 = vsel %vm484, %v6787, 0
      %v6921 = vsel %vm484, %v6796, 0
      %v6924 = vsel %vm484, %v6805, 0
      %v6927 = vsel %vm484, %v6814, 0
      %v6930 = vsel %vm484, %v6823, 0
      %v6933 = vsel %vm484, %v6832, 0
      %v6936 = vsel %vm484, %v6841, 0
      %v6939 = vsel %vm484, %v6850, 0
      %v6942 = vsel %vm484, %v6859, 0
      %v6945 = vsel %vm484, %v6868, 0
      %v6948 = vsel %vm484, %v6877, 0
      %v6951 = vsel %vm484, %v6886, 0
      %v6954 = vsel %vm484, %v6895, 0
      %v6957 = vsel %vm545, %v6704, 0
      %6959 = vmatprep.subr.bf16.mxu0 0
      %6960 = vmatpush1.bf16.msra.mxu0 0
      %6961 = vmatprep.subr.bf16.mxu0 0
      %6962 = vmatpush1.bf16.msra.mxu0 0
      %6963 = vmatprep.subr.bf16.mxu0 0
      %6964 = vmatpush1.bf16.msra.mxu0 0
      %6965 = vmatprep.subr.bf16.mxu0 0
      %6966 = vmatpush1.bf16.msra.mxu0 0
      %6967 = vmatprep.subr.bf16.mxu0 0
      %6968 = vmatpush1.bf16.msra.mxu0 0
      %6969 = vmatprep.subr.bf16.mxu0 0
      %6970 = vmatpush1.bf16.msra.mxu0 0
      %6971 = vmatprep.subr.bf16.mxu0 0
      %6972 = vmatpush1.bf16.msra.mxu0 0
      %6973 = vmatprep.subr.bf16.mxu0 0
      %6974 = vmatpush1.bf16.msra.mxu0 %v6957
      %6975 = vmatprep.subr.bf16.mxu0 0
      %6976 = vmatpush2.bf16.msra.mxu0 0
      %6977 = vmatprep.subr.bf16.mxu0 0
      %6978 = vmatpush2.bf16.msra.mxu0 0
      %6979 = vmatprep.subr.bf16.mxu0 0
      %6980 = vmatpush2.bf16.msra.mxu0 0
      %6981 = vmatprep.subr.bf16.mxu0 0
      %6982 = vmatpush2.bf16.msra.mxu0 0
      %6983 = vmatprep.subr.bf16.mxu0 0
      %6984 = vmatpush2.bf16.msra.mxu0 0
      %6985 = vmatprep.subr.bf16.mxu0 0
      %6986 = vmatpush2.bf16.msra.mxu0 0
      %6987 = vmatprep.subr.bf16.mxu0 0
      %6988 = vmatpush2.bf16.msra.mxu0 0
      %6989 = vmatprep.subr.bf16.mxu0 0
      %6990 = vmatpush2.bf16.msra.mxu0 0
      %6991 = vmatprep.mubr.bf16.mxu0 0
      %6992 = vmatmul.mubr.bf16.gmra.mxu0 %v6897
      %v6993 = vpop.f32.mrf.mxu0
      %v6994 = vadd.f32 0.0, %v6993
      %v6995 = vpop.f32.mrf.mxu0
      %v6996 = vpop.f32.mrf.mxu0
      %v6997 = vadd.f32 0.0, %v6996
      %v6998 = vpop.f32.mrf.mxu0
      %6999 = vmatprep.mubr.bf16.mxu0 0
      %7000 = vmatmul.mubr.bf16.gmra.mxu0 %v6900
      %v7001 = vpop.f32.mrf.mxu0
      %v7002 = vadd.f32 0.0, %v7001
      %v7003 = vpop.f32.mrf.mxu0
      %v7004 = vpop.f32.mrf.mxu0
      %v7005 = vadd.f32 0.0, %v7004
      %v7006 = vpop.f32.mrf.mxu0
      %7007 = vmatprep.mubr.bf16.mxu0 0
      %7008 = vmatmul.mubr.bf16.gmra.mxu0 %v6903
      %v7009 = vpop.f32.mrf.mxu0
      %v7010 = vadd.f32 0.0, %v7009
      %v7011 = vpop.f32.mrf.mxu0
      %v7012 = vpop.f32.mrf.mxu0
      %v7013 = vadd.f32 0.0, %v7012
      %v7014 = vpop.f32.mrf.mxu0
      %7015 = vmatprep.mubr.bf16.mxu0 0
      %7016 = vmatmul.mubr.bf16.gmra.mxu0 %v6906
      %v7017 = vpop.f32.mrf.mxu0
      %v7018 = vadd.f32 0.0, %v7017
      %v7019 = vpop.f32.mrf.mxu0
      %v7020 = vpop.f32.mrf.mxu0
      %v7021 = vadd.f32 0.0, %v7020
      %v7022 = vpop.f32.mrf.mxu0
      %7023 = vmatprep.mubr.bf16.mxu0 0
      %7024 = vmatmul.mubr.bf16.gmra.mxu0 %v6909
      %v7025 = vpop.f32.mrf.mxu0
      %v7026 = vadd.f32 0.0, %v7025
      %v7027 = vpop.f32.mrf.mxu0
      %v7028 = vpop.f32.mrf.mxu0
      %v7029 = vadd.f32 0.0, %v7028
      %v7030 = vpop.f32.mrf.mxu0
      %7031 = vmatprep.mubr.bf16.mxu0 0
      %7032 = vmatmul.mubr.bf16.gmra.mxu0 %v6912
      %v7033 = vpop.f32.mrf.mxu0
      %v7034 = vadd.f32 0.0, %v7033
      %v7035 = vpop.f32.mrf.mxu0
      %v7036 = vpop.f32.mrf.mxu0
      %v7037 = vadd.f32 0.0, %v7036
      %v7038 = vpop.f32.mrf.mxu0
      %7039 = vmatprep.mubr.bf16.mxu0 0
      %7040 = vmatmul.mubr.bf16.gmra.mxu0 %v6915
      %v7041 = vpop.f32.mrf.mxu0
      %v7042 = vadd.f32 0.0, %v7041
      %v7043 = vpop.f32.mrf.mxu0
      %v7044 = vpop.f32.mrf.mxu0
      %v7045 = vadd.f32 0.0, %v7044
      %v7046 = vpop.f32.mrf.mxu0
      %7047 = vmatprep.mubr.bf16.mxu0 0
      %7048 = vmatmul.mubr.bf16.gmra.mxu0 %v6918
      %v7049 = vpop.f32.mrf.mxu0
      %v7050 = vadd.f32 0.0, %v7049
      %v7051 = vpop.f32.mrf.mxu0
      %v7052 = vpop.f32.mrf.mxu0
      %v7053 = vadd.f32 0.0, %v7052
      %v7054 = vpop.f32.mrf.mxu0
      %7055 = vmatprep.mubr.bf16.mxu0 0
      %7056 = vmatmul.mubr.bf16.gmra.mxu0 %v6921
      %v7057 = vpop.f32.mrf.mxu0
      %v7058 = vadd.f32 0.0, %v7057
      %v7059 = vpop.f32.mrf.mxu0
      %v7060 = vpop.f32.mrf.mxu0
      %v7061 = vadd.f32 0.0, %v7060
      %v7062 = vpop.f32.mrf.mxu0
      %7063 = vmatprep.mubr.bf16.mxu0 0
      %7064 = vmatmul.mubr.bf16.gmra.mxu0 %v6924
      %v7065 = vpop.f32.mrf.mxu0
      %v7066 = vadd.f32 0.0, %v7065
      %v7067 = vpop.f32.mrf.mxu0
      %v7068 = vpop.f32.mrf.mxu0
      %v7069 = vadd.f32 0.0, %v7068
      %v7070 = vpop.f32.mrf.mxu0
      %7071 = vmatprep.mubr.bf16.mxu0 0
      %7072 = vmatmul.mubr.bf16.gmra.mxu0 %v6927
      %v7073 = vpop.f32.mrf.mxu0
      %v7074 = vadd.f32 0.0, %v7073
      %v7075 = vpop.f32.mrf.mxu0
      %v7076 = vpop.f32.mrf.mxu0
      %v7077 = vadd.f32 0.0, %v7076
      %v7078 = vpop.f32.mrf.mxu0
      %7079 = vmatprep.mubr.bf16.mxu0 0
      %7080 = vmatmul.mubr.bf16.gmra.mxu0 %v6930
      %v7081 = vpop.f32.mrf.mxu0
      %v7082 = vadd.f32 0.0, %v7081
      %v7083 = vpop.f32.mrf.mxu0
      %v7084 = vpop.f32.mrf.mxu0
      %v7085 = vadd.f32 0.0, %v7084
      %v7086 = vpop.f32.mrf.mxu0
      %7087 = vmatprep.mubr.bf16.mxu0 0
      %7088 = vmatmul.mubr.bf16.gmra.mxu0 %v6933
      %v7089 = vpop.f32.mrf.mxu0
      %v7090 = vadd.f32 0.0, %v7089
      %v7091 = vpop.f32.mrf.mxu0
      %v7092 = vpop.f32.mrf.mxu0
      %v7093 = vadd.f32 0.0, %v7092
      %v7094 = vpop.f32.mrf.mxu0
      %7095 = vmatprep.mubr.bf16.mxu0 0
      %7096 = vmatmul.mubr.bf16.gmra.mxu0 %v6936
      %v7097 = vpop.f32.mrf.mxu0
      %v7098 = vadd.f32 0.0, %v7097
      %v7099 = vpop.f32.mrf.mxu0
      %v7100 = vpop.f32.mrf.mxu0
      %v7101 = vadd.f32 0.0, %v7100
      %v7102 = vpop.f32.mrf.mxu0
      %7103 = vmatprep.mubr.bf16.mxu0 0
      %7104 = vmatmul.mubr.bf16.gmra.mxu0 %v6939
      %v7105 = vpop.f32.mrf.mxu0
      %v7106 = vadd.f32 0.0, %v7105
      %v7107 = vpop.f32.mrf.mxu0
      %v7108 = vpop.f32.mrf.mxu0
      %v7109 = vadd.f32 0.0, %v7108
      %v7110 = vpop.f32.mrf.mxu0
      %7111 = vmatprep.mubr.bf16.mxu0 0
      %7112 = vmatmul.mubr.bf16.gmra.mxu0 %v6942
      %v7113 = vpop.f32.mrf.mxu0
      %v7114 = vadd.f32 0.0, %v7113
      %v7115 = vpop.f32.mrf.mxu0
      %v7116 = vpop.f32.mrf.mxu0
      %v7117 = vadd.f32 0.0, %v7116
      %v7118 = vpop.f32.mrf.mxu0
      %7119 = vmatprep.mubr.bf16.mxu0 0
      %7120 = vmatmul.mubr.bf16.gmra.mxu0 %v6945
      %v7121 = vpop.f32.mrf.mxu0
      %v7122 = vadd.f32 0.0, %v7121
      %v7123 = vpop.f32.mrf.mxu0
      %v7124 = vpop.f32.mrf.mxu0
      %v7125 = vadd.f32 0.0, %v7124
      %v7126 = vpop.f32.mrf.mxu0
      %7127 = vmatprep.mubr.bf16.mxu0 0
      %7128 = vmatmul.mubr.bf16.gmra.mxu0 %v6948
      %v7129 = vpop.f32.mrf.mxu0
      %v7130 = vadd.f32 0.0, %v7129
      %v7131 = vpop.f32.mrf.mxu0
      %v7132 = vpop.f32.mrf.mxu0
      %v7133 = vadd.f32 0.0, %v7132
      %v7134 = vpop.f32.mrf.mxu0
      %7135 = vmatprep.mubr.bf16.mxu0 0
      %7136 = vmatmul.mubr.bf16.gmra.mxu0 %v6951
      %v7137 = vpop.f32.mrf.mxu0
      %v7138 = vadd.f32 0.0, %v7137
      %v7139 = vpop.f32.mrf.mxu0
      %v7140 = vpop.f32.mrf.mxu0
      %v7141 = vadd.f32 0.0, %v7140
      %v7142 = vpop.f32.mrf.mxu0
      %7143 = vmatprep.mubr.bf16.mxu0 0
      %7144 = vmatmul.mubr.bf16.gmra.mxu0 %v6954
      %v7145 = vpop.f32.mrf.mxu0
      %v7146 = vadd.f32 0.0, %v7145
      %v7147 = vpop.f32.mrf.mxu0
      %v7148 = vpop.f32.mrf.mxu0
      %v7149 = vadd.f32 0.0, %v7148
      %v7150 = vpop.f32.mrf.mxu0
      %7151 = vdwg.mxu0
      %v7152 = vadd.f32 %v6662, %v6994
      %v7153 = vadd.f32 %v6663, %v6997
      %v7154 = vadd.f32 %v6664, %v7002
      %v7155 = vadd.f32 %v6665, %v7005
      %v7156 = vadd.f32 %v6666, %v7010
      %v7157 = vadd.f32 %v6667, %v7013
      %v7158 = vadd.f32 %v6668, %v7018
      %v7159 = vadd.f32 %v6669, %v7021
      %v7160 = vadd.f32 %v6670, %v7026
      %v7161 = vadd.f32 %v6671, %v7029
      %v7162 = vadd.f32 %v6672, %v7034
      %v7163 = vadd.f32 %v6673, %v7037
      %v7164 = vadd.f32 %v6674, %v7042
      %v7165 = vadd.f32 %v6675, %v7045
      %v7166 = vadd.f32 %v6676, %v7050
      %v7167 = vadd.f32 %v6677, %v7053
      %v7168 = vadd.f32 %v6678, %v7058
      %v7169 = vadd.f32 %v6679, %v7061
      %v7170 = vadd.f32 %v6680, %v7066
      %v7171 = vadd.f32 %v6681, %v7069
      %v7172 = vadd.f32 %v6682, %v7074
      %v7173 = vadd.f32 %v6683, %v7077
      %v7174 = vadd.f32 %v6684, %v7082
      %v7175 = vadd.f32 %v6685, %v7085
      %v7176 = vadd.f32 %v6686, %v7090
      %v7177 = vadd.f32 %v6687, %v7093
      %v7178 = vadd.f32 %v6688, %v7098
      %v7179 = vadd.f32 %v6689, %v7101
      %v7180 = vadd.f32 %v6690, %v7106
      %v7181 = vadd.f32 %v6691, %v7109
      %v7182 = vadd.f32 %v6692, %v7114
      %v7183 = vadd.f32 %v6693, %v7117
      %v7184 = vadd.f32 %v6694, %v7122
      %v7185 = vadd.f32 %v6695, %v7125
      %v7186 = vadd.f32 %v6696, %v7130
      %v7187 = vadd.f32 %v6697, %v7133
      %v7188 = vadd.f32 %v6698, %v7138
      %v7189 = vadd.f32 %v6699, %v7141
      %v7190 = vadd.f32 %v6700, %v7146
      %v7191 = vadd.f32 %v6701, %v7149
      %v7192 = vld [vmem:[%s165 + $0x1c] sm:$0x8]
      %s7193 = scalar_lea.vmem %s1, 34
      %v7194 = vld [vmem:[%s7193] sm:$0x3]
      %v7196 = vunpack.c.l.b16 %v7192
      %v7197 = vpack.c.b16 %v6304, %v7196
      %v7198 = vrot.slane %v7197, 3
      %v7199 = vrot.slane %v6345, 3
      %v7200 = vsel %vm3042, %v7198, %v7199
      %v7201 = vrot.slane %v6346, 3
      %v7202 = vsel %vm3042, %v7199, %v7201
      %v7203 = vrot.slane %v6347, 3
      %v7204 = vsel %vm3042, %v7201, %v7203
      %v7205 = vrot.slane %v6348, 3
      %v7206 = vsel %vm3042, %v7203, %v7205
      %v7207 = vrot.slane %v6349, 3
      %v7208 = vsel %vm3042, %v7205, %v7207
      %v7209 = vrot.slane %v6350, 3
      %v7210 = vsel %vm3042, %v7207, %v7209
      %v7211 = vrot.slane %v6351, 3
      %v7212 = vsel %vm3042, %v7209, %v7211
      %v7213 = vrot.slane %v6352, 3
      %v7214 = vsel %vm3042, %v7211, %v7213
      %v7215 = vrot.slane %v6353, 3
      %v7216 = vsel %vm3042, %v7213, %v7215
      %v7217 = vrot.slane %v6354, 3
      %v7218 = vsel %vm3042, %v7215, %v7217
      %v7219 = vrot.slane %v6355, 3
      %v7220 = vsel %vm3042, %v7217, %v7219
      %v7221 = vrot.slane %v6356, 3
      %v7222 = vsel %vm3042, %v7219, %v7221
      %v7223 = vrot.slane %v6357, 3
      %v7224 = vsel %vm3042, %v7221, %v7223
      %v7225 = vrot.slane %v6358, 3
      %v7226 = vsel %vm3042, %v7223, %v7225
      %v7227 = vrot.slane %v6359, 3
      %v7228 = vsel %vm3042, %v7225, %v7227
      %v7229 = vrot.slane %v6360, 3
      %v7230 = vsel %vm3042, %v7227, %v7229
      %v7231 = vrot.slane %v6361, 3
      %v7232 = vsel %vm3042, %v7229, %v7231
      %v7233 = vrot.slane %v6362, 3
      %v7234 = vsel %vm3042, %v7231, %v7233
      %v7235 = vrot.slane %v6363, 3
      %v7236 = vsel %vm3042, %v7233, %v7235
      %v7237 = vrot.slane %v6707, 3
      %v7238 = vsel %vm3042, %v7235, %v7237
      %v7240 = vsel %vm484, %v7200, 0
      %v7243 = vsel %vm484, %v7202, 0
      %v7246 = vsel %vm484, %v7204, 0
      %v7249 = vsel %vm484, %v7206, 0
      %v7252 = vsel %vm484, %v7208, 0
      %v7255 = vsel %vm484, %v7210, 0
      %v7258 = vsel %vm484, %v7212, 0
      %v7261 = vsel %vm484, %v7214, 0
      %v7264 = vsel %vm484, %v7216, 0
      %v7267 = vsel %vm484, %v7218, 0
      %v7270 = vsel %vm484, %v7220, 0
      %v7273 = vsel %vm484, %v7222, 0
      %v7276 = vsel %vm484, %v7224, 0
      %v7279 = vsel %vm484, %v7226, 0
      %v7282 = vsel %vm484, %v7228, 0
      %v7285 = vsel %vm484, %v7230, 0
      %v7288 = vsel %vm484, %v7232, 0
      %v7291 = vsel %vm484, %v7234, 0
      %v7294 = vsel %vm484, %v7236, 0
      %v7297 = vsel %vm484, %v7238, 0
      %v7300 = vsel %vm545, %v7194, 0
      %7302 = vmatprep.subr.bf16.mxu0 0
      %7303 = vmatpush1.bf16.msra.mxu0 0
      %7304 = vmatprep.subr.bf16.mxu0 0
      %7305 = vmatpush1.bf16.msra.mxu0 0
      %7306 = vmatprep.subr.bf16.mxu0 0
      %7307 = vmatpush1.bf16.msra.mxu0 0
      %7308 = vmatprep.subr.bf16.mxu0 0
      %7309 = vmatpush1.bf16.msra.mxu0 0
      %7310 = vmatprep.subr.bf16.mxu0 0
      %7311 = vmatpush1.bf16.msra.mxu0 0
      %7312 = vmatprep.subr.bf16.mxu0 0
      %7313 = vmatpush1.bf16.msra.mxu0 0
      %7314 = vmatprep.subr.bf16.mxu0 0
      %7315 = vmatpush1.bf16.msra.mxu0 0
      %7316 = vmatprep.subr.bf16.mxu0 0
      %7317 = vmatpush1.bf16.msra.mxu0 %v7300
      %7318 = vmatprep.subr.bf16.mxu0 0
      %7319 = vmatpush2.bf16.msra.mxu0 0
      %7320 = vmatprep.subr.bf16.mxu0 0
      %7321 = vmatpush2.bf16.msra.mxu0 0
      %7322 = vmatprep.subr.bf16.mxu0 0
      %7323 = vmatpush2.bf16.msra.mxu0 0
      %7324 = vmatprep.subr.bf16.mxu0 0
      %7325 = vmatpush2.bf16.msra.mxu0 0
      %7326 = vmatprep.subr.bf16.mxu0 0
      %7327 = vmatpush2.bf16.msra.mxu0 0
      %7328 = vmatprep.subr.bf16.mxu0 0
      %7329 = vmatpush2.bf16.msra.mxu0 0
      %7330 = vmatprep.subr.bf16.mxu0 0
      %7331 = vmatpush2.bf16.msra.mxu0 0
      %7332 = vmatprep.subr.bf16.mxu0 0
      %7333 = vmatpush2.bf16.msra.mxu0 0
      %7334 = vmatprep.mubr.bf16.mxu0 0
      %7335 = vmatmul.mubr.bf16.gmra.mxu0 %v7240
      %v7336 = vpop.f32.mrf.mxu0
      %v7337 = vadd.f32 0.0, %v7336
      %v7338 = vpop.f32.mrf.mxu0
      %v7339 = vpop.f32.mrf.mxu0
      %v7340 = vadd.f32 0.0, %v7339
      %v7341 = vpop.f32.mrf.mxu0
      %7342 = vmatprep.mubr.bf16.mxu0 0
      %7343 = vmatmul.mubr.bf16.gmra.mxu0 %v7243
      %v7344 = vpop.f32.mrf.mxu0
      %v7345 = vadd.f32 0.0, %v7344
      %v7346 = vpop.f32.mrf.mxu0
      %v7347 = vpop.f32.mrf.mxu0
      %v7348 = vadd.f32 0.0, %v7347
      %v7349 = vpop.f32.mrf.mxu0
      %7350 = vmatprep.mubr.bf16.mxu0 0
      %7351 = vmatmul.mubr.bf16.gmra.mxu0 %v7246
      %v7352 = vpop.f32.mrf.mxu0
      %v7353 = vadd.f32 0.0, %v7352
      %v7354 = vpop.f32.mrf.mxu0
      %v7355 = vpop.f32.mrf.mxu0
      %v7356 = vadd.f32 0.0, %v7355
      %v7357 = vpop.f32.mrf.mxu0
      %7358 = vmatprep.mubr.bf16.mxu0 0
      %7359 = vmatmul.mubr.bf16.gmra.mxu0 %v7249
      %v7360 = vpop.f32.mrf.mxu0
      %v7361 = vadd.f32 0.0, %v7360
      %v7362 = vpop.f32.mrf.mxu0
      %v7363 = vpop.f32.mrf.mxu0
      %v7364 = vadd.f32 0.0, %v7363
      %v7365 = vpop.f32.mrf.mxu0
      %7366 = vmatprep.mubr.bf16.mxu0 0
      %7367 = vmatmul.mubr.bf16.gmra.mxu0 %v7252
      %v7368 = vpop.f32.mrf.mxu0
      %v7369 = vadd.f32 0.0, %v7368
      %v7370 = vpop.f32.mrf.mxu0
      %v7371 = vpop.f32.mrf.mxu0
      %v7372 = vadd.f32 0.0, %v7371
      %v7373 = vpop.f32.mrf.mxu0
      %7374 = vmatprep.mubr.bf16.mxu0 0
      %7375 = vmatmul.mubr.bf16.gmra.mxu0 %v7255
      %v7376 = vpop.f32.mrf.mxu0
      %v7377 = vadd.f32 0.0, %v7376
      %v7378 = vpop.f32.mrf.mxu0
      %v7379 = vpop.f32.mrf.mxu0
      %v7380 = vadd.f32 0.0, %v7379
      %v7381 = vpop.f32.mrf.mxu0
      %7382 = vmatprep.mubr.bf16.mxu0 0
      %7383 = vmatmul.mubr.bf16.gmra.mxu0 %v7258
      %v7384 = vpop.f32.mrf.mxu0
      %v7385 = vadd.f32 0.0, %v7384
      %v7386 = vpop.f32.mrf.mxu0
      %v7387 = vpop.f32.mrf.mxu0
      %v7388 = vadd.f32 0.0, %v7387
      %v7389 = vpop.f32.mrf.mxu0
      %7390 = vmatprep.mubr.bf16.mxu0 0
      %7391 = vmatmul.mubr.bf16.gmra.mxu0 %v7261
      %v7392 = vpop.f32.mrf.mxu0
      %v7393 = vadd.f32 0.0, %v7392
      %v7394 = vpop.f32.mrf.mxu0
      %v7395 = vpop.f32.mrf.mxu0
      %v7396 = vadd.f32 0.0, %v7395
      %v7397 = vpop.f32.mrf.mxu0
      %7398 = vmatprep.mubr.bf16.mxu0 0
      %7399 = vmatmul.mubr.bf16.gmra.mxu0 %v7264
      %v7400 = vpop.f32.mrf.mxu0
      %v7401 = vadd.f32 0.0, %v7400
      %v7402 = vpop.f32.mrf.mxu0
      %v7403 = vpop.f32.mrf.mxu0
      %v7404 = vadd.f32 0.0, %v7403
      %v7405 = vpop.f32.mrf.mxu0
      %7406 = vmatprep.mubr.bf16.mxu0 0
      %7407 = vmatmul.mubr.bf16.gmra.mxu0 %v7267
      %v7408 = vpop.f32.mrf.mxu0
      %v7409 = vadd.f32 0.0, %v7408
      %v7410 = vpop.f32.mrf.mxu0
      %v7411 = vpop.f32.mrf.mxu0
      %v7412 = vadd.f32 0.0, %v7411
      %v7413 = vpop.f32.mrf.mxu0
      %7414 = vmatprep.mubr.bf16.mxu0 0
      %7415 = vmatmul.mubr.bf16.gmra.mxu0 %v7270
      %v7416 = vpop.f32.mrf.mxu0
      %v7417 = vadd.f32 0.0, %v7416
      %v7418 = vpop.f32.mrf.mxu0
      %v7419 = vpop.f32.mrf.mxu0
      %v7420 = vadd.f32 0.0, %v7419
      %v7421 = vpop.f32.mrf.mxu0
      %7422 = vmatprep.mubr.bf16.mxu0 0
      %7423 = vmatmul.mubr.bf16.gmra.mxu0 %v7273
      %v7424 = vpop.f32.mrf.mxu0
      %v7425 = vadd.f32 0.0, %v7424
      %v7426 = vpop.f32.mrf.mxu0
      %v7427 = vpop.f32.mrf.mxu0
      %v7428 = vadd.f32 0.0, %v7427
      %v7429 = vpop.f32.mrf.mxu0
      %7430 = vmatprep.mubr.bf16.mxu0 0
      %7431 = vmatmul.mubr.bf16.gmra.mxu0 %v7276
      %v7432 = vpop.f32.mrf.mxu0
      %v7433 = vadd.f32 0.0, %v7432
      %v7434 = vpop.f32.mrf.mxu0
      %v7435 = vpop.f32.mrf.mxu0
      %v7436 = vadd.f32 0.0, %v7435
      %v7437 = vpop.f32.mrf.mxu0
      %7438 = vmatprep.mubr.bf16.mxu0 0
      %7439 = vmatmul.mubr.bf16.gmra.mxu0 %v7279
      %v7440 = vpop.f32.mrf.mxu0
      %v7441 = vadd.f32 0.0, %v7440
      %v7442 = vpop.f32.mrf.mxu0
      %v7443 = vpop.f32.mrf.mxu0
      %v7444 = vadd.f32 0.0, %v7443
      %v7445 = vpop.f32.mrf.mxu0
      %7446 = vmatprep.mubr.bf16.mxu0 0
      %7447 = vmatmul.mubr.bf16.gmra.mxu0 %v7282
      %v7448 = vpop.f32.mrf.mxu0
      %v7449 = vadd.f32 0.0, %v7448
      %v7450 = vpop.f32.mrf.mxu0
      %v7451 = vpop.f32.mrf.mxu0
      %v7452 = vadd.f32 0.0, %v7451
      %v7453 = vpop.f32.mrf.mxu0
      %7454 = vmatprep.mubr.bf16.mxu0 0
      %7455 = vmatmul.mubr.bf16.gmra.mxu0 %v7285
      %v7456 = vpop.f32.mrf.mxu0
      %v7457 = vadd.f32 0.0, %v7456
      %v7458 = vpop.f32.mrf.mxu0
      %v7459 = vpop.f32.mrf.mxu0
      %v7460 = vadd.f32 0.0, %v7459
      %v7461 = vpop.f32.mrf.mxu0
      %7462 = vmatprep.mubr.bf16.mxu0 0
      %7463 = vmatmul.mubr.bf16.gmra.mxu0 %v7288
      %v7464 = vpop.f32.mrf.mxu0
      %v7465 = vadd.f32 0.0, %v7464
      %v7466 = vpop.f32.mrf.mxu0
      %v7467 = vpop.f32.mrf.mxu0
      %v7468 = vadd.f32 0.0, %v7467
      %v7469 = vpop.f32.mrf.mxu0
      %7470 = vmatprep.mubr.bf16.mxu0 0
      %7471 = vmatmul.mubr.bf16.gmra.mxu0 %v7291
      %v7472 = vpop.f32.mrf.mxu0
      %v7473 = vadd.f32 0.0, %v7472
      %v7474 = vpop.f32.mrf.mxu0
      %v7475 = vpop.f32.mrf.mxu0
      %v7476 = vadd.f32 0.0, %v7475
      %v7477 = vpop.f32.mrf.mxu0
      %7478 = vmatprep.mubr.bf16.mxu0 0
      %7479 = vmatmul.mubr.bf16.gmra.mxu0 %v7294
      %v7480 = vpop.f32.mrf.mxu0
      %v7481 = vadd.f32 0.0, %v7480
      %v7482 = vpop.f32.mrf.mxu0
      %v7483 = vpop.f32.mrf.mxu0
      %v7484 = vadd.f32 0.0, %v7483
      %v7485 = vpop.f32.mrf.mxu0
      %7486 = vmatprep.mubr.bf16.mxu0 0
      %7487 = vmatmul.mubr.bf16.gmra.mxu0 %v7297
      %v7488 = vpop.f32.mrf.mxu0
      %v7489 = vadd.f32 0.0, %v7488
      %v7490 = vpop.f32.mrf.mxu0
      %v7491 = vpop.f32.mrf.mxu0
      %v7492 = vadd.f32 0.0, %v7491
      %v7493 = vpop.f32.mrf.mxu0
      %7494 = vdwg.mxu0
      %v7495 = vadd.f32 %v7152, %v7337
      %v7496 = vadd.f32 %v7153, %v7340
      %v7497 = vadd.f32 %v7154, %v7345
      %v7498 = vadd.f32 %v7155, %v7348
      %v7499 = vadd.f32 %v7156, %v7353
      %v7500 = vadd.f32 %v7157, %v7356
      %v7501 = vadd.f32 %v7158, %v7361
      %v7502 = vadd.f32 %v7159, %v7364
      %v7503 = vadd.f32 %v7160, %v7369
      %v7504 = vadd.f32 %v7161, %v7372
      %v7505 = vadd.f32 %v7162, %v7377
      %v7506 = vadd.f32 %v7163, %v7380
      %v7507 = vadd.f32 %v7164, %v7385
      %v7508 = vadd.f32 %v7165, %v7388
      %v7509 = vadd.f32 %v7166, %v7393
      %v7510 = vadd.f32 %v7167, %v7396
      %v7511 = vadd.f32 %v7168, %v7401
      %v7512 = vadd.f32 %v7169, %v7404
      %v7513 = vadd.f32 %v7170, %v7409
      %v7514 = vadd.f32 %v7171, %v7412
      %v7515 = vadd.f32 %v7172, %v7417
      %v7516 = vadd.f32 %v7173, %v7420
      %v7517 = vadd.f32 %v7174, %v7425
      %v7518 = vadd.f32 %v7175, %v7428
      %v7519 = vadd.f32 %v7176, %v7433
      %v7520 = vadd.f32 %v7177, %v7436
      %v7521 = vadd.f32 %v7178, %v7441
      %v7522 = vadd.f32 %v7179, %v7444
      %v7523 = vadd.f32 %v7180, %v7449
      %v7524 = vadd.f32 %v7181, %v7452
      %v7525 = vadd.f32 %v7182, %v7457
      %v7526 = vadd.f32 %v7183, %v7460
      %v7527 = vadd.f32 %v7184, %v7465
      %v7528 = vadd.f32 %v7185, %v7468
      %v7529 = vadd.f32 %v7186, %v7473
      %v7530 = vadd.f32 %v7187, %v7476
      %v7531 = vadd.f32 %v7188, %v7481
      %v7532 = vadd.f32 %v7189, %v7484
      %v7533 = vadd.f32 %v7190, %v7489
      %v7534 = vadd.f32 %v7191, %v7492
      %v7535 = vld [vmem:[%s165 + $0xbc] sm:$0xf]
      %s7536 = scalar_lea.vmem %s1, 36
      %v7537 = vld [vmem:[%s7536] sm:$0x3]
      %v7539 = vunpack.c.l.b16 %v7535
      %v7540 = vpack.c.b16 %v7539, %v7539
      %v7542 = vshrl.u32 %v7197, 16
      %v7544 = vrot.slane %v7542, 3
      %v7545 = vshll.u32 %v7197, 16
      %v7547 = vrot.slane %v7545, 4
      %v7548 = vor.u32 %v7544, %v7547
      %v7549 = vrot.slane %v6717, 3
      %v7550 = vrot.slane %v6720, 4
      %v7551 = vor.u32 %v7549, %v7550
      %v7552 = vsel %vm3386, %v7548, %v7551
      %v7553 = vrot.slane %v6726, 3
      %v7554 = vrot.slane %v6729, 4
      %v7555 = vor.u32 %v7553, %v7554
      %v7556 = vsel %vm3386, %v7551, %v7555
      %v7557 = vrot.slane %v6735, 3
      %v7558 = vrot.slane %v6738, 4
      %v7559 = vor.u32 %v7557, %v7558
      %v7560 = vsel %vm3386, %v7555, %v7559
      %v7561 = vrot.slane %v6744, 3
      %v7562 = vrot.slane %v6747, 4
      %v7563 = vor.u32 %v7561, %v7562
      %v7564 = vsel %vm3386, %v7559, %v7563
      %v7565 = vrot.slane %v6753, 3
      %v7566 = vrot.slane %v6756, 4
      %v7567 = vor.u32 %v7565, %v7566
      %v7568 = vsel %vm3386, %v7563, %v7567
      %v7569 = vrot.slane %v6762, 3
      %v7570 = vrot.slane %v6765, 4
      %v7571 = vor.u32 %v7569, %v7570
      %v7572 = vsel %vm3386, %v7567, %v7571
      %v7573 = vrot.slane %v6771, 3
      %v7574 = vrot.slane %v6774, 4
      %v7575 = vor.u32 %v7573, %v7574
      %v7576 = vsel %vm3386, %v7571, %v7575
      %v7577 = vrot.slane %v6780, 3
      %v7578 = vrot.slane %v6783, 4
      %v7579 = vor.u32 %v7577, %v7578
      %v7580 = vsel %vm3386, %v7575, %v7579
      %v7581 = vrot.slane %v6789, 3
      %v7582 = vrot.slane %v6792, 4
      %v7583 = vor.u32 %v7581, %v7582
      %v7584 = vsel %vm3386, %v7579, %v7583
      %v7585 = vrot.slane %v6798, 3
      %v7586 = vrot.slane %v6801, 4
      %v7587 = vor.u32 %v7585, %v7586
      %v7588 = vsel %vm3386, %v7583, %v7587
      %v7589 = vrot.slane %v6807, 3
      %v7590 = vrot.slane %v6810, 4
      %v7591 = vor.u32 %v7589, %v7590
      %v7592 = vsel %vm3386, %v7587, %v7591
      %v7593 = vrot.slane %v6816, 3
      %v7594 = vrot.slane %v6819, 4
      %v7595 = vor.u32 %v7593, %v7594
      %v7596 = vsel %vm3386, %v7591, %v7595
      %v7597 = vrot.slane %v6825, 3
      %v7598 = vrot.slane %v6828, 4
      %v7599 = vor.u32 %v7597, %v7598
      %v7600 = vsel %vm3386, %v7595, %v7599
      %v7601 = vrot.slane %v6834, 3
      %v7602 = vrot.slane %v6837, 4
      %v7603 = vor.u32 %v7601, %v7602
      %v7604 = vsel %vm3386, %v7599, %v7603
      %v7605 = vrot.slane %v6843, 3
      %v7606 = vrot.slane %v6846, 4
      %v7607 = vor.u32 %v7605, %v7606
      %v7608 = vsel %vm3386, %v7603, %v7607
      %v7609 = vrot.slane %v6852, 3
      %v7610 = vrot.slane %v6855, 4
      %v7611 = vor.u32 %v7609, %v7610
      %v7612 = vsel %vm3386, %v7607, %v7611
      %v7613 = vrot.slane %v6861, 3
      %v7614 = vrot.slane %v6864, 4
      %v7615 = vor.u32 %v7613, %v7614
      %v7616 = vsel %vm3386, %v7611, %v7615
      %v7617 = vrot.slane %v6870, 3
      %v7618 = vrot.slane %v6873, 4
      %v7619 = vor.u32 %v7617, %v7618
      %v7620 = vsel %vm3386, %v7615, %v7619
      %v7621 = vrot.slane %v6879, 3
      %v7622 = vrot.slane %v6882, 4
      %v7623 = vor.u32 %v7621, %v7622
      %v7624 = vsel %vm3386, %v7619, %v7623
      %v7626 = vshrl.u32 %v7540, 16
      %v7628 = vrot.slane %v7626, 3
      %v7629 = vshll.u32 %v7540, 16
      %v7631 = vrot.slane %v7629, 4
      %v7632 = vor.u32 %v7628, %v7631
      %v7633 = vsel %vm3386, %v7623, %v7632
      %v7635 = vsel %vm484, %v7552, 0
      %v7638 = vsel %vm484, %v7556, 0
      %v7641 = vsel %vm484, %v7560, 0
      %v7644 = vsel %vm484, %v7564, 0
      %v7647 = vsel %vm484, %v7568, 0
      %v7650 = vsel %vm484, %v7572, 0
      %v7653 = vsel %vm484, %v7576, 0
      %v7656 = vsel %vm484, %v7580, 0
      %v7659 = vsel %vm484, %v7584, 0
      %v7662 = vsel %vm484, %v7588, 0
      %v7665 = vsel %vm484, %v7592, 0
      %v7668 = vsel %vm484, %v7596, 0
      %v7671 = vsel %vm484, %v7600, 0
      %v7674 = vsel %vm484, %v7604, 0
      %v7677 = vsel %vm484, %v7608, 0
      %v7680 = vsel %vm484, %v7612, 0
      %v7683 = vsel %vm484, %v7616, 0
      %v7686 = vsel %vm484, %v7620, 0
      %v7689 = vsel %vm484, %v7624, 0
      %v7692 = vsel %vm484, %v7633, 0
      %v7695 = vsel %vm545, %v7537, 0
      %7697 = vmatprep.subr.bf16.mxu0 0
      %7698 = vmatpush1.bf16.msra.mxu0 0
      %7699 = vmatprep.subr.bf16.mxu0 0
      %7700 = vmatpush1.bf16.msra.mxu0 0
      %7701 = vmatprep.subr.bf16.mxu0 0
      %7702 = vmatpush1.bf16.msra.mxu0 0
      %7703 = vmatprep.subr.bf16.mxu0 0
      %7704 = vmatpush1.bf16.msra.mxu0 0
      %7705 = vmatprep.subr.bf16.mxu0 0
      %7706 = vmatpush1.bf16.msra.mxu0 0
      %7707 = vmatprep.subr.bf16.mxu0 0
      %7708 = vmatpush1.bf16.msra.mxu0 0
      %7709 = vmatprep.subr.bf16.mxu0 0
      %7710 = vmatpush1.bf16.msra.mxu0 0
      %7711 = vmatprep.subr.bf16.mxu0 0
      %7712 = vmatpush1.bf16.msra.mxu0 %v7695
      %7713 = vmatprep.subr.bf16.mxu0 0
      %7714 = vmatpush2.bf16.msra.mxu0 0
      %7715 = vmatprep.subr.bf16.mxu0 0
      %7716 = vmatpush2.bf16.msra.mxu0 0
      %7717 = vmatprep.subr.bf16.mxu0 0
      %7718 = vmatpush2.bf16.msra.mxu0 0
      %7719 = vmatprep.subr.bf16.mxu0 0
      %7720 = vmatpush2.bf16.msra.mxu0 0
      %7721 = vmatprep.subr.bf16.mxu0 0
      %7722 = vmatpush2.bf16.msra.mxu0 0
      %7723 = vmatprep.subr.bf16.mxu0 0
      %7724 = vmatpush2.bf16.msra.mxu0 0
      %7725 = vmatprep.subr.bf16.mxu0 0
      %7726 = vmatpush2.bf16.msra.mxu0 0
      %7727 = vmatprep.subr.bf16.mxu0 0
      %7728 = vmatpush2.bf16.msra.mxu0 0
      %7729 = vmatprep.mubr.bf16.mxu0 0
      %7730 = vmatmul.mubr.bf16.gmra.mxu0 %v7635
      %v7731 = vpop.f32.mrf.mxu0
      %v7732 = vadd.f32 0.0, %v7731
      %v7733 = vpop.f32.mrf.mxu0
      %v7734 = vpop.f32.mrf.mxu0
      %v7735 = vadd.f32 0.0, %v7734
      %v7736 = vpop.f32.mrf.mxu0
      %7737 = vmatprep.mubr.bf16.mxu0 0
      %7738 = vmatmul.mubr.bf16.gmra.mxu0 %v7638
      %v7739 = vpop.f32.mrf.mxu0
      %v7740 = vadd.f32 0.0, %v7739
      %v7741 = vpop.f32.mrf.mxu0
      %v7742 = vpop.f32.mrf.mxu0
      %v7743 = vadd.f32 0.0, %v7742
      %v7744 = vpop.f32.mrf.mxu0
      %7745 = vmatprep.mubr.bf16.mxu0 0
      %7746 = vmatmul.mubr.bf16.gmra.mxu0 %v7641
      %v7747 = vpop.f32.mrf.mxu0
      %v7748 = vadd.f32 0.0, %v7747
      %v7749 = vpop.f32.mrf.mxu0
      %v7750 = vpop.f32.mrf.mxu0
      %v7751 = vadd.f32 0.0, %v7750
      %v7752 = vpop.f32.mrf.mxu0
      %7753 = vmatprep.mubr.bf16.mxu0 0
      %7754 = vmatmul.mubr.bf16.gmra.mxu0 %v7644
      %v7755 = vpop.f32.mrf.mxu0
      %v7756 = vadd.f32 0.0, %v7755
      %v7757 = vpop.f32.mrf.mxu0
      %v7758 = vpop.f32.mrf.mxu0
      %v7759 = vadd.f32 0.0, %v7758
      %v7760 = vpop.f32.mrf.mxu0
      %7761 = vmatprep.mubr.bf16.mxu0 0
      %7762 = vmatmul.mubr.bf16.gmra.mxu0 %v7647
      %v7763 = vpop.f32.mrf.mxu0
      %v7764 = vadd.f32 0.0, %v7763
      %v7765 = vpop.f32.mrf.mxu0
      %v7766 = vpop.f32.mrf.mxu0
      %v7767 = vadd.f32 0.0, %v7766
      %v7768 = vpop.f32.mrf.mxu0
      %7769 = vmatprep.mubr.bf16.mxu0 0
      %7770 = vmatmul.mubr.bf16.gmra.mxu0 %v7650
      %v7771 = vpop.f32.mrf.mxu0
      %v7772 = vadd.f32 0.0, %v7771
      %v7773 = vpop.f32.mrf.mxu0
      %v7774 = vpop.f32.mrf.mxu0
      %v7775 = vadd.f32 0.0, %v7774
      %v7776 = vpop.f32.mrf.mxu0
      %7777 = vmatprep.mubr.bf16.mxu0 0
      %7778 = vmatmul.mubr.bf16.gmra.mxu0 %v7653
      %v7779 = vpop.f32.mrf.mxu0
      %v7780 = vadd.f32 0.0, %v7779
      %v7781 = vpop.f32.mrf.mxu0
      %v7782 = vpop.f32.mrf.mxu0
      %v7783 = vadd.f32 0.0, %v7782
      %v7784 = vpop.f32.mrf.mxu0
      %7785 = vmatprep.mubr.bf16.mxu0 0
      %7786 = vmatmul.mubr.bf16.gmra.mxu0 %v7656
      %v7787 = vpop.f32.mrf.mxu0
      %v7788 = vadd.f32 0.0, %v7787
      %v7789 = vpop.f32.mrf.mxu0
      %v7790 = vpop.f32.mrf.mxu0
      %v7791 = vadd.f32 0.0, %v7790
      %v7792 = vpop.f32.mrf.mxu0
      %7793 = vmatprep.mubr.bf16.mxu0 0
      %7794 = vmatmul.mubr.bf16.gmra.mxu0 %v7659
      %v7795 = vpop.f32.mrf.mxu0
      %v7796 = vadd.f32 0.0, %v7795
      %v7797 = vpop.f32.mrf.mxu0
      %v7798 = vpop.f32.mrf.mxu0
      %v7799 = vadd.f32 0.0, %v7798
      %v7800 = vpop.f32.mrf.mxu0
      %7801 = vmatprep.mubr.bf16.mxu0 0
      %7802 = vmatmul.mubr.bf16.gmra.mxu0 %v7662
      %v7803 = vpop.f32.mrf.mxu0
      %v7804 = vadd.f32 0.0, %v7803
      %v7805 = vpop.f32.mrf.mxu0
      %v7806 = vpop.f32.mrf.mxu0
      %v7807 = vadd.f32 0.0, %v7806
      %v7808 = vpop.f32.mrf.mxu0
      %7809 = vmatprep.mubr.bf16.mxu0 0
      %7810 = vmatmul.mubr.bf16.gmra.mxu0 %v7665
      %v7811 = vpop.f32.mrf.mxu0
      %v7812 = vadd.f32 0.0, %v7811
      %v7813 = vpop.f32.mrf.mxu0
      %v7814 = vpop.f32.mrf.mxu0
      %v7815 = vadd.f32 0.0, %v7814
      %v7816 = vpop.f32.mrf.mxu0
      %7817 = vmatprep.mubr.bf16.mxu0 0
      %7818 = vmatmul.mubr.bf16.gmra.mxu0 %v7668
      %v7819 = vpop.f32.mrf.mxu0
      %v7820 = vadd.f32 0.0, %v7819
      %v7821 = vpop.f32.mrf.mxu0
      %v7822 = vpop.f32.mrf.mxu0
      %v7823 = vadd.f32 0.0, %v7822
      %v7824 = vpop.f32.mrf.mxu0
      %7825 = vmatprep.mubr.bf16.mxu0 0
      %7826 = vmatmul.mubr.bf16.gmra.mxu0 %v7671
      %v7827 = vpop.f32.mrf.mxu0
      %v7828 = vadd.f32 0.0, %v7827
      %v7829 = vpop.f32.mrf.mxu0
      %v7830 = vpop.f32.mrf.mxu0
      %v7831 = vadd.f32 0.0, %v7830
      %v7832 = vpop.f32.mrf.mxu0
      %7833 = vmatprep.mubr.bf16.mxu0 0
      %7834 = vmatmul.mubr.bf16.gmra.mxu0 %v7674
      %v7835 = vpop.f32.mrf.mxu0
      %v7836 = vadd.f32 0.0, %v7835
      %v7837 = vpop.f32.mrf.mxu0
      %v7838 = vpop.f32.mrf.mxu0
      %v7839 = vadd.f32 0.0, %v7838
      %v7840 = vpop.f32.mrf.mxu0
      %7841 = vmatprep.mubr.bf16.mxu0 0
      %7842 = vmatmul.mubr.bf16.gmra.mxu0 %v7677
      %v7843 = vpop.f32.mrf.mxu0
      %v7844 = vadd.f32 0.0, %v7843
      %v7845 = vpop.f32.mrf.mxu0
      %v7846 = vpop.f32.mrf.mxu0
      %v7847 = vadd.f32 0.0, %v7846
      %v7848 = vpop.f32.mrf.mxu0
      %7849 = vmatprep.mubr.bf16.mxu0 0
      %7850 = vmatmul.mubr.bf16.gmra.mxu0 %v7680
      %v7851 = vpop.f32.mrf.mxu0
      %v7852 = vadd.f32 0.0, %v7851
      %v7853 = vpop.f32.mrf.mxu0
      %v7854 = vpop.f32.mrf.mxu0
      %v7855 = vadd.f32 0.0, %v7854
      %v7856 = vpop.f32.mrf.mxu0
      %7857 = vmatprep.mubr.bf16.mxu0 0
      %7858 = vmatmul.mubr.bf16.gmra.mxu0 %v7683
      %v7859 = vpop.f32.mrf.mxu0
      %v7860 = vadd.f32 0.0, %v7859
      %v7861 = vpop.f32.mrf.mxu0
      %v7862 = vpop.f32.mrf.mxu0
      %v7863 = vadd.f32 0.0, %v7862
      %v7864 = vpop.f32.mrf.mxu0
      %7865 = vmatprep.mubr.bf16.mxu0 0
      %7866 = vmatmul.mubr.bf16.gmra.mxu0 %v7686
      %v7867 = vpop.f32.mrf.mxu0
      %v7868 = vadd.f32 0.0, %v7867
      %v7869 = vpop.f32.mrf.mxu0
      %v7870 = vpop.f32.mrf.mxu0
      %v7871 = vadd.f32 0.0, %v7870
      %v7872 = vpop.f32.mrf.mxu0
      %7873 = vmatprep.mubr.bf16.mxu0 0
      %7874 = vmatmul.mubr.bf16.gmra.mxu0 %v7689
      %v7875 = vpop.f32.mrf.mxu0
      %v7876 = vadd.f32 0.0, %v7875
      %v7877 = vpop.f32.mrf.mxu0
      %v7878 = vpop.f32.mrf.mxu0
      %v7879 = vadd.f32 0.0, %v7878
      %v7880 = vpop.f32.mrf.mxu0
      %7881 = vmatprep.mubr.bf16.mxu0 0
      %7882 = vmatmul.mubr.bf16.gmra.mxu0 %v7692
      %v7883 = vpop.f32.mrf.mxu0
      %v7884 = vadd.f32 0.0, %v7883
      %v7885 = vpop.f32.mrf.mxu0
      %v7886 = vpop.f32.mrf.mxu0
      %v7887 = vadd.f32 0.0, %v7886
      %v7888 = vpop.f32.mrf.mxu0
      %7889 = vdwg.mxu0
      %v7890 = vadd.f32 %v7495, %v7732
      %v7891 = vadd.f32 %v7496, %v7735
      %v7892 = vadd.f32 %v7497, %v7740
      %v7893 = vadd.f32 %v7498, %v7743
      %v7894 = vadd.f32 %v7499, %v7748
      %v7895 = vadd.f32 %v7500, %v7751
      %v7896 = vadd.f32 %v7501, %v7756
      %v7897 = vadd.f32 %v7502, %v7759
      %v7898 = vadd.f32 %v7503, %v7764
      %v7899 = vadd.f32 %v7504, %v7767
      %v7900 = vadd.f32 %v7505, %v7772
      %v7901 = vadd.f32 %v7506, %v7775
      %v7902 = vadd.f32 %v7507, %v7780
      %v7903 = vadd.f32 %v7508, %v7783
      %v7904 = vadd.f32 %v7509, %v7788
      %v7905 = vadd.f32 %v7510, %v7791
      %v7906 = vadd.f32 %v7511, %v7796
      %v7907 = vadd.f32 %v7512, %v7799
      %v7908 = vadd.f32 %v7513, %v7804
      %v7909 = vadd.f32 %v7514, %v7807
      %v7910 = vadd.f32 %v7515, %v7812
      %v7911 = vadd.f32 %v7516, %v7815
      %v7912 = vadd.f32 %v7517, %v7820
      %v7913 = vadd.f32 %v7518, %v7823
      %v7914 = vadd.f32 %v7519, %v7828
      %v7915 = vadd.f32 %v7520, %v7831
      %v7916 = vadd.f32 %v7521, %v7836
      %v7917 = vadd.f32 %v7522, %v7839
      %v7918 = vadd.f32 %v7523, %v7844
      %v7919 = vadd.f32 %v7524, %v7847
      %v7920 = vadd.f32 %v7525, %v7852
      %v7921 = vadd.f32 %v7526, %v7855
      %v7922 = vadd.f32 %v7527, %v7860
      %v7923 = vadd.f32 %v7528, %v7863
      %v7924 = vadd.f32 %v7529, %v7868
      %v7925 = vadd.f32 %v7530, %v7871
      %v7926 = vadd.f32 %v7531, %v7876
      %v7927 = vadd.f32 %v7532, %v7879
      %v7928 = vadd.f32 %v7533, %v7884
      %v7929 = vadd.f32 %v7534, %v7887
      %s7930 = scalar_lea.vmem %s1, 38
      %v7931 = vld [vmem:[%s7930] sm:$0x3]
      %v7932 = vpack.c.b16 %v6305, %v6304
      %v7933 = vpack.c.b16 %v6307, %v6306
      %v7934 = vpack.c.b16 %v6309, %v6308
      %v7935 = vpack.c.b16 %v6311, %v6310
      %v7936 = vpack.c.b16 %v6313, %v6312
      %v7937 = vpack.c.b16 %v6315, %v6314
      %v7938 = vpack.c.b16 %v6317, %v6316
      %v7939 = vpack.c.b16 %v6319, %v6318
      %v7940 = vpack.c.b16 %v6321, %v6320
      %v7941 = vpack.c.b16 %v6323, %v6322
      %v7942 = vpack.c.b16 %v6325, %v6324
      %v7943 = vpack.c.b16 %v6327, %v6326
      %v7944 = vpack.c.b16 %v6329, %v6328
      %v7945 = vpack.c.b16 %v6331, %v6330
      %v7946 = vpack.c.b16 %v6333, %v6332
      %v7947 = vpack.c.b16 %v6335, %v6334
      %v7948 = vpack.c.b16 %v6337, %v6336
      %v7949 = vpack.c.b16 %v6339, %v6338
      %v7950 = vpack.c.b16 %v6341, %v6340
      %v7951 = vpack.c.b16 %v7539, %v6342
      %v7953 = vsel %vm484, %v7932, 0
      %v7956 = vsel %vm484, %v7933, 0
      %v7959 = vsel %vm484, %v7934, 0
      %v7962 = vsel %vm484, %v7935, 0
      %v7965 = vsel %vm484, %v7936, 0
      %v7968 = vsel %vm484, %v7937, 0
      %v7971 = vsel %vm484, %v7938, 0
      %v7974 = vsel %vm484, %v7939, 0
      %v7977 = vsel %vm484, %v7940, 0
      %v7980 = vsel %vm484, %v7941, 0
      %v7983 = vsel %vm484, %v7942, 0
      %v7986 = vsel %vm484, %v7943, 0
      %v7989 = vsel %vm484, %v7944, 0
      %v7992 = vsel %vm484, %v7945, 0
      %v7995 = vsel %vm484, %v7946, 0
      %v7998 = vsel %vm484, %v7947, 0
      %v8001 = vsel %vm484, %v7948, 0
      %v8004 = vsel %vm484, %v7949, 0
      %v8007 = vsel %vm484, %v7950, 0
      %v8010 = vsel %vm484, %v7951, 0
      %v8013 = vsel %vm545, %v7931, 0
      %8015 = vmatprep.subr.bf16.mxu0 0
      %8016 = vmatpush1.bf16.msra.mxu0 0
      %8017 = vmatprep.subr.bf16.mxu0 0
      %8018 = vmatpush1.bf16.msra.mxu0 0
      %8019 = vmatprep.subr.bf16.mxu0 0
      %8020 = vmatpush1.bf16.msra.mxu0 0
      %8021 = vmatprep.subr.bf16.mxu0 0
      %8022 = vmatpush1.bf16.msra.mxu0 0
      %8023 = vmatprep.subr.bf16.mxu0 0
      %8024 = vmatpush1.bf16.msra.mxu0 0
      %8025 = vmatprep.subr.bf16.mxu0 0
      %8026 = vmatpush1.bf16.msra.mxu0 0
      %8027 = vmatprep.subr.bf16.mxu0 0
      %8028 = vmatpush1.bf16.msra.mxu0 0
      %8029 = vmatprep.subr.bf16.mxu0 0
      %8030 = vmatpush1.bf16.msra.mxu0 %v8013
      %8031 = vmatprep.subr.bf16.mxu0 0
      %8032 = vmatpush2.bf16.msra.mxu0 0
      %8033 = vmatprep.subr.bf16.mxu0 0
      %8034 = vmatpush2.bf16.msra.mxu0 0
      %8035 = vmatprep.subr.bf16.mxu0 0
      %8036 = vmatpush2.bf16.msra.mxu0 0
      %8037 = vmatprep.subr.bf16.mxu0 0
      %8038 = vmatpush2.bf16.msra.mxu0 0
      %8039 = vmatprep.subr.bf16.mxu0 0
      %8040 = vmatpush2.bf16.msra.mxu0 0
      %8041 = vmatprep.subr.bf16.mxu0 0
      %8042 = vmatpush2.bf16.msra.mxu0 0
      %8043 = vmatprep.subr.bf16.mxu0 0
      %8044 = vmatpush2.bf16.msra.mxu0 0
      %8045 = vmatprep.subr.bf16.mxu0 0
      %8046 = vmatpush2.bf16.msra.mxu0 0
      %8047 = vmatprep.mubr.bf16.mxu0 0
      %8048 = vmatmul.mubr.bf16.gmra.mxu0 %v7953
      %v8049 = vpop.f32.mrf.mxu0
      %v8050 = vadd.f32 0.0, %v8049
      %v8051 = vpop.f32.mrf.mxu0
      %v8052 = vpop.f32.mrf.mxu0
      %v8053 = vadd.f32 0.0, %v8052
      %v8054 = vpop.f32.mrf.mxu0
      %8055 = vmatprep.mubr.bf16.mxu0 0
      %8056 = vmatmul.mubr.bf16.gmra.mxu0 %v7956
      %v8057 = vpop.f32.mrf.mxu0
      %v8058 = vadd.f32 0.0, %v8057
      %v8059 = vpop.f32.mrf.mxu0
      %v8060 = vpop.f32.mrf.mxu0
      %v8061 = vadd.f32 0.0, %v8060
      %v8062 = vpop.f32.mrf.mxu0
      %8063 = vmatprep.mubr.bf16.mxu0 0
      %8064 = vmatmul.mubr.bf16.gmra.mxu0 %v7959
      %v8065 = vpop.f32.mrf.mxu0
      %v8066 = vadd.f32 0.0, %v8065
      %v8067 = vpop.f32.mrf.mxu0
      %v8068 = vpop.f32.mrf.mxu0
      %v8069 = vadd.f32 0.0, %v8068
      %v8070 = vpop.f32.mrf.mxu0
      %8071 = vmatprep.mubr.bf16.mxu0 0
      %8072 = vmatmul.mubr.bf16.gmra.mxu0 %v7962
      %v8073 = vpop.f32.mrf.mxu0
      %v8074 = vadd.f32 0.0, %v8073
      %v8075 = vpop.f32.mrf.mxu0
      %v8076 = vpop.f32.mrf.mxu0
      %v8077 = vadd.f32 0.0, %v8076
      %v8078 = vpop.f32.mrf.mxu0
      %8079 = vmatprep.mubr.bf16.mxu0 0
      %8080 = vmatmul.mubr.bf16.gmra.mxu0 %v7965
      %v8081 = vpop.f32.mrf.mxu0
      %v8082 = vadd.f32 0.0, %v8081
      %v8083 = vpop.f32.mrf.mxu0
      %v8084 = vpop.f32.mrf.mxu0
      %v8085 = vadd.f32 0.0, %v8084
      %v8086 = vpop.f32.mrf.mxu0
      %8087 = vmatprep.mubr.bf16.mxu0 0
      %8088 = vmatmul.mubr.bf16.gmra.mxu0 %v7968
      %v8089 = vpop.f32.mrf.mxu0
      %v8090 = vadd.f32 0.0, %v8089
      %v8091 = vpop.f32.mrf.mxu0
      %v8092 = vpop.f32.mrf.mxu0
      %v8093 = vadd.f32 0.0, %v8092
      %v8094 = vpop.f32.mrf.mxu0
      %8095 = vmatprep.mubr.bf16.mxu0 0
      %8096 = vmatmul.mubr.bf16.gmra.mxu0 %v7971
      %v8097 = vpop.f32.mrf.mxu0
      %v8098 = vadd.f32 0.0, %v8097
      %v8099 = vpop.f32.mrf.mxu0
      %v8100 = vpop.f32.mrf.mxu0
      %v8101 = vadd.f32 0.0, %v8100
      %v8102 = vpop.f32.mrf.mxu0
      %8103 = vmatprep.mubr.bf16.mxu0 0
      %8104 = vmatmul.mubr.bf16.gmra.mxu0 %v7974
      %v8105 = vpop.f32.mrf.mxu0
      %v8106 = vadd.f32 0.0, %v8105
      %v8107 = vpop.f32.mrf.mxu0
      %v8108 = vpop.f32.mrf.mxu0
      %v8109 = vadd.f32 0.0, %v8108
      %v8110 = vpop.f32.mrf.mxu0
      %8111 = vmatprep.mubr.bf16.mxu0 0
      %8112 = vmatmul.mubr.bf16.gmra.mxu0 %v7977
      %v8113 = vpop.f32.mrf.mxu0
      %v8114 = vadd.f32 0.0, %v8113
      %v8115 = vpop.f32.mrf.mxu0
      %v8116 = vpop.f32.mrf.mxu0
      %v8117 = vadd.f32 0.0, %v8116
      %v8118 = vpop.f32.mrf.mxu0
      %8119 = vmatprep.mubr.bf16.mxu0 0
      %8120 = vmatmul.mubr.bf16.gmra.mxu0 %v7980
      %v8121 = vpop.f32.mrf.mxu0
      %v8122 = vadd.f32 0.0, %v8121
      %v8123 = vpop.f32.mrf.mxu0
      %v8124 = vpop.f32.mrf.mxu0
      %v8125 = vadd.f32 0.0, %v8124
      %v8126 = vpop.f32.mrf.mxu0
      %8127 = vmatprep.mubr.bf16.mxu0 0
      %8128 = vmatmul.mubr.bf16.gmra.mxu0 %v7983
      %v8129 = vpop.f32.mrf.mxu0
      %v8130 = vadd.f32 0.0, %v8129
      %v8131 = vpop.f32.mrf.mxu0
      %v8132 = vpop.f32.mrf.mxu0
      %v8133 = vadd.f32 0.0, %v8132
      %v8134 = vpop.f32.mrf.mxu0
      %8135 = vmatprep.mubr.bf16.mxu0 0
      %8136 = vmatmul.mubr.bf16.gmra.mxu0 %v7986
      %v8137 = vpop.f32.mrf.mxu0
      %v8138 = vadd.f32 0.0, %v8137
      %v8139 = vpop.f32.mrf.mxu0
      %v8140 = vpop.f32.mrf.mxu0
      %v8141 = vadd.f32 0.0, %v8140
      %v8142 = vpop.f32.mrf.mxu0
      %8143 = vmatprep.mubr.bf16.mxu0 0
      %8144 = vmatmul.mubr.bf16.gmra.mxu0 %v7989
      %v8145 = vpop.f32.mrf.mxu0
      %v8146 = vadd.f32 0.0, %v8145
      %v8147 = vpop.f32.mrf.mxu0
      %v8148 = vpop.f32.mrf.mxu0
      %v8149 = vadd.f32 0.0, %v8148
      %v8150 = vpop.f32.mrf.mxu0
      %8151 = vmatprep.mubr.bf16.mxu0 0
      %8152 = vmatmul.mubr.bf16.gmra.mxu0 %v7992
      %v8153 = vpop.f32.mrf.mxu0
      %v8154 = vadd.f32 0.0, %v8153
      %v8155 = vpop.f32.mrf.mxu0
      %v8156 = vpop.f32.mrf.mxu0
      %v8157 = vadd.f32 0.0, %v8156
      %v8158 = vpop.f32.mrf.mxu0
      %8159 = vmatprep.mubr.bf16.mxu0 0
      %8160 = vmatmul.mubr.bf16.gmra.mxu0 %v7995
      %v8161 = vpop.f32.mrf.mxu0
      %v8162 = vadd.f32 0.0, %v8161
      %v8163 = vpop.f32.mrf.mxu0
      %v8164 = vpop.f32.mrf.mxu0
      %v8165 = vadd.f32 0.0, %v8164
      %v8166 = vpop.f32.mrf.mxu0
      %8167 = vmatprep.mubr.bf16.mxu0 0
      %8168 = vmatmul.mubr.bf16.gmra.mxu0 %v7998
      %v8169 = vpop.f32.mrf.mxu0
      %v8170 = vadd.f32 0.0, %v8169
      %v8171 = vpop.f32.mrf.mxu0
      %v8172 = vpop.f32.mrf.mxu0
      %v8173 = vadd.f32 0.0, %v8172
      %v8174 = vpop.f32.mrf.mxu0
      %8175 = vmatprep.mubr.bf16.mxu0 0
      %8176 = vmatmul.mubr.bf16.gmra.mxu0 %v8001
      %v8177 = vpop.f32.mrf.mxu0
      %v8178 = vadd.f32 0.0, %v8177
      %v8179 = vpop.f32.mrf.mxu0
      %v8180 = vpop.f32.mrf.mxu0
      %v8181 = vadd.f32 0.0, %v8180
      %v8182 = vpop.f32.mrf.mxu0
      %8183 = vmatprep.mubr.bf16.mxu0 0
      %8184 = vmatmul.mubr.bf16.gmra.mxu0 %v8004
      %v8185 = vpop.f32.mrf.mxu0
      %v8186 = vadd.f32 0.0, %v8185
      %v8187 = vpop.f32.mrf.mxu0
      %v8188 = vpop.f32.mrf.mxu0
      %v8189 = vadd.f32 0.0, %v8188
      %v8190 = vpop.f32.mrf.mxu0
      %8191 = vmatprep.mubr.bf16.mxu0 0
      %8192 = vmatmul.mubr.bf16.gmra.mxu0 %v8007
      %v8193 = vpop.f32.mrf.mxu0
      %v8194 = vadd.f32 0.0, %v8193
      %v8195 = vpop.f32.mrf.mxu0
      %v8196 = vpop.f32.mrf.mxu0
      %v8197 = vadd.f32 0.0, %v8196
      %v8198 = vpop.f32.mrf.mxu0
      %8199 = vmatprep.mubr.bf16.mxu0 0
      %8200 = vmatmul.mubr.bf16.gmra.mxu0 %v8010
      %v8201 = vpop.f32.mrf.mxu0
      %v8202 = vadd.f32 0.0, %v8201
      %v8203 = vpop.f32.mrf.mxu0
      %v8204 = vpop.f32.mrf.mxu0
      %v8205 = vadd.f32 0.0, %v8204
      %v8206 = vpop.f32.mrf.mxu0
      %8207 = vdwg.mxu0
      %v8208 = vadd.f32 %v7890, %v8050
      %v8209 = vadd.f32 %v7891, %v8053
      %v8210 = vadd.f32 %v7892, %v8058
      %v8211 = vadd.f32 %v7893, %v8061
      %v8212 = vadd.f32 %v7894, %v8066
      %v8213 = vadd.f32 %v7895, %v8069
      %v8214 = vadd.f32 %v7896, %v8074
      %v8215 = vadd.f32 %v7897, %v8077
      %v8216 = vadd.f32 %v7898, %v8082
      %v8217 = vadd.f32 %v7899, %v8085
      %v8218 = vadd.f32 %v7900, %v8090
      %v8219 = vadd.f32 %v7901, %v8093
      %v8220 = vadd.f32 %v7902, %v8098
      %v8221 = vadd.f32 %v7903, %v8101
      %v8222 = vadd.f32 %v7904, %v8106
      %v8223 = vadd.f32 %v7905, %v8109
      %v8224 = vadd.f32 %v7906, %v8114
      %v8225 = vadd.f32 %v7907, %v8117
      %v8226 = vadd.f32 %v7908, %v8122
      %v8227 = vadd.f32 %v7909, %v8125
      %v8228 = vadd.f32 %v7910, %v8130
      %v8229 = vadd.f32 %v7911, %v8133
      %v8230 = vadd.f32 %v7912, %v8138
      %v8231 = vadd.f32 %v7913, %v8141
      %v8232 = vadd.f32 %v7914, %v8146
      %v8233 = vadd.f32 %v7915, %v8149
      %v8234 = vadd.f32 %v7916, %v8154
      %v8235 = vadd.f32 %v7917, %v8157
      %v8236 = vadd.f32 %v7918, %v8162
      %v8237 = vadd.f32 %v7919, %v8165
      %v8238 = vadd.f32 %v7920, %v8170
      %v8239 = vadd.f32 %v7921, %v8173
      %v8240 = vadd.f32 %v7922, %v8178
      %v8241 = vadd.f32 %v7923, %v8181
      %v8242 = vadd.f32 %v7924, %v8186
      %v8243 = vadd.f32 %v7925, %v8189
      %v8244 = vadd.f32 %v7926, %v8194
      %v8245 = vadd.f32 %v7927, %v8197
      %v8246 = vadd.f32 %v7928, %v8202
      %v8247 = vadd.f32 %v7929, %v8205
      %v8248 = vld [vmem:[%s165 + $0x28] sm:$0xf]
      %v8249 = vld [vmem:[%s165 + $0x2c] sm:$0xf]
      %v8250 = vld [vmem:[%s165 + $0x30] sm:$0xf]
      %v8251 = vld [vmem:[%s165 + $0x34] sm:$0xf]
      %v8252 = vld [vmem:[%s165 + $0x38] sm:$0xf]
      %v8253 = vld [vmem:[%s165 + $0x3c] sm:$0xf]
      %v8254 = vld [vmem:[%s165 + $0x40] sm:$0xf]
      %v8255 = vld [vmem:[%s165 + $0x44] sm:$0xf]
      %v8256 = vld [vmem:[%s165 + $0x48] sm:$0xf]
      %v8257 = vld [vmem:[%s165 + $0x4c] sm:$0xf]
      %v8258 = vld [vmem:[%s165 + $0x50] sm:$0xf]
      %v8259 = vld [vmem:[%s165 + $0x54] sm:$0xf]
      %v8260 = vld [vmem:[%s165 + $0x58] sm:$0xf]
      %v8261 = vld [vmem:[%s165 + $0x5c] sm:$0xf]
      %v8262 = vld [vmem:[%s165 + $0x60] sm:$0xf]
      %v8263 = vld [vmem:[%s165 + $0x64] sm:$0xf]
      %v8264 = vld [vmem:[%s165 + $0x68] sm:$0xf]
      %v8265 = vld [vmem:[%s165 + $0x6c] sm:$0xf]
      %v8266 = vld [vmem:[%s165 + $0x70] sm:$0xf]
      %v8267 = vld [vmem:[%s165 + $0x74] sm:$0xf]
      %v8268 = vld [vmem:[%s165 + $0x78] sm:$0xf]
      %v8269 = vld [vmem:[%s165 + $0x7c] sm:$0xf]
      %v8270 = vld [vmem:[%s165 + $0x80] sm:$0xf]
      %v8271 = vld [vmem:[%s165 + $0x84] sm:$0xf]
      %v8272 = vld [vmem:[%s165 + $0x88] sm:$0xf]
      %v8273 = vld [vmem:[%s165 + $0x8c] sm:$0xf]
      %v8274 = vld [vmem:[%s165 + $0x90] sm:$0xf]
      %v8275 = vld [vmem:[%s165 + $0x94] sm:$0xf]
      %v8276 = vld [vmem:[%s165 + $0x98] sm:$0xf]
      %v8277 = vld [vmem:[%s165 + $0x9c] sm:$0xf]
      %v8278 = vld [vmem:[%s165 + $0xa0] sm:$0xf]
      %v8279 = vld [vmem:[%s165 + $0xa4] sm:$0xf]
      %v8280 = vld [vmem:[%s165 + $0xa8] sm:$0xf]
      %v8281 = vld [vmem:[%s165 + $0xac] sm:$0xf]
      %v8282 = vld [vmem:[%s165 + $0xb0] sm:$0xf]
      %v8283 = vld [vmem:[%s165 + $0xb4] sm:$0xf]
      %v8284 = vld [vmem:[%s165 + $0xb8] sm:$0xf]
      %v8285 = vld [vmem:[%s165 + $0xbc] sm:$0xf]
      %v8286 = vld [vmem:[%s165 + $0xc0] sm:$0xf]
      %v8287 = vld [vmem:[%s165 + $0xc4] sm:$0xf]
      %s8288 = scalar_lea.vmem %s1, 40
      %v8289 = vld [vmem:[%s8288] sm:$0x3]
      %v8330 = vunpack.c.l.b16 %v8248
      %v8331 = vunpack.c.l.b16 %v8249
      %v8332 = vunpack.c.l.b16 %v8250
      %v8333 = vunpack.c.l.b16 %v8251
      %v8334 = vunpack.c.l.b16 %v8252
      %v8335 = vunpack.c.l.b16 %v8253
      %v8336 = vunpack.c.l.b16 %v8254
      %v8337 = vunpack.c.l.b16 %v8255
      %v8338 = vunpack.c.l.b16 %v8256
      %v8339 = vunpack.c.l.b16 %v8257
      %v8340 = vunpack.c.l.b16 %v8258
      %v8341 = vunpack.c.l.b16 %v8259
      %v8342 = vunpack.c.l.b16 %v8260
      %v8343 = vunpack.c.l.b16 %v8261
      %v8344 = vunpack.c.l.b16 %v8262
      %v8345 = vunpack.c.l.b16 %v8263
      %v8346 = vunpack.c.l.b16 %v8264
      %v8347 = vunpack.c.l.b16 %v8265
      %v8348 = vunpack.c.l.b16 %v8266
      %v8349 = vunpack.c.l.b16 %v8267
      %v8350 = vunpack.c.l.b16 %v8268
      %v8351 = vunpack.c.l.b16 %v8269
      %v8352 = vunpack.c.l.b16 %v8270
      %v8353 = vunpack.c.l.b16 %v8271
      %v8354 = vunpack.c.l.b16 %v8272
      %v8355 = vunpack.c.l.b16 %v8273
      %v8356 = vunpack.c.l.b16 %v8274
      %v8357 = vunpack.c.l.b16 %v8275
      %v8358 = vunpack.c.l.b16 %v8276
      %v8359 = vunpack.c.l.b16 %v8277
      %v8360 = vunpack.c.l.b16 %v8278
      %v8361 = vunpack.c.l.b16 %v8279
      %v8362 = vunpack.c.l.b16 %v8280
      %v8363 = vunpack.c.l.b16 %v8281
      %v8364 = vunpack.c.l.b16 %v8282
      %v8365 = vunpack.c.l.b16 %v8283
      %v8366 = vunpack.c.l.b16 %v8284
      %v8367 = vunpack.c.l.b16 %v8285
      %v8368 = vunpack.c.l.b16 %v8286
      %v8369 = vunpack.c.l.b16 %v8287
      %v8370 = vpack.c.b16 %v8331, %v8330
      %v8371 = vpack.c.b16 %v8333, %v8332
      %v8372 = vpack.c.b16 %v8335, %v8334
      %v8373 = vpack.c.b16 %v8337, %v8336
      %v8374 = vpack.c.b16 %v8339, %v8338
      %v8375 = vpack.c.b16 %v8341, %v8340
      %v8376 = vpack.c.b16 %v8343, %v8342
      %v8377 = vpack.c.b16 %v8345, %v8344
      %v8378 = vpack.c.b16 %v8347, %v8346
      %v8379 = vpack.c.b16 %v8349, %v8348
      %v8380 = vpack.c.b16 %v8351, %v8350
      %v8381 = vpack.c.b16 %v8353, %v8352
      %v8382 = vpack.c.b16 %v8355, %v8354
      %v8383 = vpack.c.b16 %v8357, %v8356
      %v8384 = vpack.c.b16 %v8359, %v8358
      %v8385 = vpack.c.b16 %v8361, %v8360
      %v8386 = vpack.c.b16 %v8363, %v8362
      %v8387 = vpack.c.b16 %v8365, %v8364
      %v8388 = vpack.c.b16 %v8367, %v8366
      %v8389 = vpack.c.b16 %v8369, %v8368
      %v8391 = vsel %vm484, %v8370, 0
      %v8394 = vsel %vm484, %v8371, 0
      %v8397 = vsel %vm484, %v8372, 0
      %v8400 = vsel %vm484, %v8373, 0
      %v8403 = vsel %vm484, %v8374, 0
      %v8406 = vsel %vm484, %v8375, 0
      %v8409 = vsel %vm484, %v8376, 0
      %v8412 = vsel %vm484, %v8377, 0
      %v8415 = vsel %vm484, %v8378, 0
      %v8418 = vsel %vm484, %v8379, 0
      %v8421 = vsel %vm484, %v8380, 0
      %v8424 = vsel %vm484, %v8381, 0
      %v8427 = vsel %vm484, %v8382, 0
      %v8430 = vsel %vm484, %v8383, 0
      %v8433 = vsel %vm484, %v8384, 0
      %v8436 = vsel %vm484, %v8385, 0
      %v8439 = vsel %vm484, %v8386, 0
      %v8442 = vsel %vm484, %v8387, 0
      %v8445 = vsel %vm484, %v8388, 0
      %v8448 = vsel %vm484, %v8389, 0
      %v8451 = vsel %vm545, %v8289, 0
      %8453 = vmatprep.subr.bf16.mxu0 0
      %8454 = vmatpush1.bf16.msra.mxu0 0
      %8455 = vmatprep.subr.bf16.mxu0 0
      %8456 = vmatpush1.bf16.msra.mxu0 0
      %8457 = vmatprep.subr.bf16.mxu0 0
      %8458 = vmatpush1.bf16.msra.mxu0 0
      %8459 = vmatprep.subr.bf16.mxu0 0
      %8460 = vmatpush1.bf16.msra.mxu0 0
      %8461 = vmatprep.subr.bf16.mxu0 0
      %8462 = vmatpush1.bf16.msra.mxu0 0
      %8463 = vmatprep.subr.bf16.mxu0 0
      %8464 = vmatpush1.bf16.msra.mxu0 0
      %8465 = vmatprep.subr.bf16.mxu0 0
      %8466 = vmatpush1.bf16.msra.mxu0 0
      %8467 = vmatprep.subr.bf16.mxu0 0
      %8468 = vmatpush1.bf16.msra.mxu0 %v8451
      %8469 = vmatprep.subr.bf16.mxu0 0
      %8470 = vmatpush2.bf16.msra.mxu0 0
      %8471 = vmatprep.subr.bf16.mxu0 0
      %8472 = vmatpush2.bf16.msra.mxu0 0
      %8473 = vmatprep.subr.bf16.mxu0 0
      %8474 = vmatpush2.bf16.msra.mxu0 0
      %8475 = vmatprep.subr.bf16.mxu0 0
      %8476 = vmatpush2.bf16.msra.mxu0 0
      %8477 = vmatprep.subr.bf16.mxu0 0
      %8478 = vmatpush2.bf16.msra.mxu0 0
      %8479 = vmatprep.subr.bf16.mxu0 0
      %8480 = vmatpush2.bf16.msra.mxu0 0
      %8481 = vmatprep.subr.bf16.mxu0 0
      %8482 = vmatpush2.bf16.msra.mxu0 0
      %8483 = vmatprep.subr.bf16.mxu0 0
      %8484 = vmatpush2.bf16.msra.mxu0 0
      %8485 = vmatprep.mubr.bf16.mxu0 0
      %8486 = vmatmul.mubr.bf16.gmra.mxu0 %v8391
      %v8487 = vpop.f32.mrf.mxu0
      %v8488 = vadd.f32 0.0, %v8487
      %v8489 = vpop.f32.mrf.mxu0
      %v8490 = vpop.f32.mrf.mxu0
      %v8491 = vadd.f32 0.0, %v8490
      %v8492 = vpop.f32.mrf.mxu0
      %8493 = vmatprep.mubr.bf16.mxu0 0
      %8494 = vmatmul.mubr.bf16.gmra.mxu0 %v8394
      %v8495 = vpop.f32.mrf.mxu0
      %v8496 = vadd.f32 0.0, %v8495
      %v8497 = vpop.f32.mrf.mxu0
      %v8498 = vpop.f32.mrf.mxu0
      %v8499 = vadd.f32 0.0, %v8498
      %v8500 = vpop.f32.mrf.mxu0
      %8501 = vmatprep.mubr.bf16.mxu0 0
      %8502 = vmatmul.mubr.bf16.gmra.mxu0 %v8397
      %v8503 = vpop.f32.mrf.mxu0
      %v8504 = vadd.f32 0.0, %v8503
      %v8505 = vpop.f32.mrf.mxu0
      %v8506 = vpop.f32.mrf.mxu0
      %v8507 = vadd.f32 0.0, %v8506
      %v8508 = vpop.f32.mrf.mxu0
      %8509 = vmatprep.mubr.bf16.mxu0 0
      %8510 = vmatmul.mubr.bf16.gmra.mxu0 %v8400
      %v8511 = vpop.f32.mrf.mxu0
      %v8512 = vadd.f32 0.0, %v8511
      %v8513 = vpop.f32.mrf.mxu0
      %v8514 = vpop.f32.mrf.mxu0
      %v8515 = vadd.f32 0.0, %v8514
      %v8516 = vpop.f32.mrf.mxu0
      %8517 = vmatprep.mubr.bf16.mxu0 0
      %8518 = vmatmul.mubr.bf16.gmra.mxu0 %v8403
      %v8519 = vpop.f32.mrf.mxu0
      %v8520 = vadd.f32 0.0, %v8519
      %v8521 = vpop.f32.mrf.mxu0
      %v8522 = vpop.f32.mrf.mxu0
      %v8523 = vadd.f32 0.0, %v8522
      %v8524 = vpop.f32.mrf.mxu0
      %8525 = vmatprep.mubr.bf16.mxu0 0
      %8526 = vmatmul.mubr.bf16.gmra.mxu0 %v8406
      %v8527 = vpop.f32.mrf.mxu0
      %v8528 = vadd.f32 0.0, %v8527
      %v8529 = vpop.f32.mrf.mxu0
      %v8530 = vpop.f32.mrf.mxu0
      %v8531 = vadd.f32 0.0, %v8530
      %v8532 = vpop.f32.mrf.mxu0
      %8533 = vmatprep.mubr.bf16.mxu0 0
      %8534 = vmatmul.mubr.bf16.gmra.mxu0 %v8409
      %v8535 = vpop.f32.mrf.mxu0
      %v8536 = vadd.f32 0.0, %v8535
      %v8537 = vpop.f32.mrf.mxu0
      %v8538 = vpop.f32.mrf.mxu0
      %v8539 = vadd.f32 0.0, %v8538
      %v8540 = vpop.f32.mrf.mxu0
      %8541 = vmatprep.mubr.bf16.mxu0 0
      %8542 = vmatmul.mubr.bf16.gmra.mxu0 %v8412
      %v8543 = vpop.f32.mrf.mxu0
      %v8544 = vadd.f32 0.0, %v8543
      %v8545 = vpop.f32.mrf.mxu0
      %v8546 = vpop.f32.mrf.mxu0
      %v8547 = vadd.f32 0.0, %v8546
      %v8548 = vpop.f32.mrf.mxu0
      %8549 = vmatprep.mubr.bf16.mxu0 0
      %8550 = vmatmul.mubr.bf16.gmra.mxu0 %v8415
      %v8551 = vpop.f32.mrf.mxu0
      %v8552 = vadd.f32 0.0, %v8551
      %v8553 = vpop.f32.mrf.mxu0
      %v8554 = vpop.f32.mrf.mxu0
      %v8555 = vadd.f32 0.0, %v8554
      %v8556 = vpop.f32.mrf.mxu0
      %8557 = vmatprep.mubr.bf16.mxu0 0
      %8558 = vmatmul.mubr.bf16.gmra.mxu0 %v8418
      %v8559 = vpop.f32.mrf.mxu0
      %v8560 = vadd.f32 0.0, %v8559
      %v8561 = vpop.f32.mrf.mxu0
      %v8562 = vpop.f32.mrf.mxu0
      %v8563 = vadd.f32 0.0, %v8562
      %v8564 = vpop.f32.mrf.mxu0
      %8565 = vmatprep.mubr.bf16.mxu0 0
      %8566 = vmatmul.mubr.bf16.gmra.mxu0 %v8421
      %v8567 = vpop.f32.mrf.mxu0
      %v8568 = vadd.f32 0.0, %v8567
      %v8569 = vpop.f32.mrf.mxu0
      %v8570 = vpop.f32.mrf.mxu0
      %v8571 = vadd.f32 0.0, %v8570
      %v8572 = vpop.f32.mrf.mxu0
      %8573 = vmatprep.mubr.bf16.mxu0 0
      %8574 = vmatmul.mubr.bf16.gmra.mxu0 %v8424
      %v8575 = vpop.f32.mrf.mxu0
      %v8576 = vadd.f32 0.0, %v8575
      %v8577 = vpop.f32.mrf.mxu0
      %v8578 = vpop.f32.mrf.mxu0
      %v8579 = vadd.f32 0.0, %v8578
      %v8580 = vpop.f32.mrf.mxu0
      %8581 = vmatprep.mubr.bf16.mxu0 0
      %8582 = vmatmul.mubr.bf16.gmra.mxu0 %v8427
      %v8583 = vpop.f32.mrf.mxu0
      %v8584 = vadd.f32 0.0, %v8583
      %v8585 = vpop.f32.mrf.mxu0
      %v8586 = vpop.f32.mrf.mxu0
      %v8587 = vadd.f32 0.0, %v8586
      %v8588 = vpop.f32.mrf.mxu0
      %8589 = vmatprep.mubr.bf16.mxu0 0
      %8590 = vmatmul.mubr.bf16.gmra.mxu0 %v8430
      %v8591 = vpop.f32.mrf.mxu0
      %v8592 = vadd.f32 0.0, %v8591
      %v8593 = vpop.f32.mrf.mxu0
      %v8594 = vpop.f32.mrf.mxu0
      %v8595 = vadd.f32 0.0, %v8594
      %v8596 = vpop.f32.mrf.mxu0
      %8597 = vmatprep.mubr.bf16.mxu0 0
      %8598 = vmatmul.mubr.bf16.gmra.mxu0 %v8433
      %v8599 = vpop.f32.mrf.mxu0
      %v8600 = vadd.f32 0.0, %v8599
      %v8601 = vpop.f32.mrf.mxu0
      %v8602 = vpop.f32.mrf.mxu0
      %v8603 = vadd.f32 0.0, %v8602
      %v8604 = vpop.f32.mrf.mxu0
      %8605 = vmatprep.mubr.bf16.mxu0 0
      %8606 = vmatmul.mubr.bf16.gmra.mxu0 %v8436
      %v8607 = vpop.f32.mrf.mxu0
      %v8608 = vadd.f32 0.0, %v8607
      %v8609 = vpop.f32.mrf.mxu0
      %v8610 = vpop.f32.mrf.mxu0
      %v8611 = vadd.f32 0.0, %v8610
      %v8612 = vpop.f32.mrf.mxu0
      %8613 = vmatprep.mubr.bf16.mxu0 0
      %8614 = vmatmul.mubr.bf16.gmra.mxu0 %v8439
      %v8615 = vpop.f32.mrf.mxu0
      %v8616 = vadd.f32 0.0, %v8615
      %v8617 = vpop.f32.mrf.mxu0
      %v8618 = vpop.f32.mrf.mxu0
      %v8619 = vadd.f32 0.0, %v8618
      %v8620 = vpop.f32.mrf.mxu0
      %8621 = vmatprep.mubr.bf16.mxu0 0
      %8622 = vmatmul.mubr.bf16.gmra.mxu0 %v8442
      %v8623 = vpop.f32.mrf.mxu0
      %v8624 = vadd.f32 0.0, %v8623
      %v8625 = vpop.f32.mrf.mxu0
      %v8626 = vpop.f32.mrf.mxu0
      %v8627 = vadd.f32 0.0, %v8626
      %v8628 = vpop.f32.mrf.mxu0
      %8629 = vmatprep.mubr.bf16.mxu0 0
      %8630 = vmatmul.mubr.bf16.gmra.mxu0 %v8445
      %v8631 = vpop.f32.mrf.mxu0
      %v8632 = vadd.f32 0.0, %v8631
      %v8633 = vpop.f32.mrf.mxu0
      %v8634 = vpop.f32.mrf.mxu0
      %v8635 = vadd.f32 0.0, %v8634
      %v8636 = vpop.f32.mrf.mxu0
      %8637 = vmatprep.mubr.bf16.mxu0 0
      %8638 = vmatmul.mubr.bf16.gmra.mxu0 %v8448
      %v8639 = vpop.f32.mrf.mxu0
      %v8640 = vadd.f32 0.0, %v8639
      %v8641 = vpop.f32.mrf.mxu0
      %v8642 = vpop.f32.mrf.mxu0
      %v8643 = vadd.f32 0.0, %v8642
      %v8644 = vpop.f32.mrf.mxu0
      %8645 = vdwg.mxu0
      %v8646 = vadd.f32 %v8208, %v8488
      %v8647 = vadd.f32 %v8209, %v8491
      %v8648 = vadd.f32 %v8210, %v8496
      %v8649 = vadd.f32 %v8211, %v8499
      %v8650 = vadd.f32 %v8212, %v8504
      %v8651 = vadd.f32 %v8213, %v8507
      %v8652 = vadd.f32 %v8214, %v8512
      %v8653 = vadd.f32 %v8215, %v8515
      %v8654 = vadd.f32 %v8216, %v8520
      %v8655 = vadd.f32 %v8217, %v8523
      %v8656 = vadd.f32 %v8218, %v8528
      %v8657 = vadd.f32 %v8219, %v8531
      %v8658 = vadd.f32 %v8220, %v8536
      %v8659 = vadd.f32 %v8221, %v8539
      %v8660 = vadd.f32 %v8222, %v8544
      %v8661 = vadd.f32 %v8223, %v8547
      %v8662 = vadd.f32 %v8224, %v8552
      %v8663 = vadd.f32 %v8225, %v8555
      %v8664 = vadd.f32 %v8226, %v8560
      %v8665 = vadd.f32 %v8227, %v8563
      %v8666 = vadd.f32 %v8228, %v8568
      %v8667 = vadd.f32 %v8229, %v8571
      %v8668 = vadd.f32 %v8230, %v8576
      %v8669 = vadd.f32 %v8231, %v8579
      %v8670 = vadd.f32 %v8232, %v8584
      %v8671 = vadd.f32 %v8233, %v8587
      %v8672 = vadd.f32 %v8234, %v8592
      %v8673 = vadd.f32 %v8235, %v8595
      %v8674 = vadd.f32 %v8236, %v8600
      %v8675 = vadd.f32 %v8237, %v8603
      %v8676 = vadd.f32 %v8238, %v8608
      %v8677 = vadd.f32 %v8239, %v8611
      %v8678 = vadd.f32 %v8240, %v8616
      %v8679 = vadd.f32 %v8241, %v8619
      %v8680 = vadd.f32 %v8242, %v8624
      %v8681 = vadd.f32 %v8243, %v8627
      %v8682 = vadd.f32 %v8244, %v8632
      %v8683 = vadd.f32 %v8245, %v8635
      %v8684 = vadd.f32 %v8246, %v8640
      %v8685 = vadd.f32 %v8247, %v8643
      %v8686 = vld [vmem:[%s165 + $0x28] sm:$0xf]
      %v8687 = vld [vmem:[%s165 + $0x2c] sm:$0xf]
      %v8688 = vld [vmem:[%s165 + $0x30] sm:$0xf]
      %v8689 = vld [vmem:[%s165 + $0x34] sm:$0xf]
      %v8690 = vld [vmem:[%s165 + $0x38] sm:$0xf]
      %v8691 = vld [vmem:[%s165 + $0x3c] sm:$0xf]
      %v8692 = vld [vmem:[%s165 + $0x40] sm:$0xf]
      %v8693 = vld [vmem:[%s165 + $0x44] sm:$0xf]
      %v8694 = vld [vmem:[%s165 + $0x48] sm:$0xf]
      %v8695 = vld [vmem:[%s165 + $0x4c] sm:$0xf]
      %v8696 = vld [vmem:[%s165 + $0x50] sm:$0xf]
      %v8697 = vld [vmem:[%s165 + $0x54] sm:$0xf]
      %v8698 = vld [vmem:[%s165 + $0x58] sm:$0xf]
      %v8699 = vld [vmem:[%s165 + $0x5c] sm:$0xf]
      %v8700 = vld [vmem:[%s165 + $0x60] sm:$0xf]
      %v8701 = vld [vmem:[%s165 + $0x64] sm:$0xf]
      %v8702 = vld [vmem:[%s165 + $0x68] sm:$0xf]
      %v8703 = vld [vmem:[%s165 + $0x6c] sm:$0xf]
      %v8704 = vld [vmem:[%s165 + $0x70] sm:$0xf]
      %v8705 = vld [vmem:[%s165 + $0x74] sm:$0xf]
      %v8706 = vld [vmem:[%s165 + $0x78] sm:$0xf]
      %v8707 = vld [vmem:[%s165 + $0x7c] sm:$0xf]
      %v8708 = vld [vmem:[%s165 + $0x80] sm:$0xf]
      %v8709 = vld [vmem:[%s165 + $0x84] sm:$0xf]
      %v8710 = vld [vmem:[%s165 + $0x88] sm:$0xf]
      %v8711 = vld [vmem:[%s165 + $0x8c] sm:$0xf]
      %v8712 = vld [vmem:[%s165 + $0x90] sm:$0xf]
      %v8713 = vld [vmem:[%s165 + $0x94] sm:$0xf]
      %v8714 = vld [vmem:[%s165 + $0x98] sm:$0xf]
      %v8715 = vld [vmem:[%s165 + $0x9c] sm:$0xf]
      %v8716 = vld [vmem:[%s165 + $0xa0] sm:$0xf]
      %v8717 = vld [vmem:[%s165 + $0xa4] sm:$0xf]
      %v8718 = vld [vmem:[%s165 + $0xa8] sm:$0xf]
      %v8719 = vld [vmem:[%s165 + $0xac] sm:$0xf]
      %v8720 = vld [vmem:[%s165 + $0xb0] sm:$0xf]
      %v8721 = vld [vmem:[%s165 + $0xb4] sm:$0xf]
      %v8722 = vld [vmem:[%s165 + $0xb8] sm:$0xf]
      %v8723 = vld [vmem:[%s165 + $0xbc] sm:$0xf]
      %v8724 = vld [vmem:[%s165 + $0xc0] sm:$0xf]
      %v8725 = vld [vmem:[%s165 + $0xc4] sm:$0xf]
      %v8726 = vld [vmem:[%s165 + $0xc8] sm:$0x1]
      %s8727 = scalar_lea.vmem %s1, 42
      %v8728 = vld [vmem:[%s8727] sm:$0x3]
      %v8770 = vunpack.c.l.b16 %v8686
      %v8771 = vunpack.c.l.b16 %v8687
      %v8772 = vunpack.c.l.b16 %v8688
      %v8773 = vunpack.c.l.b16 %v8689
      %v8774 = vunpack.c.l.b16 %v8690
      %v8775 = vunpack.c.l.b16 %v8691
      %v8776 = vunpack.c.l.b16 %v8692
      %v8777 = vunpack.c.l.b16 %v8693
      %v8778 = vunpack.c.l.b16 %v8694
      %v8779 = vunpack.c.l.b16 %v8695
      %v8780 = vunpack.c.l.b16 %v8696
      %v8781 = vunpack.c.l.b16 %v8697
      %v8782 = vunpack.c.l.b16 %v8698
      %v8783 = vunpack.c.l.b16 %v8699
      %v8784 = vunpack.c.l.b16 %v8700
      %v8785 = vunpack.c.l.b16 %v8701
      %v8786 = vunpack.c.l.b16 %v8702
      %v8787 = vunpack.c.l.b16 %v8703
      %v8788 = vunpack.c.l.b16 %v8704
      %v8789 = vunpack.c.l.b16 %v8705
      %v8790 = vunpack.c.l.b16 %v8706
      %v8791 = vunpack.c.l.b16 %v8707
      %v8792 = vunpack.c.l.b16 %v8708
      %v8793 = vunpack.c.l.b16 %v8709
      %v8794 = vunpack.c.l.b16 %v8710
      %v8795 = vunpack.c.l.b16 %v8711
      %v8796 = vunpack.c.l.b16 %v8712
      %v8797 = vunpack.c.l.b16 %v8713
      %v8798 = vunpack.c.l.b16 %v8714
      %v8799 = vunpack.c.l.b16 %v8715
      %v8800 = vunpack.c.l.b16 %v8716
      %v8801 = vunpack.c.l.b16 %v8717
      %v8802 = vunpack.c.l.b16 %v8718
      %v8803 = vunpack.c.l.b16 %v8719
      %v8804 = vunpack.c.l.b16 %v8720
      %v8805 = vunpack.c.l.b16 %v8721
      %v8806 = vunpack.c.l.b16 %v8722
      %v8807 = vunpack.c.l.b16 %v8723
      %v8808 = vunpack.c.l.b16 %v8724
      %v8809 = vunpack.c.l.b16 %v8725
      %v8810 = vunpack.c.l.b16 %v8726
      %v8811 = vpack.c.b16 %v8771, %v8770
      %v8812 = vpack.c.b16 %v8773, %v8772
      %v8813 = vpack.c.b16 %v8775, %v8774
      %v8814 = vpack.c.b16 %v8777, %v8776
      %v8815 = vpack.c.b16 %v8779, %v8778
      %v8816 = vpack.c.b16 %v8781, %v8780
      %v8817 = vpack.c.b16 %v8783, %v8782
      %v8818 = vpack.c.b16 %v8785, %v8784
      %v8819 = vpack.c.b16 %v8787, %v8786
      %v8820 = vpack.c.b16 %v8789, %v8788
      %v8821 = vpack.c.b16 %v8791, %v8790
      %v8822 = vpack.c.b16 %v8793, %v8792
      %v8823 = vpack.c.b16 %v8795, %v8794
      %v8824 = vpack.c.b16 %v8797, %v8796
      %v8825 = vpack.c.b16 %v8799, %v8798
      %v8826 = vpack.c.b16 %v8801, %v8800
      %v8827 = vpack.c.b16 %v8803, %v8802
      %v8828 = vpack.c.b16 %v8805, %v8804
      %v8829 = vpack.c.b16 %v8807, %v8806
      %v8830 = vpack.c.b16 %v8809, %v8808
      %v8831 = vpack.c.b16 %v8810, %v8810
      %v8833 = vshrl.u32 %v8811, 16
      %v8835 = vshll.u32 %v8811, 16
      %v8837 = vrot.slane %v8835, 1
      %v8838 = vor.u32 %v8833, %v8837
      %v8840 = vshll.u32 %v8812, 16
      %v8842 = vrot.slane %v8840, 1
      %v8843 = vsel %vm319, %v8838, %v8842
      %v8844 = vshrl.u32 %v8812, 16
      %v8846 = vor.u32 %v8844, %v8842
      %v8848 = vshll.u32 %v8813, 16
      %v8850 = vrot.slane %v8848, 1
      %v8851 = vsel %vm319, %v8846, %v8850
      %v8852 = vshrl.u32 %v8813, 16
      %v8854 = vor.u32 %v8852, %v8850
      %v8856 = vshll.u32 %v8814, 16
      %v8858 = vrot.slane %v8856, 1
      %v8859 = vsel %vm319, %v8854, %v8858
      %v8860 = vshrl.u32 %v8814, 16
      %v8862 = vor.u32 %v8860, %v8858
      %v8864 = vshll.u32 %v8815, 16
      %v8866 = vrot.slane %v8864, 1
      %v8867 = vsel %vm319, %v8862, %v8866
      %v8868 = vshrl.u32 %v8815, 16
      %v8870 = vor.u32 %v8868, %v8866
      %v8872 = vshll.u32 %v8816, 16
      %v8874 = vrot.slane %v8872, 1
      %v8875 = vsel %vm319, %v8870, %v8874
      %v8876 = vshrl.u32 %v8816, 16
      %v8878 = vor.u32 %v8876, %v8874
      %v8880 = vshll.u32 %v8817, 16
      %v8882 = vrot.slane %v8880, 1
      %v8883 = vsel %vm319, %v8878, %v8882
      %v8884 = vshrl.u32 %v8817, 16
      %v8886 = vor.u32 %v8884, %v8882
      %v8888 = vshll.u32 %v8818, 16
      %v8890 = vrot.slane %v8888, 1
      %v8891 = vsel %vm319, %v8886, %v8890
      %v8892 = vshrl.u32 %v8818, 16
      %v8894 = vor.u32 %v8892, %v8890
      %v8896 = vshll.u32 %v8819, 16
      %v8898 = vrot.slane %v8896, 1
      %v8899 = vsel %vm319, %v8894, %v8898
      %v8900 = vshrl.u32 %v8819, 16
      %v8902 = vor.u32 %v8900, %v8898
      %v8904 = vshll.u32 %v8820, 16
      %v8906 = vrot.slane %v8904, 1
      %v8907 = vsel %vm319, %v8902, %v8906
      %v8908 = vshrl.u32 %v8820, 16
      %v8910 = vor.u32 %v8908, %v8906
      %v8912 = vshll.u32 %v8821, 16
      %v8914 = vrot.slane %v8912, 1
      %v8915 = vsel %vm319, %v8910, %v8914
      %v8916 = vshrl.u32 %v8821, 16
      %v8918 = vor.u32 %v8916, %v8914
      %v8920 = vshll.u32 %v8822, 16
      %v8922 = vrot.slane %v8920, 1
      %v8923 = vsel %vm319, %v8918, %v8922
      %v8924 = vshrl.u32 %v8822, 16
      %v8926 = vor.u32 %v8924, %v8922
      %v8928 = vshll.u32 %v8823, 16
      %v8930 = vrot.slane %v8928, 1
      %v8931 = vsel %vm319, %v8926, %v8930
      %v8932 = vshrl.u32 %v8823, 16
      %v8934 = vor.u32 %v8932, %v8930
      %v8936 = vshll.u32 %v8824, 16
      %v8938 = vrot.slane %v8936, 1
      %v8939 = vsel %vm319, %v8934, %v8938
      %v8940 = vshrl.u32 %v8824, 16
      %v8942 = vor.u32 %v8940, %v8938
      %v8944 = vshll.u32 %v8825, 16
      %v8946 = vrot.slane %v8944, 1
      %v8947 = vsel %vm319, %v8942, %v8946
      %v8948 = vshrl.u32 %v8825, 16
      %v8950 = vor.u32 %v8948, %v8946
      %v8952 = vshll.u32 %v8826, 16
      %v8954 = vrot.slane %v8952, 1
      %v8955 = vsel %vm319, %v8950, %v8954
      %v8956 = vshrl.u32 %v8826, 16
      %v8958 = vor.u32 %v8956, %v8954
      %v8960 = vshll.u32 %v8827, 16
      %v8962 = vrot.slane %v8960, 1
      %v8963 = vsel %vm319, %v8958, %v8962
      %v8964 = vshrl.u32 %v8827, 16
      %v8966 = vor.u32 %v8964, %v8962
      %v8968 = vshll.u32 %v8828, 16
      %v8970 = vrot.slane %v8968, 1
      %v8971 = vsel %vm319, %v8966, %v8970
      %v8972 = vshrl.u32 %v8828, 16
      %v8974 = vor.u32 %v8972, %v8970
      %v8976 = vshll.u32 %v8829, 16
      %v8978 = vrot.slane %v8976, 1
      %v8979 = vsel %vm319, %v8974, %v8978
      %v8980 = vshrl.u32 %v8829, 16
      %v8982 = vor.u32 %v8980, %v8978
      %v8984 = vshll.u32 %v8830, 16
      %v8986 = vrot.slane %v8984, 1
      %v8987 = vsel %vm319, %v8982, %v8986
      %v8988 = vshrl.u32 %v8830, 16
      %v8990 = vor.u32 %v8988, %v8986
      %v8992 = vshll.u32 %v8831, 16
      %v8994 = vrot.slane %v8992, 1
      %v8995 = vsel %vm319, %v8990, %v8994
      %v8997 = vsel %vm484, %v8843, 0
      %v9000 = vsel %vm484, %v8851, 0
      %v9003 = vsel %vm484, %v8859, 0
      %v9006 = vsel %vm484, %v8867, 0
      %v9009 = vsel %vm484, %v8875, 0
      %v9012 = vsel %vm484, %v8883, 0
      %v9015 = vsel %vm484, %v8891, 0
      %v9018 = vsel %vm484, %v8899, 0
      %v9021 = vsel %vm484, %v8907, 0
      %v9024 = vsel %vm484, %v8915, 0
      %v9027 = vsel %vm484, %v8923, 0
      %v9030 = vsel %vm484, %v8931, 0
      %v9033 = vsel %vm484, %v8939, 0
      %v9036 = vsel %vm484, %v8947, 0
      %v9039 = vsel %vm484, %v8955, 0
      %v9042 = vsel %vm484, %v8963, 0
      %v9045 = vsel %vm484, %v8971, 0
      %v9048 = vsel %vm484, %v8979, 0
      %v9051 = vsel %vm484, %v8987, 0
      %v9054 = vsel %vm484, %v8995, 0
      %v9057 = vsel %vm545, %v8728, 0
      %9059 = vmatprep.subr.bf16.mxu0 0
      %9060 = vmatpush1.bf16.msra.mxu0 0
      %9061 = vmatprep.subr.bf16.mxu0 0
      %9062 = vmatpush1.bf16.msra.mxu0 0
      %9063 = vmatprep.subr.bf16.mxu0 0
      %9064 = vmatpush1.bf16.msra.mxu0 0
      %9065 = vmatprep.subr.bf16.mxu0 0
      %9066 = vmatpush1.bf16.msra.mxu0 0
      %9067 = vmatprep.subr.bf16.mxu0 0
      %9068 = vmatpush1.bf16.msra.mxu0 0
      %9069 = vmatprep.subr.bf16.mxu0 0
      %9070 = vmatpush1.bf16.msra.mxu0 0
      %9071 = vmatprep.subr.bf16.mxu0 0
      %9072 = vmatpush1.bf16.msra.mxu0 0
      %9073 = vmatprep.subr.bf16.mxu0 0
      %9074 = vmatpush1.bf16.msra.mxu0 %v9057
      %9075 = vmatprep.subr.bf16.mxu0 0
      %9076 = vmatpush2.bf16.msra.mxu0 0
      %9077 = vmatprep.subr.bf16.mxu0 0
      %9078 = vmatpush2.bf16.msra.mxu0 0
      %9079 = vmatprep.subr.bf16.mxu0 0
      %9080 = vmatpush2.bf16.msra.mxu0 0
      %9081 = vmatprep.subr.bf16.mxu0 0
      %9082 = vmatpush2.bf16.msra.mxu0 0
      %9083 = vmatprep.subr.bf16.mxu0 0
      %9084 = vmatpush2.bf16.msra.mxu0 0
      %9085 = vmatprep.subr.bf16.mxu0 0
      %9086 = vmatpush2.bf16.msra.mxu0 0
      %9087 = vmatprep.subr.bf16.mxu0 0
      %9088 = vmatpush2.bf16.msra.mxu0 0
      %9089 = vmatprep.subr.bf16.mxu0 0
      %9090 = vmatpush2.bf16.msra.mxu0 0
      %9091 = vmatprep.mubr.bf16.mxu0 0
      %9092 = vmatmul.mubr.bf16.gmra.mxu0 %v8997
      %v9093 = vpop.f32.mrf.mxu0
      %v9094 = vadd.f32 0.0, %v9093
      %v9095 = vpop.f32.mrf.mxu0
      %v9096 = vpop.f32.mrf.mxu0
      %v9097 = vadd.f32 0.0, %v9096
      %v9098 = vpop.f32.mrf.mxu0
      %9099 = vmatprep.mubr.bf16.mxu0 0
      %9100 = vmatmul.mubr.bf16.gmra.mxu0 %v9000
      %v9101 = vpop.f32.mrf.mxu0
      %v9102 = vadd.f32 0.0, %v9101
      %v9103 = vpop.f32.mrf.mxu0
      %v9104 = vpop.f32.mrf.mxu0
      %v9105 = vadd.f32 0.0, %v9104
      %v9106 = vpop.f32.mrf.mxu0
      %9107 = vmatprep.mubr.bf16.mxu0 0
      %9108 = vmatmul.mubr.bf16.gmra.mxu0 %v9003
      %v9109 = vpop.f32.mrf.mxu0
      %v9110 = vadd.f32 0.0, %v9109
      %v9111 = vpop.f32.mrf.mxu0
      %v9112 = vpop.f32.mrf.mxu0
      %v9113 = vadd.f32 0.0, %v9112
      %v9114 = vpop.f32.mrf.mxu0
      %9115 = vmatprep.mubr.bf16.mxu0 0
      %9116 = vmatmul.mubr.bf16.gmra.mxu0 %v9006
      %v9117 = vpop.f32.mrf.mxu0
      %v9118 = vadd.f32 0.0, %v9117
      %v9119 = vpop.f32.mrf.mxu0
      %v9120 = vpop.f32.mrf.mxu0
      %v9121 = vadd.f32 0.0, %v9120
      %v9122 = vpop.f32.mrf.mxu0
      %9123 = vmatprep.mubr.bf16.mxu0 0
      %9124 = vmatmul.mubr.bf16.gmra.mxu0 %v9009
      %v9125 = vpop.f32.mrf.mxu0
      %v9126 = vadd.f32 0.0, %v9125
      %v9127 = vpop.f32.mrf.mxu0
      %v9128 = vpop.f32.mrf.mxu0
      %v9129 = vadd.f32 0.0, %v9128
      %v9130 = vpop.f32.mrf.mxu0
      %9131 = vmatprep.mubr.bf16.mxu0 0
      %9132 = vmatmul.mubr.bf16.gmra.mxu0 %v9012
      %v9133 = vpop.f32.mrf.mxu0
      %v9134 = vadd.f32 0.0, %v9133
      %v9135 = vpop.f32.mrf.mxu0
      %v9136 = vpop.f32.mrf.mxu0
      %v9137 = vadd.f32 0.0, %v9136
      %v9138 = vpop.f32.mrf.mxu0
      %9139 = vmatprep.mubr.bf16.mxu0 0
      %9140 = vmatmul.mubr.bf16.gmra.mxu0 %v9015
      %v9141 = vpop.f32.mrf.mxu0
      %v9142 = vadd.f32 0.0, %v9141
      %v9143 = vpop.f32.mrf.mxu0
      %v9144 = vpop.f32.mrf.mxu0
      %v9145 = vadd.f32 0.0, %v9144
      %v9146 = vpop.f32.mrf.mxu0
      %9147 = vmatprep.mubr.bf16.mxu0 0
      %9148 = vmatmul.mubr.bf16.gmra.mxu0 %v9018
      %v9149 = vpop.f32.mrf.mxu0
      %v9150 = vadd.f32 0.0, %v9149
      %v9151 = vpop.f32.mrf.mxu0
      %v9152 = vpop.f32.mrf.mxu0
      %v9153 = vadd.f32 0.0, %v9152
      %v9154 = vpop.f32.mrf.mxu0
      %9155 = vmatprep.mubr.bf16.mxu0 0
      %9156 = vmatmul.mubr.bf16.gmra.mxu0 %v9021
      %v9157 = vpop.f32.mrf.mxu0
      %v9158 = vadd.f32 0.0, %v9157
      %v9159 = vpop.f32.mrf.mxu0
      %v9160 = vpop.f32.mrf.mxu0
      %v9161 = vadd.f32 0.0, %v9160
      %v9162 = vpop.f32.mrf.mxu0
      %9163 = vmatprep.mubr.bf16.mxu0 0
      %9164 = vmatmul.mubr.bf16.gmra.mxu0 %v9024
      %v9165 = vpop.f32.mrf.mxu0
      %v9166 = vadd.f32 0.0, %v9165
      %v9167 = vpop.f32.mrf.mxu0
      %v9168 = vpop.f32.mrf.mxu0
      %v9169 = vadd.f32 0.0, %v9168
      %v9170 = vpop.f32.mrf.mxu0
      %9171 = vmatprep.mubr.bf16.mxu0 0
      %9172 = vmatmul.mubr.bf16.gmra.mxu0 %v9027
      %v9173 = vpop.f32.mrf.mxu0
      %v9174 = vadd.f32 0.0, %v9173
      %v9175 = vpop.f32.mrf.mxu0
      %v9176 = vpop.f32.mrf.mxu0
      %v9177 = vadd.f32 0.0, %v9176
      %v9178 = vpop.f32.mrf.mxu0
      %9179 = vmatprep.mubr.bf16.mxu0 0
      %9180 = vmatmul.mubr.bf16.gmra.mxu0 %v9030
      %v9181 = vpop.f32.mrf.mxu0
      %v9182 = vadd.f32 0.0, %v9181
      %v9183 = vpop.f32.mrf.mxu0
      %v9184 = vpop.f32.mrf.mxu0
      %v9185 = vadd.f32 0.0, %v9184
      %v9186 = vpop.f32.mrf.mxu0
      %9187 = vmatprep.mubr.bf16.mxu0 0
      %9188 = vmatmul.mubr.bf16.gmra.mxu0 %v9033
      %v9189 = vpop.f32.mrf.mxu0
      %v9190 = vadd.f32 0.0, %v9189
      %v9191 = vpop.f32.mrf.mxu0
      %v9192 = vpop.f32.mrf.mxu0
      %v9193 = vadd.f32 0.0, %v9192
      %v9194 = vpop.f32.mrf.mxu0
      %9195 = vmatprep.mubr.bf16.mxu0 0
      %9196 = vmatmul.mubr.bf16.gmra.mxu0 %v9036
      %v9197 = vpop.f32.mrf.mxu0
      %v9198 = vadd.f32 0.0, %v9197
      %v9199 = vpop.f32.mrf.mxu0
      %v9200 = vpop.f32.mrf.mxu0
      %v9201 = vadd.f32 0.0, %v9200
      %v9202 = vpop.f32.mrf.mxu0
      %9203 = vmatprep.mubr.bf16.mxu0 0
      %9204 = vmatmul.mubr.bf16.gmra.mxu0 %v9039
      %v9205 = vpop.f32.mrf.mxu0
      %v9206 = vadd.f32 0.0, %v9205
      %v9207 = vpop.f32.mrf.mxu0
      %v9208 = vpop.f32.mrf.mxu0
      %v9209 = vadd.f32 0.0, %v9208
      %v9210 = vpop.f32.mrf.mxu0
      %9211 = vmatprep.mubr.bf16.mxu0 0
      %9212 = vmatmul.mubr.bf16.gmra.mxu0 %v9042
      %v9213 = vpop.f32.mrf.mxu0
      %v9214 = vadd.f32 0.0, %v9213
      %v9215 = vpop.f32.mrf.mxu0
      %v9216 = vpop.f32.mrf.mxu0
      %v9217 = vadd.f32 0.0, %v9216
      %v9218 = vpop.f32.mrf.mxu0
      %9219 = vmatprep.mubr.bf16.mxu0 0
      %9220 = vmatmul.mubr.bf16.gmra.mxu0 %v9045
      %v9221 = vpop.f32.mrf.mxu0
      %v9222 = vadd.f32 0.0, %v9221
      %v9223 = vpop.f32.mrf.mxu0
      %v9224 = vpop.f32.mrf.mxu0
      %v9225 = vadd.f32 0.0, %v9224
      %v9226 = vpop.f32.mrf.mxu0
      %9227 = vmatprep.mubr.bf16.mxu0 0
      %9228 = vmatmul.mubr.bf16.gmra.mxu0 %v9048
      %v9229 = vpop.f32.mrf.mxu0
      %v9230 = vadd.f32 0.0, %v9229
      %v9231 = vpop.f32.mrf.mxu0
      %v9232 = vpop.f32.mrf.mxu0
      %v9233 = vadd.f32 0.0, %v9232
      %v9234 = vpop.f32.mrf.mxu0
      %9235 = vmatprep.mubr.bf16.mxu0 0
      %9236 = vmatmul.mubr.bf16.gmra.mxu0 %v9051
      %v9237 = vpop.f32.mrf.mxu0
      %v9238 = vadd.f32 0.0, %v9237
      %v9239 = vpop.f32.mrf.mxu0
      %v9240 = vpop.f32.mrf.mxu0
      %v9241 = vadd.f32 0.0, %v9240
      %v9242 = vpop.f32.mrf.mxu0
      %9243 = vmatprep.mubr.bf16.mxu0 0
      %9244 = vmatmul.mubr.bf16.gmra.mxu0 %v9054
      %v9245 = vpop.f32.mrf.mxu0
      %v9246 = vadd.f32 0.0, %v9245
      %v9247 = vpop.f32.mrf.mxu0
      %v9248 = vpop.f32.mrf.mxu0
      %v9249 = vadd.f32 0.0, %v9248
      %v9250 = vpop.f32.mrf.mxu0
      %9251 = vdwg.mxu0
      %v9252 = vadd.f32 %v8646, %v9094
      %v9253 = vadd.f32 %v8647, %v9097
      %v9254 = vadd.f32 %v8648, %v9102
      %v9255 = vadd.f32 %v8649, %v9105
      %v9256 = vadd.f32 %v8650, %v9110
      %v9257 = vadd.f32 %v8651, %v9113
      %v9258 = vadd.f32 %v8652, %v9118
      %v9259 = vadd.f32 %v8653, %v9121
      %v9260 = vadd.f32 %v8654, %v9126
      %v9261 = vadd.f32 %v8655, %v9129
      %v9262 = vadd.f32 %v8656, %v9134
      %v9263 = vadd.f32 %v8657, %v9137
      %v9264 = vadd.f32 %v8658, %v9142
      %v9265 = vadd.f32 %v8659, %v9145
      %v9266 = vadd.f32 %v8660, %v9150
      %v9267 = vadd.f32 %v8661, %v9153
      %v9268 = vadd.f32 %v8662, %v9158
      %v9269 = vadd.f32 %v8663, %v9161
      %v9270 = vadd.f32 %v8664, %v9166
      %v9271 = vadd.f32 %v8665, %v9169
      %v9272 = vadd.f32 %v8666, %v9174
      %v9273 = vadd.f32 %v8667, %v9177
      %v9274 = vadd.f32 %v8668, %v9182
      %v9275 = vadd.f32 %v8669, %v9185
      %v9276 = vadd.f32 %v8670, %v9190
      %v9277 = vadd.f32 %v8671, %v9193
      %v9278 = vadd.f32 %v8672, %v9198
      %v9279 = vadd.f32 %v8673, %v9201
      %v9280 = vadd.f32 %v8674, %v9206
      %v9281 = vadd.f32 %v8675, %v9209
      %v9282 = vadd.f32 %v8676, %v9214
      %v9283 = vadd.f32 %v8677, %v9217
      %v9284 = vadd.f32 %v8678, %v9222
      %v9285 = vadd.f32 %v8679, %v9225
      %v9286 = vadd.f32 %v8680, %v9230
      %v9287 = vadd.f32 %v8681, %v9233
      %v9288 = vadd.f32 %v8682, %v9238
      %v9289 = vadd.f32 %v8683, %v9241
      %v9290 = vadd.f32 %v8684, %v9246
      %v9291 = vadd.f32 %v8685, %v9249
      %v9292 = vld [vmem:[%s165 + $0x28] sm:$0xe]
      %s9293 = scalar_lea.vmem %s1, 44
      %v9294 = vld [vmem:[%s9293] sm:$0x3]
      %v9296 = vunpack.c.l.b16 %v9292
      %v9297 = vpack.c.b16 %v8771, %v9296
      %v9298 = vrot.slane %v9297, 1
      %v9299 = vrot.slane %v8812, 1
      %v9300 = vsel %vm984, %v9298, %v9299
      %v9301 = vrot.slane %v8813, 1
      %v9302 = vsel %vm984, %v9299, %v9301
      %v9303 = vrot.slane %v8814, 1
      %v9304 = vsel %vm984, %v9301, %v9303
      %v9305 = vrot.slane %v8815, 1
      %v9306 = vsel %vm984, %v9303, %v9305
      %v9307 = vrot.slane %v8816, 1
      %v9308 = vsel %vm984, %v9305, %v9307
      %v9309 = vrot.slane %v8817, 1
      %v9310 = vsel %vm984, %v9307, %v9309
      %v9311 = vrot.slane %v8818, 1
      %v9312 = vsel %vm984, %v9309, %v9311
      %v9313 = vrot.slane %v8819, 1
      %v9314 = vsel %vm984, %v9311, %v9313
      %v9315 = vrot.slane %v8820, 1
      %v9316 = vsel %vm984, %v9313, %v9315
      %v9317 = vrot.slane %v8821, 1
      %v9318 = vsel %vm984, %v9315, %v9317
      %v9319 = vrot.slane %v8822, 1
      %v9320 = vsel %vm984, %v9317, %v9319
      %v9321 = vrot.slane %v8823, 1
      %v9322 = vsel %vm984, %v9319, %v9321
      %v9323 = vrot.slane %v8824, 1
      %v9324 = vsel %vm984, %v9321, %v9323
      %v9325 = vrot.slane %v8825, 1
      %v9326 = vsel %vm984, %v9323, %v9325
      %v9327 = vrot.slane %v8826, 1
      %v9328 = vsel %vm984, %v9325, %v9327
      %v9329 = vrot.slane %v8827, 1
      %v9330 = vsel %vm984, %v9327, %v9329
      %v9331 = vrot.slane %v8828, 1
      %v9332 = vsel %vm984, %v9329, %v9331
      %v9333 = vrot.slane %v8829, 1
      %v9334 = vsel %vm984, %v9331, %v9333
      %v9335 = vrot.slane %v8830, 1
      %v9336 = vsel %vm984, %v9333, %v9335
      %v9337 = vrot.slane %v8831, 1
      %v9338 = vsel %vm984, %v9335, %v9337
      %v9340 = vsel %vm484, %v9300, 0
      %v9343 = vsel %vm484, %v9302, 0
      %v9346 = vsel %vm484, %v9304, 0
      %v9349 = vsel %vm484, %v9306, 0
      %v9352 = vsel %vm484, %v9308, 0
      %v9355 = vsel %vm484, %v9310, 0
      %v9358 = vsel %vm484, %v9312, 0
      %v9361 = vsel %vm484, %v9314, 0
      %v9364 = vsel %vm484, %v9316, 0
      %v9367 = vsel %vm484, %v9318, 0
      %v9370 = vsel %vm484, %v9320, 0
      %v9373 = vsel %vm484, %v9322, 0
      %v9376 = vsel %vm484, %v9324, 0
      %v9379 = vsel %vm484, %v9326, 0
      %v9382 = vsel %vm484, %v9328, 0
      %v9385 = vsel %vm484, %v9330, 0
      %v9388 = vsel %vm484, %v9332, 0
      %v9391 = vsel %vm484, %v9334, 0
      %v9394 = vsel %vm484, %v9336, 0
      %v9397 = vsel %vm484, %v9338, 0
      %v9400 = vsel %vm545, %v9294, 0
      %9402 = vmatprep.subr.bf16.mxu0 0
      %9403 = vmatpush1.bf16.msra.mxu0 0
      %9404 = vmatprep.subr.bf16.mxu0 0
      %9405 = vmatpush1.bf16.msra.mxu0 0
      %9406 = vmatprep.subr.bf16.mxu0 0
      %9407 = vmatpush1.bf16.msra.mxu0 0
      %9408 = vmatprep.subr.bf16.mxu0 0
      %9409 = vmatpush1.bf16.msra.mxu0 0
      %9410 = vmatprep.subr.bf16.mxu0 0
      %9411 = vmatpush1.bf16.msra.mxu0 0
      %9412 = vmatprep.subr.bf16.mxu0 0
      %9413 = vmatpush1.bf16.msra.mxu0 0
      %9414 = vmatprep.subr.bf16.mxu0 0
      %9415 = vmatpush1.bf16.msra.mxu0 0
      %9416 = vmatprep.subr.bf16.mxu0 0
      %9417 = vmatpush1.bf16.msra.mxu0 %v9400
      %9418 = vmatprep.subr.bf16.mxu0 0
      %9419 = vmatpush2.bf16.msra.mxu0 0
      %9420 = vmatprep.subr.bf16.mxu0 0
      %9421 = vmatpush2.bf16.msra.mxu0 0
      %9422 = vmatprep.subr.bf16.mxu0 0
      %9423 = vmatpush2.bf16.msra.mxu0 0
      %9424 = vmatprep.subr.bf16.mxu0 0
      %9425 = vmatpush2.bf16.msra.mxu0 0
      %9426 = vmatprep.subr.bf16.mxu0 0
      %9427 = vmatpush2.bf16.msra.mxu0 0
      %9428 = vmatprep.subr.bf16.mxu0 0
      %9429 = vmatpush2.bf16.msra.mxu0 0
      %9430 = vmatprep.subr.bf16.mxu0 0
      %9431 = vmatpush2.bf16.msra.mxu0 0
      %9432 = vmatprep.subr.bf16.mxu0 0
      %9433 = vmatpush2.bf16.msra.mxu0 0
      %9434 = vmatprep.mubr.bf16.mxu0 0
      %9435 = vmatmul.mubr.bf16.gmra.mxu0 %v9340
      %v9436 = vpop.f32.mrf.mxu0
      %v9437 = vadd.f32 0.0, %v9436
      %v9438 = vpop.f32.mrf.mxu0
      %v9439 = vpop.f32.mrf.mxu0
      %v9440 = vadd.f32 0.0, %v9439
      %v9441 = vpop.f32.mrf.mxu0
      %9442 = vmatprep.mubr.bf16.mxu0 0
      %9443 = vmatmul.mubr.bf16.gmra.mxu0 %v9343
      %v9444 = vpop.f32.mrf.mxu0
      %v9445 = vadd.f32 0.0, %v9444
      %v9446 = vpop.f32.mrf.mxu0
      %v9447 = vpop.f32.mrf.mxu0
      %v9448 = vadd.f32 0.0, %v9447
      %v9449 = vpop.f32.mrf.mxu0
      %9450 = vmatprep.mubr.bf16.mxu0 0
      %9451 = vmatmul.mubr.bf16.gmra.mxu0 %v9346
      %v9452 = vpop.f32.mrf.mxu0
      %v9453 = vadd.f32 0.0, %v9452
      %v9454 = vpop.f32.mrf.mxu0
      %v9455 = vpop.f32.mrf.mxu0
      %v9456 = vadd.f32 0.0, %v9455
      %v9457 = vpop.f32.mrf.mxu0
      %9458 = vmatprep.mubr.bf16.mxu0 0
      %9459 = vmatmul.mubr.bf16.gmra.mxu0 %v9349
      %v9460 = vpop.f32.mrf.mxu0
      %v9461 = vadd.f32 0.0, %v9460
      %v9462 = vpop.f32.mrf.mxu0
      %v9463 = vpop.f32.mrf.mxu0
      %v9464 = vadd.f32 0.0, %v9463
      %v9465 = vpop.f32.mrf.mxu0
      %9466 = vmatprep.mubr.bf16.mxu0 0
      %9467 = vmatmul.mubr.bf16.gmra.mxu0 %v9352
      %v9468 = vpop.f32.mrf.mxu0
      %v9469 = vadd.f32 0.0, %v9468
      %v9470 = vpop.f32.mrf.mxu0
      %v9471 = vpop.f32.mrf.mxu0
      %v9472 = vadd.f32 0.0, %v9471
      %v9473 = vpop.f32.mrf.mxu0
      %9474 = vmatprep.mubr.bf16.mxu0 0
      %9475 = vmatmul.mubr.bf16.gmra.mxu0 %v9355
      %v9476 = vpop.f32.mrf.mxu0
      %v9477 = vadd.f32 0.0, %v9476
      %v9478 = vpop.f32.mrf.mxu0
      %v9479 = vpop.f32.mrf.mxu0
      %v9480 = vadd.f32 0.0, %v9479
      %v9481 = vpop.f32.mrf.mxu0
      %9482 = vmatprep.mubr.bf16.mxu0 0
      %9483 = vmatmul.mubr.bf16.gmra.mxu0 %v9358
      %v9484 = vpop.f32.mrf.mxu0
      %v9485 = vadd.f32 0.0, %v9484
      %v9486 = vpop.f32.mrf.mxu0
      %v9487 = vpop.f32.mrf.mxu0
      %v9488 = vadd.f32 0.0, %v9487
      %v9489 = vpop.f32.mrf.mxu0
      %9490 = vmatprep.mubr.bf16.mxu0 0
      %9491 = vmatmul.mubr.bf16.gmra.mxu0 %v9361
      %v9492 = vpop.f32.mrf.mxu0
      %v9493 = vadd.f32 0.0, %v9492
      %v9494 = vpop.f32.mrf.mxu0
      %v9495 = vpop.f32.mrf.mxu0
      %v9496 = vadd.f32 0.0, %v9495
      %v9497 = vpop.f32.mrf.mxu0
      %9498 = vmatprep.mubr.bf16.mxu0 0
      %9499 = vmatmul.mubr.bf16.gmra.mxu0 %v9364
      %v9500 = vpop.f32.mrf.mxu0
      %v9501 = vadd.f32 0.0, %v9500
      %v9502 = vpop.f32.mrf.mxu0
      %v9503 = vpop.f32.mrf.mxu0
      %v9504 = vadd.f32 0.0, %v9503
      %v9505 = vpop.f32.mrf.mxu0
      %9506 = vmatprep.mubr.bf16.mxu0 0
      %9507 = vmatmul.mubr.bf16.gmra.mxu0 %v9367
      %v9508 = vpop.f32.mrf.mxu0
      %v9509 = vadd.f32 0.0, %v9508
      %v9510 = vpop.f32.mrf.mxu0
      %v9511 = vpop.f32.mrf.mxu0
      %v9512 = vadd.f32 0.0, %v9511
      %v9513 = vpop.f32.mrf.mxu0
      %9514 = vmatprep.mubr.bf16.mxu0 0
      %9515 = vmatmul.mubr.bf16.gmra.mxu0 %v9370
      %v9516 = vpop.f32.mrf.mxu0
      %v9517 = vadd.f32 0.0, %v9516
      %v9518 = vpop.f32.mrf.mxu0
      %v9519 = vpop.f32.mrf.mxu0
      %v9520 = vadd.f32 0.0, %v9519
      %v9521 = vpop.f32.mrf.mxu0
      %9522 = vmatprep.mubr.bf16.mxu0 0
      %9523 = vmatmul.mubr.bf16.gmra.mxu0 %v9373
      %v9524 = vpop.f32.mrf.mxu0
      %v9525 = vadd.f32 0.0, %v9524
      %v9526 = vpop.f32.mrf.mxu0
      %v9527 = vpop.f32.mrf.mxu0
      %v9528 = vadd.f32 0.0, %v9527
      %v9529 = vpop.f32.mrf.mxu0
      %9530 = vmatprep.mubr.bf16.mxu0 0
      %9531 = vmatmul.mubr.bf16.gmra.mxu0 %v9376
      %v9532 = vpop.f32.mrf.mxu0
      %v9533 = vadd.f32 0.0, %v9532
      %v9534 = vpop.f32.mrf.mxu0
      %v9535 = vpop.f32.mrf.mxu0
      %v9536 = vadd.f32 0.0, %v9535
      %v9537 = vpop.f32.mrf.mxu0
      %9538 = vmatprep.mubr.bf16.mxu0 0
      %9539 = vmatmul.mubr.bf16.gmra.mxu0 %v9379
      %v9540 = vpop.f32.mrf.mxu0
      %v9541 = vadd.f32 0.0, %v9540
      %v9542 = vpop.f32.mrf.mxu0
      %v9543 = vpop.f32.mrf.mxu0
      %v9544 = vadd.f32 0.0, %v9543
      %v9545 = vpop.f32.mrf.mxu0
      %9546 = vmatprep.mubr.bf16.mxu0 0
      %9547 = vmatmul.mubr.bf16.gmra.mxu0 %v9382
      %v9548 = vpop.f32.mrf.mxu0
      %v9549 = vadd.f32 0.0, %v9548
      %v9550 = vpop.f32.mrf.mxu0
      %v9551 = vpop.f32.mrf.mxu0
      %v9552 = vadd.f32 0.0, %v9551
      %v9553 = vpop.f32.mrf.mxu0
      %9554 = vmatprep.mubr.bf16.mxu0 0
      %9555 = vmatmul.mubr.bf16.gmra.mxu0 %v9385
      %v9556 = vpop.f32.mrf.mxu0
      %v9557 = vadd.f32 0.0, %v9556
      %v9558 = vpop.f32.mrf.mxu0
      %v9559 = vpop.f32.mrf.mxu0
      %v9560 = vadd.f32 0.0, %v9559
      %v9561 = vpop.f32.mrf.mxu0
      %9562 = vmatprep.mubr.bf16.mxu0 0
      %9563 = vmatmul.mubr.bf16.gmra.mxu0 %v9388
      %v9564 = vpop.f32.mrf.mxu0
      %v9565 = vadd.f32 0.0, %v9564
      %v9566 = vpop.f32.mrf.mxu0
      %v9567 = vpop.f32.mrf.mxu0
      %v9568 = vadd.f32 0.0, %v9567
      %v9569 = vpop.f32.mrf.mxu0
      %9570 = vmatprep.mubr.bf16.mxu0 0
      %9571 = vmatmul.mubr.bf16.gmra.mxu0 %v9391
      %v9572 = vpop.f32.mrf.mxu0
      %v9573 = vadd.f32 0.0, %v9572
      %v9574 = vpop.f32.mrf.mxu0
      %v9575 = vpop.f32.mrf.mxu0
      %v9576 = vadd.f32 0.0, %v9575
      %v9577 = vpop.f32.mrf.mxu0
      %9578 = vmatprep.mubr.bf16.mxu0 0
      %9579 = vmatmul.mubr.bf16.gmra.mxu0 %v9394
      %v9580 = vpop.f32.mrf.mxu0
      %v9581 = vadd.f32 0.0, %v9580
      %v9582 = vpop.f32.mrf.mxu0
      %v9583 = vpop.f32.mrf.mxu0
      %v9584 = vadd.f32 0.0, %v9583
      %v9585 = vpop.f32.mrf.mxu0
      %9586 = vmatprep.mubr.bf16.mxu0 0
      %9587 = vmatmul.mubr.bf16.gmra.mxu0 %v9397
      %v9588 = vpop.f32.mrf.mxu0
      %v9589 = vadd.f32 0.0, %v9588
      %v9590 = vpop.f32.mrf.mxu0
      %v9591 = vpop.f32.mrf.mxu0
      %v9592 = vadd.f32 0.0, %v9591
      %v9593 = vpop.f32.mrf.mxu0
      %9594 = vdwg.mxu0
      %v9595 = vadd.f32 %v9252, %v9437
      %v9596 = vadd.f32 %v9253, %v9440
      %v9597 = vadd.f32 %v9254, %v9445
      %v9598 = vadd.f32 %v9255, %v9448
      %v9599 = vadd.f32 %v9256, %v9453
      %v9600 = vadd.f32 %v9257, %v9456
      %v9601 = vadd.f32 %v9258, %v9461
      %v9602 = vadd.f32 %v9259, %v9464
      %v9603 = vadd.f32 %v9260, %v9469
      %v9604 = vadd.f32 %v9261, %v9472
      %v9605 = vadd.f32 %v9262, %v9477
      %v9606 = vadd.f32 %v9263, %v9480
      %v9607 = vadd.f32 %v9264, %v9485
      %v9608 = vadd.f32 %v9265, %v9488
      %v9609 = vadd.f32 %v9266, %v9493
      %v9610 = vadd.f32 %v9267, %v9496
      %v9611 = vadd.f32 %v9268, %v9501
      %v9612 = vadd.f32 %v9269, %v9504
      %v9613 = vadd.f32 %v9270, %v9509
      %v9614 = vadd.f32 %v9271, %v9512
      %v9615 = vadd.f32 %v9272, %v9517
      %v9616 = vadd.f32 %v9273, %v9520
      %v9617 = vadd.f32 %v9274, %v9525
      %v9618 = vadd.f32 %v9275, %v9528
      %v9619 = vadd.f32 %v9276, %v9533
      %v9620 = vadd.f32 %v9277, %v9536
      %v9621 = vadd.f32 %v9278, %v9541
      %v9622 = vadd.f32 %v9279, %v9544
      %v9623 = vadd.f32 %v9280, %v9549
      %v9624 = vadd.f32 %v9281, %v9552
      %v9625 = vadd.f32 %v9282, %v9557
      %v9626 = vadd.f32 %v9283, %v9560
      %v9627 = vadd.f32 %v9284, %v9565
      %v9628 = vadd.f32 %v9285, %v9568
      %v9629 = vadd.f32 %v9286, %v9573
      %v9630 = vadd.f32 %v9287, %v9576
      %v9631 = vadd.f32 %v9288, %v9581
      %v9632 = vadd.f32 %v9289, %v9584
      %v9633 = vadd.f32 %v9290, %v9589
      %v9634 = vadd.f32 %v9291, %v9592
      %v9635 = vld [vmem:[%s165 + $0xc8] sm:$0x3]
      %s9636 = scalar_lea.vmem %s1, 46
      %v9637 = vld [vmem:[%s9636] sm:$0x3]
      %v9639 = vunpack.c.l.b16 %v9635
      %v9640 = vpack.c.b16 %v9639, %v9639
      %v9642 = vshrl.u32 %v9297, 16
      %v9644 = vrot.slane %v9642, 1
      %v9645 = vshll.u32 %v9297, 16
      %v9647 = vrot.slane %v9645, 2
      %v9648 = vor.u32 %v9644, %v9647
      %v9649 = vrot.slane %v8844, 1
      %v9650 = vrot.slane %v8840, 2
      %v9651 = vor.u32 %v9649, %v9650
      %v9652 = vsel %vm1328, %v9648, %v9651
      %v9653 = vrot.slane %v8852, 1
      %v9654 = vrot.slane %v8848, 2
      %v9655 = vor.u32 %v9653, %v9654
      %v9656 = vsel %vm1328, %v9651, %v9655
      %v9657 = vrot.slane %v8860, 1
      %v9658 = vrot.slane %v8856, 2
      %v9659 = vor.u32 %v9657, %v9658
      %v9660 = vsel %vm1328, %v9655, %v9659
      %v9661 = vrot.slane %v8868, 1
      %v9662 = vrot.slane %v8864, 2
      %v9663 = vor.u32 %v9661, %v9662
      %v9664 = vsel %vm1328, %v9659, %v9663
      %v9665 = vrot.slane %v8876, 1
      %v9666 = vrot.slane %v8872, 2
      %v9667 = vor.u32 %v9665, %v9666
      %v9668 = vsel %vm1328, %v9663, %v9667
      %v9669 = vrot.slane %v8884, 1
      %v9670 = vrot.slane %v8880, 2
      %v9671 = vor.u32 %v9669, %v9670
      %v9672 = vsel %vm1328, %v9667, %v9671
      %v9673 = vrot.slane %v8892, 1
      %v9674 = vrot.slane %v8888, 2
      %v9675 = vor.u32 %v9673, %v9674
      %v9676 = vsel %vm1328, %v9671, %v9675
      %v9677 = vrot.slane %v8900, 1
      %v9678 = vrot.slane %v8896, 2
      %v9679 = vor.u32 %v9677, %v9678
      %v9680 = vsel %vm1328, %v9675, %v9679
      %v9681 = vrot.slane %v8908, 1
      %v9682 = vrot.slane %v8904, 2
      %v9683 = vor.u32 %v9681, %v9682
      %v9684 = vsel %vm1328, %v9679, %v9683
      %v9685 = vrot.slane %v8916, 1
      %v9686 = vrot.slane %v8912, 2
      %v9687 = vor.u32 %v9685, %v9686
      %v9688 = vsel %vm1328, %v9683, %v9687
      %v9689 = vrot.slane %v8924, 1
      %v9690 = vrot.slane %v8920, 2
      %v9691 = vor.u32 %v9689, %v9690
      %v9692 = vsel %vm1328, %v9687, %v9691
      %v9693 = vrot.slane %v8932, 1
      %v9694 = vrot.slane %v8928, 2
      %v9695 = vor.u32 %v9693, %v9694
      %v9696 = vsel %vm1328, %v9691, %v9695
      %v9697 = vrot.slane %v8940, 1
      %v9698 = vrot.slane %v8936, 2
      %v9699 = vor.u32 %v9697, %v9698
      %v9700 = vsel %vm1328, %v9695, %v9699
      %v9701 = vrot.slane %v8948, 1
      %v9702 = vrot.slane %v8944, 2
      %v9703 = vor.u32 %v9701, %v9702
      %v9704 = vsel %vm1328, %v9699, %v9703
      %v9705 = vrot.slane %v8956, 1
      %v9706 = vrot.slane %v8952, 2
      %v9707 = vor.u32 %v9705, %v9706
      %v9708 = vsel %vm1328, %v9703, %v9707
      %v9709 = vrot.slane %v8964, 1
      %v9710 = vrot.slane %v8960, 2
      %v9711 = vor.u32 %v9709, %v9710
      %v9712 = vsel %vm1328, %v9707, %v9711
      %v9713 = vrot.slane %v8972, 1
      %v9714 = vrot.slane %v8968, 2
      %v9715 = vor.u32 %v9713, %v9714
      %v9716 = vsel %vm1328, %v9711, %v9715
      %v9717 = vrot.slane %v8980, 1
      %v9718 = vrot.slane %v8976, 2
      %v9719 = vor.u32 %v9717, %v9718
      %v9720 = vsel %vm1328, %v9715, %v9719
      %v9721 = vrot.slane %v8988, 1
      %v9722 = vrot.slane %v8984, 2
      %v9723 = vor.u32 %v9721, %v9722
      %v9724 = vsel %vm1328, %v9719, %v9723
      %v9726 = vshrl.u32 %v9640, 16
      %v9728 = vrot.slane %v9726, 1
      %v9729 = vshll.u32 %v9640, 16
      %v9731 = vrot.slane %v9729, 2
      %v9732 = vor.u32 %v9728, %v9731
      %v9733 = vsel %vm1328, %v9723, %v9732
      %v9735 = vsel %vm484, %v9652, 0
      %v9738 = vsel %vm484, %v9656, 0
      %v9741 = vsel %vm484, %v9660, 0
      %v9744 = vsel %vm484, %v9664, 0
      %v9747 = vsel %vm484, %v9668, 0
      %v9750 = vsel %vm484, %v9672, 0
      %v9753 = vsel %vm484, %v9676, 0
      %v9756 = vsel %vm484, %v9680, 0
      %v9759 = vsel %vm484, %v9684, 0
      %v9762 = vsel %vm484, %v9688, 0
      %v9765 = vsel %vm484, %v9692, 0
      %v9768 = vsel %vm484, %v9696, 0
      %v9771 = vsel %vm484, %v9700, 0
      %v9774 = vsel %vm484, %v9704, 0
      %v9777 = vsel %vm484, %v9708, 0
      %v9780 = vsel %vm484, %v9712, 0
      %v9783 = vsel %vm484, %v9716, 0
      %v9786 = vsel %vm484, %v9720, 0
      %v9789 = vsel %vm484, %v9724, 0
      %v9792 = vsel %vm484, %v9733, 0
      %v9795 = vsel %vm545, %v9637, 0
      %9797 = vmatprep.subr.bf16.mxu0 0
      %9798 = vmatpush1.bf16.msra.mxu0 0
      %9799 = vmatprep.subr.bf16.mxu0 0
      %9800 = vmatpush1.bf16.msra.mxu0 0
      %9801 = vmatprep.subr.bf16.mxu0 0
      %9802 = vmatpush1.bf16.msra.mxu0 0
      %9803 = vmatprep.subr.bf16.mxu0 0
      %9804 = vmatpush1.bf16.msra.mxu0 0
      %9805 = vmatprep.subr.bf16.mxu0 0
      %9806 = vmatpush1.bf16.msra.mxu0 0
      %9807 = vmatprep.subr.bf16.mxu0 0
      %9808 = vmatpush1.bf16.msra.mxu0 0
      %9809 = vmatprep.subr.bf16.mxu0 0
      %9810 = vmatpush1.bf16.msra.mxu0 0
      %9811 = vmatprep.subr.bf16.mxu0 0
      %9812 = vmatpush1.bf16.msra.mxu0 %v9795
      %9813 = vmatprep.subr.bf16.mxu0 0
      %9814 = vmatpush2.bf16.msra.mxu0 0
      %9815 = vmatprep.subr.bf16.mxu0 0
      %9816 = vmatpush2.bf16.msra.mxu0 0
      %9817 = vmatprep.subr.bf16.mxu0 0
      %9818 = vmatpush2.bf16.msra.mxu0 0
      %9819 = vmatprep.subr.bf16.mxu0 0
      %9820 = vmatpush2.bf16.msra.mxu0 0
      %9821 = vmatprep.subr.bf16.mxu0 0
      %9822 = vmatpush2.bf16.msra.mxu0 0
      %9823 = vmatprep.subr.bf16.mxu0 0
      %9824 = vmatpush2.bf16.msra.mxu0 0
      %9825 = vmatprep.subr.bf16.mxu0 0
      %9826 = vmatpush2.bf16.msra.mxu0 0
      %9827 = vmatprep.subr.bf16.mxu0 0
      %9828 = vmatpush2.bf16.msra.mxu0 0
      %9829 = vmatprep.mubr.bf16.mxu0 0
      %9830 = vmatmul.mubr.bf16.gmra.mxu0 %v9735
      %v9831 = vpop.f32.mrf.mxu0
      %v9832 = vadd.f32 0.0, %v9831
      %v9833 = vpop.f32.mrf.mxu0
      %v9834 = vpop.f32.mrf.mxu0
      %v9835 = vadd.f32 0.0, %v9834
      %v9836 = vpop.f32.mrf.mxu0
      %9837 = vmatprep.mubr.bf16.mxu0 0
      %9838 = vmatmul.mubr.bf16.gmra.mxu0 %v9738
      %v9839 = vpop.f32.mrf.mxu0
      %v9840 = vadd.f32 0.0, %v9839
      %v9841 = vpop.f32.mrf.mxu0
      %v9842 = vpop.f32.mrf.mxu0
      %v9843 = vadd.f32 0.0, %v9842
      %v9844 = vpop.f32.mrf.mxu0
      %9845 = vmatprep.mubr.bf16.mxu0 0
      %9846 = vmatmul.mubr.bf16.gmra.mxu0 %v9741
      %v9847 = vpop.f32.mrf.mxu0
      %v9848 = vadd.f32 0.0, %v9847
      %v9849 = vpop.f32.mrf.mxu0
      %v9850 = vpop.f32.mrf.mxu0
      %v9851 = vadd.f32 0.0, %v9850
      %v9852 = vpop.f32.mrf.mxu0
      %9853 = vmatprep.mubr.bf16.mxu0 0
      %9854 = vmatmul.mubr.bf16.gmra.mxu0 %v9744
      %v9855 = vpop.f32.mrf.mxu0
      %v9856 = vadd.f32 0.0, %v9855
      %v9857 = vpop.f32.mrf.mxu0
      %v9858 = vpop.f32.mrf.mxu0
      %v9859 = vadd.f32 0.0, %v9858
      %v9860 = vpop.f32.mrf.mxu0
      %9861 = vmatprep.mubr.bf16.mxu0 0
      %9862 = vmatmul.mubr.bf16.gmra.mxu0 %v9747
      %v9863 = vpop.f32.mrf.mxu0
      %v9864 = vadd.f32 0.0, %v9863
      %v9865 = vpop.f32.mrf.mxu0
      %v9866 = vpop.f32.mrf.mxu0
      %v9867 = vadd.f32 0.0, %v9866
      %v9868 = vpop.f32.mrf.mxu0
      %9869 = vmatprep.mubr.bf16.mxu0 0
      %9870 = vmatmul.mubr.bf16.gmra.mxu0 %v9750
      %v9871 = vpop.f32.mrf.mxu0
      %v9872 = vadd.f32 0.0, %v9871
      %v9873 = vpop.f32.mrf.mxu0
      %v9874 = vpop.f32.mrf.mxu0
      %v9875 = vadd.f32 0.0, %v9874
      %v9876 = vpop.f32.mrf.mxu0
      %9877 = vmatprep.mubr.bf16.mxu0 0
      %9878 = vmatmul.mubr.bf16.gmra.mxu0 %v9753
      %v9879 = vpop.f32.mrf.mxu0
      %v9880 = vadd.f32 0.0, %v9879
      %v9881 = vpop.f32.mrf.mxu0
      %v9882 = vpop.f32.mrf.mxu0
      %v9883 = vadd.f32 0.0, %v9882
      %v9884 = vpop.f32.mrf.mxu0
      %9885 = vmatprep.mubr.bf16.mxu0 0
      %9886 = vmatmul.mubr.bf16.gmra.mxu0 %v9756
      %v9887 = vpop.f32.mrf.mxu0
      %v9888 = vadd.f32 0.0, %v9887
      %v9889 = vpop.f32.mrf.mxu0
      %v9890 = vpop.f32.mrf.mxu0
      %v9891 = vadd.f32 0.0, %v9890
      %v9892 = vpop.f32.mrf.mxu0
      %9893 = vmatprep.mubr.bf16.mxu0 0
      %9894 = vmatmul.mubr.bf16.gmra.mxu0 %v9759
      %v9895 = vpop.f32.mrf.mxu0
      %v9896 = vadd.f32 0.0, %v9895
      %v9897 = vpop.f32.mrf.mxu0
      %v9898 = vpop.f32.mrf.mxu0
      %v9899 = vadd.f32 0.0, %v9898
      %v9900 = vpop.f32.mrf.mxu0
      %9901 = vmatprep.mubr.bf16.mxu0 0
      %9902 = vmatmul.mubr.bf16.gmra.mxu0 %v9762
      %v9903 = vpop.f32.mrf.mxu0
      %v9904 = vadd.f32 0.0, %v9903
      %v9905 = vpop.f32.mrf.mxu0
      %v9906 = vpop.f32.mrf.mxu0
      %v9907 = vadd.f32 0.0, %v9906
      %v9908 = vpop.f32.mrf.mxu0
      %9909 = vmatprep.mubr.bf16.mxu0 0
      %9910 = vmatmul.mubr.bf16.gmra.mxu0 %v9765
      %v9911 = vpop.f32.mrf.mxu0
      %v9912 = vadd.f32 0.0, %v9911
      %v9913 = vpop.f32.mrf.mxu0
      %v9914 = vpop.f32.mrf.mxu0
      %v9915 = vadd.f32 0.0, %v9914
      %v9916 = vpop.f32.mrf.mxu0
      %9917 = vmatprep.mubr.bf16.mxu0 0
      %9918 = vmatmul.mubr.bf16.gmra.mxu0 %v9768
      %v9919 = vpop.f32.mrf.mxu0
      %v9920 = vadd.f32 0.0, %v9919
      %v9921 = vpop.f32.mrf.mxu0
      %v9922 = vpop.f32.mrf.mxu0
      %v9923 = vadd.f32 0.0, %v9922
      %v9924 = vpop.f32.mrf.mxu0
      %9925 = vmatprep.mubr.bf16.mxu0 0
      %9926 = vmatmul.mubr.bf16.gmra.mxu0 %v9771
      %v9927 = vpop.f32.mrf.mxu0
      %v9928 = vadd.f32 0.0, %v9927
      %v9929 = vpop.f32.mrf.mxu0
      %v9930 = vpop.f32.mrf.mxu0
      %v9931 = vadd.f32 0.0, %v9930
      %v9932 = vpop.f32.mrf.mxu0
      %9933 = vmatprep.mubr.bf16.mxu0 0
      %9934 = vmatmul.mubr.bf16.gmra.mxu0 %v9774
      %v9935 = vpop.f32.mrf.mxu0
      %v9936 = vadd.f32 0.0, %v9935
      %v9937 = vpop.f32.mrf.mxu0
      %v9938 = vpop.f32.mrf.mxu0
      %v9939 = vadd.f32 0.0, %v9938
      %v9940 = vpop.f32.mrf.mxu0
      %9941 = vmatprep.mubr.bf16.mxu0 0
      %9942 = vmatmul.mubr.bf16.gmra.mxu0 %v9777
      %v9943 = vpop.f32.mrf.mxu0
      %v9944 = vadd.f32 0.0, %v9943
      %v9945 = vpop.f32.mrf.mxu0
      %v9946 = vpop.f32.mrf.mxu0
      %v9947 = vadd.f32 0.0, %v9946
      %v9948 = vpop.f32.mrf.mxu0
      %9949 = vmatprep.mubr.bf16.mxu0 0
      %9950 = vmatmul.mubr.bf16.gmra.mxu0 %v9780
      %v9951 = vpop.f32.mrf.mxu0
      %v9952 = vadd.f32 0.0, %v9951
      %v9953 = vpop.f32.mrf.mxu0
      %v9954 = vpop.f32.mrf.mxu0
      %v9955 = vadd.f32 0.0, %v9954
      %v9956 = vpop.f32.mrf.mxu0
      %9957 = vmatprep.mubr.bf16.mxu0 0
      %9958 = vmatmul.mubr.bf16.gmra.mxu0 %v9783
      %v9959 = vpop.f32.mrf.mxu0
      %v9960 = vadd.f32 0.0, %v9959
      %v9961 = vpop.f32.mrf.mxu0
      %v9962 = vpop.f32.mrf.mxu0
      %v9963 = vadd.f32 0.0, %v9962
      %v9964 = vpop.f32.mrf.mxu0
      %9965 = vmatprep.mubr.bf16.mxu0 0
      %9966 = vmatmul.mubr.bf16.gmra.mxu0 %v9786
      %v9967 = vpop.f32.mrf.mxu0
      %v9968 = vadd.f32 0.0, %v9967
      %v9969 = vpop.f32.mrf.mxu0
      %v9970 = vpop.f32.mrf.mxu0
      %v9971 = vadd.f32 0.0, %v9970
      %v9972 = vpop.f32.mrf.mxu0
      %9973 = vmatprep.mubr.bf16.mxu0 0
      %9974 = vmatmul.mubr.bf16.gmra.mxu0 %v9789
      %v9975 = vpop.f32.mrf.mxu0
      %v9976 = vadd.f32 0.0, %v9975
      %v9977 = vpop.f32.mrf.mxu0
      %v9978 = vpop.f32.mrf.mxu0
      %v9979 = vadd.f32 0.0, %v9978
      %v9980 = vpop.f32.mrf.mxu0
      %9981 = vmatprep.mubr.bf16.mxu0 0
      %9982 = vmatmul.mubr.bf16.gmra.mxu0 %v9792
      %v9983 = vpop.f32.mrf.mxu0
      %v9984 = vadd.f32 0.0, %v9983
      %v9985 = vpop.f32.mrf.mxu0
      %v9986 = vpop.f32.mrf.mxu0
      %v9987 = vadd.f32 0.0, %v9986
      %v9988 = vpop.f32.mrf.mxu0
      %9989 = vdwg.mxu0
      %v9990 = vadd.f32 %v9595, %v9832
      %v9991 = vadd.f32 %v9596, %v9835
      %v9992 = vadd.f32 %v9597, %v9840
      %v9993 = vadd.f32 %v9598, %v9843
      %v9994 = vadd.f32 %v9599, %v9848
      %v9995 = vadd.f32 %v9600, %v9851
      %v9996 = vadd.f32 %v9601, %v9856
      %v9997 = vadd.f32 %v9602, %v9859
      %v9998 = vadd.f32 %v9603, %v9864
      %v9999 = vadd.f32 %v9604, %v9867
      %v10000 = vadd.f32 %v9605, %v9872
      %v10001 = vadd.f32 %v9606, %v9875
      %v10002 = vadd.f32 %v9607, %v9880
      %v10003 = vadd.f32 %v9608, %v9883
      %v10004 = vadd.f32 %v9609, %v9888
      %v10005 = vadd.f32 %v9610, %v9891
      %v10006 = vadd.f32 %v9611, %v9896
      %v10007 = vadd.f32 %v9612, %v9899
      %v10008 = vadd.f32 %v9613, %v9904
      %v10009 = vadd.f32 %v9614, %v9907
      %v10010 = vadd.f32 %v9615, %v9912
      %v10011 = vadd.f32 %v9616, %v9915
      %v10012 = vadd.f32 %v9617, %v9920
      %v10013 = vadd.f32 %v9618, %v9923
      %v10014 = vadd.f32 %v9619, %v9928
      %v10015 = vadd.f32 %v9620, %v9931
      %v10016 = vadd.f32 %v9621, %v9936
      %v10017 = vadd.f32 %v9622, %v9939
      %v10018 = vadd.f32 %v9623, %v9944
      %v10019 = vadd.f32 %v9624, %v9947
      %v10020 = vadd.f32 %v9625, %v9952
      %v10021 = vadd.f32 %v9626, %v9955
      %v10022 = vadd.f32 %v9627, %v9960
      %v10023 = vadd.f32 %v9628, %v9963
      %v10024 = vadd.f32 %v9629, %v9968
      %v10025 = vadd.f32 %v9630, %v9971
      %v10026 = vadd.f32 %v9631, %v9976
      %v10027 = vadd.f32 %v9632, %v9979
      %v10028 = vadd.f32 %v9633, %v9984
      %v10029 = vadd.f32 %v9634, %v9987
      %v10030 = vld [vmem:[%s165 + $0x28] sm:$0xc]
      %s10031 = scalar_lea.vmem %s1, 48
      %v10032 = vld [vmem:[%s10031] sm:$0x3]
      %v10034 = vunpack.c.l.b16 %v10030
      %v10035 = vpack.c.b16 %v8771, %v10034
      %v10036 = vrot.slane %v10035, 2
      %v10037 = vrot.slane %v8812, 2
      %v10038 = vsel %vm1724, %v10036, %v10037
      %v10039 = vrot.slane %v8813, 2
      %v10040 = vsel %vm1724, %v10037, %v10039
      %v10041 = vrot.slane %v8814, 2
      %v10042 = vsel %vm1724, %v10039, %v10041
      %v10043 = vrot.slane %v8815, 2
      %v10044 = vsel %vm1724, %v10041, %v10043
      %v10045 = vrot.slane %v8816, 2
      %v10046 = vsel %vm1724, %v10043, %v10045
      %v10047 = vrot.slane %v8817, 2
      %v10048 = vsel %vm1724, %v10045, %v10047
      %v10049 = vrot.slane %v8818, 2
      %v10050 = vsel %vm1724, %v10047, %v10049
      %v10051 = vrot.slane %v8819, 2
      %v10052 = vsel %vm1724, %v10049, %v10051
      %v10053 = vrot.slane %v8820, 2
      %v10054 = vsel %vm1724, %v10051, %v10053
      %v10055 = vrot.slane %v8821, 2
      %v10056 = vsel %vm1724, %v10053, %v10055
      %v10057 = vrot.slane %v8822, 2
      %v10058 = vsel %vm1724, %v10055, %v10057
      %v10059 = vrot.slane %v8823, 2
      %v10060 = vsel %vm1724, %v10057, %v10059
      %v10061 = vrot.slane %v8824, 2
      %v10062 = vsel %vm1724, %v10059, %v10061
      %v10063 = vrot.slane %v8825, 2
      %v10064 = vsel %vm1724, %v10061, %v10063
      %v10065 = vrot.slane %v8826, 2
      %v10066 = vsel %vm1724, %v10063, %v10065
      %v10067 = vrot.slane %v8827, 2
      %v10068 = vsel %vm1724, %v10065, %v10067
      %v10069 = vrot.slane %v8828, 2
      %v10070 = vsel %vm1724, %v10067, %v10069
      %v10071 = vrot.slane %v8829, 2
      %v10072 = vsel %vm1724, %v10069, %v10071
      %v10073 = vrot.slane %v8830, 2
      %v10074 = vsel %vm1724, %v10071, %v10073
      %v10075 = vrot.slane %v9640, 2
      %v10076 = vsel %vm1724, %v10073, %v10075
      %v10078 = vsel %vm484, %v10038, 0
      %v10081 = vsel %vm484, %v10040, 0
      %v10084 = vsel %vm484, %v10042, 0
      %v10087 = vsel %vm484, %v10044, 0
      %v10090 = vsel %vm484, %v10046, 0
      %v10093 = vsel %vm484, %v10048, 0
      %v10096 = vsel %vm484, %v10050, 0
      %v10099 = vsel %vm484, %v10052, 0
      %v10102 = vsel %vm484, %v10054, 0
      %v10105 = vsel %vm484, %v10056, 0
      %v10108 = vsel %vm484, %v10058, 0
      %v10111 = vsel %vm484, %v10060, 0
      %v10114 = vsel %vm484, %v10062, 0
      %v10117 = vsel %vm484, %v10064, 0
      %v10120 = vsel %vm484, %v10066, 0
      %v10123 = vsel %vm484, %v10068, 0
      %v10126 = vsel %vm484, %v10070, 0
      %v10129 = vsel %vm484, %v10072, 0
      %v10132 = vsel %vm484, %v10074, 0
      %v10135 = vsel %vm484, %v10076, 0
      %v10138 = vsel %vm545, %v10032, 0
      %10140 = vmatprep.subr.bf16.mxu0 0
      %10141 = vmatpush1.bf16.msra.mxu0 0
      %10142 = vmatprep.subr.bf16.mxu0 0
      %10143 = vmatpush1.bf16.msra.mxu0 0
      %10144 = vmatprep.subr.bf16.mxu0 0
      %10145 = vmatpush1.bf16.msra.mxu0 0
      %10146 = vmatprep.subr.bf16.mxu0 0
      %10147 = vmatpush1.bf16.msra.mxu0 0
      %10148 = vmatprep.subr.bf16.mxu0 0
      %10149 = vmatpush1.bf16.msra.mxu0 0
      %10150 = vmatprep.subr.bf16.mxu0 0
      %10151 = vmatpush1.bf16.msra.mxu0 0
      %10152 = vmatprep.subr.bf16.mxu0 0
      %10153 = vmatpush1.bf16.msra.mxu0 0
      %10154 = vmatprep.subr.bf16.mxu0 0
      %10155 = vmatpush1.bf16.msra.mxu0 %v10138
      %10156 = vmatprep.subr.bf16.mxu0 0
      %10157 = vmatpush2.bf16.msra.mxu0 0
      %10158 = vmatprep.subr.bf16.mxu0 0
      %10159 = vmatpush2.bf16.msra.mxu0 0
      %10160 = vmatprep.subr.bf16.mxu0 0
      %10161 = vmatpush2.bf16.msra.mxu0 0
      %10162 = vmatprep.subr.bf16.mxu0 0
      %10163 = vmatpush2.bf16.msra.mxu0 0
      %10164 = vmatprep.subr.bf16.mxu0 0
      %10165 = vmatpush2.bf16.msra.mxu0 0
      %10166 = vmatprep.subr.bf16.mxu0 0
      %10167 = vmatpush2.bf16.msra.mxu0 0
      %10168 = vmatprep.subr.bf16.mxu0 0
      %10169 = vmatpush2.bf16.msra.mxu0 0
      %10170 = vmatprep.subr.bf16.mxu0 0
      %10171 = vmatpush2.bf16.msra.mxu0 0
      %10172 = vmatprep.mubr.bf16.mxu0 0
      %10173 = vmatmul.mubr.bf16.gmra.mxu0 %v10078
      %v10174 = vpop.f32.mrf.mxu0
      %v10175 = vadd.f32 0.0, %v10174
      %v10176 = vpop.f32.mrf.mxu0
      %v10177 = vpop.f32.mrf.mxu0
      %v10178 = vadd.f32 0.0, %v10177
      %v10179 = vpop.f32.mrf.mxu0
      %10180 = vmatprep.mubr.bf16.mxu0 0
      %10181 = vmatmul.mubr.bf16.gmra.mxu0 %v10081
      %v10182 = vpop.f32.mrf.mxu0
      %v10183 = vadd.f32 0.0, %v10182
      %v10184 = vpop.f32.mrf.mxu0
      %v10185 = vpop.f32.mrf.mxu0
      %v10186 = vadd.f32 0.0, %v10185
      %v10187 = vpop.f32.mrf.mxu0
      %10188 = vmatprep.mubr.bf16.mxu0 0
      %10189 = vmatmul.mubr.bf16.gmra.mxu0 %v10084
      %v10190 = vpop.f32.mrf.mxu0
      %v10191 = vadd.f32 0.0, %v10190
      %v10192 = vpop.f32.mrf.mxu0
      %v10193 = vpop.f32.mrf.mxu0
      %v10194 = vadd.f32 0.0, %v10193
      %v10195 = vpop.f32.mrf.mxu0
      %10196 = vmatprep.mubr.bf16.mxu0 0
      %10197 = vmatmul.mubr.bf16.gmra.mxu0 %v10087
      %v10198 = vpop.f32.mrf.mxu0
      %v10199 = vadd.f32 0.0, %v10198
      %v10200 = vpop.f32.mrf.mxu0
      %v10201 = vpop.f32.mrf.mxu0
      %v10202 = vadd.f32 0.0, %v10201
      %v10203 = vpop.f32.mrf.mxu0
      %10204 = vmatprep.mubr.bf16.mxu0 0
      %10205 = vmatmul.mubr.bf16.gmra.mxu0 %v10090
      %v10206 = vpop.f32.mrf.mxu0
      %v10207 = vadd.f32 0.0, %v10206
      %v10208 = vpop.f32.mrf.mxu0
      %v10209 = vpop.f32.mrf.mxu0
      %v10210 = vadd.f32 0.0, %v10209
      %v10211 = vpop.f32.mrf.mxu0
      %10212 = vmatprep.mubr.bf16.mxu0 0
      %10213 = vmatmul.mubr.bf16.gmra.mxu0 %v10093
      %v10214 = vpop.f32.mrf.mxu0
      %v10215 = vadd.f32 0.0, %v10214
      %v10216 = vpop.f32.mrf.mxu0
      %v10217 = vpop.f32.mrf.mxu0
      %v10218 = vadd.f32 0.0, %v10217
      %v10219 = vpop.f32.mrf.mxu0
      %10220 = vmatprep.mubr.bf16.mxu0 0
      %10221 = vmatmul.mubr.bf16.gmra.mxu0 %v10096
      %v10222 = vpop.f32.mrf.mxu0
      %v10223 = vadd.f32 0.0, %v10222
      %v10224 = vpop.f32.mrf.mxu0
      %v10225 = vpop.f32.mrf.mxu0
      %v10226 = vadd.f32 0.0, %v10225
      %v10227 = vpop.f32.mrf.mxu0
      %10228 = vmatprep.mubr.bf16.mxu0 0
      %10229 = vmatmul.mubr.bf16.gmra.mxu0 %v10099
      %v10230 = vpop.f32.mrf.mxu0
      %v10231 = vadd.f32 0.0, %v10230
      %v10232 = vpop.f32.mrf.mxu0
      %v10233 = vpop.f32.mrf.mxu0
      %v10234 = vadd.f32 0.0, %v10233
      %v10235 = vpop.f32.mrf.mxu0
      %10236 = vmatprep.mubr.bf16.mxu0 0
      %10237 = vmatmul.mubr.bf16.gmra.mxu0 %v10102
      %v10238 = vpop.f32.mrf.mxu0
      %v10239 = vadd.f32 0.0, %v10238
      %v10240 = vpop.f32.mrf.mxu0
      %v10241 = vpop.f32.mrf.mxu0
      %v10242 = vadd.f32 0.0, %v10241
      %v10243 = vpop.f32.mrf.mxu0
      %10244 = vmatprep.mubr.bf16.mxu0 0
      %10245 = vmatmul.mubr.bf16.gmra.mxu0 %v10105
      %v10246 = vpop.f32.mrf.mxu0
      %v10247 = vadd.f32 0.0, %v10246
      %v10248 = vpop.f32.mrf.mxu0
      %v10249 = vpop.f32.mrf.mxu0
      %v10250 = vadd.f32 0.0, %v10249
      %v10251 = vpop.f32.mrf.mxu0
      %10252 = vmatprep.mubr.bf16.mxu0 0
      %10253 = vmatmul.mubr.bf16.gmra.mxu0 %v10108
      %v10254 = vpop.f32.mrf.mxu0
      %v10255 = vadd.f32 0.0, %v10254
      %v10256 = vpop.f32.mrf.mxu0
      %v10257 = vpop.f32.mrf.mxu0
      %v10258 = vadd.f32 0.0, %v10257
      %v10259 = vpop.f32.mrf.mxu0
      %10260 = vmatprep.mubr.bf16.mxu0 0
      %10261 = vmatmul.mubr.bf16.gmra.mxu0 %v10111
      %v10262 = vpop.f32.mrf.mxu0
      %v10263 = vadd.f32 0.0, %v10262
      %v10264 = vpop.f32.mrf.mxu0
      %v10265 = vpop.f32.mrf.mxu0
      %v10266 = vadd.f32 0.0, %v10265
      %v10267 = vpop.f32.mrf.mxu0
      %10268 = vmatprep.mubr.bf16.mxu0 0
      %10269 = vmatmul.mubr.bf16.gmra.mxu0 %v10114
      %v10270 = vpop.f32.mrf.mxu0
      %v10271 = vadd.f32 0.0, %v10270
      %v10272 = vpop.f32.mrf.mxu0
      %v10273 = vpop.f32.mrf.mxu0
      %v10274 = vadd.f32 0.0, %v10273
      %v10275 = vpop.f32.mrf.mxu0
      %10276 = vmatprep.mubr.bf16.mxu0 0
      %10277 = vmatmul.mubr.bf16.gmra.mxu0 %v10117
      %v10278 = vpop.f32.mrf.mxu0
      %v10279 = vadd.f32 0.0, %v10278
      %v10280 = vpop.f32.mrf.mxu0
      %v10281 = vpop.f32.mrf.mxu0
      %v10282 = vadd.f32 0.0, %v10281
      %v10283 = vpop.f32.mrf.mxu0
      %10284 = vmatprep.mubr.bf16.mxu0 0
      %10285 = vmatmul.mubr.bf16.gmra.mxu0 %v10120
      %v10286 = vpop.f32.mrf.mxu0
      %v10287 = vadd.f32 0.0, %v10286
      %v10288 = vpop.f32.mrf.mxu0
      %v10289 = vpop.f32.mrf.mxu0
      %v10290 = vadd.f32 0.0, %v10289
      %v10291 = vpop.f32.mrf.mxu0
      %10292 = vmatprep.mubr.bf16.mxu0 0
      %10293 = vmatmul.mubr.bf16.gmra.mxu0 %v10123
      %v10294 = vpop.f32.mrf.mxu0
      %v10295 = vadd.f32 0.0, %v10294
      %v10296 = vpop.f32.mrf.mxu0
      %v10297 = vpop.f32.mrf.mxu0
      %v10298 = vadd.f32 0.0, %v10297
      %v10299 = vpop.f32.mrf.mxu0
      %10300 = vmatprep.mubr.bf16.mxu0 0
      %10301 = vmatmul.mubr.bf16.gmra.mxu0 %v10126
      %v10302 = vpop.f32.mrf.mxu0
      %v10303 = vadd.f32 0.0, %v10302
      %v10304 = vpop.f32.mrf.mxu0
      %v10305 = vpop.f32.mrf.mxu0
      %v10306 = vadd.f32 0.0, %v10305
      %v10307 = vpop.f32.mrf.mxu0
      %10308 = vmatprep.mubr.bf16.mxu0 0
      %10309 = vmatmul.mubr.bf16.gmra.mxu0 %v10129
      %v10310 = vpop.f32.mrf.mxu0
      %v10311 = vadd.f32 0.0, %v10310
      %v10312 = vpop.f32.mrf.mxu0
      %v10313 = vpop.f32.mrf.mxu0
      %v10314 = vadd.f32 0.0, %v10313
      %v10315 = vpop.f32.mrf.mxu0
      %10316 = vmatprep.mubr.bf16.mxu0 0
      %10317 = vmatmul.mubr.bf16.gmra.mxu0 %v10132
      %v10318 = vpop.f32.mrf.mxu0
      %v10319 = vadd.f32 0.0, %v10318
      %v10320 = vpop.f32.mrf.mxu0
      %v10321 = vpop.f32.mrf.mxu0
      %v10322 = vadd.f32 0.0, %v10321
      %v10323 = vpop.f32.mrf.mxu0
      %10324 = vmatprep.mubr.bf16.mxu0 0
      %10325 = vmatmul.mubr.bf16.gmra.mxu0 %v10135
      %v10326 = vpop.f32.mrf.mxu0
      %v10327 = vadd.f32 0.0, %v10326
      %v10328 = vpop.f32.mrf.mxu0
      %v10329 = vpop.f32.mrf.mxu0
      %v10330 = vadd.f32 0.0, %v10329
      %v10331 = vpop.f32.mrf.mxu0
      %10332 = vdwg.mxu0
      %v10333 = vadd.f32 %v9990, %v10175
      %v10334 = vadd.f32 %v9991, %v10178
      %v10335 = vadd.f32 %v9992, %v10183
      %v10336 = vadd.f32 %v9993, %v10186
      %v10337 = vadd.f32 %v9994, %v10191
      %v10338 = vadd.f32 %v9995, %v10194
      %v10339 = vadd.f32 %v9996, %v10199
      %v10340 = vadd.f32 %v9997, %v10202
      %v10341 = vadd.f32 %v9998, %v10207
      %v10342 = vadd.f32 %v9999, %v10210
      %v10343 = vadd.f32 %v10000, %v10215
      %v10344 = vadd.f32 %v10001, %v10218
      %v10345 = vadd.f32 %v10002, %v10223
      %v10346 = vadd.f32 %v10003, %v10226
      %v10347 = vadd.f32 %v10004, %v10231
      %v10348 = vadd.f32 %v10005, %v10234
      %v10349 = vadd.f32 %v10006, %v10239
      %v10350 = vadd.f32 %v10007, %v10242
      %v10351 = vadd.f32 %v10008, %v10247
      %v10352 = vadd.f32 %v10009, %v10250
      %v10353 = vadd.f32 %v10010, %v10255
      %v10354 = vadd.f32 %v10011, %v10258
      %v10355 = vadd.f32 %v10012, %v10263
      %v10356 = vadd.f32 %v10013, %v10266
      %v10357 = vadd.f32 %v10014, %v10271
      %v10358 = vadd.f32 %v10015, %v10274
      %v10359 = vadd.f32 %v10016, %v10279
      %v10360 = vadd.f32 %v10017, %v10282
      %v10361 = vadd.f32 %v10018, %v10287
      %v10362 = vadd.f32 %v10019, %v10290
      %v10363 = vadd.f32 %v10020, %v10295
      %v10364 = vadd.f32 %v10021, %v10298
      %v10365 = vadd.f32 %v10022, %v10303
      %v10366 = vadd.f32 %v10023, %v10306
      %v10367 = vadd.f32 %v10024, %v10311
      %v10368 = vadd.f32 %v10025, %v10314
      %v10369 = vadd.f32 %v10026, %v10319
      %v10370 = vadd.f32 %v10027, %v10322
      %v10371 = vadd.f32 %v10028, %v10327
      %v10372 = vadd.f32 %v10029, %v10330
      %v10373 = vmax.f32 %v10333, 0.0
      %v10374 = vmax.f32 %v10334, 0.0
      %v10375 = vmax.f32 %v10335, 0.0
      %v10376 = vmax.f32 %v10336, 0.0
      %v10377 = vmax.f32 %v10337, 0.0
      %v10378 = vmax.f32 %v10338, 0.0
      %v10379 = vmax.f32 %v10339, 0.0
      %v10380 = vmax.f32 %v10340, 0.0
      %v10381 = vmax.f32 %v10341, 0.0
      %v10382 = vmax.f32 %v10342, 0.0
      %v10383 = vmax.f32 %v10343, 0.0
      %v10384 = vmax.f32 %v10344, 0.0
      %v10385 = vmax.f32 %v10345, 0.0
      %v10386 = vmax.f32 %v10346, 0.0
      %v10387 = vmax.f32 %v10347, 0.0
      %v10388 = vmax.f32 %v10348, 0.0
      %v10389 = vmax.f32 %v10349, 0.0
      %v10390 = vmax.f32 %v10350, 0.0
      %v10391 = vmax.f32 %v10351, 0.0
      %v10392 = vmax.f32 %v10352, 0.0
      %v10393 = vmax.f32 %v10353, 0.0
      %v10394 = vmax.f32 %v10354, 0.0
      %v10395 = vmax.f32 %v10355, 0.0
      %v10396 = vmax.f32 %v10356, 0.0
      %v10397 = vmax.f32 %v10357, 0.0
      %v10398 = vmax.f32 %v10358, 0.0
      %v10399 = vmax.f32 %v10359, 0.0
      %v10400 = vmax.f32 %v10360, 0.0
      %v10401 = vmax.f32 %v10361, 0.0
      %v10402 = vmax.f32 %v10362, 0.0
      %v10403 = vmax.f32 %v10363, 0.0
      %v10404 = vmax.f32 %v10364, 0.0
      %v10405 = vmax.f32 %v10365, 0.0
      %v10406 = vmax.f32 %v10366, 0.0
      %v10407 = vmax.f32 %v10367, 0.0
      %v10408 = vmax.f32 %v10368, 0.0
      %v10409 = vmax.f32 %v10369, 0.0
      %v10410 = vmax.f32 %v10370, 0.0
      %v10411 = vmax.f32 %v10371, 0.0
      %v10412 = vmax.f32 %v10372, 0.0
      %v10413 = vld [vmem:[%s2] sm:$0x1]
      %v10415 = vlaneseq
      %v10416 = vshrl.u32 %v10415, 7
      %v10417 = vsub.s32 0, %v10416
      %v10418 = vrot.slane %v10413, %v10417
      %v10420 = vmul.f32 %v10373, %v10418
      %v10421 = vmul.f32 %v10374, %v10418
      %v10422 = vmul.f32 %v10375, %v10418
      %v10423 = vmul.f32 %v10376, %v10418
      %v10424 = vmul.f32 %v10377, %v10418
      %v10425 = vmul.f32 %v10378, %v10418
      %v10426 = vmul.f32 %v10379, %v10418
      %v10427 = vmul.f32 %v10380, %v10418
      %v10428 = vmul.f32 %v10381, %v10418
      %v10429 = vmul.f32 %v10382, %v10418
      %v10430 = vmul.f32 %v10383, %v10418
      %v10431 = vmul.f32 %v10384, %v10418
      %v10432 = vmul.f32 %v10385, %v10418
      %v10433 = vmul.f32 %v10386, %v10418
      %v10434 = vmul.f32 %v10387, %v10418
      %v10435 = vmul.f32 %v10388, %v10418
      %v10436 = vmul.f32 %v10389, %v10418
      %v10437 = vmul.f32 %v10390, %v10418
      %v10438 = vmul.f32 %v10391, %v10418
      %v10439 = vmul.f32 %v10392, %v10418
      %v10440 = vmul.f32 %v10393, %v10418
      %v10441 = vmul.f32 %v10394, %v10418
      %v10442 = vmul.f32 %v10395, %v10418
      %v10443 = vmul.f32 %v10396, %v10418
      %v10444 = vmul.f32 %v10397, %v10418
      %v10445 = vmul.f32 %v10398, %v10418
      %v10446 = vmul.f32 %v10399, %v10418
      %v10447 = vmul.f32 %v10400, %v10418
      %v10448 = vmul.f32 %v10401, %v10418
      %v10449 = vmul.f32 %v10402, %v10418
      %v10450 = vmul.f32 %v10403, %v10418
      %v10451 = vmul.f32 %v10404, %v10418
      %v10452 = vmul.f32 %v10405, %v10418
      %v10453 = vmul.f32 %v10406, %v10418
      %v10454 = vmul.f32 %v10407, %v10418
      %v10455 = vmul.f32 %v10408, %v10418
      %v10456 = vmul.f32 %v10409, %v10418
      %v10457 = vmul.f32 %v10410, %v10418
      %v10458 = vmul.f32 %v10411, %v10418
      %v10459 = vmul.f32 %v10412, %v10418
      %10500 = vrot.lane.b32.xlu0 %v10420, 120
      %v10501 = vpop.permute.xlu0 %10500
      %10502 = vrot.lane.b32.xlu0 %v10421, 120
      %v10503 = vpop.permute.xlu0 %10502
      %10504 = vrot.lane.b32.xlu0 %v10422, 120
      %v10505 = vpop.permute.xlu0 %10504
      %10506 = vrot.lane.b32.xlu0 %v10423, 120
      %v10507 = vpop.permute.xlu0 %10506
      %10508 = vrot.lane.b32.xlu0 %v10424, 120
      %v10509 = vpop.permute.xlu0 %10508
      %10510 = vrot.lane.b32.xlu0 %v10425, 120
      %v10511 = vpop.permute.xlu0 %10510
      %10512 = vrot.lane.b32.xlu0 %v10426, 120
      %v10513 = vpop.permute.xlu0 %10512
      %10514 = vrot.lane.b32.xlu0 %v10427, 120
      %v10515 = vpop.permute.xlu0 %10514
      %10516 = vrot.lane.b32.xlu0 %v10428, 120
      %v10517 = vpop.permute.xlu0 %10516
      %10518 = vrot.lane.b32.xlu0 %v10429, 120
      %v10519 = vpop.permute.xlu0 %10518
      %10520 = vrot.lane.b32.xlu0 %v10430, 120
      %v10521 = vpop.permute.xlu0 %10520
      %10522 = vrot.lane.b32.xlu0 %v10431, 120
      %v10523 = vpop.permute.xlu0 %10522
      %10524 = vrot.lane.b32.xlu0 %v10432, 120
      %v10525 = vpop.permute.xlu0 %10524
      %10526 = vrot.lane.b32.xlu0 %v10433, 120
      %v10527 = vpop.permute.xlu0 %10526
      %10528 = vrot.lane.b32.xlu0 %v10434, 120
      %v10529 = vpop.permute.xlu0 %10528
      %10530 = vrot.lane.b32.xlu0 %v10435, 120
      %v10531 = vpop.permute.xlu0 %10530
      %10532 = vrot.lane.b32.xlu0 %v10436, 120
      %v10533 = vpop.permute.xlu0 %10532
      %10534 = vrot.lane.b32.xlu0 %v10437, 120
      %v10535 = vpop.permute.xlu0 %10534
      %10536 = vrot.lane.b32.xlu0 %v10438, 120
      %v10537 = vpop.permute.xlu0 %10536
      %10538 = vrot.lane.b32.xlu0 %v10439, 120
      %v10539 = vpop.permute.xlu0 %10538
      %10540 = vrot.lane.b32.xlu0 %v10440, 120
      %v10541 = vpop.permute.xlu0 %10540
      %10542 = vrot.lane.b32.xlu0 %v10441, 120
      %v10543 = vpop.permute.xlu0 %10542
      %10544 = vrot.lane.b32.xlu0 %v10442, 120
      %v10545 = vpop.permute.xlu0 %10544
      %10546 = vrot.lane.b32.xlu0 %v10443, 120
      %v10547 = vpop.permute.xlu0 %10546
      %10548 = vrot.lane.b32.xlu0 %v10444, 120
      %v10549 = vpop.permute.xlu0 %10548
      %10550 = vrot.lane.b32.xlu0 %v10445, 120
      %v10551 = vpop.permute.xlu0 %10550
      %10552 = vrot.lane.b32.xlu0 %v10446, 120
      %v10553 = vpop.permute.xlu0 %10552
      %10554 = vrot.lane.b32.xlu0 %v10447, 120
      %v10555 = vpop.permute.xlu0 %10554
      %10556 = vrot.lane.b32.xlu0 %v10448, 120
      %v10557 = vpop.permute.xlu0 %10556
      %10558 = vrot.lane.b32.xlu0 %v10449, 120
      %v10559 = vpop.permute.xlu0 %10558
      %10560 = vrot.lane.b32.xlu0 %v10450, 120
      %v10561 = vpop.permute.xlu0 %10560
      %10562 = vrot.lane.b32.xlu0 %v10451, 120
      %v10563 = vpop.permute.xlu0 %10562
      %10564 = vrot.lane.b32.xlu0 %v10452, 120
      %v10565 = vpop.permute.xlu0 %10564
      %10566 = vrot.lane.b32.xlu0 %v10453, 120
      %v10567 = vpop.permute.xlu0 %10566
      %10568 = vrot.lane.b32.xlu0 %v10454, 120
      %v10569 = vpop.permute.xlu0 %10568
      %10570 = vrot.lane.b32.xlu0 %v10455, 120
      %v10571 = vpop.permute.xlu0 %10570
      %10572 = vrot.lane.b32.xlu0 %v10456, 120
      %v10573 = vpop.permute.xlu0 %10572
      %10574 = vrot.lane.b32.xlu0 %v10457, 120
      %v10575 = vpop.permute.xlu0 %10574
      %10576 = vrot.lane.b32.xlu0 %v10458, 120
      %v10577 = vpop.permute.xlu0 %10576
      %10578 = vrot.lane.b32.xlu0 %v10459, 120
      %v10579 = vpop.permute.xlu0 %10578
      %v10620 = vadd.f32 %v10420, %v10501
      %v10621 = vadd.f32 %v10421, %v10503
      %v10622 = vadd.f32 %v10422, %v10505
      %v10623 = vadd.f32 %v10423, %v10507
      %v10624 = vadd.f32 %v10424, %v10509
      %v10625 = vadd.f32 %v10425, %v10511
      %v10626 = vadd.f32 %v10426, %v10513
      %v10627 = vadd.f32 %v10427, %v10515
      %v10628 = vadd.f32 %v10428, %v10517
      %v10629 = vadd.f32 %v10429, %v10519
      %v10630 = vadd.f32 %v10430, %v10521
      %v10631 = vadd.f32 %v10431, %v10523
      %v10632 = vadd.f32 %v10432, %v10525
      %v10633 = vadd.f32 %v10433, %v10527
      %v10634 = vadd.f32 %v10434, %v10529
      %v10635 = vadd.f32 %v10435, %v10531
      %v10636 = vadd.f32 %v10436, %v10533
      %v10637 = vadd.f32 %v10437, %v10535
      %v10638 = vadd.f32 %v10438, %v10537
      %v10639 = vadd.f32 %v10439, %v10539
      %v10640 = vadd.f32 %v10440, %v10541
      %v10641 = vadd.f32 %v10441, %v10543
      %v10642 = vadd.f32 %v10442, %v10545
      %v10643 = vadd.f32 %v10443, %v10547
      %v10644 = vadd.f32 %v10444, %v10549
      %v10645 = vadd.f32 %v10445, %v10551
      %v10646 = vadd.f32 %v10446, %v10553
      %v10647 = vadd.f32 %v10447, %v10555
      %v10648 = vadd.f32 %v10448, %v10557
      %v10649 = vadd.f32 %v10449, %v10559
      %v10650 = vadd.f32 %v10450, %v10561
      %v10651 = vadd.f32 %v10451, %v10563
      %v10652 = vadd.f32 %v10452, %v10565
      %v10653 = vadd.f32 %v10453, %v10567
      %v10654 = vadd.f32 %v10454, %v10569
      %v10655 = vadd.f32 %v10455, %v10571
      %v10656 = vadd.f32 %v10456, %v10573
      %v10657 = vadd.f32 %v10457, %v10575
      %v10658 = vadd.f32 %v10458, %v10577
      %v10659 = vadd.f32 %v10459, %v10579
      %10660 = vrot.lane.b32.xlu0 %v10420, 112
      %v10661 = vpop.permute.xlu0 %10660
      %10662 = vrot.lane.b32.xlu0 %v10421, 112
      %v10663 = vpop.permute.xlu0 %10662
      %10664 = vrot.lane.b32.xlu0 %v10422, 112
      %v10665 = vpop.permute.xlu0 %10664
      %10666 = vrot.lane.b32.xlu0 %v10423, 112
      %v10667 = vpop.permute.xlu0 %10666
      %10668 = vrot.lane.b32.xlu0 %v10424, 112
      %v10669 = vpop.permute.xlu0 %10668
      %10670 = vrot.lane.b32.xlu0 %v10425, 112
      %v10671 = vpop.permute.xlu0 %10670
      %10672 = vrot.lane.b32.xlu0 %v10426, 112
      %v10673 = vpop.permute.xlu0 %10672
      %10674 = vrot.lane.b32.xlu0 %v10427, 112
      %v10675 = vpop.permute.xlu0 %10674
      %10676 = vrot.lane.b32.xlu0 %v10428, 112
      %v10677 = vpop.permute.xlu0 %10676
      %10678 = vrot.lane.b32.xlu0 %v10429, 112
      %v10679 = vpop.permute.xlu0 %10678
      %10680 = vrot.lane.b32.xlu0 %v10430, 112
      %v10681 = vpop.permute.xlu0 %10680
      %10682 = vrot.lane.b32.xlu0 %v10431, 112
      %v10683 = vpop.permute.xlu0 %10682
      %10684 = vrot.lane.b32.xlu0 %v10432, 112
      %v10685 = vpop.permute.xlu0 %10684
      %10686 = vrot.lane.b32.xlu0 %v10433, 112
      %v10687 = vpop.permute.xlu0 %10686
      %10688 = vrot.lane.b32.xlu0 %v10434, 112
      %v10689 = vpop.permute.xlu0 %10688
      %10690 = vrot.lane.b32.xlu0 %v10435, 112
      %v10691 = vpop.permute.xlu0 %10690
      %10692 = vrot.lane.b32.xlu0 %v10436, 112
      %v10693 = vpop.permute.xlu0 %10692
      %10694 = vrot.lane.b32.xlu0 %v10437, 112
      %v10695 = vpop.permute.xlu0 %10694
      %10696 = vrot.lane.b32.xlu0 %v10438, 112
      %v10697 = vpop.permute.xlu0 %10696
      %10698 = vrot.lane.b32.xlu0 %v10439, 112
      %v10699 = vpop.permute.xlu0 %10698
      %10700 = vrot.lane.b32.xlu0 %v10440, 112
      %v10701 = vpop.permute.xlu0 %10700
      %10702 = vrot.lane.b32.xlu0 %v10441, 112
      %v10703 = vpop.permute.xlu0 %10702
      %10704 = vrot.lane.b32.xlu0 %v10442, 112
      %v10705 = vpop.permute.xlu0 %10704
      %10706 = vrot.lane.b32.xlu0 %v10443, 112
      %v10707 = vpop.permute.xlu0 %10706
      %10708 = vrot.lane.b32.xlu0 %v10444, 112
      %v10709 = vpop.permute.xlu0 %10708
      %10710 = vrot.lane.b32.xlu0 %v10445, 112
      %v10711 = vpop.permute.xlu0 %10710
      %10712 = vrot.lane.b32.xlu0 %v10446, 112
      %v10713 = vpop.permute.xlu0 %10712
      %10714 = vrot.lane.b32.xlu0 %v10447, 112
      %v10715 = vpop.permute.xlu0 %10714
      %10716 = vrot.lane.b32.xlu0 %v10448, 112
      %v10717 = vpop.permute.xlu0 %10716
      %10718 = vrot.lane.b32.xlu0 %v10449, 112
      %v10719 = vpop.permute.xlu0 %10718
      %10720 = vrot.lane.b32.xlu0 %v10450, 112
      %v10721 = vpop.permute.xlu0 %10720
      %10722 = vrot.lane.b32.xlu0 %v10451, 112
      %v10723 = vpop.permute.xlu0 %10722
      %10724 = vrot.lane.b32.xlu0 %v10452, 112
      %v10725 = vpop.permute.xlu0 %10724
      %10726 = vrot.lane.b32.xlu0 %v10453, 112
      %v10727 = vpop.permute.xlu0 %10726
      %10728 = vrot.lane.b32.xlu0 %v10454, 112
      %v10729 = vpop.permute.xlu0 %10728
      %10730 = vrot.lane.b32.xlu0 %v10455, 112
      %v10731 = vpop.permute.xlu0 %10730
      %10732 = vrot.lane.b32.xlu0 %v10456, 112
      %v10733 = vpop.permute.xlu0 %10732
      %10734 = vrot.lane.b32.xlu0 %v10457, 112
      %v10735 = vpop.permute.xlu0 %10734
      %10736 = vrot.lane.b32.xlu0 %v10458, 112
      %v10737 = vpop.permute.xlu0 %10736
      %10738 = vrot.lane.b32.xlu0 %v10459, 112
      %v10739 = vpop.permute.xlu0 %10738
      %v10780 = vadd.f32 %v10620, %v10661
      %v10781 = vadd.f32 %v10621, %v10663
      %v10782 = vadd.f32 %v10622, %v10665
      %v10783 = vadd.f32 %v10623, %v10667
      %v10784 = vadd.f32 %v10624, %v10669
      %v10785 = vadd.f32 %v10625, %v10671
      %v10786 = vadd.f32 %v10626, %v10673
      %v10787 = vadd.f32 %v10627, %v10675
      %v10788 = vadd.f32 %v10628, %v10677
      %v10789 = vadd.f32 %v10629, %v10679
      %v10790 = vadd.f32 %v10630, %v10681
      %v10791 = vadd.f32 %v10631, %v10683
      %v10792 = vadd.f32 %v10632, %v10685
      %v10793 = vadd.f32 %v10633, %v10687
      %v10794 = vadd.f32 %v10634, %v10689
      %v10795 = vadd.f32 %v10635, %v10691
      %v10796 = vadd.f32 %v10636, %v10693
      %v10797 = vadd.f32 %v10637, %v10695
      %v10798 = vadd.f32 %v10638, %v10697
      %v10799 = vadd.f32 %v10639, %v10699
      %v10800 = vadd.f32 %v10640, %v10701
      %v10801 = vadd.f32 %v10641, %v10703
      %v10802 = vadd.f32 %v10642, %v10705
      %v10803 = vadd.f32 %v10643, %v10707
      %v10804 = vadd.f32 %v10644, %v10709
      %v10805 = vadd.f32 %v10645, %v10711
      %v10806 = vadd.f32 %v10646, %v10713
      %v10807 = vadd.f32 %v10647, %v10715
      %v10808 = vadd.f32 %v10648, %v10717
      %v10809 = vadd.f32 %v10649, %v10719
      %v10810 = vadd.f32 %v10650, %v10721
      %v10811 = vadd.f32 %v10651, %v10723
      %v10812 = vadd.f32 %v10652, %v10725
      %v10813 = vadd.f32 %v10653, %v10727
      %v10814 = vadd.f32 %v10654, %v10729
      %v10815 = vadd.f32 %v10655, %v10731
      %v10816 = vadd.f32 %v10656, %v10733
      %v10817 = vadd.f32 %v10657, %v10735
      %v10818 = vadd.f32 %v10658, %v10737
      %v10819 = vadd.f32 %v10659, %v10739
      %vm10820 = vcmask 64512
      %10821 = vst.msk [vmem:[%s170] sm:$0xff] %vm10820, %v10780
      %10822 = vst.msk [vmem:[%s170 + $0x8] sm:$0xff] %vm10820, %v10781
      %10823 = vst.msk [vmem:[%s170 + $0x10] sm:$0xff] %vm10820, %v10782
      %10824 = vst.msk [vmem:[%s170 + $0x18] sm:$0xff] %vm10820, %v10783
      %10825 = vst.msk [vmem:[%s170 + $0x20] sm:$0xff] %vm10820, %v10784
      %10826 = vst.msk [vmem:[%s170 + $0x28] sm:$0xff] %vm10820, %v10785
      %10827 = vst.msk [vmem:[%s170 + $0x30] sm:$0xff] %vm10820, %v10786
      %10828 = vst.msk [vmem:[%s170 + $0x38] sm:$0xff] %vm10820, %v10787
      %10829 = vst.msk [vmem:[%s170 + $0x40] sm:$0xff] %vm10820, %v10788
      %10830 = vst.msk [vmem:[%s170 + $0x48] sm:$0xff] %vm10820, %v10789
      %10831 = vst.msk [vmem:[%s170 + $0x50] sm:$0xff] %vm10820, %v10790
      %10832 = vst.msk [vmem:[%s170 + $0x58] sm:$0xff] %vm10820, %v10791
      %10833 = vst.msk [vmem:[%s170 + $0x60] sm:$0xff] %vm10820, %v10792
      %10834 = vst.msk [vmem:[%s170 + $0x68] sm:$0xff] %vm10820, %v10793
      %10835 = vst.msk [vmem:[%s170 + $0x70] sm:$0xff] %vm10820, %v10794
      %10836 = vst.msk [vmem:[%s170 + $0x78] sm:$0xff] %vm10820, %v10795
      %10837 = vst.msk [vmem:[%s170 + $0x80] sm:$0xff] %vm10820, %v10796
      %10838 = vst.msk [vmem:[%s170 + $0x88] sm:$0xff] %vm10820, %v10797
      %10839 = vst.msk [vmem:[%s170 + $0x90] sm:$0xff] %vm10820, %v10798
      %10840 = vst.msk [vmem:[%s170 + $0x98] sm:$0xff] %vm10820, %v10799
      %10841 = vst.msk [vmem:[%s170 + $0xa0] sm:$0xff] %vm10820, %v10800
      %10842 = vst.msk [vmem:[%s170 + $0xa8] sm:$0xff] %vm10820, %v10801
      %10843 = vst.msk [vmem:[%s170 + $0xb0] sm:$0xff] %vm10820, %v10802
      %10844 = vst.msk [vmem:[%s170 + $0xb8] sm:$0xff] %vm10820, %v10803
      %10845 = vst.msk [vmem:[%s170 + $0xc0] sm:$0xff] %vm10820, %v10804
      %10846 = vst.msk [vmem:[%s170 + $0xc8] sm:$0xff] %vm10820, %v10805
      %10847 = vst.msk [vmem:[%s170 + $0xd0] sm:$0xff] %vm10820, %v10806
      %10848 = vst.msk [vmem:[%s170 + $0xd8] sm:$0xff] %vm10820, %v10807
      %10849 = vst.msk [vmem:[%s170 + $0xe0] sm:$0xff] %vm10820, %v10808
      %10850 = vst.msk [vmem:[%s170 + $0xe8] sm:$0xff] %vm10820, %v10809
      %10851 = vst.msk [vmem:[%s170 + $0xf0] sm:$0xff] %vm10820, %v10810
      %10852 = vst.msk [vmem:[%s170 + $0xf8] sm:$0xff] %vm10820, %v10811
      %10853 = vst.msk [vmem:[%s170 + $0x100] sm:$0xff] %vm10820, %v10812
      %10854 = vst.msk [vmem:[%s170 + $0x108] sm:$0xff] %vm10820, %v10813
      %10855 = vst.msk [vmem:[%s170 + $0x110] sm:$0xff] %vm10820, %v10814
      %10856 = vst.msk [vmem:[%s170 + $0x118] sm:$0xff] %vm10820, %v10815
      %10857 = vst.msk [vmem:[%s170 + $0x120] sm:$0xff] %vm10820, %v10816
      %10858 = vst.msk [vmem:[%s170 + $0x128] sm:$0xff] %vm10820, %v10817
      %10859 = vst.msk [vmem:[%s170 + $0x130] sm:$0xff] %vm10820, %v10818
      %10860 = vst.msk [vmem:[%s170 + $0x138] sm:$0xff] %vm10820, %v10819
      %p10861 = scmp.lt.s32.totalorder %s14, 1
      %s10862 = scalar_select %p10861, %s14, 1
      %s10863 = smul.addr %s10862, 40
      %s10864 = smul.addr %s10863, 8
      %s10865 = scalar_lea.vmem %s3, %s10864
      // Predicated region
      $region33: #{tpu_custom_call.1} parent=31 // pred_check
        %p10866 = pneg %p100
      $region34: #{tpu_custom_call.1} parent=31 // pred_check_branch
        %10868 = sbr.rel (%p10866) target = $region36
      $region35: #{tpu_custom_call.1} parent=31 // pred_region
        _
      $region36: #{tpu_custom_call.1} parent=31 // pred_fallthru
        _
    $region32: #{tpu_custom_call.1} parent=5 // pred_fallthru
      _
    %p10869 = scmp.le.s32.totalorder 2, %s9
    // Predicated region
    $region37: #{tpu_custom_call.1} parent=5 // pred_check
      %p10870 = pneg %p10869
    $region38: #{tpu_custom_call.1} parent=5 // pred_check_branch
      %10872 = sbr.rel (%p10870) target = $region40
    $region39: #{tpu_custom_call.1} parent=5 // pred_region
      %s10873 = ssub.s32 %s9, 2
      // Predicated region
      $region41: #{tpu_custom_call.1} parent=39 // pred_check
        %p10874 = pneg %p106
      $region42: #{tpu_custom_call.1} parent=39 // pred_check_branch
        %10876 = sbr.rel (%p10874) target = $region44
      $region43: #{tpu_custom_call.1} parent=39 // pred_region
        %p10877 = scmp.lt.s32.totalorder %s15, 1
        %s10878 = scalar_select %p10877, %s15, 1
        %s10879 = smul.addr %s10878, 40
        %s10880 = smul.addr %s10879, 8
        %s10881 = scalar_lea.vmem %s3, %s10880
      $region44: #{tpu_custom_call.1} parent=39 // pred_fallthru
        _
    $region40: #{tpu_custom_call.1} parent=5 // pred_fallthru
      _
  $region6: #{tpu_custom_call.1} parent=0 // loop_footer
    %s13 = sadd.s32 1, %s9
  $region7: #{tpu_custom_call.1} parent=0 // loop_footer_branch
    %8 = sbr.rel target = $region3
  $region8: #{tpu_custom_call.1} parent=0 // loop_exit
    _

</llo_original>
